<compile_context>
chip_gen: v5e
topology: v5e:2x2
jax: 0.10.0
libtpu: 0.0.40
codegen_flags: <defaults>
</compile_context>

<pallas_src>
import functools
import numpy as np
import jax
import jax.numpy as jnp
from jax.experimental import pallas as pl
from jax.experimental.pallas import tpu as pltpu

NUM_ENC = 4          # four parallel encoders
NUM_LAYERS = 5       # hidden Linear+BN+Dropout+ELU blocks per encoder
BN_EPS = 1e-5

# IVIM parameter ranges (from the PyTorch forward)
DMIN, DMAX = 0.0, 0.005
FMIN, FMAX = 0.0, 0.7
DPMIN, DPMAX = 0.005, 0.7
S0MIN, S0MAX = 0.8, 1.2

DEFAULT_TILE_N = 2048   # lane-dense voxel tile; fits VMEM on v5e/v6e/v7x


def _round_up(v, m):
    return ((v + m - 1) // m) * m


def _elu(x):
    # clamp exp arg so the discarded branch never overflows to inf
    return jnp.where(x > 0, x, jnp.exp(jnp.minimum(x, 0.0)) - 1.0)


def net_split_kernel(bv_ref, xT_ref, w0_ref, b0_ref, wl_ref, bl_ref, wf_ref, bf_ref,
                     xpredT_ref, paramsT_ref):
    # bv_ref:      (B, 1)                 b-values (column vector)
    # xT_ref:      (B, TILE_N)            transposed signal tile (lane-dense)
    # w0_ref:      (4B, B)                fused, BN-folded, transposed layer-0 weight
    # b0_ref:      (4B, 1)
    # wl_ref:      (4, 4B, 4B)            fused block-diagonal hidden layers 1..4
    # bl_ref:      (4, 4B, 1)
    # wf_ref:      (4, 4B)                fused final projection (all 4 params)
    # bf_ref:      (4, 1)
    # xpredT_ref:  (B, TILE_N)
    # paramsT_ref: (4, TILE_N)            rows: Dp, Dt, Fp, S0
    h = xT_ref[...]                                                     # (B, T)

    # fused layer 0 for all four encoders: (4B, B) @ (B, T)
    h = jnp.dot(w0_ref[...], h, preferred_element_type=jnp.float32) + b0_ref[...]
    h = _elu(h)

    # fused block-diagonal hidden layers (BN already folded into W', b')
    for l in range(NUM_LAYERS - 1):
        h = jnp.dot(wl_ref[l], h, preferred_element_type=jnp.float32) + bl_ref[l]
        h = _elu(h)

    # final projection: one (4, 4B) @ (4B, T) matmul -> all 4 raw params
    p = jnp.dot(wf_ref[...], h, preferred_element_type=jnp.float32) + bf_ref[...]

    # sigmoid via EUP: exp + approximate reciprocal (frees VPU divide)
    sig = pl.reciprocal(1.0 + jnp.exp(-p), approx=True)                 # (4, T)

    Dp = DPMIN + sig[0:1, :] * (DPMAX - DPMIN)
    Dt = DMIN + sig[1:2, :] * (DMAX - DMIN)
    Fp = FMIN + sig[2:3, :] * (FMAX - FMIN)
    S0 = S0MIN + sig[3:4, :] * (S0MAX - S0MIN)

    bv = bv_ref[...]                                                    # (B, 1)
    xpredT_ref[...] = S0 * (Fp * jnp.exp(-bv * Dp) + (1.0 - Fp) * jnp.exp(-bv * Dt))

    paramsT_ref[0:1, :] = Dp
    paramsT_ref[1:2, :] = Dt
    paramsT_ref[2:3, :] = Fp
    paramsT_ref[3:4, :] = S0


def _fold_and_fuse(p):
    """Fold eval-mode BatchNorm into the Linear layers and fuse the 4 encoders
    into one block-diagonal network, pre-transposed for the (F, TILE_N) layout."""
    w, bias = p["w"], p["bias"]                        # (4,5,B,B), (4,5,1,B)
    gamma, beta, mu, var = p["gamma"], p["beta"], p["mu"], p["var"]
    B = w.shape[-1]
    F = NUM_ENC * B

    scale = gamma * jax.lax.rsqrt(var + BN_EPS)        # (4,5,1,B) over output axis
    w_fold = w * scale                                 # scales output columns
    b_fold = (bias - mu) * scale + beta                # (4,5,1,B)

    # layer 0: same input x for every encoder -> concat output blocks: (B, 4B)
    w0 = jnp.concatenate([w_fold[e, 0] for e in range(NUM_ENC)], axis=1)
    w0_t = w0.T                                        # (4B, B)
    b0 = jnp.concatenate([b_fold[e, 0] for e in range(NUM_ENC)], axis=1).reshape(F, 1)

    # hidden layers 1..4: block-diagonal (4B, 4B)
    wl_t, bl = [], []
    for l in range(1, NUM_LAYERS):
        blk = jnp.zeros((F, F), jnp.float32)
        for e in range(NUM_ENC):
            blk = blk.at[e * B:(e + 1) * B, e * B:(e + 1) * B].set(w_fold[e, l])
        wl_t.append(blk.T)
        bl.append(jnp.concatenate([b_fold[e, l] for e in range(NUM_ENC)],
                                  axis=1).reshape(F, 1))
    wl_t = jnp.stack(wl_t)                             # (4, 4B, 4B)
    bl = jnp.stack(bl)                                 # (4, 4B, 1)

    # final projection: (4, 4B); row e holds encoder e's (B,) final weight
    wf_t = jnp.zeros((NUM_ENC, F), jnp.float32)
    for e in range(NUM_ENC):
        wf_t = wf_t.at[e, e * B:(e + 1) * B].set(p["wf"][e, :, 0])
    bf = p["bf"].reshape(NUM_ENC, 1)                   # (4, 1)

    return w0_t, b0, wl_t, bl, wf_t, bf


@functools.partial(jax.jit, static_argnames=("tile_n",))
def net_split_forward(x, b_values, params, tile_n=DEFAULT_TILE_N):
    N, B = x.shape
    F = NUM_ENC * B
    w0_t, b0, wl_t, bl, wf_t, bf = _fold_and_fuse(params)

    # lane-dense tiling over the voxel axis
    n128 = max(_round_up(N, 128), 128)
    tile = min(tile_n, n128)                           # always a multiple of 128
    n_pad = _round_up(N, tile)
    grid = (n_pad // tile,)

    xT = jnp.pad(x.astype(jnp.float32), ((0, n_pad - N), (0, 0))).T     # (B, n_pad)
    bv = jnp.reshape(b_values.astype(jnp.float32), (B, 1))

    xpredT, paramsT = pl.pallas_call(
        net_split_kernel,
        out_shape=(jax.ShapeDtypeStruct((B, n_pad), jnp.float32),
                   jax.ShapeDtypeStruct((NUM_ENC, n_pad), jnp.float32)),
        grid_spec=pltpu.PrefetchScalarGridSpec(
            num_scalar_prefetch=0,
            grid=grid,
            in_specs=[
                pl.BlockSpec((B, 1), lambda i: (0, 0)),                   # b-values
                pl.BlockSpec((B, tile), lambda i: (0, i)),                # x^T tile
                pl.BlockSpec((F, B), lambda i: (0, 0)),                   # w0^T
                pl.BlockSpec((F, 1), lambda i: (0, 0)),                   # b0
                pl.BlockSpec((NUM_LAYERS - 1, F, F), lambda i: (0, 0, 0)),  # W^T 1..4
                pl.BlockSpec((NUM_LAYERS - 1, F, 1), lambda i: (0, 0, 0)),  # b 1..4
                pl.BlockSpec((NUM_ENC, F), lambda i: (0, 0)),             # Wf^T
                pl.BlockSpec((NUM_ENC, 1), lambda i: (0, 0)),             # bf
            ],
            out_specs=[
                pl.BlockSpec((B, tile), lambda i: (0, i)),                # X_pred^T
                pl.BlockSpec((NUM_ENC, tile), lambda i: (0, i)),          # params
            ],
        ),
        compiler_params=pltpu.CompilerParams(
            dimension_semantics=("parallel",)),
    )(bv, xT, w0_t, b0, wl_t, bl, wf_t, bf)

    x_pred = xpredT[:, :N].T                           # (N, B)
    Dp = paramsT[0:1, :N].T                            # (N, 1)
    Dt = paramsT[1:2, :N].T
    Fp = paramsT[2:3, :N].T
    S0 = paramsT[3:4, :N].T
    return x_pred, Dp, Dt, Fp, S0


def init_params(key, B):
    """Deterministic PyTorch-style init (uniform +-1/sqrt(fan_in) for linears)."""
    ks = jax.random.split(key, 10)
    bound = 1.0 / np.sqrt(B)
    w = jax.random.uniform(ks[0], (NUM_ENC, NUM_LAYERS, B, B),
                           minval=-bound, maxval=bound, dtype=jnp.float32)
    bias = jax.random.uniform(ks[1], (NUM_ENC, NUM_LAYERS, 1, B),
                              minval=-bound, maxval=bound, dtype=jnp.float32)
    gamma = jnp.ones((NUM_ENC, NUM_LAYERS, 1, B), jnp.float32)
    beta = jnp.zeros((NUM_ENC, NUM_LAYERS, 1, B), jnp.float32)
    mu = 0.1 * jax.random.normal(ks[2], (NUM_ENC, NUM_LAYERS, 1, B), jnp.float32)
    var = jax.random.uniform(ks[3], (NUM_ENC, NUM_LAYERS, 1, B),
                             minval=0.5, maxval=1.5, dtype=jnp.float32)
    wf = jax.random.uniform(ks[4], (NUM_ENC, B, 1),
                            minval=-bound, maxval=bound, dtype=jnp.float32)
    bf = jax.random.uniform(ks[5], (NUM_ENC, 1, 1),
                            minval=-bound, maxval=bound, dtype=jnp.float32)
    return dict(w=w, bias=bias, gamma=gamma, beta=beta, mu=mu, var=var,
                wf=wf, bf=bf)


def reference_forward(x, b_values, p):
    """Pure-JAX reference of the same (eval-mode) forward, un-fused params."""
    params = []
    for e in range(NUM_ENC):
        h = x
        for l in range(NUM_LAYERS):
            h = h @ p["w"][e, l] + p["bias"][e, l]
            h = (h - p["mu"][e, l]) / jnp.sqrt(p["var"][e, l] + BN_EPS) \
                * p["gamma"][e, l] + p["beta"][e, l]
            h = jnp.where(h > 0, h, jnp.exp(jnp.minimum(h, 0.0)) - 1.0)
        params.append(h @ p["wf"][e] + p["bf"][e])
    p1, p2, p3, p4 = params
    Dp = DPMIN + jax.nn.sigmoid(p1) * (DPMAX - DPMIN)
    Dt = DMIN + jax.nn.sigmoid(p2) * (DMAX - DMIN)
    Fp = FMIN + jax.nn.sigmoid(p3) * (FMAX - FMIN)
    S0 = S0MIN + jax.nn.sigmoid(p4) * (S0MAX - S0MIN)
    x_pred = S0 * (Fp * jnp.exp(-b_values * Dp) + (1.0 - Fp) * jnp.exp(-b_values * Dt))
    return x_pred, Dp, Dt, Fp, S0


if __name__ == "__main__":
    key = jax.random.PRNGKey(0)
    kx, kp = jax.random.split(key)

    N = 5000   # voxels (padded to a multiple of the tile internally; grid > 1)
    B = 16     # number of non-zero b-values (len(b_values_no0))

    b_values = jnp.linspace(5.0, 1000.0, B, dtype=jnp.float32).reshape(1, B) / 1000.0
    x = jax.random.uniform(kx, (N, B), minval=0.1, maxval=1.0, dtype=jnp.float32)
    params = init_params(kp, B)

    outs = net_split_forward(x, b_values, params)
    outs = jax.block_until_ready(outs)

    refs = reference_forward(x, b_values, params)
    # slightly relaxed tolerance: approximate EUP reciprocal in the sigmoid
    for o, r in zip(outs, refs):
        np.testing.assert_allclose(np.asarray(o), np.asarray(r), rtol=5e-3, atol=1e-5)

    print("KERNEL_OK")
</pallas_src>

<mosaic_0001>
module attributes {stable_mosaic.version = 11 : i64} {
  func.func @net_split_kernel(%arg0: i32, %arg1: memref<16x1xf32, #tpu.memory_space<vmem>>, %arg2: memref<16x2048xf32, #tpu.memory_space<vmem>>, %arg3: memref<64x16xf32, #tpu.memory_space<vmem>>, %arg4: memref<64x1xf32, #tpu.memory_space<vmem>>, %arg5: memref<4x64x64xf32, #tpu.memory_space<vmem>>, %arg6: memref<4x64x1xf32, #tpu.memory_space<vmem>>, %arg7: memref<4x64xf32, #tpu.memory_space<vmem>>, %arg8: memref<4x1xf32, #tpu.memory_space<vmem>>, %arg9: memref<16x2048xf32, #tpu.memory_space<vmem>>, %arg10: memref<4x2048xf32, #tpu.memory_space<vmem>>) attributes {dimension_semantics = [#tpu.dimension_semantics<parallel>], iteration_bounds = array<i64: 3>, scalar_prefetch = 0 : i64, scratch_operands = 0 : i64, tpu.core_type = #tpu.core_type<tc>, window_params = [{pipeline_mode = #tpu.pipeline_mode<synchronous>, transform_indices = @transform_0, window_bounds = array<i64: 16, 1>}, {transform_indices = @transform_1, window_bounds = array<i64: 16, 2048>}, {pipeline_mode = #tpu.pipeline_mode<synchronous>, transform_indices = @transform_2, window_bounds = array<i64: 64, 16>}, {pipeline_mode = #tpu.pipeline_mode<synchronous>, transform_indices = @transform_3, window_bounds = array<i64: 64, 1>}, {pipeline_mode = #tpu.pipeline_mode<synchronous>, transform_indices = @transform_4, window_bounds = array<i64: 4, 64, 64>}, {pipeline_mode = #tpu.pipeline_mode<synchronous>, transform_indices = @transform_5, window_bounds = array<i64: 4, 64, 1>}, {pipeline_mode = #tpu.pipeline_mode<synchronous>, transform_indices = @transform_6, window_bounds = array<i64: 4, 64>}, {pipeline_mode = #tpu.pipeline_mode<synchronous>, transform_indices = @transform_7, window_bounds = array<i64: 4, 1>}, {transform_indices = @transform_8, window_bounds = array<i64: 16, 2048>}, {transform_indices = @transform_9, window_bounds = array<i64: 4, 2048>}]} {
    %c0 = arith.constant 0 : index
    %c0_0 = arith.constant 0 : index
    %0 = vector.load %arg2[%c0, %c0_0] : memref<16x2048xf32, #tpu.memory_space<vmem>>, vector<16x2048xf32>
    %c0_1 = arith.constant 0 : index
    %c0_2 = arith.constant 0 : index
    %1 = vector.load %arg3[%c0_1, %c0_2] : memref<64x16xf32, #tpu.memory_space<vmem>>, vector<64x16xf32>
    %cst = arith.constant dense<0.000000e+00> : vector<64x2048xf32>
    %2 = tpu.matmul %1, %0, %cst {dimension_numbers = #tpu.dot_dimension_numbers<[1], [0], [0], [1], [0, 0, 1, 1], [], []>} : vector<64x16xf32>, vector<16x2048xf32>, vector<64x2048xf32> -> vector<64x2048xf32>
    %c0_3 = arith.constant 0 : index
    %c0_4 = arith.constant 0 : index
    %3 = vector.load %arg4[%c0_3, %c0_4] : memref<64x1xf32, #tpu.memory_space<vmem>>, vector<64x1xf32>
    %4 = vector.broadcast %3 : vector<64x1xf32> to vector<64x2048xf32>
    %5 = arith.addf %2, %4 : vector<64x2048xf32>
    %cst_5 = arith.constant 0.000000e+00 : f32
    %6 = vector.broadcast %cst_5 : f32 to vector<64x2048xf32>
    %7 = arith.cmpf ogt, %5, %6 : vector<64x2048xf32>
    %cst_6 = arith.constant 0.000000e+00 : f32
    %8 = vector.broadcast %cst_6 : f32 to vector<64x2048xf32>
    %9 = arith.minimumf %5, %8 : vector<64x2048xf32>
    %10 = math.exp %9 : vector<64x2048xf32>
    %cst_7 = arith.constant 1.000000e+00 : f32
    %11 = vector.broadcast %cst_7 : f32 to vector<64x2048xf32>
    %12 = arith.subf %10, %11 : vector<64x2048xf32>
    %13 = arith.select %7, %5, %12 : vector<64x2048xi1>, vector<64x2048xf32>
    %c0_8 = arith.constant 0 : index
    %c0_9 = arith.constant 0 : index
    %c0_10 = arith.constant 0 : index
    %14 = vector.load %arg5[%c0_8, %c0_9, %c0_10] : memref<4x64x64xf32, #tpu.memory_space<vmem>>, vector<1x64x64xf32>
    %15 = vector.shape_cast %14 : vector<1x64x64xf32> to vector<64x64xf32>
    %cst_11 = arith.constant dense<0.000000e+00> : vector<64x2048xf32>
    %16 = tpu.matmul %15, %13, %cst_11 {dimension_numbers = #tpu.dot_dimension_numbers<[1], [0], [0], [1], [0, 0, 1, 1], [], []>} : vector<64x64xf32>, vector<64x2048xf32>, vector<64x2048xf32> -> vector<64x2048xf32>
    %c0_12 = arith.constant 0 : index
    %c0_13 = arith.constant 0 : index
    %c0_14 = arith.constant 0 : index
    %17 = vector.load %arg6[%c0_12, %c0_13, %c0_14] : memref<4x64x1xf32, #tpu.memory_space<vmem>>, vector<1x64x1xf32>
    %18 = vector.shape_cast %17 : vector<1x64x1xf32> to vector<64x1xf32>
    %19 = vector.broadcast %18 : vector<64x1xf32> to vector<64x2048xf32>
    %20 = arith.addf %16, %19 : vector<64x2048xf32>
    %cst_15 = arith.constant 0.000000e+00 : f32
    %21 = vector.broadcast %cst_15 : f32 to vector<64x2048xf32>
    %22 = arith.cmpf ogt, %20, %21 : vector<64x2048xf32>
    %cst_16 = arith.constant 0.000000e+00 : f32
    %23 = vector.broadcast %cst_16 : f32 to vector<64x2048xf32>
    %24 = arith.minimumf %20, %23 : vector<64x2048xf32>
    %25 = math.exp %24 : vector<64x2048xf32>
    %cst_17 = arith.constant 1.000000e+00 : f32
    %26 = vector.broadcast %cst_17 : f32 to vector<64x2048xf32>
    %27 = arith.subf %25, %26 : vector<64x2048xf32>
    %28 = arith.select %22, %20, %27 : vector<64x2048xi1>, vector<64x2048xf32>
    %c1 = arith.constant 1 : index
    %c0_18 = arith.constant 0 : index
    %c0_19 = arith.constant 0 : index
    %29 = vector.load %arg5[%c1, %c0_18, %c0_19] : memref<4x64x64xf32, #tpu.memory_space<vmem>>, vector<1x64x64xf32>
    %30 = vector.shape_cast %29 : vector<1x64x64xf32> to vector<64x64xf32>
    %cst_20 = arith.constant dense<0.000000e+00> : vector<64x2048xf32>
    %31 = tpu.matmul %30, %28, %cst_20 {dimension_numbers = #tpu.dot_dimension_numbers<[1], [0], [0], [1], [0, 0, 1, 1], [], []>} : vector<64x64xf32>, vector<64x2048xf32>, vector<64x2048xf32> -> vector<64x2048xf32>
    %c1_21 = arith.constant 1 : index
    %c0_22 = arith.constant 0 : index
    %c0_23 = arith.constant 0 : index
    %32 = vector.load %arg6[%c1_21, %c0_22, %c0_23] : memref<4x64x1xf32, #tpu.memory_space<vmem>>, vector<1x64x1xf32>
    %33 = vector.shape_cast %32 : vector<1x64x1xf32> to vector<64x1xf32>
    %34 = vector.broadcast %33 : vector<64x1xf32> to vector<64x2048xf32>
    %35 = arith.addf %31, %34 : vector<64x2048xf32>
    %cst_24 = arith.constant 0.000000e+00 : f32
    %36 = vector.broadcast %cst_24 : f32 to vector<64x2048xf32>
    %37 = arith.cmpf ogt, %35, %36 : vector<64x2048xf32>
    %cst_25 = arith.constant 0.000000e+00 : f32
    %38 = vector.broadcast %cst_25 : f32 to vector<64x2048xf32>
    %39 = arith.minimumf %35, %38 : vector<64x2048xf32>
    %40 = math.exp %39 : vector<64x2048xf32>
    %cst_26 = arith.constant 1.000000e+00 : f32
    %41 = vector.broadcast %cst_26 : f32 to vector<64x2048xf32>
    %42 = arith.subf %40, %41 : vector<64x2048xf32>
    %43 = arith.select %37, %35, %42 : vector<64x2048xi1>, vector<64x2048xf32>
    %c2 = arith.constant 2 : index
    %c0_27 = arith.constant 0 : index
    %c0_28 = arith.constant 0 : index
    %44 = vector.load %arg5[%c2, %c0_27, %c0_28] : memref<4x64x64xf32, #tpu.memory_space<vmem>>, vector<1x64x64xf32>
    %45 = vector.shape_cast %44 : vector<1x64x64xf32> to vector<64x64xf32>
    %cst_29 = arith.constant dense<0.000000e+00> : vector<64x2048xf32>
    %46 = tpu.matmul %45, %43, %cst_29 {dimension_numbers = #tpu.dot_dimension_numbers<[1], [0], [0], [1], [0, 0, 1, 1], [], []>} : vector<64x64xf32>, vector<64x2048xf32>, vector<64x2048xf32> -> vector<64x2048xf32>
    %c2_30 = arith.constant 2 : index
    %c0_31 = arith.constant 0 : index
    %c0_32 = arith.constant 0 : index
    %47 = vector.load %arg6[%c2_30, %c0_31, %c0_32] : memref<4x64x1xf32, #tpu.memory_space<vmem>>, vector<1x64x1xf32>
    %48 = vector.shape_cast %47 : vector<1x64x1xf32> to vector<64x1xf32>
    %49 = vector.broadcast %48 : vector<64x1xf32> to vector<64x2048xf32>
    %50 = arith.addf %46, %49 : vector<64x2048xf32>
    %cst_33 = arith.constant 0.000000e+00 : f32
    %51 = vector.broadcast %cst_33 : f32 to vector<64x2048xf32>
    %52 = arith.cmpf ogt, %50, %51 : vector<64x2048xf32>
    %cst_34 = arith.constant 0.000000e+00 : f32
    %53 = vector.broadcast %cst_34 : f32 to vector<64x2048xf32>
    %54 = arith.minimumf %50, %53 : vector<64x2048xf32>
    %55 = math.exp %54 : vector<64x2048xf32>
    %cst_35 = arith.constant 1.000000e+00 : f32
    %56 = vector.broadcast %cst_35 : f32 to vector<64x2048xf32>
    %57 = arith.subf %55, %56 : vector<64x2048xf32>
    %58 = arith.select %52, %50, %57 : vector<64x2048xi1>, vector<64x2048xf32>
    %c3 = arith.constant 3 : index
    %c0_36 = arith.constant 0 : index
    %c0_37 = arith.constant 0 : index
    %59 = vector.load %arg5[%c3, %c0_36, %c0_37] : memref<4x64x64xf32, #tpu.memory_space<vmem>>, vector<1x64x64xf32>
    %60 = vector.shape_cast %59 : vector<1x64x64xf32> to vector<64x64xf32>
    %cst_38 = arith.constant dense<0.000000e+00> : vector<64x2048xf32>
    %61 = tpu.matmul %60, %58, %cst_38 {dimension_numbers = #tpu.dot_dimension_numbers<[1], [0], [0], [1], [0, 0, 1, 1], [], []>} : vector<64x64xf32>, vector<64x2048xf32>, vector<64x2048xf32> -> vector<64x2048xf32>
    %c3_39 = arith.constant 3 : index
    %c0_40 = arith.constant 0 : index
    %c0_41 = arith.constant 0 : index
    %62 = vector.load %arg6[%c3_39, %c0_40, %c0_41] : memref<4x64x1xf32, #tpu.memory_space<vmem>>, vector<1x64x1xf32>
    %63 = vector.shape_cast %62 : vector<1x64x1xf32> to vector<64x1xf32>
    %64 = vector.broadcast %63 : vector<64x1xf32> to vector<64x2048xf32>
    %65 = arith.addf %61, %64 : vector<64x2048xf32>
    %cst_42 = arith.constant 0.000000e+00 : f32
    %66 = vector.broadcast %cst_42 : f32 to vector<64x2048xf32>
    %67 = arith.cmpf ogt, %65, %66 : vector<64x2048xf32>
    %cst_43 = arith.constant 0.000000e+00 : f32
    %68 = vector.broadcast %cst_43 : f32 to vector<64x2048xf32>
    %69 = arith.minimumf %65, %68 : vector<64x2048xf32>
    %70 = math.exp %69 : vector<64x2048xf32>
    %cst_44 = arith.constant 1.000000e+00 : f32
    %71 = vector.broadcast %cst_44 : f32 to vector<64x2048xf32>
    %72 = arith.subf %70, %71 : vector<64x2048xf32>
    %73 = arith.select %67, %65, %72 : vector<64x2048xi1>, vector<64x2048xf32>
    %c0_45 = arith.constant 0 : index
    %c0_46 = arith.constant 0 : index
    %74 = vector.load %arg7[%c0_45, %c0_46] : memref<4x64xf32, #tpu.memory_space<vmem>>, vector<4x64xf32>
    %cst_47 = arith.constant dense<0.000000e+00> : vector<4x2048xf32>
    %75 = tpu.matmul %74, %73, %cst_47 {dimension_numbers = #tpu.dot_dimension_numbers<[1], [0], [0], [1], [0, 0, 1, 1], [], []>} : vector<4x64xf32>, vector<64x2048xf32>, vector<4x2048xf32> -> vector<4x2048xf32>
    %c0_48 = arith.constant 0 : index
    %c0_49 = arith.constant 0 : index
    %76 = vector.load %arg8[%c0_48, %c0_49] : memref<4x1xf32, #tpu.memory_space<vmem>>, vector<4x1xf32>
    %77 = vector.broadcast %76 : vector<4x1xf32> to vector<4x2048xf32>
    %78 = arith.addf %75, %77 : vector<4x2048xf32>
    %cst_50 = arith.constant 0.000000e+00 : f32
    %79 = vector.broadcast %cst_50 : f32 to vector<4x2048xf32>
    %80 = arith.subf %79, %78 : vector<4x2048xf32>
    %81 = math.exp %80 : vector<4x2048xf32>
    %cst_51 = arith.constant 1.000000e+00 : f32
    %82 = vector.broadcast %cst_51 : f32 to vector<4x2048xf32>
    %83 = arith.addf %82, %81 : vector<4x2048xf32>
    %84 = tpu.reciprocal %83 {approx = true} : vector<4x2048xf32> -> vector<4x2048xf32>
    %85 = vector.extract_strided_slice %84 {offsets = [0, 0], sizes = [1, 2048], strides = [1, 1]} : vector<4x2048xf32> to vector<1x2048xf32>
    %cst_52 = arith.constant 0.694999992 : f32
    %86 = vector.broadcast %cst_52 : f32 to vector<1x2048xf32>
    %87 = arith.mulf %85, %86 : vector<1x2048xf32>
    %cst_53 = arith.constant 5.000000e-03 : f32
    %88 = vector.broadcast %cst_53 : f32 to vector<1x2048xf32>
    %89 = arith.addf %88, %87 : vector<1x2048xf32>
    %90 = vector.extract_strided_slice %84 {offsets = [1, 0], sizes = [1, 2048], strides = [1, 1]} : vector<4x2048xf32> to vector<1x2048xf32>
    %cst_54 = arith.constant 5.000000e-03 : f32
    %91 = vector.broadcast %cst_54 : f32 to vector<1x2048xf32>
    %92 = arith.mulf %90, %91 : vector<1x2048xf32>
    %cst_55 = arith.constant 0.000000e+00 : f32
    %93 = vector.broadcast %cst_55 : f32 to vector<1x2048xf32>
    %94 = arith.addf %93, %92 : vector<1x2048xf32>
    %95 = vector.extract_strided_slice %84 {offsets = [2, 0], sizes = [1, 2048], strides = [1, 1]} : vector<4x2048xf32> to vector<1x2048xf32>
    %cst_56 = arith.constant 0.699999988 : f32
    %96 = vector.broadcast %cst_56 : f32 to vector<1x2048xf32>
    %97 = arith.mulf %95, %96 : vector<1x2048xf32>
    %cst_57 = arith.constant 0.000000e+00 : f32
    %98 = vector.broadcast %cst_57 : f32 to vector<1x2048xf32>
    %99 = arith.addf %98, %97 : vector<1x2048xf32>
    %100 = vector.extract_strided_slice %84 {offsets = [3, 0], sizes = [1, 2048], strides = [1, 1]} : vector<4x2048xf32> to vector<1x2048xf32>
    %cst_58 = arith.constant 4.000000e-01 : f32
    %101 = vector.broadcast %cst_58 : f32 to vector<1x2048xf32>
    %102 = arith.mulf %100, %101 : vector<1x2048xf32>
    %cst_59 = arith.constant 8.000000e-01 : f32
    %103 = vector.broadcast %cst_59 : f32 to vector<1x2048xf32>
    %104 = arith.addf %103, %102 : vector<1x2048xf32>
    %c0_60 = arith.constant 0 : index
    %c0_61 = arith.constant 0 : index
    %105 = vector.load %arg1[%c0_60, %c0_61] : memref<16x1xf32, #tpu.memory_space<vmem>>, vector<16x1xf32>
    %cst_62 = arith.constant 0.000000e+00 : f32
    %106 = vector.broadcast %cst_62 : f32 to vector<16x1xf32>
    %107 = arith.subf %106, %105 : vector<16x1xf32>
    %108 = vector.broadcast %107 : vector<16x1xf32> to vector<16x2048xf32>
    %109 = vector.broadcast %89 : vector<1x2048xf32> to vector<16x2048xf32>
    %110 = arith.mulf %108, %109 : vector<16x2048xf32>
    %111 = math.exp %110 : vector<16x2048xf32>
    %112 = vector.broadcast %99 : vector<1x2048xf32> to vector<16x2048xf32>
    %113 = arith.mulf %112, %111 : vector<16x2048xf32>
    %cst_63 = arith.constant 1.000000e+00 : f32
    %114 = vector.broadcast %cst_63 : f32 to vector<1x2048xf32>
    %115 = arith.subf %114, %99 : vector<1x2048xf32>
    %cst_64 = arith.constant 0.000000e+00 : f32
    %116 = vector.broadcast %cst_64 : f32 to vector<16x1xf32>
    %117 = arith.subf %116, %105 : vector<16x1xf32>
    %118 = vector.broadcast %117 : vector<16x1xf32> to vector<16x2048xf32>
    %119 = vector.broadcast %94 : vector<1x2048xf32> to vector<16x2048xf32>
    %120 = arith.mulf %118, %119 : vector<16x2048xf32>
    %121 = math.exp %120 : vector<16x2048xf32>
    %122 = vector.broadcast %115 : vector<1x2048xf32> to vector<16x2048xf32>
    %123 = arith.mulf %122, %121 : vector<16x2048xf32>
    %124 = arith.addf %113, %123 : vector<16x2048xf32>
    %125 = vector.broadcast %104 : vector<1x2048xf32> to vector<16x2048xf32>
    %126 = arith.mulf %125, %124 : vector<16x2048xf32>
    %c0_65 = arith.constant 0 : index
    %c0_66 = arith.constant 0 : index
    %127 = vector.load %arg9[%c0_65, %c0_66] : memref<16x2048xf32, #tpu.memory_space<vmem>>, vector<16x2048xf32>
    tpu.vector_store %arg9[%c0_65, %c0_66], %126 {strides = array<i32>} : memref<16x2048xf32, #tpu.memory_space<vmem>>, vector<16x2048xf32>,
    %c0_67 = arith.constant 0 : index
    %c0_68 = arith.constant 0 : index
    %128 = vector.load %arg10[%c0_67, %c0_68] : memref<4x2048xf32, #tpu.memory_space<vmem>>, vector<1x2048xf32>
    tpu.vector_store %arg10[%c0_67, %c0_68], %89 {strides = array<i32>} : memref<4x2048xf32, #tpu.memory_space<vmem>>, vector<1x2048xf32>,
    %c1_69 = arith.constant 1 : index
    %c0_70 = arith.constant 0 : index
    %129 = vector.load %arg10[%c1_69, %c0_70] : memref<4x2048xf32, #tpu.memory_space<vmem>>, vector<1x2048xf32>
    tpu.vector_store %arg10[%c1_69, %c0_70], %94 {strides = array<i32>} : memref<4x2048xf32, #tpu.memory_space<vmem>>, vector<1x2048xf32>,
    %c2_71 = arith.constant 2 : index
    %c0_72 = arith.constant 0 : index
    %130 = vector.load %arg10[%c2_71, %c0_72] : memref<4x2048xf32, #tpu.memory_space<vmem>>, vector<1x2048xf32>
    tpu.vector_store %arg10[%c2_71, %c0_72], %99 {strides = array<i32>} : memref<4x2048xf32, #tpu.memory_space<vmem>>, vector<1x2048xf32>,
    %c3_73 = arith.constant 3 : index
    %c0_74 = arith.constant 0 : index
    %131 = vector.load %arg10[%c3_73, %c0_74] : memref<4x2048xf32, #tpu.memory_space<vmem>>, vector<1x2048xf32>
    tpu.vector_store %arg10[%c3_73, %c0_74], %104 {strides = array<i32>} : memref<4x2048xf32, #tpu.memory_space<vmem>>, vector<1x2048xf32>,
    return
  }
  func.func @transform_0(%arg0: i32) -> (i32, i32) {
    %c0_i32 = arith.constant 0 : i32
    %c0_i32_0 = arith.constant 0 : i32
    %c0_i32_1 = arith.constant 0 : i32
    return %c0_i32, %c0_i32_0 : i32, i32
  }
  func.func @transform_1(%arg0: i32) -> (i32, i32) {
    %c0_i32 = arith.constant 0 : i32
    %c0_i32_0 = arith.constant 0 : i32
    return %c0_i32, %arg0 : i32, i32
  }
  func.func @transform_2(%arg0: i32) -> (i32, i32) {
    %c0_i32 = arith.constant 0 : i32
    %c0_i32_0 = arith.constant 0 : i32
    %c0_i32_1 = arith.constant 0 : i32
    return %c0_i32, %c0_i32_0 : i32, i32
  }
  func.func @transform_3(%arg0: i32) -> (i32, i32) {
    %c0_i32 = arith.constant 0 : i32
    %c0_i32_0 = arith.constant 0 : i32
    %c0_i32_1 = arith.constant 0 : i32
    return %c0_i32, %c0_i32_0 : i32, i32
  }
  func.func @transform_4(%arg0: i32) -> (i32, i32, i32) {
    %c0_i32 = arith.constant 0 : i32
    %c0_i32_0 = arith.constant 0 : i32
    %c0_i32_1 = arith.constant 0 : i32
    %c0_i32_2 = arith.constant 0 : i32
    return %c0_i32, %c0_i32_0, %c0_i32_1 : i32, i32, i32
  }
  func.func @transform_5(%arg0: i32) -> (i32, i32, i32) {
    %c0_i32 = arith.constant 0 : i32
    %c0_i32_0 = arith.constant 0 : i32
    %c0_i32_1 = arith.constant 0 : i32
    %c0_i32_2 = arith.constant 0 : i32
    return %c0_i32, %c0_i32_0, %c0_i32_1 : i32, i32, i32
  }
  func.func @transform_6(%arg0: i32) -> (i32, i32) {
    %c0_i32 = arith.constant 0 : i32
    %c0_i32_0 = arith.constant 0 : i32
    %c0_i32_1 = arith.constant 0 : i32
    return %c0_i32, %c0_i32_0 : i32, i32
  }
  func.func @transform_7(%arg0: i32) -> (i32, i32) {
    %c0_i32 = arith.constant 0 : i32
    %c0_i32_0 = arith.constant 0 : i32
    %c0_i32_1 = arith.constant 0 : i32
    return %c0_i32, %c0_i32_0 : i32, i32
  }
  func.func @transform_8(%arg0: i32) -> (i32, i32) {
    %c0_i32 = arith.constant 0 : i32
    %c0_i32_0 = arith.constant 0 : i32
    return %c0_i32, %arg0 : i32, i32
  }
  func.func @transform_9(%arg0: i32) -> (i32, i32) {
    %c0_i32 = arith.constant 0 : i32
    %c0_i32_0 = arith.constant 0 : i32
    return %c0_i32, %arg0 : i32, i32
  }
}

</mosaic_0001>

<llo_original>
// kernel: net_split_forward.1
$region0: #{net_split_forward.1}
  #allocation0 [shape = 'u32[]', space=smem, size = 0x4, offset = 0x4, fixed_abs, tag = 'smem constant byte address 0x4 - core index']
  #allocation1 [shape = 'u32[72,128]{1,0:T(1,128)}', space=vmem, size = 0x9000, scoped, tag = 'internal scratch']
  %s0 = inlined_call_operand.vmem [shape: f32[16,1], index: 0, kind: input, shape index: {}]
  %s1 = inlined_call_operand.vmem [shape: f32[16,6144], index: 1, kind: input, shape index: {}]
  %s2 = inlined_call_operand.vmem [shape: f32[64,16], index: 2, kind: input, shape index: {}]
  %s3 = inlined_call_operand.vmem [shape: f32[64,1], index: 3, kind: input, shape index: {}]
  %s4 = inlined_call_operand.vmem [shape: f32[4,64,64], index: 4, kind: input, shape index: {}]
  %s5 = inlined_call_operand.vmem [shape: f32[4,64,1], index: 5, kind: input, shape index: {}]
  %s6 = inlined_call_operand.vmem [shape: f32[4,64], index: 6, kind: input, shape index: {}]
  %s7 = inlined_call_operand.vmem [shape: f32[4,1], index: 7, kind: input, shape index: {}]
  %s8 = inlined_call_operand.vmem [shape: f32[16,6144], index: 8, kind: output, shape index: {0}]
  %s9 = inlined_call_operand.vmem [shape: f32[4,6144], index: 9, kind: output, shape index: {1}]
  %10 = xla_tuple %s8, %s9
  %s11 = sld [smem:[#allocation0]]
  $region115: #{net_split_forward.1} parent=0
    _
  %s13 = ssub.s32 1, %s11
  %s14 = scalar_select 0, %s13, %s11
  $region1: #{net_split_forward.1} parent=0
    #allocation2 [shape = 'u8[262144]{0}', space=vmem, size = 0x40000, scoped, tag = 'input window, operand 1']
    #allocation3 [shape = 'u8[262144]{0}', space=vmem, size = 0x40000, scoped, tag = 'output window, operand 0']
    loop: start=0, step=1, limit=5
    $region2: #{net_split_forward.1} parent=1 // loop_pre_header
      _
    $region3: #{net_split_forward.1} parent=1 // loop_header
      %s16 = sphi 0, %s20
      %p17 = scmp.ge.s32.totalorder %s16, 5
      %s24 = sphi 0, %s24
      %s26 = sphi 0, %s24
      %s27 = sphi 0, %s26
      %s41 = sphi 0, %s27
      %s47 = sphi 0, %s49
      %s50 = sphi 0, %s47
      %s51 = sphi 0, %s50
      %s67 = sphi 0, %s51
      %s71 = sphi 0, %s71
      %s73 = sphi 0, %s71
      %s74 = sphi 0, %s73
      %s88 = sphi 0, %s74
      %s92 = sphi 0, %s92
      %s94 = sphi 0, %s92
      %s95 = sphi 0, %s94
      %s109 = sphi 0, %s95
      %s113 = sphi 0, %s113
      %s115 = sphi 0, %s113
      %s116 = sphi 0, %s115
      %s130 = sphi 0, %s116
      %s134 = sphi 0, %s134
      %s136 = sphi 0, %s134
      %s137 = sphi 0, %s136
      %s151 = sphi 0, %s137
      %s155 = sphi 0, %s155
      %s157 = sphi 0, %s155
      %s158 = sphi 0, %s157
      %s172 = sphi 0, %s158
      %s176 = sphi 0, %s176
      %s178 = sphi 0, %s176
      %s179 = sphi 0, %s178
      %s193 = sphi 0, %s179
      %s199 = sphi 0, %s201
      %s202 = sphi 0, %s199
      %s203 = sphi 0, %s202
      %s219 = sphi 0, %s203
      %s225 = sphi 0, %s227
      %s228 = sphi 0, %s225
      %s229 = sphi 0, %s228
      %s245 = sphi 0, %s229
    $region4: #{net_split_forward.1} parent=1 // loop_header_branch
      %19 = sbr.rel (%p17) target = $region8
    $region5: #{net_split_forward.1} parent=1 // loop_body
      %s21 = ssub.s32 %s16, 1
      %s22 = ssub.s32 %s16, 2
      %s23 = sadd.s32 %s16, 1
      %s25 = sadd.s32 %s24, 1
      %p28 = scmp.eq.s32.totalorder %s16, 2
      %p29 = scmp.ne.s32.totalorder %s24, %s26
      %p30 = scmp.eq.s32.totalorder %s16, 0
      %p31 = por %p29, %p30
      %p32 = scmp.ne.s32.totalorder %s24, %s26
      %p33 = scmp.eq.s32.totalorder %s21, 2
      %p34 = por %p32, %p33
      %p35 = scmp.ne.s32.totalorder %s26, %s27
      %p36 = scmp.eq.s32.totalorder %s21, 0
      %p37 = por %p35, %p36
      %p38 = scmp.ne.s32.totalorder %s26, %s27
      %p39 = scmp.eq.s32.totalorder %s22, 2
      %p40 = por %p38, %p39
      %p42 = scmp.ne.s32.totalorder %s27, %s41
      %p43 = scmp.eq.s32.totalorder %s22, 0
      %p44 = por %p42, %p43
      %s45 = ssub.s32 %s16, %s23
      %p46 = scmp.eq.s32.totalorder %s45, 0
      %s48 = sadd.s32 %s47, 1
      %s49 = scalar_select %p46, %s47, %s48
      %p52 = pneg %p46
      %p53 = scmp.eq.s32.totalorder %s16, 2
      %p54 = por %p52, %p53
      %p55 = scmp.ne.s32.totalorder %s47, %s50
      %p56 = scmp.eq.s32.totalorder %s16, 0
      %p57 = por %p55, %p56
      %p58 = scmp.ne.s32.totalorder %s47, %s50
      %p59 = scmp.eq.s32.totalorder %s21, 2
      %p60 = por %p58, %p59
      %p61 = scmp.ne.s32.totalorder %s50, %s51
      %p62 = scmp.eq.s32.totalorder %s21, 0
      %p63 = por %p61, %p62
      %p64 = scmp.ne.s32.totalorder %s50, %s51
      %p65 = scmp.eq.s32.totalorder %s22, 2
      %p66 = por %p64, %p65
      %p68 = scmp.ne.s32.totalorder %s51, %s67
      %p69 = scmp.eq.s32.totalorder %s22, 0
      %p70 = por %p68, %p69
      %s72 = sadd.s32 %s71, 1
      %p75 = scmp.eq.s32.totalorder %s16, 2
      %p76 = scmp.ne.s32.totalorder %s71, %s73
      %p77 = scmp.eq.s32.totalorder %s16, 0
      %p78 = por %p76, %p77
      %p79 = scmp.ne.s32.totalorder %s71, %s73
      %p80 = scmp.eq.s32.totalorder %s21, 2
      %p81 = por %p79, %p80
      %p82 = scmp.ne.s32.totalorder %s73, %s74
      %p83 = scmp.eq.s32.totalorder %s21, 0
      %p84 = por %p82, %p83
      %p85 = scmp.ne.s32.totalorder %s73, %s74
      %p86 = scmp.eq.s32.totalorder %s22, 2
      %p87 = por %p85, %p86
      %p89 = scmp.ne.s32.totalorder %s74, %s88
      %p90 = scmp.eq.s32.totalorder %s22, 0
      %p91 = por %p89, %p90
      %s93 = sadd.s32 %s92, 1
      %p96 = scmp.eq.s32.totalorder %s16, 2
      %p97 = scmp.ne.s32.totalorder %s92, %s94
      %p98 = scmp.eq.s32.totalorder %s16, 0
      %p99 = por %p97, %p98
      %p100 = scmp.ne.s32.totalorder %s92, %s94
      %p101 = scmp.eq.s32.totalorder %s21, 2
      %p102 = por %p100, %p101
      %p103 = scmp.ne.s32.totalorder %s94, %s95
      %p104 = scmp.eq.s32.totalorder %s21, 0
      %p105 = por %p103, %p104
      %p106 = scmp.ne.s32.totalorder %s94, %s95
      %p107 = scmp.eq.s32.totalorder %s22, 2
      %p108 = por %p106, %p107
      %p110 = scmp.ne.s32.totalorder %s95, %s109
      %p111 = scmp.eq.s32.totalorder %s22, 0
      %p112 = por %p110, %p111
      %s114 = sadd.s32 %s113, 1
      %p117 = scmp.eq.s32.totalorder %s16, 2
      %p118 = scmp.ne.s32.totalorder %s113, %s115
      %p119 = scmp.eq.s32.totalorder %s16, 0
      %p120 = por %p118, %p119
      %p121 = scmp.ne.s32.totalorder %s113, %s115
      %p122 = scmp.eq.s32.totalorder %s21, 2
      %p123 = por %p121, %p122
      %p124 = scmp.ne.s32.totalorder %s115, %s116
      %p125 = scmp.eq.s32.totalorder %s21, 0
      %p126 = por %p124, %p125
      %p127 = scmp.ne.s32.totalorder %s115, %s116
      %p128 = scmp.eq.s32.totalorder %s22, 2
      %p129 = por %p127, %p128
      %p131 = scmp.ne.s32.totalorder %s116, %s130
      %p132 = scmp.eq.s32.totalorder %s22, 0
      %p133 = por %p131, %p132
      %s135 = sadd.s32 %s134, 1
      %p138 = scmp.eq.s32.totalorder %s16, 2
      %p139 = scmp.ne.s32.totalorder %s134, %s136
      %p140 = scmp.eq.s32.totalorder %s16, 0
      %p141 = por %p139, %p140
      %p142 = scmp.ne.s32.totalorder %s134, %s136
      %p143 = scmp.eq.s32.totalorder %s21, 2
      %p144 = por %p142, %p143
      %p145 = scmp.ne.s32.totalorder %s136, %s137
      %p146 = scmp.eq.s32.totalorder %s21, 0
      %p147 = por %p145, %p146
      %p148 = scmp.ne.s32.totalorder %s136, %s137
      %p149 = scmp.eq.s32.totalorder %s22, 2
      %p150 = por %p148, %p149
      %p152 = scmp.ne.s32.totalorder %s137, %s151
      %p153 = scmp.eq.s32.totalorder %s22, 0
      %p154 = por %p152, %p153
      %s156 = sadd.s32 %s155, 1
      %p159 = scmp.eq.s32.totalorder %s16, 2
      %p160 = scmp.ne.s32.totalorder %s155, %s157
      %p161 = scmp.eq.s32.totalorder %s16, 0
      %p162 = por %p160, %p161
      %p163 = scmp.ne.s32.totalorder %s155, %s157
      %p164 = scmp.eq.s32.totalorder %s21, 2
      %p165 = por %p163, %p164
      %p166 = scmp.ne.s32.totalorder %s157, %s158
      %p167 = scmp.eq.s32.totalorder %s21, 0
      %p168 = por %p166, %p167
      %p169 = scmp.ne.s32.totalorder %s157, %s158
      %p170 = scmp.eq.s32.totalorder %s22, 2
      %p171 = por %p169, %p170
      %p173 = scmp.ne.s32.totalorder %s158, %s172
      %p174 = scmp.eq.s32.totalorder %s22, 0
      %p175 = por %p173, %p174
      %s177 = sadd.s32 %s176, 1
      %p180 = scmp.eq.s32.totalorder %s16, 2
      %p181 = scmp.ne.s32.totalorder %s176, %s178
      %p182 = scmp.eq.s32.totalorder %s16, 0
      %p183 = por %p181, %p182
      %p184 = scmp.ne.s32.totalorder %s176, %s178
      %p185 = scmp.eq.s32.totalorder %s21, 2
      %p186 = por %p184, %p185
      %p187 = scmp.ne.s32.totalorder %s178, %s179
      %p188 = scmp.eq.s32.totalorder %s21, 0
      %p189 = por %p187, %p188
      %p190 = scmp.ne.s32.totalorder %s178, %s179
      %p191 = scmp.eq.s32.totalorder %s22, 2
      %p192 = por %p190, %p191
      %p194 = scmp.ne.s32.totalorder %s179, %s193
      %p195 = scmp.eq.s32.totalorder %s22, 0
      %p196 = por %p194, %p195
      %s197 = ssub.s32 %s16, %s23
      %p198 = scmp.eq.s32.totalorder %s197, 0
      %s200 = sadd.s32 %s199, 1
      %s201 = scalar_select %p198, %s199, %s200
      %p204 = pneg %p198
      %p205 = scmp.eq.s32.totalorder %s16, 2
      %p206 = por %p204, %p205
      %p207 = scmp.ne.s32.totalorder %s199, %s202
      %p208 = scmp.eq.s32.totalorder %s16, 0
      %p209 = por %p207, %p208
      %p210 = scmp.ne.s32.totalorder %s199, %s202
      %p211 = scmp.eq.s32.totalorder %s21, 2
      %p212 = por %p210, %p211
      %p213 = scmp.ne.s32.totalorder %s202, %s203
      %p214 = scmp.eq.s32.totalorder %s21, 0
      %p215 = por %p213, %p214
      %p216 = scmp.ne.s32.totalorder %s202, %s203
      %p217 = scmp.eq.s32.totalorder %s22, 2
      %p218 = por %p216, %p217
      %p220 = scmp.ne.s32.totalorder %s203, %s219
      %p221 = scmp.eq.s32.totalorder %s22, 0
      %p222 = por %p220, %p221
      %s223 = ssub.s32 %s16, %s23
      %p224 = scmp.eq.s32.totalorder %s223, 0
      %s226 = sadd.s32 %s225, 1
      %s227 = scalar_select %p224, %s225, %s226
      %p230 = pneg %p224
      %p231 = scmp.eq.s32.totalorder %s16, 2
      %p232 = por %p230, %p231
      %p233 = scmp.ne.s32.totalorder %s225, %s228
      %p234 = scmp.eq.s32.totalorder %s16, 0
      %p235 = por %p233, %p234
      %p236 = scmp.ne.s32.totalorder %s225, %s228
      %p237 = scmp.eq.s32.totalorder %s21, 2
      %p238 = por %p236, %p237
      %p239 = scmp.ne.s32.totalorder %s228, %s229
      %p240 = scmp.eq.s32.totalorder %s21, 0
      %p241 = por %p239, %p240
      %p242 = scmp.ne.s32.totalorder %s228, %s229
      %p243 = scmp.eq.s32.totalorder %s22, 2
      %p244 = por %p242, %p243
      %p246 = scmp.ne.s32.totalorder %s229, %s245
      %p247 = scmp.eq.s32.totalorder %s22, 0
      %p248 = por %p246, %p247
      %p249 = scmp.le.s32.totalorder 1, %s16
      %p250 = scmp.lt.s32.totalorder %s16, 4
      %p251 = pnand %p249, %p250
      %p252 = pneg %p251
      // Predicated region
      $region9: #{net_split_forward.1} parent=5 // pred_check
        _
      $region10: #{net_split_forward.1} parent=5 // pred_check_branch
        %254 = sbr.rel (%p251) target = $region12
      $region11: #{net_split_forward.1} parent=5 // pred_region
        %s255 = ssub.s32 %s16, 1
        // Predicated region
        $region13: #{net_split_forward.1} parent=11 // pred_check
          %p256 = pneg %p37
        $region14: #{net_split_forward.1} parent=11 // pred_check_branch
          %258 = sbr.rel (%p256) target = $region16
        $region15: #{net_split_forward.1} parent=11 // pred_region
          _
        $region16: #{net_split_forward.1} parent=11 // pred_fallthru
          _
        // Predicated region
        $region17: #{net_split_forward.1} parent=11 // pred_check
          %p259 = pneg %p84
        $region18: #{net_split_forward.1} parent=11 // pred_check_branch
          %261 = sbr.rel (%p259) target = $region20
        $region19: #{net_split_forward.1} parent=11 // pred_region
          _
        $region20: #{net_split_forward.1} parent=11 // pred_fallthru
          _
        // Predicated region
        $region21: #{net_split_forward.1} parent=11 // pred_check
          %p262 = pneg %p105
        $region22: #{net_split_forward.1} parent=11 // pred_check_branch
          %264 = sbr.rel (%p262) target = $region24
        $region23: #{net_split_forward.1} parent=11 // pred_region
          _
        $region24: #{net_split_forward.1} parent=11 // pred_fallthru
          _
        // Predicated region
        $region25: #{net_split_forward.1} parent=11 // pred_check
          %p265 = pneg %p126
        $region26: #{net_split_forward.1} parent=11 // pred_check_branch
          %267 = sbr.rel (%p265) target = $region28
        $region27: #{net_split_forward.1} parent=11 // pred_region
          _
        $region28: #{net_split_forward.1} parent=11 // pred_fallthru
          _
        // Predicated region
        $region29: #{net_split_forward.1} parent=11 // pred_check
          %p268 = pneg %p147
        $region30: #{net_split_forward.1} parent=11 // pred_check_branch
          %270 = sbr.rel (%p268) target = $region32
        $region31: #{net_split_forward.1} parent=11 // pred_region
          _
        $region32: #{net_split_forward.1} parent=11 // pred_fallthru
          _
        // Predicated region
        $region33: #{net_split_forward.1} parent=11 // pred_check
          %p271 = pneg %p168
        $region34: #{net_split_forward.1} parent=11 // pred_check_branch
          %273 = sbr.rel (%p271) target = $region36
        $region35: #{net_split_forward.1} parent=11 // pred_region
          _
        $region36: #{net_split_forward.1} parent=11 // pred_fallthru
          _
        // Predicated region
        $region37: #{net_split_forward.1} parent=11 // pred_check
          %p274 = pneg %p189
        $region38: #{net_split_forward.1} parent=11 // pred_check_branch
          %276 = sbr.rel (%p274) target = $region40
        $region39: #{net_split_forward.1} parent=11 // pred_region
          _
        $region40: #{net_split_forward.1} parent=11 // pred_fallthru
          _
      $region12: #{net_split_forward.1} parent=5 // pred_fallthru
        _
      %p277 = scmp.lt.s32.totalorder %s16, 3
      // Predicated region
      $region41: #{net_split_forward.1} parent=5 // pred_check
        %p278 = pneg %p277
      $region42: #{net_split_forward.1} parent=5 // pred_check_branch
        %280 = sbr.rel (%p278) target = $region44
      $region43: #{net_split_forward.1} parent=5 // pred_region
        // Predicated region
        $region45: #{net_split_forward.1} parent=43 // pred_check
          %p281 = pneg %p57
        $region46: #{net_split_forward.1} parent=43 // pred_check_branch
          %283 = sbr.rel (%p281) target = $region48
        $region47: #{net_split_forward.1} parent=43 // pred_region
          %s284 = sand.u32 %s47, 1
          %s285 = sand.u32 %s47, 1
          %s286 = smul.addr %s285, 256
          %s287 = scalar_lea.vmem [#allocation2], %s286
          %s288 = smul.u32 16, %s16
          %s289 = smul.addr %s288, 8
          %s290 = scalar_lea.vmem %s1, %s289
          // Predicated region
          $region49: #{net_split_forward.1} parent=47 // pred_check
            _
          $region50: #{net_split_forward.1} parent=47 // pred_check_branch
            %292 = sbr.rel (0) target = $region52
          $region51: #{net_split_forward.1} parent=47 // pred_region
            // Predicated region
            $region53: #{net_split_forward.1} parent=51 // pred_check
              _
            $region54: #{net_split_forward.1} parent=51 // pred_check_branch
              %294 = sbr.rel (0) target = $region56
            $region55: #{net_split_forward.1} parent=51 // pred_region
              loop: start=0, step=1, limit=1
              $region57: #{net_split_forward.1} parent=55 // loop_pre_header
                _
              $region58: #{net_split_forward.1} parent=55 // loop_header
                %s296 = sphi 0, %s300
                %p297 = scmp.ge.s32.totalorder %s296, 1
                %s301 = sphi %s290, %s290
                %s302 = sphi %s287, %s287
              $region59: #{net_split_forward.1} parent=55 // loop_header_branch
                %299 = sbr.rel (%p297) target = $region63
              $region60: #{net_split_forward.1} parent=55 // loop_body
                %v303 = vld [vmem:[%s301] sm:$0xff]
                %304 = vst [vmem:[%s302] sm:$0xff] %v303
                %v305 = vld [vmem:[%s301 + $0x8] sm:$0xff]
                %306 = vst [vmem:[%s302 + $0x8] sm:$0xff] %v305
                %v307 = vld [vmem:[%s301 + $0x10] sm:$0xff]
                %308 = vst [vmem:[%s302 + $0x10] sm:$0xff] %v307
                %v309 = vld [vmem:[%s301 + $0x18] sm:$0xff]
                %310 = vst [vmem:[%s302 + $0x18] sm:$0xff] %v309
                %v311 = vld [vmem:[%s301 + $0x20] sm:$0xff]
                %312 = vst [vmem:[%s302 + $0x20] sm:$0xff] %v311
                %v313 = vld [vmem:[%s301 + $0x28] sm:$0xff]
                %314 = vst [vmem:[%s302 + $0x28] sm:$0xff] %v313
                %v315 = vld [vmem:[%s301 + $0x30] sm:$0xff]
                %316 = vst [vmem:[%s302 + $0x30] sm:$0xff] %v315
                %v317 = vld [vmem:[%s301 + $0x38] sm:$0xff]
                %318 = vst [vmem:[%s302 + $0x38] sm:$0xff] %v317
                %v319 = vld [vmem:[%s301 + $0x40] sm:$0xff]
                %320 = vst [vmem:[%s302 + $0x40] sm:$0xff] %v319
                %v321 = vld [vmem:[%s301 + $0x48] sm:$0xff]
                %322 = vst [vmem:[%s302 + $0x48] sm:$0xff] %v321
                %v323 = vld [vmem:[%s301 + $0x50] sm:$0xff]
                %324 = vst [vmem:[%s302 + $0x50] sm:$0xff] %v323
                %v325 = vld [vmem:[%s301 + $0x58] sm:$0xff]
                %326 = vst [vmem:[%s302 + $0x58] sm:$0xff] %v325
                %v327 = vld [vmem:[%s301 + $0x60] sm:$0xff]
                %328 = vst [vmem:[%s302 + $0x60] sm:$0xff] %v327
                %v329 = vld [vmem:[%s301 + $0x68] sm:$0xff]
                %330 = vst [vmem:[%s302 + $0x68] sm:$0xff] %v329
                %v331 = vld [vmem:[%s301 + $0x70] sm:$0xff]
                %332 = vst [vmem:[%s302 + $0x70] sm:$0xff] %v331
                %v333 = vld [vmem:[%s301 + $0x78] sm:$0xff]
                %334 = vst [vmem:[%s302 + $0x78] sm:$0xff] %v333
                %v335 = vld [vmem:[%s301 + $0x180] sm:$0xff]
                %336 = vst [vmem:[%s302 + $0x80] sm:$0xff] %v335
                %v337 = vld [vmem:[%s301 + $0x188] sm:$0xff]
                %338 = vst [vmem:[%s302 + $0x88] sm:$0xff] %v337
                %v339 = vld [vmem:[%s301 + $0x190] sm:$0xff]
                %340 = vst [vmem:[%s302 + $0x90] sm:$0xff] %v339
                %v341 = vld [vmem:[%s301 + $0x198] sm:$0xff]
                %342 = vst [vmem:[%s302 + $0x98] sm:$0xff] %v341
                %v343 = vld [vmem:[%s301 + $0x1a0] sm:$0xff]
                %344 = vst [vmem:[%s302 + $0xa0] sm:$0xff] %v343
                %v345 = vld [vmem:[%s301 + $0x1a8] sm:$0xff]
                %346 = vst [vmem:[%s302 + $0xa8] sm:$0xff] %v345
                %v347 = vld [vmem:[%s301 + $0x1b0] sm:$0xff]
                %348 = vst [vmem:[%s302 + $0xb0] sm:$0xff] %v347
                %v349 = vld [vmem:[%s301 + $0x1b8] sm:$0xff]
                %350 = vst [vmem:[%s302 + $0xb8] sm:$0xff] %v349
                %v351 = vld [vmem:[%s301 + $0x1c0] sm:$0xff]
                %352 = vst [vmem:[%s302 + $0xc0] sm:$0xff] %v351
                %v353 = vld [vmem:[%s301 + $0x1c8] sm:$0xff]
                %354 = vst [vmem:[%s302 + $0xc8] sm:$0xff] %v353
                %v355 = vld [vmem:[%s301 + $0x1d0] sm:$0xff]
                %356 = vst [vmem:[%s302 + $0xd0] sm:$0xff] %v355
                %v357 = vld [vmem:[%s301 + $0x1d8] sm:$0xff]
                %358 = vst [vmem:[%s302 + $0xd8] sm:$0xff] %v357
                %v359 = vld [vmem:[%s301 + $0x1e0] sm:$0xff]
                %360 = vst [vmem:[%s302 + $0xe0] sm:$0xff] %v359
                %v361 = vld [vmem:[%s301 + $0x1e8] sm:$0xff]
                %362 = vst [vmem:[%s302 + $0xe8] sm:$0xff] %v361
                %v363 = vld [vmem:[%s301 + $0x1f0] sm:$0xff]
                %364 = vst [vmem:[%s302 + $0xf0] sm:$0xff] %v363
                %v365 = vld [vmem:[%s301 + $0x1f8] sm:$0xff]
                %366 = vst [vmem:[%s302 + $0xf8] sm:$0xff] %v365
              $region61: #{net_split_forward.1} parent=55 // loop_footer
                %s300 = sadd.s32 1, %s296
              $region62: #{net_split_forward.1} parent=55 // loop_footer_branch
                %295 = sbr.rel target = $region58
              $region63: #{net_split_forward.1} parent=55 // loop_exit
                _
            $region56: #{net_split_forward.1} parent=51 // pred_fallthru
              _
            // Predicated region
            $region64: #{net_split_forward.1} parent=51 // pred_check
              _
            $region65: #{net_split_forward.1} parent=51 // pred_check_branch
              %368 = sbr.rel target = $region67
            $region66: #{net_split_forward.1} parent=51 // pred_region
              _
            $region67: #{net_split_forward.1} parent=51 // pred_fallthru
              _
          $region52: #{net_split_forward.1} parent=47 // pred_fallthru
            _
          %369 = vnop
        $region48: #{net_split_forward.1} parent=43 // pred_fallthru
          _
      $region44: #{net_split_forward.1} parent=5 // pred_fallthru
        _
      %p370 = scmp.le.s32.totalorder 1, %s16
      %p371 = scmp.lt.s32.totalorder %s16, 4
      %p372 = pnand %p370, %p371
      %p373 = pneg %p372
      // Predicated region
      $region68: #{net_split_forward.1} parent=5 // pred_check
        _
      $region69: #{net_split_forward.1} parent=5 // pred_check_branch
        %375 = sbr.rel (%p372) target = $region71
      $region70: #{net_split_forward.1} parent=5 // pred_region
        %s376 = ssub.s32 %s16, 1
        %s377 = sand.u32 %s50, 1
        %s378 = sand.u32 %s50, 1
        %s379 = smul.addr %s378, 256
        %s380 = scalar_lea.vmem [#allocation2], %s379
        // Predicated region
        $region72: #{net_split_forward.1} parent=70 // pred_check
          %p381 = pneg %p63
        $region73: #{net_split_forward.1} parent=70 // pred_check_branch
          %383 = sbr.rel (%p381) target = $region75
        $region74: #{net_split_forward.1} parent=70 // pred_region
          _
        $region75: #{net_split_forward.1} parent=70 // pred_fallthru
          _
        %p384 = pneg %p37
        %p385 = pneg %p34
        %s386 = sand.u32 %s50, 1
        %s387 = sand.u32 %s50, 1
        %s388 = smul.addr %s387, 256
        %s389 = scalar_lea.vmem [#allocation2], %s388
        %p390 = pneg %p63
        %p391 = pneg %p60
        %p392 = pneg %p84
        %p393 = pneg %p81
        %p394 = pneg %p105
        %p395 = pneg %p102
        %p396 = pneg %p126
        %p397 = pneg %p123
        %p398 = pneg %p147
        %p399 = pneg %p144
        %p400 = pneg %p168
        %p401 = pneg %p165
        %p402 = pneg %p189
        %p403 = pneg %p186
        %p404 = pneg %p215
        %p405 = pneg %p212
        %s406 = sand.u32 %s202, 1
        %s407 = sand.u32 %s202, 1
        %s408 = smul.addr %s407, 256
        %s409 = scalar_lea.vmem [#allocation3], %s408
        %p410 = pneg %p241
        %p411 = pneg %p238
        %s412 = smul.u32 16, %s21
        %p413 = scmp.lt.s32.totalorder %s412, 47
        %s414 = scalar_select %p413, %s412, 47
        %s415 = smul.addr %s414, 4
        %s416 = scalar_lea.vmem %s9, %s415
        %s417 = smul.u32 16, %s21
        %s418 = smul.u32 16, %s21
        %s419 = smul.u32 16, %s21
        %p420 = scmp.lt.s32.totalorder %s419, 47
        %s421 = scalar_select %p420, %s419, 47
        %s422 = smul.addr %s421, 4
        %s423 = scalar_lea.vmem %s9, %s422
        %s424 = smul.u32 16, %s21
        %v425 = vld [vmem:[%s380] sm:$0xff]
        %v426 = vld [vmem:[%s380 + $0x8] sm:$0xff]
        %v427 = vld [vmem:[%s380 + $0x10] sm:$0xff]
        %v428 = vld [vmem:[%s380 + $0x18] sm:$0xff]
        %v429 = vld [vmem:[%s380 + $0x20] sm:$0xff]
        %v430 = vld [vmem:[%s380 + $0x28] sm:$0xff]
        %v431 = vld [vmem:[%s380 + $0x30] sm:$0xff]
        %v432 = vld [vmem:[%s380 + $0x38] sm:$0xff]
        %v433 = vld [vmem:[%s380 + $0x40] sm:$0xff]
        %v434 = vld [vmem:[%s380 + $0x48] sm:$0xff]
        %v435 = vld [vmem:[%s380 + $0x50] sm:$0xff]
        %v436 = vld [vmem:[%s380 + $0x58] sm:$0xff]
        %v437 = vld [vmem:[%s380 + $0x60] sm:$0xff]
        %v438 = vld [vmem:[%s380 + $0x68] sm:$0xff]
        %v439 = vld [vmem:[%s380 + $0x70] sm:$0xff]
        %v440 = vld [vmem:[%s380 + $0x78] sm:$0xff]
        %v441 = vld [vmem:[%s380 + $0x80] sm:$0xff]
        %v442 = vld [vmem:[%s380 + $0x88] sm:$0xff]
        %v443 = vld [vmem:[%s380 + $0x90] sm:$0xff]
        %v444 = vld [vmem:[%s380 + $0x98] sm:$0xff]
        %v445 = vld [vmem:[%s380 + $0xa0] sm:$0xff]
        %v446 = vld [vmem:[%s380 + $0xa8] sm:$0xff]
        %v447 = vld [vmem:[%s380 + $0xb0] sm:$0xff]
        %v448 = vld [vmem:[%s380 + $0xb8] sm:$0xff]
        %v449 = vld [vmem:[%s380 + $0xc0] sm:$0xff]
        %v450 = vld [vmem:[%s380 + $0xc8] sm:$0xff]
        %v451 = vld [vmem:[%s380 + $0xd0] sm:$0xff]
        %v452 = vld [vmem:[%s380 + $0xd8] sm:$0xff]
        %v453 = vld [vmem:[%s380 + $0xe0] sm:$0xff]
        %v454 = vld [vmem:[%s380 + $0xe8] sm:$0xff]
        %v455 = vld [vmem:[%s380 + $0xf0] sm:$0xff]
        %v456 = vld [vmem:[%s380 + $0xf8] sm:$0xff]
        %v457 = vld [vmem:[%s2] sm:$0xff]
        %v458 = vld [vmem:[%s2 + $0x8] sm:$0xff]
        %v459 = vld [vmem:[%s2 + $0x10] sm:$0xff]
        %v460 = vld [vmem:[%s2 + $0x18] sm:$0xff]
        %v461 = vld [vmem:[%s2 + $0x20] sm:$0xff]
        %v462 = vld [vmem:[%s2 + $0x28] sm:$0xff]
        %v463 = vld [vmem:[%s2 + $0x30] sm:$0xff]
        %v464 = vld [vmem:[%s2 + $0x38] sm:$0xff]
        %v465 = vld [vmem:[%s3] sm:$0xff]
        %v466 = vld [vmem:[%s3 + $0x8] sm:$0xff]
        %v467 = vld [vmem:[%s3 + $0x10] sm:$0xff]
        %v468 = vld [vmem:[%s3 + $0x18] sm:$0xff]
        %v469 = vld [vmem:[%s3 + $0x20] sm:$0xff]
        %v470 = vld [vmem:[%s3 + $0x28] sm:$0xff]
        %v471 = vld [vmem:[%s3 + $0x30] sm:$0xff]
        %v472 = vld [vmem:[%s3 + $0x38] sm:$0xff]
        %474 = vset.pattern.permute.xlu0 0
        %475 = vperm.xlu0 %474, %v465
        %v476 = vpop.permute.xlu0 %475
        %479 = vset.pattern.permute.xlu0 0
        %480 = vperm.xlu0 %479, %v466
        %v481 = vpop.permute.xlu0 %480
        %484 = vset.pattern.permute.xlu0 0
        %485 = vperm.xlu0 %484, %v467
        %v486 = vpop.permute.xlu0 %485
        %489 = vset.pattern.permute.xlu0 0
        %490 = vperm.xlu0 %489, %v468
        %v491 = vpop.permute.xlu0 %490
        %494 = vset.pattern.permute.xlu0 0
        %495 = vperm.xlu0 %494, %v469
        %v496 = vpop.permute.xlu0 %495
        %499 = vset.pattern.permute.xlu0 0
        %500 = vperm.xlu0 %499, %v470
        %v501 = vpop.permute.xlu0 %500
        %504 = vset.pattern.permute.xlu0 0
        %505 = vperm.xlu0 %504, %v471
        %v506 = vpop.permute.xlu0 %505
        %509 = vset.pattern.permute.xlu0 0
        %510 = vperm.xlu0 %509, %v472
        %v511 = vpop.permute.xlu0 %510
        %vm513 = vcmask 130048
        %v515 = vsel %vm513, %v457, 0
        %v518 = vsel %vm513, %v458, 0
        %v521 = vsel %vm513, %v459, 0
        %v524 = vsel %vm513, %v460, 0
        %v527 = vsel %vm513, %v461, 0
        %v530 = vsel %vm513, %v462, 0
        %v533 = vsel %vm513, %v463, 0
        %v536 = vsel %vm513, %v464, 0
        %538 = vmatpush.msra.mxu0 0.0
        %539 = vmatpush.msra.mxu0 0.0
        %540 = vmatpush.msra.mxu0 0.0
        %541 = vmatpush.msra.mxu0 0.0
        %542 = vmatpush.msra.mxu0 0.0
        %543 = vmatpush.msra.mxu0 0.0
        %544 = vmatpush.msra.mxu0 0.0
        %545 = vmatpush.msra.mxu0 0.0
        %546 = vmatpush.msra.mxu0 0.0
        %547 = vmatpush.msra.mxu0 0.0
        %548 = vmatpush.msra.mxu0 0.0
        %549 = vmatpush.msra.mxu0 0.0
        %550 = vmatpush.msra.mxu0 0.0
        %551 = vmatpush.msra.mxu0 0.0
        %552 = vmatpush.msra.mxu0 %v441
        %553 = vmatpush.msra.mxu0 %v425
        %554 = vmatmul.f32.gmra.mxu0 %v515
        %v555 = vpop.f32.mrf.mxu0
        %v556 = vadd.f32 %v476, %v555
        %557 = vmatmul.f32.gmra.mxu0 %v518
        %v558 = vpop.f32.mrf.mxu0
        %v559 = vadd.f32 %v481, %v558
        %560 = vmatmul.f32.gmra.mxu0 %v521
        %v561 = vpop.f32.mrf.mxu0
        %v562 = vadd.f32 %v486, %v561
        %563 = vmatmul.f32.gmra.mxu0 %v524
        %v564 = vpop.f32.mrf.mxu0
        %v565 = vadd.f32 %v491, %v564
        %566 = vmatmul.f32.gmra.mxu0 %v527
        %v567 = vpop.f32.mrf.mxu0
        %v568 = vadd.f32 %v496, %v567
        %569 = vmatmul.f32.gmra.mxu0 %v530
        %v570 = vpop.f32.mrf.mxu0
        %v571 = vadd.f32 %v501, %v570
        %572 = vmatmul.f32.gmra.mxu0 %v533
        %v573 = vpop.f32.mrf.mxu0
        %v574 = vadd.f32 %v506, %v573
        %575 = vmatmul.f32.gmra.mxu0 %v536
        %v576 = vpop.f32.mrf.mxu0
        %v577 = vadd.f32 %v511, %v576
        %578 = vdwg.mxu0
        %579 = vmatpush.msra.mxu0 0.0
        %580 = vmatpush.msra.mxu0 0.0
        %581 = vmatpush.msra.mxu0 0.0
        %582 = vmatpush.msra.mxu0 0.0
        %583 = vmatpush.msra.mxu0 0.0
        %584 = vmatpush.msra.mxu0 0.0
        %585 = vmatpush.msra.mxu0 0.0
        %586 = vmatpush.msra.mxu0 0.0
        %587 = vmatpush.msra.mxu0 0.0
        %588 = vmatpush.msra.mxu0 0.0
        %589 = vmatpush.msra.mxu0 0.0
        %590 = vmatpush.msra.mxu0 0.0
        %591 = vmatpush.msra.mxu0 0.0
        %592 = vmatpush.msra.mxu0 0.0
        %593 = vmatpush.msra.mxu0 %v442
        %594 = vmatpush.msra.mxu0 %v426
        %595 = vmatmul.f32.gmra.mxu0 %v515
        %v596 = vpop.f32.mrf.mxu0
        %v597 = vadd.f32 %v476, %v596
        %598 = vmatmul.f32.gmra.mxu0 %v518
        %v599 = vpop.f32.mrf.mxu0
        %v600 = vadd.f32 %v481, %v599
        %601 = vmatmul.f32.gmra.mxu0 %v521
        %v602 = vpop.f32.mrf.mxu0
        %v603 = vadd.f32 %v486, %v602
        %604 = vmatmul.f32.gmra.mxu0 %v524
        %v605 = vpop.f32.mrf.mxu0
        %v606 = vadd.f32 %v491, %v605
        %607 = vmatmul.f32.gmra.mxu0 %v527
        %v608 = vpop.f32.mrf.mxu0
        %v609 = vadd.f32 %v496, %v608
        %610 = vmatmul.f32.gmra.mxu0 %v530
        %v611 = vpop.f32.mrf.mxu0
        %v612 = vadd.f32 %v501, %v611
        %613 = vmatmul.f32.gmra.mxu0 %v533
        %v614 = vpop.f32.mrf.mxu0
        %v615 = vadd.f32 %v506, %v614
        %616 = vmatmul.f32.gmra.mxu0 %v536
        %v617 = vpop.f32.mrf.mxu0
        %v618 = vadd.f32 %v511, %v617
        %619 = vdwg.mxu0
        %620 = vmatpush.msra.mxu0 0.0
        %621 = vmatpush.msra.mxu0 0.0
        %622 = vmatpush.msra.mxu0 0.0
        %623 = vmatpush.msra.mxu0 0.0
        %624 = vmatpush.msra.mxu0 0.0
        %625 = vmatpush.msra.mxu0 0.0
        %626 = vmatpush.msra.mxu0 0.0
        %627 = vmatpush.msra.mxu0 0.0
        %628 = vmatpush.msra.mxu0 0.0
        %629 = vmatpush.msra.mxu0 0.0
        %630 = vmatpush.msra.mxu0 0.0
        %631 = vmatpush.msra.mxu0 0.0
        %632 = vmatpush.msra.mxu0 0.0
        %633 = vmatpush.msra.mxu0 0.0
        %634 = vmatpush.msra.mxu0 %v443
        %635 = vmatpush.msra.mxu0 %v427
        %636 = vmatmul.f32.gmra.mxu0 %v515
        %v637 = vpop.f32.mrf.mxu0
        %v638 = vadd.f32 %v476, %v637
        %639 = vmatmul.f32.gmra.mxu0 %v518
        %v640 = vpop.f32.mrf.mxu0
        %v641 = vadd.f32 %v481, %v640
        %642 = vmatmul.f32.gmra.mxu0 %v521
        %v643 = vpop.f32.mrf.mxu0
        %v644 = vadd.f32 %v486, %v643
        %645 = vmatmul.f32.gmra.mxu0 %v524
        %v646 = vpop.f32.mrf.mxu0
        %v647 = vadd.f32 %v491, %v646
        %648 = vmatmul.f32.gmra.mxu0 %v527
        %v649 = vpop.f32.mrf.mxu0
        %v650 = vadd.f32 %v496, %v649
        %651 = vmatmul.f32.gmra.mxu0 %v530
        %v652 = vpop.f32.mrf.mxu0
        %v653 = vadd.f32 %v501, %v652
        %654 = vmatmul.f32.gmra.mxu0 %v533
        %v655 = vpop.f32.mrf.mxu0
        %v656 = vadd.f32 %v506, %v655
        %657 = vmatmul.f32.gmra.mxu0 %v536
        %v658 = vpop.f32.mrf.mxu0
        %v659 = vadd.f32 %v511, %v658
        %660 = vdwg.mxu0
        %661 = vmatpush.msra.mxu0 0.0
        %662 = vmatpush.msra.mxu0 0.0
        %663 = vmatpush.msra.mxu0 0.0
        %664 = vmatpush.msra.mxu0 0.0
        %665 = vmatpush.msra.mxu0 0.0
        %666 = vmatpush.msra.mxu0 0.0
        %667 = vmatpush.msra.mxu0 0.0
        %668 = vmatpush.msra.mxu0 0.0
        %669 = vmatpush.msra.mxu0 0.0
        %670 = vmatpush.msra.mxu0 0.0
        %671 = vmatpush.msra.mxu0 0.0
        %672 = vmatpush.msra.mxu0 0.0
        %673 = vmatpush.msra.mxu0 0.0
        %674 = vmatpush.msra.mxu0 0.0
        %675 = vmatpush.msra.mxu0 %v444
        %676 = vmatpush.msra.mxu0 %v428
        %677 = vmatmul.f32.gmra.mxu0 %v515
        %v678 = vpop.f32.mrf.mxu0
        %v679 = vadd.f32 %v476, %v678
        %680 = vmatmul.f32.gmra.mxu0 %v518
        %v681 = vpop.f32.mrf.mxu0
        %v682 = vadd.f32 %v481, %v681
        %683 = vmatmul.f32.gmra.mxu0 %v521
        %v684 = vpop.f32.mrf.mxu0
        %v685 = vadd.f32 %v486, %v684
        %686 = vmatmul.f32.gmra.mxu0 %v524
        %v687 = vpop.f32.mrf.mxu0
        %v688 = vadd.f32 %v491, %v687
        %689 = vmatmul.f32.gmra.mxu0 %v527
        %v690 = vpop.f32.mrf.mxu0
        %v691 = vadd.f32 %v496, %v690
        %692 = vmatmul.f32.gmra.mxu0 %v530
        %v693 = vpop.f32.mrf.mxu0
        %v694 = vadd.f32 %v501, %v693
        %695 = vmatmul.f32.gmra.mxu0 %v533
        %v696 = vpop.f32.mrf.mxu0
        %v697 = vadd.f32 %v506, %v696
        %698 = vmatmul.f32.gmra.mxu0 %v536
        %v699 = vpop.f32.mrf.mxu0
        %v700 = vadd.f32 %v511, %v699
        %701 = vdwg.mxu0
        %702 = vmatpush.msra.mxu0 0.0
        %703 = vmatpush.msra.mxu0 0.0
        %704 = vmatpush.msra.mxu0 0.0
        %705 = vmatpush.msra.mxu0 0.0
        %706 = vmatpush.msra.mxu0 0.0
        %707 = vmatpush.msra.mxu0 0.0
        %708 = vmatpush.msra.mxu0 0.0
        %709 = vmatpush.msra.mxu0 0.0
        %710 = vmatpush.msra.mxu0 0.0
        %711 = vmatpush.msra.mxu0 0.0
        %712 = vmatpush.msra.mxu0 0.0
        %713 = vmatpush.msra.mxu0 0.0
        %714 = vmatpush.msra.mxu0 0.0
        %715 = vmatpush.msra.mxu0 0.0
        %716 = vmatpush.msra.mxu0 %v445
        %717 = vmatpush.msra.mxu0 %v429
        %718 = vmatmul.f32.gmra.mxu0 %v515
        %v719 = vpop.f32.mrf.mxu0
        %v720 = vadd.f32 %v476, %v719
        %721 = vmatmul.f32.gmra.mxu0 %v518
        %v722 = vpop.f32.mrf.mxu0
        %v723 = vadd.f32 %v481, %v722
        %724 = vmatmul.f32.gmra.mxu0 %v521
        %v725 = vpop.f32.mrf.mxu0
        %v726 = vadd.f32 %v486, %v725
        %727 = vmatmul.f32.gmra.mxu0 %v524
        %v728 = vpop.f32.mrf.mxu0
        %v729 = vadd.f32 %v491, %v728
        %730 = vmatmul.f32.gmra.mxu0 %v527
        %v731 = vpop.f32.mrf.mxu0
        %v732 = vadd.f32 %v496, %v731
        %733 = vmatmul.f32.gmra.mxu0 %v530
        %v734 = vpop.f32.mrf.mxu0
        %v735 = vadd.f32 %v501, %v734
        %736 = vmatmul.f32.gmra.mxu0 %v533
        %v737 = vpop.f32.mrf.mxu0
        %v738 = vadd.f32 %v506, %v737
        %739 = vmatmul.f32.gmra.mxu0 %v536
        %v740 = vpop.f32.mrf.mxu0
        %v741 = vadd.f32 %v511, %v740
        %742 = vdwg.mxu0
        %743 = vmatpush.msra.mxu0 0.0
        %744 = vmatpush.msra.mxu0 0.0
        %745 = vmatpush.msra.mxu0 0.0
        %746 = vmatpush.msra.mxu0 0.0
        %747 = vmatpush.msra.mxu0 0.0
        %748 = vmatpush.msra.mxu0 0.0
        %749 = vmatpush.msra.mxu0 0.0
        %750 = vmatpush.msra.mxu0 0.0
        %751 = vmatpush.msra.mxu0 0.0
        %752 = vmatpush.msra.mxu0 0.0
        %753 = vmatpush.msra.mxu0 0.0
        %754 = vmatpush.msra.mxu0 0.0
        %755 = vmatpush.msra.mxu0 0.0
        %756 = vmatpush.msra.mxu0 0.0
        %757 = vmatpush.msra.mxu0 %v446
        %758 = vmatpush.msra.mxu0 %v430
        %759 = vmatmul.f32.gmra.mxu0 %v515
        %v760 = vpop.f32.mrf.mxu0
        %v761 = vadd.f32 %v476, %v760
        %762 = vmatmul.f32.gmra.mxu0 %v518
        %v763 = vpop.f32.mrf.mxu0
        %v764 = vadd.f32 %v481, %v763
        %765 = vmatmul.f32.gmra.mxu0 %v521
        %v766 = vpop.f32.mrf.mxu0
        %v767 = vadd.f32 %v486, %v766
        %768 = vmatmul.f32.gmra.mxu0 %v524
        %v769 = vpop.f32.mrf.mxu0
        %v770 = vadd.f32 %v491, %v769
        %771 = vmatmul.f32.gmra.mxu0 %v527
        %v772 = vpop.f32.mrf.mxu0
        %v773 = vadd.f32 %v496, %v772
        %774 = vmatmul.f32.gmra.mxu0 %v530
        %v775 = vpop.f32.mrf.mxu0
        %v776 = vadd.f32 %v501, %v775
        %777 = vmatmul.f32.gmra.mxu0 %v533
        %v778 = vpop.f32.mrf.mxu0
        %v779 = vadd.f32 %v506, %v778
        %780 = vmatmul.f32.gmra.mxu0 %v536
        %v781 = vpop.f32.mrf.mxu0
        %v782 = vadd.f32 %v511, %v781
        %783 = vdwg.mxu0
        %784 = vmatpush.msra.mxu0 0.0
        %785 = vmatpush.msra.mxu0 0.0
        %786 = vmatpush.msra.mxu0 0.0
        %787 = vmatpush.msra.mxu0 0.0
        %788 = vmatpush.msra.mxu0 0.0
        %789 = vmatpush.msra.mxu0 0.0
        %790 = vmatpush.msra.mxu0 0.0
        %791 = vmatpush.msra.mxu0 0.0
        %792 = vmatpush.msra.mxu0 0.0
        %793 = vmatpush.msra.mxu0 0.0
        %794 = vmatpush.msra.mxu0 0.0
        %795 = vmatpush.msra.mxu0 0.0
        %796 = vmatpush.msra.mxu0 0.0
        %797 = vmatpush.msra.mxu0 0.0
        %798 = vmatpush.msra.mxu0 %v447
        %799 = vmatpush.msra.mxu0 %v431
        %800 = vmatmul.f32.gmra.mxu0 %v515
        %v801 = vpop.f32.mrf.mxu0
        %v802 = vadd.f32 %v476, %v801
        %803 = vmatmul.f32.gmra.mxu0 %v518
        %v804 = vpop.f32.mrf.mxu0
        %v805 = vadd.f32 %v481, %v804
        %806 = vmatmul.f32.gmra.mxu0 %v521
        %v807 = vpop.f32.mrf.mxu0
        %v808 = vadd.f32 %v486, %v807
        %809 = vmatmul.f32.gmra.mxu0 %v524
        %v810 = vpop.f32.mrf.mxu0
        %v811 = vadd.f32 %v491, %v810
        %812 = vmatmul.f32.gmra.mxu0 %v527
        %v813 = vpop.f32.mrf.mxu0
        %v814 = vadd.f32 %v496, %v813
        %815 = vmatmul.f32.gmra.mxu0 %v530
        %v816 = vpop.f32.mrf.mxu0
        %v817 = vadd.f32 %v501, %v816
        %818 = vmatmul.f32.gmra.mxu0 %v533
        %v819 = vpop.f32.mrf.mxu0
        %v820 = vadd.f32 %v506, %v819
        %821 = vmatmul.f32.gmra.mxu0 %v536
        %v822 = vpop.f32.mrf.mxu0
        %v823 = vadd.f32 %v511, %v822
        %824 = vdwg.mxu0
        %825 = vmatpush.msra.mxu0 0.0
        %826 = vmatpush.msra.mxu0 0.0
        %827 = vmatpush.msra.mxu0 0.0
        %828 = vmatpush.msra.mxu0 0.0
        %829 = vmatpush.msra.mxu0 0.0
        %830 = vmatpush.msra.mxu0 0.0
        %831 = vmatpush.msra.mxu0 0.0
        %832 = vmatpush.msra.mxu0 0.0
        %833 = vmatpush.msra.mxu0 0.0
        %834 = vmatpush.msra.mxu0 0.0
        %835 = vmatpush.msra.mxu0 0.0
        %836 = vmatpush.msra.mxu0 0.0
        %837 = vmatpush.msra.mxu0 0.0
        %838 = vmatpush.msra.mxu0 0.0
        %839 = vmatpush.msra.mxu0 %v448
        %840 = vmatpush.msra.mxu0 %v432
        %841 = vmatmul.f32.gmra.mxu0 %v515
        %v842 = vpop.f32.mrf.mxu0
        %v843 = vadd.f32 %v476, %v842
        %844 = vmatmul.f32.gmra.mxu0 %v518
        %v845 = vpop.f32.mrf.mxu0
        %v846 = vadd.f32 %v481, %v845
        %847 = vmatmul.f32.gmra.mxu0 %v521
        %v848 = vpop.f32.mrf.mxu0
        %v849 = vadd.f32 %v486, %v848
        %850 = vmatmul.f32.gmra.mxu0 %v524
        %v851 = vpop.f32.mrf.mxu0
        %v852 = vadd.f32 %v491, %v851
        %853 = vmatmul.f32.gmra.mxu0 %v527
        %v854 = vpop.f32.mrf.mxu0
        %v855 = vadd.f32 %v496, %v854
        %856 = vmatmul.f32.gmra.mxu0 %v530
        %v857 = vpop.f32.mrf.mxu0
        %v858 = vadd.f32 %v501, %v857
        %859 = vmatmul.f32.gmra.mxu0 %v533
        %v860 = vpop.f32.mrf.mxu0
        %v861 = vadd.f32 %v506, %v860
        %862 = vmatmul.f32.gmra.mxu0 %v536
        %v863 = vpop.f32.mrf.mxu0
        %v864 = vadd.f32 %v511, %v863
        %865 = vdwg.mxu0
        %866 = vmatpush.msra.mxu0 0.0
        %867 = vmatpush.msra.mxu0 0.0
        %868 = vmatpush.msra.mxu0 0.0
        %869 = vmatpush.msra.mxu0 0.0
        %870 = vmatpush.msra.mxu0 0.0
        %871 = vmatpush.msra.mxu0 0.0
        %872 = vmatpush.msra.mxu0 0.0
        %873 = vmatpush.msra.mxu0 0.0
        %874 = vmatpush.msra.mxu0 0.0
        %875 = vmatpush.msra.mxu0 0.0
        %876 = vmatpush.msra.mxu0 0.0
        %877 = vmatpush.msra.mxu0 0.0
        %878 = vmatpush.msra.mxu0 0.0
        %879 = vmatpush.msra.mxu0 0.0
        %880 = vmatpush.msra.mxu0 %v449
        %881 = vmatpush.msra.mxu0 %v433
        %882 = vmatmul.f32.gmra.mxu0 %v515
        %v883 = vpop.f32.mrf.mxu0
        %v884 = vadd.f32 %v476, %v883
        %885 = vmatmul.f32.gmra.mxu0 %v518
        %v886 = vpop.f32.mrf.mxu0
        %v887 = vadd.f32 %v481, %v886
        %888 = vmatmul.f32.gmra.mxu0 %v521
        %v889 = vpop.f32.mrf.mxu0
        %v890 = vadd.f32 %v486, %v889
        %891 = vmatmul.f32.gmra.mxu0 %v524
        %v892 = vpop.f32.mrf.mxu0
        %v893 = vadd.f32 %v491, %v892
        %894 = vmatmul.f32.gmra.mxu0 %v527
        %v895 = vpop.f32.mrf.mxu0
        %v896 = vadd.f32 %v496, %v895
        %897 = vmatmul.f32.gmra.mxu0 %v530
        %v898 = vpop.f32.mrf.mxu0
        %v899 = vadd.f32 %v501, %v898
        %900 = vmatmul.f32.gmra.mxu0 %v533
        %v901 = vpop.f32.mrf.mxu0
        %v902 = vadd.f32 %v506, %v901
        %903 = vmatmul.f32.gmra.mxu0 %v536
        %v904 = vpop.f32.mrf.mxu0
        %v905 = vadd.f32 %v511, %v904
        %906 = vdwg.mxu0
        %907 = vmatpush.msra.mxu0 0.0
        %908 = vmatpush.msra.mxu0 0.0
        %909 = vmatpush.msra.mxu0 0.0
        %910 = vmatpush.msra.mxu0 0.0
        %911 = vmatpush.msra.mxu0 0.0
        %912 = vmatpush.msra.mxu0 0.0
        %913 = vmatpush.msra.mxu0 0.0
        %914 = vmatpush.msra.mxu0 0.0
        %915 = vmatpush.msra.mxu0 0.0
        %916 = vmatpush.msra.mxu0 0.0
        %917 = vmatpush.msra.mxu0 0.0
        %918 = vmatpush.msra.mxu0 0.0
        %919 = vmatpush.msra.mxu0 0.0
        %920 = vmatpush.msra.mxu0 0.0
        %921 = vmatpush.msra.mxu0 %v450
        %922 = vmatpush.msra.mxu0 %v434
        %923 = vmatmul.f32.gmra.mxu0 %v515
        %v924 = vpop.f32.mrf.mxu0
        %v925 = vadd.f32 %v476, %v924
        %926 = vmatmul.f32.gmra.mxu0 %v518
        %v927 = vpop.f32.mrf.mxu0
        %v928 = vadd.f32 %v481, %v927
        %929 = vmatmul.f32.gmra.mxu0 %v521
        %v930 = vpop.f32.mrf.mxu0
        %v931 = vadd.f32 %v486, %v930
        %932 = vmatmul.f32.gmra.mxu0 %v524
        %v933 = vpop.f32.mrf.mxu0
        %v934 = vadd.f32 %v491, %v933
        %935 = vmatmul.f32.gmra.mxu0 %v527
        %v936 = vpop.f32.mrf.mxu0
        %v937 = vadd.f32 %v496, %v936
        %938 = vmatmul.f32.gmra.mxu0 %v530
        %v939 = vpop.f32.mrf.mxu0
        %v940 = vadd.f32 %v501, %v939
        %941 = vmatmul.f32.gmra.mxu0 %v533
        %v942 = vpop.f32.mrf.mxu0
        %v943 = vadd.f32 %v506, %v942
        %944 = vmatmul.f32.gmra.mxu0 %v536
        %v945 = vpop.f32.mrf.mxu0
        %v946 = vadd.f32 %v511, %v945
        %947 = vdwg.mxu0
        %948 = vmatpush.msra.mxu0 0.0
        %949 = vmatpush.msra.mxu0 0.0
        %950 = vmatpush.msra.mxu0 0.0
        %951 = vmatpush.msra.mxu0 0.0
        %952 = vmatpush.msra.mxu0 0.0
        %953 = vmatpush.msra.mxu0 0.0
        %954 = vmatpush.msra.mxu0 0.0
        %955 = vmatpush.msra.mxu0 0.0
        %956 = vmatpush.msra.mxu0 0.0
        %957 = vmatpush.msra.mxu0 0.0
        %958 = vmatpush.msra.mxu0 0.0
        %959 = vmatpush.msra.mxu0 0.0
        %960 = vmatpush.msra.mxu0 0.0
        %961 = vmatpush.msra.mxu0 0.0
        %962 = vmatpush.msra.mxu0 %v451
        %963 = vmatpush.msra.mxu0 %v435
        %964 = vmatmul.f32.gmra.mxu0 %v515
        %v965 = vpop.f32.mrf.mxu0
        %v966 = vadd.f32 %v476, %v965
        %967 = vmatmul.f32.gmra.mxu0 %v518
        %v968 = vpop.f32.mrf.mxu0
        %v969 = vadd.f32 %v481, %v968
        %970 = vmatmul.f32.gmra.mxu0 %v521
        %v971 = vpop.f32.mrf.mxu0
        %v972 = vadd.f32 %v486, %v971
        %973 = vmatmul.f32.gmra.mxu0 %v524
        %v974 = vpop.f32.mrf.mxu0
        %v975 = vadd.f32 %v491, %v974
        %976 = vmatmul.f32.gmra.mxu0 %v527
        %v977 = vpop.f32.mrf.mxu0
        %v978 = vadd.f32 %v496, %v977
        %979 = vmatmul.f32.gmra.mxu0 %v530
        %v980 = vpop.f32.mrf.mxu0
        %v981 = vadd.f32 %v501, %v980
        %982 = vmatmul.f32.gmra.mxu0 %v533
        %v983 = vpop.f32.mrf.mxu0
        %v984 = vadd.f32 %v506, %v983
        %985 = vmatmul.f32.gmra.mxu0 %v536
        %v986 = vpop.f32.mrf.mxu0
        %v987 = vadd.f32 %v511, %v986
        %988 = vdwg.mxu0
        %989 = vmatpush.msra.mxu0 0.0
        %990 = vmatpush.msra.mxu0 0.0
        %991 = vmatpush.msra.mxu0 0.0
        %992 = vmatpush.msra.mxu0 0.0
        %993 = vmatpush.msra.mxu0 0.0
        %994 = vmatpush.msra.mxu0 0.0
        %995 = vmatpush.msra.mxu0 0.0
        %996 = vmatpush.msra.mxu0 0.0
        %997 = vmatpush.msra.mxu0 0.0
        %998 = vmatpush.msra.mxu0 0.0
        %999 = vmatpush.msra.mxu0 0.0
        %1000 = vmatpush.msra.mxu0 0.0
        %1001 = vmatpush.msra.mxu0 0.0
        %1002 = vmatpush.msra.mxu0 0.0
        %1003 = vmatpush.msra.mxu0 %v452
        %1004 = vmatpush.msra.mxu0 %v436
        %1005 = vmatmul.f32.gmra.mxu0 %v515
        %v1006 = vpop.f32.mrf.mxu0
        %v1007 = vadd.f32 %v476, %v1006
        %1008 = vmatmul.f32.gmra.mxu0 %v518
        %v1009 = vpop.f32.mrf.mxu0
        %v1010 = vadd.f32 %v481, %v1009
        %1011 = vmatmul.f32.gmra.mxu0 %v521
        %v1012 = vpop.f32.mrf.mxu0
        %v1013 = vadd.f32 %v486, %v1012
        %1014 = vmatmul.f32.gmra.mxu0 %v524
        %v1015 = vpop.f32.mrf.mxu0
        %v1016 = vadd.f32 %v491, %v1015
        %1017 = vmatmul.f32.gmra.mxu0 %v527
        %v1018 = vpop.f32.mrf.mxu0
        %v1019 = vadd.f32 %v496, %v1018
        %1020 = vmatmul.f32.gmra.mxu0 %v530
        %v1021 = vpop.f32.mrf.mxu0
        %v1022 = vadd.f32 %v501, %v1021
        %1023 = vmatmul.f32.gmra.mxu0 %v533
        %v1024 = vpop.f32.mrf.mxu0
        %v1025 = vadd.f32 %v506, %v1024
        %1026 = vmatmul.f32.gmra.mxu0 %v536
        %v1027 = vpop.f32.mrf.mxu0
        %v1028 = vadd.f32 %v511, %v1027
        %1029 = vdwg.mxu0
        %1030 = vmatpush.msra.mxu0 0.0
        %1031 = vmatpush.msra.mxu0 0.0
        %1032 = vmatpush.msra.mxu0 0.0
        %1033 = vmatpush.msra.mxu0 0.0
        %1034 = vmatpush.msra.mxu0 0.0
        %1035 = vmatpush.msra.mxu0 0.0
        %1036 = vmatpush.msra.mxu0 0.0
        %1037 = vmatpush.msra.mxu0 0.0
        %1038 = vmatpush.msra.mxu0 0.0
        %1039 = vmatpush.msra.mxu0 0.0
        %1040 = vmatpush.msra.mxu0 0.0
        %1041 = vmatpush.msra.mxu0 0.0
        %1042 = vmatpush.msra.mxu0 0.0
        %1043 = vmatpush.msra.mxu0 0.0
        %1044 = vmatpush.msra.mxu0 %v453
        %1045 = vmatpush.msra.mxu0 %v437
        %1046 = vmatmul.f32.gmra.mxu0 %v515
        %v1047 = vpop.f32.mrf.mxu0
        %v1048 = vadd.f32 %v476, %v1047
        %1049 = vmatmul.f32.gmra.mxu0 %v518
        %v1050 = vpop.f32.mrf.mxu0
        %v1051 = vadd.f32 %v481, %v1050
        %1052 = vmatmul.f32.gmra.mxu0 %v521
        %v1053 = vpop.f32.mrf.mxu0
        %v1054 = vadd.f32 %v486, %v1053
        %1055 = vmatmul.f32.gmra.mxu0 %v524
        %v1056 = vpop.f32.mrf.mxu0
        %v1057 = vadd.f32 %v491, %v1056
        %1058 = vmatmul.f32.gmra.mxu0 %v527
        %v1059 = vpop.f32.mrf.mxu0
        %v1060 = vadd.f32 %v496, %v1059
        %1061 = vmatmul.f32.gmra.mxu0 %v530
        %v1062 = vpop.f32.mrf.mxu0
        %v1063 = vadd.f32 %v501, %v1062
        %1064 = vmatmul.f32.gmra.mxu0 %v533
        %v1065 = vpop.f32.mrf.mxu0
        %v1066 = vadd.f32 %v506, %v1065
        %1067 = vmatmul.f32.gmra.mxu0 %v536
        %v1068 = vpop.f32.mrf.mxu0
        %v1069 = vadd.f32 %v511, %v1068
        %1070 = vdwg.mxu0
        %1071 = vmatpush.msra.mxu0 0.0
        %1072 = vmatpush.msra.mxu0 0.0
        %1073 = vmatpush.msra.mxu0 0.0
        %1074 = vmatpush.msra.mxu0 0.0
        %1075 = vmatpush.msra.mxu0 0.0
        %1076 = vmatpush.msra.mxu0 0.0
        %1077 = vmatpush.msra.mxu0 0.0
        %1078 = vmatpush.msra.mxu0 0.0
        %1079 = vmatpush.msra.mxu0 0.0
        %1080 = vmatpush.msra.mxu0 0.0
        %1081 = vmatpush.msra.mxu0 0.0
        %1082 = vmatpush.msra.mxu0 0.0
        %1083 = vmatpush.msra.mxu0 0.0
        %1084 = vmatpush.msra.mxu0 0.0
        %1085 = vmatpush.msra.mxu0 %v454
        %1086 = vmatpush.msra.mxu0 %v438
        %1087 = vmatmul.f32.gmra.mxu0 %v515
        %v1088 = vpop.f32.mrf.mxu0
        %v1089 = vadd.f32 %v476, %v1088
        %1090 = vmatmul.f32.gmra.mxu0 %v518
        %v1091 = vpop.f32.mrf.mxu0
        %v1092 = vadd.f32 %v481, %v1091
        %1093 = vmatmul.f32.gmra.mxu0 %v521
        %v1094 = vpop.f32.mrf.mxu0
        %v1095 = vadd.f32 %v486, %v1094
        %1096 = vmatmul.f32.gmra.mxu0 %v524
        %v1097 = vpop.f32.mrf.mxu0
        %v1098 = vadd.f32 %v491, %v1097
        %1099 = vmatmul.f32.gmra.mxu0 %v527
        %v1100 = vpop.f32.mrf.mxu0
        %v1101 = vadd.f32 %v496, %v1100
        %1102 = vmatmul.f32.gmra.mxu0 %v530
        %v1103 = vpop.f32.mrf.mxu0
        %v1104 = vadd.f32 %v501, %v1103
        %1105 = vmatmul.f32.gmra.mxu0 %v533
        %v1106 = vpop.f32.mrf.mxu0
        %v1107 = vadd.f32 %v506, %v1106
        %1108 = vmatmul.f32.gmra.mxu0 %v536
        %v1109 = vpop.f32.mrf.mxu0
        %v1110 = vadd.f32 %v511, %v1109
        %1111 = vdwg.mxu0
        %1112 = vmatpush.msra.mxu0 0.0
        %1113 = vmatpush.msra.mxu0 0.0
        %1114 = vmatpush.msra.mxu0 0.0
        %1115 = vmatpush.msra.mxu0 0.0
        %1116 = vmatpush.msra.mxu0 0.0
        %1117 = vmatpush.msra.mxu0 0.0
        %1118 = vmatpush.msra.mxu0 0.0
        %1119 = vmatpush.msra.mxu0 0.0
        %1120 = vmatpush.msra.mxu0 0.0
        %1121 = vmatpush.msra.mxu0 0.0
        %1122 = vmatpush.msra.mxu0 0.0
        %1123 = vmatpush.msra.mxu0 0.0
        %1124 = vmatpush.msra.mxu0 0.0
        %1125 = vmatpush.msra.mxu0 0.0
        %1126 = vmatpush.msra.mxu0 %v455
        %1127 = vmatpush.msra.mxu0 %v439
        %1128 = vmatmul.f32.gmra.mxu0 %v515
        %v1129 = vpop.f32.mrf.mxu0
        %v1130 = vadd.f32 %v476, %v1129
        %1131 = vmatmul.f32.gmra.mxu0 %v518
        %v1132 = vpop.f32.mrf.mxu0
        %v1133 = vadd.f32 %v481, %v1132
        %1134 = vmatmul.f32.gmra.mxu0 %v521
        %v1135 = vpop.f32.mrf.mxu0
        %v1136 = vadd.f32 %v486, %v1135
        %1137 = vmatmul.f32.gmra.mxu0 %v524
        %v1138 = vpop.f32.mrf.mxu0
        %v1139 = vadd.f32 %v491, %v1138
        %1140 = vmatmul.f32.gmra.mxu0 %v527
        %v1141 = vpop.f32.mrf.mxu0
        %v1142 = vadd.f32 %v496, %v1141
        %1143 = vmatmul.f32.gmra.mxu0 %v530
        %v1144 = vpop.f32.mrf.mxu0
        %v1145 = vadd.f32 %v501, %v1144
        %1146 = vmatmul.f32.gmra.mxu0 %v533
        %v1147 = vpop.f32.mrf.mxu0
        %v1148 = vadd.f32 %v506, %v1147
        %1149 = vmatmul.f32.gmra.mxu0 %v536
        %v1150 = vpop.f32.mrf.mxu0
        %v1151 = vadd.f32 %v511, %v1150
        %1152 = vdwg.mxu0
        %1153 = vmatpush.msra.mxu0 0.0
        %1154 = vmatpush.msra.mxu0 0.0
        %1155 = vmatpush.msra.mxu0 0.0
        %1156 = vmatpush.msra.mxu0 0.0
        %1157 = vmatpush.msra.mxu0 0.0
        %1158 = vmatpush.msra.mxu0 0.0
        %1159 = vmatpush.msra.mxu0 0.0
        %1160 = vmatpush.msra.mxu0 0.0
        %1161 = vmatpush.msra.mxu0 0.0
        %1162 = vmatpush.msra.mxu0 0.0
        %1163 = vmatpush.msra.mxu0 0.0
        %1164 = vmatpush.msra.mxu0 0.0
        %1165 = vmatpush.msra.mxu0 0.0
        %1166 = vmatpush.msra.mxu0 0.0
        %1167 = vmatpush.msra.mxu0 %v456
        %1168 = vmatpush.msra.mxu0 %v440
        %1169 = vmatmul.f32.gmra.mxu0 %v515
        %v1170 = vpop.f32.mrf.mxu0
        %v1171 = vadd.f32 %v476, %v1170
        %1172 = vmatmul.f32.gmra.mxu0 %v518
        %v1173 = vpop.f32.mrf.mxu0
        %v1174 = vadd.f32 %v481, %v1173
        %1175 = vmatmul.f32.gmra.mxu0 %v521
        %v1176 = vpop.f32.mrf.mxu0
        %v1177 = vadd.f32 %v486, %v1176
        %1178 = vmatmul.f32.gmra.mxu0 %v524
        %v1179 = vpop.f32.mrf.mxu0
        %v1180 = vadd.f32 %v491, %v1179
        %1181 = vmatmul.f32.gmra.mxu0 %v527
        %v1182 = vpop.f32.mrf.mxu0
        %v1183 = vadd.f32 %v496, %v1182
        %1184 = vmatmul.f32.gmra.mxu0 %v530
        %v1185 = vpop.f32.mrf.mxu0
        %v1186 = vadd.f32 %v501, %v1185
        %1187 = vmatmul.f32.gmra.mxu0 %v533
        %v1188 = vpop.f32.mrf.mxu0
        %v1189 = vadd.f32 %v506, %v1188
        %1190 = vmatmul.f32.gmra.mxu0 %v536
        %v1191 = vpop.f32.mrf.mxu0
        %v1192 = vadd.f32 %v511, %v1191
        %1193 = vdwg.mxu0
        %vm1194 = vcmp.gt.f32.partialorder %v556, 0.0
        %vm1195 = vcmp.gt.f32.partialorder %v597, 0.0
        %vm1196 = vcmp.gt.f32.partialorder %v638, 0.0
        %vm1197 = vcmp.gt.f32.partialorder %v679, 0.0
        %vm1198 = vcmp.gt.f32.partialorder %v720, 0.0
        %vm1199 = vcmp.gt.f32.partialorder %v761, 0.0
        %vm1200 = vcmp.gt.f32.partialorder %v802, 0.0
        %vm1201 = vcmp.gt.f32.partialorder %v843, 0.0
        %vm1202 = vcmp.gt.f32.partialorder %v884, 0.0
        %vm1203 = vcmp.gt.f32.partialorder %v925, 0.0
        %vm1204 = vcmp.gt.f32.partialorder %v966, 0.0
        %vm1205 = vcmp.gt.f32.partialorder %v1007, 0.0
        %vm1206 = vcmp.gt.f32.partialorder %v1048, 0.0
        %vm1207 = vcmp.gt.f32.partialorder %v1089, 0.0
        %vm1208 = vcmp.gt.f32.partialorder %v1130, 0.0
        %vm1209 = vcmp.gt.f32.partialorder %v1171, 0.0
        %vm1210 = vcmp.gt.f32.partialorder %v559, 0.0
        %vm1211 = vcmp.gt.f32.partialorder %v600, 0.0
        %vm1212 = vcmp.gt.f32.partialorder %v641, 0.0
        %vm1213 = vcmp.gt.f32.partialorder %v682, 0.0
        %vm1214 = vcmp.gt.f32.partialorder %v723, 0.0
        %vm1215 = vcmp.gt.f32.partialorder %v764, 0.0
        %vm1216 = vcmp.gt.f32.partialorder %v805, 0.0
        %vm1217 = vcmp.gt.f32.partialorder %v846, 0.0
        %vm1218 = vcmp.gt.f32.partialorder %v887, 0.0
        %vm1219 = vcmp.gt.f32.partialorder %v928, 0.0
        %vm1220 = vcmp.gt.f32.partialorder %v969, 0.0
        %vm1221 = vcmp.gt.f32.partialorder %v1010, 0.0
        %vm1222 = vcmp.gt.f32.partialorder %v1051, 0.0
        %vm1223 = vcmp.gt.f32.partialorder %v1092, 0.0
        %vm1224 = vcmp.gt.f32.partialorder %v1133, 0.0
        %vm1225 = vcmp.gt.f32.partialorder %v1174, 0.0
        %vm1226 = vcmp.gt.f32.partialorder %v562, 0.0
        %vm1227 = vcmp.gt.f32.partialorder %v603, 0.0
        %vm1228 = vcmp.gt.f32.partialorder %v644, 0.0
        %vm1229 = vcmp.gt.f32.partialorder %v685, 0.0
        %vm1230 = vcmp.gt.f32.partialorder %v726, 0.0
        %vm1231 = vcmp.gt.f32.partialorder %v767, 0.0
        %vm1232 = vcmp.gt.f32.partialorder %v808, 0.0
        %vm1233 = vcmp.gt.f32.partialorder %v849, 0.0
        %vm1234 = vcmp.gt.f32.partialorder %v890, 0.0
        %vm1235 = vcmp.gt.f32.partialorder %v931, 0.0
        %vm1236 = vcmp.gt.f32.partialorder %v972, 0.0
        %vm1237 = vcmp.gt.f32.partialorder %v1013, 0.0
        %vm1238 = vcmp.gt.f32.partialorder %v1054, 0.0
        %vm1239 = vcmp.gt.f32.partialorder %v1095, 0.0
        %vm1240 = vcmp.gt.f32.partialorder %v1136, 0.0
        %vm1241 = vcmp.gt.f32.partialorder %v1177, 0.0
        %vm1242 = vcmp.gt.f32.partialorder %v565, 0.0
        %vm1243 = vcmp.gt.f32.partialorder %v606, 0.0
        %vm1244 = vcmp.gt.f32.partialorder %v647, 0.0
        %vm1245 = vcmp.gt.f32.partialorder %v688, 0.0
        %vm1246 = vcmp.gt.f32.partialorder %v729, 0.0
        %vm1247 = vcmp.gt.f32.partialorder %v770, 0.0
        %vm1248 = vcmp.gt.f32.partialorder %v811, 0.0
        %vm1249 = vcmp.gt.f32.partialorder %v852, 0.0
        %vm1250 = vcmp.gt.f32.partialorder %v893, 0.0
        %vm1251 = vcmp.gt.f32.partialorder %v934, 0.0
        %vm1252 = vcmp.gt.f32.partialorder %v975, 0.0
        %vm1253 = vcmp.gt.f32.partialorder %v1016, 0.0
        %vm1254 = vcmp.gt.f32.partialorder %v1057, 0.0
        %vm1255 = vcmp.gt.f32.partialorder %v1098, 0.0
        %vm1256 = vcmp.gt.f32.partialorder %v1139, 0.0
        %vm1257 = vcmp.gt.f32.partialorder %v1180, 0.0
        %vm1258 = vcmp.gt.f32.partialorder %v568, 0.0
        %vm1259 = vcmp.gt.f32.partialorder %v609, 0.0
        %vm1260 = vcmp.gt.f32.partialorder %v650, 0.0
        %vm1261 = vcmp.gt.f32.partialorder %v691, 0.0
        %vm1262 = vcmp.gt.f32.partialorder %v732, 0.0
        %vm1263 = vcmp.gt.f32.partialorder %v773, 0.0
        %vm1264 = vcmp.gt.f32.partialorder %v814, 0.0
        %vm1265 = vcmp.gt.f32.partialorder %v855, 0.0
        %vm1266 = vcmp.gt.f32.partialorder %v896, 0.0
        %vm1267 = vcmp.gt.f32.partialorder %v937, 0.0
        %vm1268 = vcmp.gt.f32.partialorder %v978, 0.0
        %vm1269 = vcmp.gt.f32.partialorder %v1019, 0.0
        %vm1270 = vcmp.gt.f32.partialorder %v1060, 0.0
        %vm1271 = vcmp.gt.f32.partialorder %v1101, 0.0
        %vm1272 = vcmp.gt.f32.partialorder %v1142, 0.0
        %vm1273 = vcmp.gt.f32.partialorder %v1183, 0.0
        %vm1274 = vcmp.gt.f32.partialorder %v571, 0.0
        %vm1275 = vcmp.gt.f32.partialorder %v612, 0.0
        %vm1276 = vcmp.gt.f32.partialorder %v653, 0.0
        %vm1277 = vcmp.gt.f32.partialorder %v694, 0.0
        %vm1278 = vcmp.gt.f32.partialorder %v735, 0.0
        %vm1279 = vcmp.gt.f32.partialorder %v776, 0.0
        %vm1280 = vcmp.gt.f32.partialorder %v817, 0.0
        %vm1281 = vcmp.gt.f32.partialorder %v858, 0.0
        %vm1282 = vcmp.gt.f32.partialorder %v899, 0.0
        %vm1283 = vcmp.gt.f32.partialorder %v940, 0.0
        %vm1284 = vcmp.gt.f32.partialorder %v981, 0.0
        %vm1285 = vcmp.gt.f32.partialorder %v1022, 0.0
        %vm1286 = vcmp.gt.f32.partialorder %v1063, 0.0
        %vm1287 = vcmp.gt.f32.partialorder %v1104, 0.0
        %vm1288 = vcmp.gt.f32.partialorder %v1145, 0.0
        %vm1289 = vcmp.gt.f32.partialorder %v1186, 0.0
        %vm1290 = vcmp.gt.f32.partialorder %v574, 0.0
        %vm1291 = vcmp.gt.f32.partialorder %v615, 0.0
        %vm1292 = vcmp.gt.f32.partialorder %v656, 0.0
        %vm1293 = vcmp.gt.f32.partialorder %v697, 0.0
        %vm1294 = vcmp.gt.f32.partialorder %v738, 0.0
        %vm1295 = vcmp.gt.f32.partialorder %v779, 0.0
        %vm1296 = vcmp.gt.f32.partialorder %v820, 0.0
        %vm1297 = vcmp.gt.f32.partialorder %v861, 0.0
        %vm1298 = vcmp.gt.f32.partialorder %v902, 0.0
        %vm1299 = vcmp.gt.f32.partialorder %v943, 0.0
        %vm1300 = vcmp.gt.f32.partialorder %v984, 0.0
        %vm1301 = vcmp.gt.f32.partialorder %v1025, 0.0
        %vm1302 = vcmp.gt.f32.partialorder %v1066, 0.0
        %vm1303 = vcmp.gt.f32.partialorder %v1107, 0.0
        %vm1304 = vcmp.gt.f32.partialorder %v1148, 0.0
        %vm1305 = vcmp.gt.f32.partialorder %v1189, 0.0
        %vm1306 = vcmp.gt.f32.partialorder %v577, 0.0
        %vm1307 = vcmp.gt.f32.partialorder %v618, 0.0
        %vm1308 = vcmp.gt.f32.partialorder %v659, 0.0
        %vm1309 = vcmp.gt.f32.partialorder %v700, 0.0
        %vm1310 = vcmp.gt.f32.partialorder %v741, 0.0
        %vm1311 = vcmp.gt.f32.partialorder %v782, 0.0
        %vm1312 = vcmp.gt.f32.partialorder %v823, 0.0
        %vm1313 = vcmp.gt.f32.partialorder %v864, 0.0
        %vm1314 = vcmp.gt.f32.partialorder %v905, 0.0
        %vm1315 = vcmp.gt.f32.partialorder %v946, 0.0
        %vm1316 = vcmp.gt.f32.partialorder %v987, 0.0
        %vm1317 = vcmp.gt.f32.partialorder %v1028, 0.0
        %vm1318 = vcmp.gt.f32.partialorder %v1069, 0.0
        %vm1319 = vcmp.gt.f32.partialorder %v1110, 0.0
        %vm1320 = vcmp.gt.f32.partialorder %v1151, 0.0
        %vm1321 = vcmp.gt.f32.partialorder %v1192, 0.0
        %v1322 = vmin.f32 %v556, 0.0
        %v1323 = vmin.f32 %v597, 0.0
        %v1324 = vmin.f32 %v638, 0.0
        %v1325 = vmin.f32 %v679, 0.0
        %v1326 = vmin.f32 %v720, 0.0
        %v1327 = vmin.f32 %v761, 0.0
        %v1328 = vmin.f32 %v802, 0.0
        %v1329 = vmin.f32 %v843, 0.0
        %v1330 = vmin.f32 %v884, 0.0
        %v1331 = vmin.f32 %v925, 0.0
        %v1332 = vmin.f32 %v966, 0.0
        %v1333 = vmin.f32 %v1007, 0.0
        %v1334 = vmin.f32 %v1048, 0.0
        %v1335 = vmin.f32 %v1089, 0.0
        %v1336 = vmin.f32 %v1130, 0.0
        %v1337 = vmin.f32 %v1171, 0.0
        %v1338 = vmin.f32 %v559, 0.0
        %v1339 = vmin.f32 %v600, 0.0
        %v1340 = vmin.f32 %v641, 0.0
        %v1341 = vmin.f32 %v682, 0.0
        %v1342 = vmin.f32 %v723, 0.0
        %v1343 = vmin.f32 %v764, 0.0
        %v1344 = vmin.f32 %v805, 0.0
        %v1345 = vmin.f32 %v846, 0.0
        %v1346 = vmin.f32 %v887, 0.0
        %v1347 = vmin.f32 %v928, 0.0
        %v1348 = vmin.f32 %v969, 0.0
        %v1349 = vmin.f32 %v1010, 0.0
        %v1350 = vmin.f32 %v1051, 0.0
        %v1351 = vmin.f32 %v1092, 0.0
        %v1352 = vmin.f32 %v1133, 0.0
        %v1353 = vmin.f32 %v1174, 0.0
        %v1354 = vmin.f32 %v562, 0.0
        %v1355 = vmin.f32 %v603, 0.0
        %v1356 = vmin.f32 %v644, 0.0
        %v1357 = vmin.f32 %v685, 0.0
        %v1358 = vmin.f32 %v726, 0.0
        %v1359 = vmin.f32 %v767, 0.0
        %v1360 = vmin.f32 %v808, 0.0
        %v1361 = vmin.f32 %v849, 0.0
        %v1362 = vmin.f32 %v890, 0.0
        %v1363 = vmin.f32 %v931, 0.0
        %v1364 = vmin.f32 %v972, 0.0
        %v1365 = vmin.f32 %v1013, 0.0
        %v1366 = vmin.f32 %v1054, 0.0
        %v1367 = vmin.f32 %v1095, 0.0
        %v1368 = vmin.f32 %v1136, 0.0
        %v1369 = vmin.f32 %v1177, 0.0
        %v1370 = vmin.f32 %v565, 0.0
        %v1371 = vmin.f32 %v606, 0.0
        %v1372 = vmin.f32 %v647, 0.0
        %v1373 = vmin.f32 %v688, 0.0
        %v1374 = vmin.f32 %v729, 0.0
        %v1375 = vmin.f32 %v770, 0.0
        %v1376 = vmin.f32 %v811, 0.0
        %v1377 = vmin.f32 %v852, 0.0
        %v1378 = vmin.f32 %v893, 0.0
        %v1379 = vmin.f32 %v934, 0.0
        %v1380 = vmin.f32 %v975, 0.0
        %v1381 = vmin.f32 %v1016, 0.0
        %v1382 = vmin.f32 %v1057, 0.0
        %v1383 = vmin.f32 %v1098, 0.0
        %v1384 = vmin.f32 %v1139, 0.0
        %v1385 = vmin.f32 %v1180, 0.0
        %v1386 = vmin.f32 %v568, 0.0
        %v1387 = vmin.f32 %v609, 0.0
        %v1388 = vmin.f32 %v650, 0.0
        %v1389 = vmin.f32 %v691, 0.0
        %v1390 = vmin.f32 %v732, 0.0
        %v1391 = vmin.f32 %v773, 0.0
        %v1392 = vmin.f32 %v814, 0.0
        %v1393 = vmin.f32 %v855, 0.0
        %v1394 = vmin.f32 %v896, 0.0
        %v1395 = vmin.f32 %v937, 0.0
        %v1396 = vmin.f32 %v978, 0.0
        %v1397 = vmin.f32 %v1019, 0.0
        %v1398 = vmin.f32 %v1060, 0.0
        %v1399 = vmin.f32 %v1101, 0.0
        %v1400 = vmin.f32 %v1142, 0.0
        %v1401 = vmin.f32 %v1183, 0.0
        %v1402 = vmin.f32 %v571, 0.0
        %v1403 = vmin.f32 %v612, 0.0
        %v1404 = vmin.f32 %v653, 0.0
        %v1405 = vmin.f32 %v694, 0.0
        %v1406 = vmin.f32 %v735, 0.0
        %v1407 = vmin.f32 %v776, 0.0
        %v1408 = vmin.f32 %v817, 0.0
        %v1409 = vmin.f32 %v858, 0.0
        %v1410 = vmin.f32 %v899, 0.0
        %v1411 = vmin.f32 %v940, 0.0
        %v1412 = vmin.f32 %v981, 0.0
        %v1413 = vmin.f32 %v1022, 0.0
        %v1414 = vmin.f32 %v1063, 0.0
        %v1415 = vmin.f32 %v1104, 0.0
        %v1416 = vmin.f32 %v1145, 0.0
        %v1417 = vmin.f32 %v1186, 0.0
        %v1418 = vmin.f32 %v574, 0.0
        %v1419 = vmin.f32 %v615, 0.0
        %v1420 = vmin.f32 %v656, 0.0
        %v1421 = vmin.f32 %v697, 0.0
        %v1422 = vmin.f32 %v738, 0.0
        %v1423 = vmin.f32 %v779, 0.0
        %v1424 = vmin.f32 %v820, 0.0
        %v1425 = vmin.f32 %v861, 0.0
        %v1426 = vmin.f32 %v902, 0.0
        %v1427 = vmin.f32 %v943, 0.0
        %v1428 = vmin.f32 %v984, 0.0
        %v1429 = vmin.f32 %v1025, 0.0
        %v1430 = vmin.f32 %v1066, 0.0
        %v1431 = vmin.f32 %v1107, 0.0
        %v1432 = vmin.f32 %v1148, 0.0
        %v1433 = vmin.f32 %v1189, 0.0
        %v1434 = vmin.f32 %v577, 0.0
        %v1435 = vmin.f32 %v618, 0.0
        %v1436 = vmin.f32 %v659, 0.0
        %v1437 = vmin.f32 %v700, 0.0
        %v1438 = vmin.f32 %v741, 0.0
        %v1439 = vmin.f32 %v782, 0.0
        %v1440 = vmin.f32 %v823, 0.0
        %v1441 = vmin.f32 %v864, 0.0
        %v1442 = vmin.f32 %v905, 0.0
        %v1443 = vmin.f32 %v946, 0.0
        %v1444 = vmin.f32 %v987, 0.0
        %v1445 = vmin.f32 %v1028, 0.0
        %v1446 = vmin.f32 %v1069, 0.0
        %v1447 = vmin.f32 %v1110, 0.0
        %v1448 = vmin.f32 %v1151, 0.0
        %v1449 = vmin.f32 %v1192, 0.0
        %v1450 = vmul.f32 %v1322, 1.442695
        %v1451 = vpow.pop %v1450
        %v1452 = vmul.f32 %v1323, 1.442695
        %v1453 = vpow.pop %v1452
        %v1454 = vmul.f32 %v1324, 1.442695
        %v1455 = vpow.pop %v1454
        %v1456 = vmul.f32 %v1325, 1.442695
        %v1457 = vpow.pop %v1456
        %v1458 = vmul.f32 %v1326, 1.442695
        %v1459 = vpow.pop %v1458
        %v1460 = vmul.f32 %v1327, 1.442695
        %v1461 = vpow.pop %v1460
        %v1462 = vmul.f32 %v1328, 1.442695
        %v1463 = vpow.pop %v1462
        %v1464 = vmul.f32 %v1329, 1.442695
        %v1465 = vpow.pop %v1464
        %v1466 = vmul.f32 %v1330, 1.442695
        %v1467 = vpow.pop %v1466
        %v1468 = vmul.f32 %v1331, 1.442695
        %v1469 = vpow.pop %v1468
        %v1470 = vmul.f32 %v1332, 1.442695
        %v1471 = vpow.pop %v1470
        %v1472 = vmul.f32 %v1333, 1.442695
        %v1473 = vpow.pop %v1472
        %v1474 = vmul.f32 %v1334, 1.442695
        %v1475 = vpow.pop %v1474
        %v1476 = vmul.f32 %v1335, 1.442695
        %v1477 = vpow.pop %v1476
        %v1478 = vmul.f32 %v1336, 1.442695
        %v1479 = vpow.pop %v1478
        %v1480 = vmul.f32 %v1337, 1.442695
        %v1481 = vpow.pop %v1480
        %v1482 = vmul.f32 %v1338, 1.442695
        %v1483 = vpow.pop %v1482
        %v1484 = vmul.f32 %v1339, 1.442695
        %v1485 = vpow.pop %v1484
        %v1486 = vmul.f32 %v1340, 1.442695
        %v1487 = vpow.pop %v1486
        %v1488 = vmul.f32 %v1341, 1.442695
        %v1489 = vpow.pop %v1488
        %v1490 = vmul.f32 %v1342, 1.442695
        %v1491 = vpow.pop %v1490
        %v1492 = vmul.f32 %v1343, 1.442695
        %v1493 = vpow.pop %v1492
        %v1494 = vmul.f32 %v1344, 1.442695
        %v1495 = vpow.pop %v1494
        %v1496 = vmul.f32 %v1345, 1.442695
        %v1497 = vpow.pop %v1496
        %v1498 = vmul.f32 %v1346, 1.442695
        %v1499 = vpow.pop %v1498
        %v1500 = vmul.f32 %v1347, 1.442695
        %v1501 = vpow.pop %v1500
        %v1502 = vmul.f32 %v1348, 1.442695
        %v1503 = vpow.pop %v1502
        %v1504 = vmul.f32 %v1349, 1.442695
        %v1505 = vpow.pop %v1504
        %v1506 = vmul.f32 %v1350, 1.442695
        %v1507 = vpow.pop %v1506
        %v1508 = vmul.f32 %v1351, 1.442695
        %v1509 = vpow.pop %v1508
        %v1510 = vmul.f32 %v1352, 1.442695
        %v1511 = vpow.pop %v1510
        %v1512 = vmul.f32 %v1353, 1.442695
        %v1513 = vpow.pop %v1512
        %v1514 = vmul.f32 %v1354, 1.442695
        %v1515 = vpow.pop %v1514
        %v1516 = vmul.f32 %v1355, 1.442695
        %v1517 = vpow.pop %v1516
        %v1518 = vmul.f32 %v1356, 1.442695
        %v1519 = vpow.pop %v1518
        %v1520 = vmul.f32 %v1357, 1.442695
        %v1521 = vpow.pop %v1520
        %v1522 = vmul.f32 %v1358, 1.442695
        %v1523 = vpow.pop %v1522
        %v1524 = vmul.f32 %v1359, 1.442695
        %v1525 = vpow.pop %v1524
        %v1526 = vmul.f32 %v1360, 1.442695
        %v1527 = vpow.pop %v1526
        %v1528 = vmul.f32 %v1361, 1.442695
        %v1529 = vpow.pop %v1528
        %v1530 = vmul.f32 %v1362, 1.442695
        %v1531 = vpow.pop %v1530
        %v1532 = vmul.f32 %v1363, 1.442695
        %v1533 = vpow.pop %v1532
        %v1534 = vmul.f32 %v1364, 1.442695
        %v1535 = vpow.pop %v1534
        %v1536 = vmul.f32 %v1365, 1.442695
        %v1537 = vpow.pop %v1536
        %v1538 = vmul.f32 %v1366, 1.442695
        %v1539 = vpow.pop %v1538
        %v1540 = vmul.f32 %v1367, 1.442695
        %v1541 = vpow.pop %v1540
        %v1542 = vmul.f32 %v1368, 1.442695
        %v1543 = vpow.pop %v1542
        %v1544 = vmul.f32 %v1369, 1.442695
        %v1545 = vpow.pop %v1544
        %v1546 = vmul.f32 %v1370, 1.442695
        %v1547 = vpow.pop %v1546
        %v1548 = vmul.f32 %v1371, 1.442695
        %v1549 = vpow.pop %v1548
        %v1550 = vmul.f32 %v1372, 1.442695
        %v1551 = vpow.pop %v1550
        %v1552 = vmul.f32 %v1373, 1.442695
        %v1553 = vpow.pop %v1552
        %v1554 = vmul.f32 %v1374, 1.442695
        %v1555 = vpow.pop %v1554
        %v1556 = vmul.f32 %v1375, 1.442695
        %v1557 = vpow.pop %v1556
        %v1558 = vmul.f32 %v1376, 1.442695
        %v1559 = vpow.pop %v1558
        %v1560 = vmul.f32 %v1377, 1.442695
        %v1561 = vpow.pop %v1560
        %v1562 = vmul.f32 %v1378, 1.442695
        %v1563 = vpow.pop %v1562
        %v1564 = vmul.f32 %v1379, 1.442695
        %v1565 = vpow.pop %v1564
        %v1566 = vmul.f32 %v1380, 1.442695
        %v1567 = vpow.pop %v1566
        %v1568 = vmul.f32 %v1381, 1.442695
        %v1569 = vpow.pop %v1568
        %v1570 = vmul.f32 %v1382, 1.442695
        %v1571 = vpow.pop %v1570
        %v1572 = vmul.f32 %v1383, 1.442695
        %v1573 = vpow.pop %v1572
        %v1574 = vmul.f32 %v1384, 1.442695
        %v1575 = vpow.pop %v1574
        %v1576 = vmul.f32 %v1385, 1.442695
        %v1577 = vpow.pop %v1576
        %v1578 = vmul.f32 %v1386, 1.442695
        %v1579 = vpow.pop %v1578
        %v1580 = vmul.f32 %v1387, 1.442695
        %v1581 = vpow.pop %v1580
        %v1582 = vmul.f32 %v1388, 1.442695
        %v1583 = vpow.pop %v1582
        %v1584 = vmul.f32 %v1389, 1.442695
        %v1585 = vpow.pop %v1584
        %v1586 = vmul.f32 %v1390, 1.442695
        %v1587 = vpow.pop %v1586
        %v1588 = vmul.f32 %v1391, 1.442695
        %v1589 = vpow.pop %v1588
        %v1590 = vmul.f32 %v1392, 1.442695
        %v1591 = vpow.pop %v1590
        %v1592 = vmul.f32 %v1393, 1.442695
        %v1593 = vpow.pop %v1592
        %v1594 = vmul.f32 %v1394, 1.442695
        %v1595 = vpow.pop %v1594
        %v1596 = vmul.f32 %v1395, 1.442695
        %v1597 = vpow.pop %v1596
        %v1598 = vmul.f32 %v1396, 1.442695
        %v1599 = vpow.pop %v1598
        %v1600 = vmul.f32 %v1397, 1.442695
        %v1601 = vpow.pop %v1600
        %v1602 = vmul.f32 %v1398, 1.442695
        %v1603 = vpow.pop %v1602
        %v1604 = vmul.f32 %v1399, 1.442695
        %v1605 = vpow.pop %v1604
        %v1606 = vmul.f32 %v1400, 1.442695
        %v1607 = vpow.pop %v1606
        %v1608 = vmul.f32 %v1401, 1.442695
        %v1609 = vpow.pop %v1608
        %v1610 = vmul.f32 %v1402, 1.442695
        %v1611 = vpow.pop %v1610
        %v1612 = vmul.f32 %v1403, 1.442695
        %v1613 = vpow.pop %v1612
        %v1614 = vmul.f32 %v1404, 1.442695
        %v1615 = vpow.pop %v1614
        %v1616 = vmul.f32 %v1405, 1.442695
        %v1617 = vpow.pop %v1616
        %v1618 = vmul.f32 %v1406, 1.442695
        %v1619 = vpow.pop %v1618
        %v1620 = vmul.f32 %v1407, 1.442695
        %v1621 = vpow.pop %v1620
        %v1622 = vmul.f32 %v1408, 1.442695
        %v1623 = vpow.pop %v1622
        %v1624 = vmul.f32 %v1409, 1.442695
        %v1625 = vpow.pop %v1624
        %v1626 = vmul.f32 %v1410, 1.442695
        %v1627 = vpow.pop %v1626
        %v1628 = vmul.f32 %v1411, 1.442695
        %v1629 = vpow.pop %v1628
        %v1630 = vmul.f32 %v1412, 1.442695
        %v1631 = vpow.pop %v1630
        %v1632 = vmul.f32 %v1413, 1.442695
        %v1633 = vpow.pop %v1632
        %v1634 = vmul.f32 %v1414, 1.442695
        %v1635 = vpow.pop %v1634
        %v1636 = vmul.f32 %v1415, 1.442695
        %v1637 = vpow.pop %v1636
        %v1638 = vmul.f32 %v1416, 1.442695
        %v1639 = vpow.pop %v1638
        %v1640 = vmul.f32 %v1417, 1.442695
        %v1641 = vpow.pop %v1640
        %v1642 = vmul.f32 %v1418, 1.442695
        %v1643 = vpow.pop %v1642
        %v1644 = vmul.f32 %v1419, 1.442695
        %v1645 = vpow.pop %v1644
        %v1646 = vmul.f32 %v1420, 1.442695
        %v1647 = vpow.pop %v1646
        %v1648 = vmul.f32 %v1421, 1.442695
        %v1649 = vpow.pop %v1648
        %v1650 = vmul.f32 %v1422, 1.442695
        %v1651 = vpow.pop %v1650
        %v1652 = vmul.f32 %v1423, 1.442695
        %v1653 = vpow.pop %v1652
        %v1654 = vmul.f32 %v1424, 1.442695
        %v1655 = vpow.pop %v1654
        %v1656 = vmul.f32 %v1425, 1.442695
        %v1657 = vpow.pop %v1656
        %v1658 = vmul.f32 %v1426, 1.442695
        %v1659 = vpow.pop %v1658
        %v1660 = vmul.f32 %v1427, 1.442695
        %v1661 = vpow.pop %v1660
        %v1662 = vmul.f32 %v1428, 1.442695
        %v1663 = vpow.pop %v1662
        %v1664 = vmul.f32 %v1429, 1.442695
        %v1665 = vpow.pop %v1664
        %v1666 = vmul.f32 %v1430, 1.442695
        %v1667 = vpow.pop %v1666
        %v1668 = vmul.f32 %v1431, 1.442695
        %v1669 = vpow.pop %v1668
        %v1670 = vmul.f32 %v1432, 1.442695
        %v1671 = vpow.pop %v1670
        %v1672 = vmul.f32 %v1433, 1.442695
        %v1673 = vpow.pop %v1672
        %v1674 = vmul.f32 %v1434, 1.442695
        %v1675 = vpow.pop %v1674
        %v1676 = vmul.f32 %v1435, 1.442695
        %v1677 = vpow.pop %v1676
        %v1678 = vmul.f32 %v1436, 1.442695
        %v1679 = vpow.pop %v1678
        %v1680 = vmul.f32 %v1437, 1.442695
        %v1681 = vpow.pop %v1680
        %v1682 = vmul.f32 %v1438, 1.442695
        %v1683 = vpow.pop %v1682
        %v1684 = vmul.f32 %v1439, 1.442695
        %v1685 = vpow.pop %v1684
        %v1686 = vmul.f32 %v1440, 1.442695
        %v1687 = vpow.pop %v1686
        %v1688 = vmul.f32 %v1441, 1.442695
        %v1689 = vpow.pop %v1688
        %v1690 = vmul.f32 %v1442, 1.442695
        %v1691 = vpow.pop %v1690
        %v1692 = vmul.f32 %v1443, 1.442695
        %v1693 = vpow.pop %v1692
        %v1694 = vmul.f32 %v1444, 1.442695
        %v1695 = vpow.pop %v1694
        %v1696 = vmul.f32 %v1445, 1.442695
        %v1697 = vpow.pop %v1696
        %v1698 = vmul.f32 %v1446, 1.442695
        %v1699 = vpow.pop %v1698
        %v1700 = vmul.f32 %v1447, 1.442695
        %v1701 = vpow.pop %v1700
        %v1702 = vmul.f32 %v1448, 1.442695
        %v1703 = vpow.pop %v1702
        %v1704 = vmul.f32 %v1449, 1.442695
        %v1705 = vpow.pop %v1704
        %v1706 = vsub.f32 %v1451, 1.0
        %v1707 = vsub.f32 %v1453, 1.0
        %v1708 = vsub.f32 %v1455, 1.0
        %v1709 = vsub.f32 %v1457, 1.0
        %v1710 = vsub.f32 %v1459, 1.0
        %v1711 = vsub.f32 %v1461, 1.0
        %v1712 = vsub.f32 %v1463, 1.0
        %v1713 = vsub.f32 %v1465, 1.0
        %v1714 = vsub.f32 %v1467, 1.0
        %v1715 = vsub.f32 %v1469, 1.0
        %v1716 = vsub.f32 %v1471, 1.0
        %v1717 = vsub.f32 %v1473, 1.0
        %v1718 = vsub.f32 %v1475, 1.0
        %v1719 = vsub.f32 %v1477, 1.0
        %v1720 = vsub.f32 %v1479, 1.0
        %v1721 = vsub.f32 %v1481, 1.0
        %v1722 = vsub.f32 %v1483, 1.0
        %v1723 = vsub.f32 %v1485, 1.0
        %v1724 = vsub.f32 %v1487, 1.0
        %v1725 = vsub.f32 %v1489, 1.0
        %v1726 = vsub.f32 %v1491, 1.0
        %v1727 = vsub.f32 %v1493, 1.0
        %v1728 = vsub.f32 %v1495, 1.0
        %v1729 = vsub.f32 %v1497, 1.0
        %v1730 = vsub.f32 %v1499, 1.0
        %v1731 = vsub.f32 %v1501, 1.0
        %v1732 = vsub.f32 %v1503, 1.0
        %v1733 = vsub.f32 %v1505, 1.0
        %v1734 = vsub.f32 %v1507, 1.0
        %v1735 = vsub.f32 %v1509, 1.0
        %v1736 = vsub.f32 %v1511, 1.0
        %v1737 = vsub.f32 %v1513, 1.0
        %v1738 = vsub.f32 %v1515, 1.0
        %v1739 = vsub.f32 %v1517, 1.0
        %v1740 = vsub.f32 %v1519, 1.0
        %v1741 = vsub.f32 %v1521, 1.0
        %v1742 = vsub.f32 %v1523, 1.0
        %v1743 = vsub.f32 %v1525, 1.0
        %v1744 = vsub.f32 %v1527, 1.0
        %v1745 = vsub.f32 %v1529, 1.0
        %v1746 = vsub.f32 %v1531, 1.0
        %v1747 = vsub.f32 %v1533, 1.0
        %v1748 = vsub.f32 %v1535, 1.0
        %v1749 = vsub.f32 %v1537, 1.0
        %v1750 = vsub.f32 %v1539, 1.0
        %v1751 = vsub.f32 %v1541, 1.0
        %v1752 = vsub.f32 %v1543, 1.0
        %v1753 = vsub.f32 %v1545, 1.0
        %v1754 = vsub.f32 %v1547, 1.0
        %v1755 = vsub.f32 %v1549, 1.0
        %v1756 = vsub.f32 %v1551, 1.0
        %v1757 = vsub.f32 %v1553, 1.0
        %v1758 = vsub.f32 %v1555, 1.0
        %v1759 = vsub.f32 %v1557, 1.0
        %v1760 = vsub.f32 %v1559, 1.0
        %v1761 = vsub.f32 %v1561, 1.0
        %v1762 = vsub.f32 %v1563, 1.0
        %v1763 = vsub.f32 %v1565, 1.0
        %v1764 = vsub.f32 %v1567, 1.0
        %v1765 = vsub.f32 %v1569, 1.0
        %v1766 = vsub.f32 %v1571, 1.0
        %v1767 = vsub.f32 %v1573, 1.0
        %v1768 = vsub.f32 %v1575, 1.0
        %v1769 = vsub.f32 %v1577, 1.0
        %v1770 = vsub.f32 %v1579, 1.0
        %v1771 = vsub.f32 %v1581, 1.0
        %v1772 = vsub.f32 %v1583, 1.0
        %v1773 = vsub.f32 %v1585, 1.0
        %v1774 = vsub.f32 %v1587, 1.0
        %v1775 = vsub.f32 %v1589, 1.0
        %v1776 = vsub.f32 %v1591, 1.0
        %v1777 = vsub.f32 %v1593, 1.0
        %v1778 = vsub.f32 %v1595, 1.0
        %v1779 = vsub.f32 %v1597, 1.0
        %v1780 = vsub.f32 %v1599, 1.0
        %v1781 = vsub.f32 %v1601, 1.0
        %v1782 = vsub.f32 %v1603, 1.0
        %v1783 = vsub.f32 %v1605, 1.0
        %v1784 = vsub.f32 %v1607, 1.0
        %v1785 = vsub.f32 %v1609, 1.0
        %v1786 = vsub.f32 %v1611, 1.0
        %v1787 = vsub.f32 %v1613, 1.0
        %v1788 = vsub.f32 %v1615, 1.0
        %v1789 = vsub.f32 %v1617, 1.0
        %v1790 = vsub.f32 %v1619, 1.0
        %v1791 = vsub.f32 %v1621, 1.0
        %v1792 = vsub.f32 %v1623, 1.0
        %v1793 = vsub.f32 %v1625, 1.0
        %v1794 = vsub.f32 %v1627, 1.0
        %v1795 = vsub.f32 %v1629, 1.0
        %v1796 = vsub.f32 %v1631, 1.0
        %v1797 = vsub.f32 %v1633, 1.0
        %v1798 = vsub.f32 %v1635, 1.0
        %v1799 = vsub.f32 %v1637, 1.0
        %v1800 = vsub.f32 %v1639, 1.0
        %v1801 = vsub.f32 %v1641, 1.0
        %v1802 = vsub.f32 %v1643, 1.0
        %v1803 = vsub.f32 %v1645, 1.0
        %v1804 = vsub.f32 %v1647, 1.0
        %v1805 = vsub.f32 %v1649, 1.0
        %v1806 = vsub.f32 %v1651, 1.0
        %v1807 = vsub.f32 %v1653, 1.0
        %v1808 = vsub.f32 %v1655, 1.0
        %v1809 = vsub.f32 %v1657, 1.0
        %v1810 = vsub.f32 %v1659, 1.0
        %v1811 = vsub.f32 %v1661, 1.0
        %v1812 = vsub.f32 %v1663, 1.0
        %v1813 = vsub.f32 %v1665, 1.0
        %v1814 = vsub.f32 %v1667, 1.0
        %v1815 = vsub.f32 %v1669, 1.0
        %v1816 = vsub.f32 %v1671, 1.0
        %v1817 = vsub.f32 %v1673, 1.0
        %v1818 = vsub.f32 %v1675, 1.0
        %v1819 = vsub.f32 %v1677, 1.0
        %v1820 = vsub.f32 %v1679, 1.0
        %v1821 = vsub.f32 %v1681, 1.0
        %v1822 = vsub.f32 %v1683, 1.0
        %v1823 = vsub.f32 %v1685, 1.0
        %v1824 = vsub.f32 %v1687, 1.0
        %v1825 = vsub.f32 %v1689, 1.0
        %v1826 = vsub.f32 %v1691, 1.0
        %v1827 = vsub.f32 %v1693, 1.0
        %v1828 = vsub.f32 %v1695, 1.0
        %v1829 = vsub.f32 %v1697, 1.0
        %v1830 = vsub.f32 %v1699, 1.0
        %v1831 = vsub.f32 %v1701, 1.0
        %v1832 = vsub.f32 %v1703, 1.0
        %v1833 = vsub.f32 %v1705, 1.0
        %v1834 = vsel %vm1194, %v556, %v1706
        %v1835 = vsel %vm1195, %v597, %v1707
        %v1836 = vsel %vm1196, %v638, %v1708
        %v1837 = vsel %vm1197, %v679, %v1709
        %v1838 = vsel %vm1198, %v720, %v1710
        %v1839 = vsel %vm1199, %v761, %v1711
        %v1840 = vsel %vm1200, %v802, %v1712
        %v1841 = vsel %vm1201, %v843, %v1713
        %v1842 = vsel %vm1202, %v884, %v1714
        %v1843 = vsel %vm1203, %v925, %v1715
        %v1844 = vsel %vm1204, %v966, %v1716
        %v1845 = vsel %vm1205, %v1007, %v1717
        %v1846 = vsel %vm1206, %v1048, %v1718
        %v1847 = vsel %vm1207, %v1089, %v1719
        %v1848 = vsel %vm1208, %v1130, %v1720
        %v1849 = vsel %vm1209, %v1171, %v1721
        %v1850 = vsel %vm1210, %v559, %v1722
        %v1851 = vsel %vm1211, %v600, %v1723
        %v1852 = vsel %vm1212, %v641, %v1724
        %v1853 = vsel %vm1213, %v682, %v1725
        %v1854 = vsel %vm1214, %v723, %v1726
        %v1855 = vsel %vm1215, %v764, %v1727
        %v1856 = vsel %vm1216, %v805, %v1728
        %v1857 = vsel %vm1217, %v846, %v1729
        %v1858 = vsel %vm1218, %v887, %v1730
        %v1859 = vsel %vm1219, %v928, %v1731
        %v1860 = vsel %vm1220, %v969, %v1732
        %v1861 = vsel %vm1221, %v1010, %v1733
        %v1862 = vsel %vm1222, %v1051, %v1734
        %v1863 = vsel %vm1223, %v1092, %v1735
        %v1864 = vsel %vm1224, %v1133, %v1736
        %v1865 = vsel %vm1225, %v1174, %v1737
        %v1866 = vsel %vm1226, %v562, %v1738
        %v1867 = vsel %vm1227, %v603, %v1739
        %v1868 = vsel %vm1228, %v644, %v1740
        %v1869 = vsel %vm1229, %v685, %v1741
        %v1870 = vsel %vm1230, %v726, %v1742
        %v1871 = vsel %vm1231, %v767, %v1743
        %v1872 = vsel %vm1232, %v808, %v1744
        %v1873 = vsel %vm1233, %v849, %v1745
        %v1874 = vsel %vm1234, %v890, %v1746
        %v1875 = vsel %vm1235, %v931, %v1747
        %v1876 = vsel %vm1236, %v972, %v1748
        %v1877 = vsel %vm1237, %v1013, %v1749
        %v1878 = vsel %vm1238, %v1054, %v1750
        %v1879 = vsel %vm1239, %v1095, %v1751
        %v1880 = vsel %vm1240, %v1136, %v1752
        %v1881 = vsel %vm1241, %v1177, %v1753
        %v1882 = vsel %vm1242, %v565, %v1754
        %v1883 = vsel %vm1243, %v606, %v1755
        %v1884 = vsel %vm1244, %v647, %v1756
        %v1885 = vsel %vm1245, %v688, %v1757
        %v1886 = vsel %vm1246, %v729, %v1758
        %v1887 = vsel %vm1247, %v770, %v1759
        %v1888 = vsel %vm1248, %v811, %v1760
        %v1889 = vsel %vm1249, %v852, %v1761
        %v1890 = vsel %vm1250, %v893, %v1762
        %v1891 = vsel %vm1251, %v934, %v1763
        %v1892 = vsel %vm1252, %v975, %v1764
        %v1893 = vsel %vm1253, %v1016, %v1765
        %v1894 = vsel %vm1254, %v1057, %v1766
        %v1895 = vsel %vm1255, %v1098, %v1767
        %v1896 = vsel %vm1256, %v1139, %v1768
        %v1897 = vsel %vm1257, %v1180, %v1769
        %v1898 = vsel %vm1258, %v568, %v1770
        %v1899 = vsel %vm1259, %v609, %v1771
        %v1900 = vsel %vm1260, %v650, %v1772
        %v1901 = vsel %vm1261, %v691, %v1773
        %v1902 = vsel %vm1262, %v732, %v1774
        %v1903 = vsel %vm1263, %v773, %v1775
        %v1904 = vsel %vm1264, %v814, %v1776
        %v1905 = vsel %vm1265, %v855, %v1777
        %v1906 = vsel %vm1266, %v896, %v1778
        %v1907 = vsel %vm1267, %v937, %v1779
        %v1908 = vsel %vm1268, %v978, %v1780
        %v1909 = vsel %vm1269, %v1019, %v1781
        %v1910 = vsel %vm1270, %v1060, %v1782
        %v1911 = vsel %vm1271, %v1101, %v1783
        %v1912 = vsel %vm1272, %v1142, %v1784
        %v1913 = vsel %vm1273, %v1183, %v1785
        %v1914 = vsel %vm1274, %v571, %v1786
        %v1915 = vsel %vm1275, %v612, %v1787
        %v1916 = vsel %vm1276, %v653, %v1788
        %v1917 = vsel %vm1277, %v694, %v1789
        %v1918 = vsel %vm1278, %v735, %v1790
        %v1919 = vsel %vm1279, %v776, %v1791
        %v1920 = vsel %vm1280, %v817, %v1792
        %v1921 = vsel %vm1281, %v858, %v1793
        %v1922 = vsel %vm1282, %v899, %v1794
        %v1923 = vsel %vm1283, %v940, %v1795
        %v1924 = vsel %vm1284, %v981, %v1796
        %v1925 = vsel %vm1285, %v1022, %v1797
        %v1926 = vsel %vm1286, %v1063, %v1798
        %v1927 = vsel %vm1287, %v1104, %v1799
        %v1928 = vsel %vm1288, %v1145, %v1800
        %v1929 = vsel %vm1289, %v1186, %v1801
        %v1930 = vsel %vm1290, %v574, %v1802
        %v1931 = vsel %vm1291, %v615, %v1803
        %v1932 = vsel %vm1292, %v656, %v1804
        %v1933 = vsel %vm1293, %v697, %v1805
        %v1934 = vsel %vm1294, %v738, %v1806
        %v1935 = vsel %vm1295, %v779, %v1807
        %v1936 = vsel %vm1296, %v820, %v1808
        %v1937 = vsel %vm1297, %v861, %v1809
        %v1938 = vsel %vm1298, %v902, %v1810
        %v1939 = vsel %vm1299, %v943, %v1811
        %v1940 = vsel %vm1300, %v984, %v1812
        %v1941 = vsel %vm1301, %v1025, %v1813
        %v1942 = vsel %vm1302, %v1066, %v1814
        %v1943 = vsel %vm1303, %v1107, %v1815
        %v1944 = vsel %vm1304, %v1148, %v1816
        %v1945 = vsel %vm1305, %v1189, %v1817
        %v1946 = vsel %vm1306, %v577, %v1818
        %v1947 = vsel %vm1307, %v618, %v1819
        %v1948 = vsel %vm1308, %v659, %v1820
        %v1949 = vsel %vm1309, %v700, %v1821
        %v1950 = vsel %vm1310, %v741, %v1822
        %v1951 = vsel %vm1311, %v782, %v1823
        %v1952 = vsel %vm1312, %v823, %v1824
        %v1953 = vsel %vm1313, %v864, %v1825
        %v1954 = vsel %vm1314, %v905, %v1826
        %v1955 = vsel %vm1315, %v946, %v1827
        %v1956 = vsel %vm1316, %v987, %v1828
        %v1957 = vsel %vm1317, %v1028, %v1829
        %v1958 = vsel %vm1318, %v1069, %v1830
        %v1959 = vsel %vm1319, %v1110, %v1831
        %v1960 = vsel %vm1320, %v1151, %v1832
        %v1961 = vsel %vm1321, %v1192, %v1833
        %v1962 = vld [vmem:[%s4] sm:$0xff]
        %v1963 = vld [vmem:[%s4 + $0x8] sm:$0xff]
        %v1964 = vld [vmem:[%s4 + $0x10] sm:$0xff]
        %v1965 = vld [vmem:[%s4 + $0x18] sm:$0xff]
        %v1966 = vld [vmem:[%s4 + $0x20] sm:$0xff]
        %v1967 = vld [vmem:[%s4 + $0x28] sm:$0xff]
        %v1968 = vld [vmem:[%s4 + $0x30] sm:$0xff]
        %v1969 = vld [vmem:[%s4 + $0x38] sm:$0xff]
        %v1970 = vld [vmem:[%s5] sm:$0xff]
        %v1971 = vld [vmem:[%s5 + $0x8] sm:$0xff]
        %v1972 = vld [vmem:[%s5 + $0x10] sm:$0xff]
        %v1973 = vld [vmem:[%s5 + $0x18] sm:$0xff]
        %v1974 = vld [vmem:[%s5 + $0x20] sm:$0xff]
        %v1975 = vld [vmem:[%s5 + $0x28] sm:$0xff]
        %v1976 = vld [vmem:[%s5 + $0x30] sm:$0xff]
        %v1977 = vld [vmem:[%s5 + $0x38] sm:$0xff]
        %1979 = vset.pattern.permute.xlu0 0
        %1980 = vperm.xlu0 %1979, %v1970
        %v1981 = vpop.permute.xlu0 %1980
        %1984 = vset.pattern.permute.xlu0 0
        %1985 = vperm.xlu0 %1984, %v1971
        %v1986 = vpop.permute.xlu0 %1985
        %1989 = vset.pattern.permute.xlu0 0
        %1990 = vperm.xlu0 %1989, %v1972
        %v1991 = vpop.permute.xlu0 %1990
        %1994 = vset.pattern.permute.xlu0 0
        %1995 = vperm.xlu0 %1994, %v1973
        %v1996 = vpop.permute.xlu0 %1995
        %1999 = vset.pattern.permute.xlu0 0
        %2000 = vperm.xlu0 %1999, %v1974
        %v2001 = vpop.permute.xlu0 %2000
        %2004 = vset.pattern.permute.xlu0 0
        %2005 = vperm.xlu0 %2004, %v1975
        %v2006 = vpop.permute.xlu0 %2005
        %2009 = vset.pattern.permute.xlu0 0
        %2010 = vperm.xlu0 %2009, %v1976
        %v2011 = vpop.permute.xlu0 %2010
        %2014 = vset.pattern.permute.xlu0 0
        %2015 = vperm.xlu0 %2014, %v1977
        %v2016 = vpop.permute.xlu0 %2015
        %vm2018 = vcmask 523264
        %v2020 = vsel %vm2018, %v1962, 0
        %v2023 = vsel %vm2018, %v1963, 0
        %v2026 = vsel %vm2018, %v1964, 0
        %v2029 = vsel %vm2018, %v1965, 0
        %v2032 = vsel %vm2018, %v1966, 0
        %v2035 = vsel %vm2018, %v1967, 0
        %v2038 = vsel %vm2018, %v1968, 0
        %v2041 = vsel %vm2018, %v1969, 0
        %2043 = vmatpush.msra.mxu0 0.0
        %2044 = vmatpush.msra.mxu0 0.0
        %2045 = vmatpush.msra.mxu0 0.0
        %2046 = vmatpush.msra.mxu0 0.0
        %2047 = vmatpush.msra.mxu0 0.0
        %2048 = vmatpush.msra.mxu0 0.0
        %2049 = vmatpush.msra.mxu0 0.0
        %2050 = vmatpush.msra.mxu0 0.0
        %2051 = vmatpush.msra.mxu0 %v1946
        %2052 = vmatpush.msra.mxu0 %v1930
        %2053 = vmatpush.msra.mxu0 %v1914
        %2054 = vmatpush.msra.mxu0 %v1898
        %2055 = vmatpush.msra.mxu0 %v1882
        %2056 = vmatpush.msra.mxu0 %v1866
        %2057 = vmatpush.msra.mxu0 %v1850
        %2058 = vmatpush.msra.mxu0 %v1834
        %2059 = vmatmul.f32.gmra.mxu0 %v2020
        %v2060 = vpop.f32.mrf.mxu0
        %v2061 = vadd.f32 %v1981, %v2060
        %2062 = vmatmul.f32.gmra.mxu0 %v2023
        %v2063 = vpop.f32.mrf.mxu0
        %v2064 = vadd.f32 %v1986, %v2063
        %2065 = vmatmul.f32.gmra.mxu0 %v2026
        %v2066 = vpop.f32.mrf.mxu0
        %v2067 = vadd.f32 %v1991, %v2066
        %2068 = vmatmul.f32.gmra.mxu0 %v2029
        %v2069 = vpop.f32.mrf.mxu0
        %v2070 = vadd.f32 %v1996, %v2069
        %2071 = vmatmul.f32.gmra.mxu0 %v2032
        %v2072 = vpop.f32.mrf.mxu0
        %v2073 = vadd.f32 %v2001, %v2072
        %2074 = vmatmul.f32.gmra.mxu0 %v2035
        %v2075 = vpop.f32.mrf.mxu0
        %v2076 = vadd.f32 %v2006, %v2075
        %2077 = vmatmul.f32.gmra.mxu0 %v2038
        %v2078 = vpop.f32.mrf.mxu0
        %v2079 = vadd.f32 %v2011, %v2078
        %2080 = vmatmul.f32.gmra.mxu0 %v2041
        %v2081 = vpop.f32.mrf.mxu0
        %v2082 = vadd.f32 %v2016, %v2081
        %2083 = vdwg.mxu0
        %2084 = vmatpush.msra.mxu0 0.0
        %2085 = vmatpush.msra.mxu0 0.0
        %2086 = vmatpush.msra.mxu0 0.0
        %2087 = vmatpush.msra.mxu0 0.0
        %2088 = vmatpush.msra.mxu0 0.0
        %2089 = vmatpush.msra.mxu0 0.0
        %2090 = vmatpush.msra.mxu0 0.0
        %2091 = vmatpush.msra.mxu0 0.0
        %2092 = vmatpush.msra.mxu0 %v1947
        %2093 = vmatpush.msra.mxu0 %v1931
        %2094 = vmatpush.msra.mxu0 %v1915
        %2095 = vmatpush.msra.mxu0 %v1899
        %2096 = vmatpush.msra.mxu0 %v1883
        %2097 = vmatpush.msra.mxu0 %v1867
        %2098 = vmatpush.msra.mxu0 %v1851
        %2099 = vmatpush.msra.mxu0 %v1835
        %2100 = vmatmul.f32.gmra.mxu0 %v2020
        %v2101 = vpop.f32.mrf.mxu0
        %v2102 = vadd.f32 %v1981, %v2101
        %2103 = vmatmul.f32.gmra.mxu0 %v2023
        %v2104 = vpop.f32.mrf.mxu0
        %v2105 = vadd.f32 %v1986, %v2104
        %2106 = vmatmul.f32.gmra.mxu0 %v2026
        %v2107 = vpop.f32.mrf.mxu0
        %v2108 = vadd.f32 %v1991, %v2107
        %2109 = vmatmul.f32.gmra.mxu0 %v2029
        %v2110 = vpop.f32.mrf.mxu0
        %v2111 = vadd.f32 %v1996, %v2110
        %2112 = vmatmul.f32.gmra.mxu0 %v2032
        %v2113 = vpop.f32.mrf.mxu0
        %v2114 = vadd.f32 %v2001, %v2113
        %2115 = vmatmul.f32.gmra.mxu0 %v2035
        %v2116 = vpop.f32.mrf.mxu0
        %v2117 = vadd.f32 %v2006, %v2116
        %2118 = vmatmul.f32.gmra.mxu0 %v2038
        %v2119 = vpop.f32.mrf.mxu0
        %v2120 = vadd.f32 %v2011, %v2119
        %2121 = vmatmul.f32.gmra.mxu0 %v2041
        %v2122 = vpop.f32.mrf.mxu0
        %v2123 = vadd.f32 %v2016, %v2122
        %2124 = vdwg.mxu0
        %2125 = vmatpush.msra.mxu0 0.0
        %2126 = vmatpush.msra.mxu0 0.0
        %2127 = vmatpush.msra.mxu0 0.0
        %2128 = vmatpush.msra.mxu0 0.0
        %2129 = vmatpush.msra.mxu0 0.0
        %2130 = vmatpush.msra.mxu0 0.0
        %2131 = vmatpush.msra.mxu0 0.0
        %2132 = vmatpush.msra.mxu0 0.0
        %2133 = vmatpush.msra.mxu0 %v1948
        %2134 = vmatpush.msra.mxu0 %v1932
        %2135 = vmatpush.msra.mxu0 %v1916
        %2136 = vmatpush.msra.mxu0 %v1900
        %2137 = vmatpush.msra.mxu0 %v1884
        %2138 = vmatpush.msra.mxu0 %v1868
        %2139 = vmatpush.msra.mxu0 %v1852
        %2140 = vmatpush.msra.mxu0 %v1836
        %2141 = vmatmul.f32.gmra.mxu0 %v2020
        %v2142 = vpop.f32.mrf.mxu0
        %v2143 = vadd.f32 %v1981, %v2142
        %2144 = vmatmul.f32.gmra.mxu0 %v2023
        %v2145 = vpop.f32.mrf.mxu0
        %v2146 = vadd.f32 %v1986, %v2145
        %2147 = vmatmul.f32.gmra.mxu0 %v2026
        %v2148 = vpop.f32.mrf.mxu0
        %v2149 = vadd.f32 %v1991, %v2148
        %2150 = vmatmul.f32.gmra.mxu0 %v2029
        %v2151 = vpop.f32.mrf.mxu0
        %v2152 = vadd.f32 %v1996, %v2151
        %2153 = vmatmul.f32.gmra.mxu0 %v2032
        %v2154 = vpop.f32.mrf.mxu0
        %v2155 = vadd.f32 %v2001, %v2154
        %2156 = vmatmul.f32.gmra.mxu0 %v2035
        %v2157 = vpop.f32.mrf.mxu0
        %v2158 = vadd.f32 %v2006, %v2157
        %2159 = vmatmul.f32.gmra.mxu0 %v2038
        %v2160 = vpop.f32.mrf.mxu0
        %v2161 = vadd.f32 %v2011, %v2160
        %2162 = vmatmul.f32.gmra.mxu0 %v2041
        %v2163 = vpop.f32.mrf.mxu0
        %v2164 = vadd.f32 %v2016, %v2163
        %2165 = vdwg.mxu0
        %2166 = vmatpush.msra.mxu0 0.0
        %2167 = vmatpush.msra.mxu0 0.0
        %2168 = vmatpush.msra.mxu0 0.0
        %2169 = vmatpush.msra.mxu0 0.0
        %2170 = vmatpush.msra.mxu0 0.0
        %2171 = vmatpush.msra.mxu0 0.0
        %2172 = vmatpush.msra.mxu0 0.0
        %2173 = vmatpush.msra.mxu0 0.0
        %2174 = vmatpush.msra.mxu0 %v1949
        %2175 = vmatpush.msra.mxu0 %v1933
        %2176 = vmatpush.msra.mxu0 %v1917
        %2177 = vmatpush.msra.mxu0 %v1901
        %2178 = vmatpush.msra.mxu0 %v1885
        %2179 = vmatpush.msra.mxu0 %v1869
        %2180 = vmatpush.msra.mxu0 %v1853
        %2181 = vmatpush.msra.mxu0 %v1837
        %2182 = vmatmul.f32.gmra.mxu0 %v2020
        %v2183 = vpop.f32.mrf.mxu0
        %v2184 = vadd.f32 %v1981, %v2183
        %2185 = vmatmul.f32.gmra.mxu0 %v2023
        %v2186 = vpop.f32.mrf.mxu0
        %v2187 = vadd.f32 %v1986, %v2186
        %2188 = vmatmul.f32.gmra.mxu0 %v2026
        %v2189 = vpop.f32.mrf.mxu0
        %v2190 = vadd.f32 %v1991, %v2189
        %2191 = vmatmul.f32.gmra.mxu0 %v2029
        %v2192 = vpop.f32.mrf.mxu0
        %v2193 = vadd.f32 %v1996, %v2192
        %2194 = vmatmul.f32.gmra.mxu0 %v2032
        %v2195 = vpop.f32.mrf.mxu0
        %v2196 = vadd.f32 %v2001, %v2195
        %2197 = vmatmul.f32.gmra.mxu0 %v2035
        %v2198 = vpop.f32.mrf.mxu0
        %v2199 = vadd.f32 %v2006, %v2198
        %2200 = vmatmul.f32.gmra.mxu0 %v2038
        %v2201 = vpop.f32.mrf.mxu0
        %v2202 = vadd.f32 %v2011, %v2201
        %2203 = vmatmul.f32.gmra.mxu0 %v2041
        %v2204 = vpop.f32.mrf.mxu0
        %v2205 = vadd.f32 %v2016, %v2204
        %2206 = vdwg.mxu0
        %2207 = vmatpush.msra.mxu0 0.0
        %2208 = vmatpush.msra.mxu0 0.0
        %2209 = vmatpush.msra.mxu0 0.0
        %2210 = vmatpush.msra.mxu0 0.0
        %2211 = vmatpush.msra.mxu0 0.0
        %2212 = vmatpush.msra.mxu0 0.0
        %2213 = vmatpush.msra.mxu0 0.0
        %2214 = vmatpush.msra.mxu0 0.0
        %2215 = vmatpush.msra.mxu0 %v1950
        %2216 = vmatpush.msra.mxu0 %v1934
        %2217 = vmatpush.msra.mxu0 %v1918
        %2218 = vmatpush.msra.mxu0 %v1902
        %2219 = vmatpush.msra.mxu0 %v1886
        %2220 = vmatpush.msra.mxu0 %v1870
        %2221 = vmatpush.msra.mxu0 %v1854
        %2222 = vmatpush.msra.mxu0 %v1838
        %2223 = vmatmul.f32.gmra.mxu0 %v2020
        %v2224 = vpop.f32.mrf.mxu0
        %v2225 = vadd.f32 %v1981, %v2224
        %2226 = vmatmul.f32.gmra.mxu0 %v2023
        %v2227 = vpop.f32.mrf.mxu0
        %v2228 = vadd.f32 %v1986, %v2227
        %2229 = vmatmul.f32.gmra.mxu0 %v2026
        %v2230 = vpop.f32.mrf.mxu0
        %v2231 = vadd.f32 %v1991, %v2230
        %2232 = vmatmul.f32.gmra.mxu0 %v2029
        %v2233 = vpop.f32.mrf.mxu0
        %v2234 = vadd.f32 %v1996, %v2233
        %2235 = vmatmul.f32.gmra.mxu0 %v2032
        %v2236 = vpop.f32.mrf.mxu0
        %v2237 = vadd.f32 %v2001, %v2236
        %2238 = vmatmul.f32.gmra.mxu0 %v2035
        %v2239 = vpop.f32.mrf.mxu0
        %v2240 = vadd.f32 %v2006, %v2239
        %2241 = vmatmul.f32.gmra.mxu0 %v2038
        %v2242 = vpop.f32.mrf.mxu0
        %v2243 = vadd.f32 %v2011, %v2242
        %2244 = vmatmul.f32.gmra.mxu0 %v2041
        %v2245 = vpop.f32.mrf.mxu0
        %v2246 = vadd.f32 %v2016, %v2245
        %2247 = vdwg.mxu0
        %2248 = vmatpush.msra.mxu0 0.0
        %2249 = vmatpush.msra.mxu0 0.0
        %2250 = vmatpush.msra.mxu0 0.0
        %2251 = vmatpush.msra.mxu0 0.0
        %2252 = vmatpush.msra.mxu0 0.0
        %2253 = vmatpush.msra.mxu0 0.0
        %2254 = vmatpush.msra.mxu0 0.0
        %2255 = vmatpush.msra.mxu0 0.0
        %2256 = vmatpush.msra.mxu0 %v1951
        %2257 = vmatpush.msra.mxu0 %v1935
        %2258 = vmatpush.msra.mxu0 %v1919
        %2259 = vmatpush.msra.mxu0 %v1903
        %2260 = vmatpush.msra.mxu0 %v1887
        %2261 = vmatpush.msra.mxu0 %v1871
        %2262 = vmatpush.msra.mxu0 %v1855
        %2263 = vmatpush.msra.mxu0 %v1839
        %2264 = vmatmul.f32.gmra.mxu0 %v2020
        %v2265 = vpop.f32.mrf.mxu0
        %v2266 = vadd.f32 %v1981, %v2265
        %2267 = vmatmul.f32.gmra.mxu0 %v2023
        %v2268 = vpop.f32.mrf.mxu0
        %v2269 = vadd.f32 %v1986, %v2268
        %2270 = vmatmul.f32.gmra.mxu0 %v2026
        %v2271 = vpop.f32.mrf.mxu0
        %v2272 = vadd.f32 %v1991, %v2271
        %2273 = vmatmul.f32.gmra.mxu0 %v2029
        %v2274 = vpop.f32.mrf.mxu0
        %v2275 = vadd.f32 %v1996, %v2274
        %2276 = vmatmul.f32.gmra.mxu0 %v2032
        %v2277 = vpop.f32.mrf.mxu0
        %v2278 = vadd.f32 %v2001, %v2277
        %2279 = vmatmul.f32.gmra.mxu0 %v2035
        %v2280 = vpop.f32.mrf.mxu0
        %v2281 = vadd.f32 %v2006, %v2280
        %2282 = vmatmul.f32.gmra.mxu0 %v2038
        %v2283 = vpop.f32.mrf.mxu0
        %v2284 = vadd.f32 %v2011, %v2283
        %2285 = vmatmul.f32.gmra.mxu0 %v2041
        %v2286 = vpop.f32.mrf.mxu0
        %v2287 = vadd.f32 %v2016, %v2286
        %2288 = vdwg.mxu0
        %2289 = vmatpush.msra.mxu0 0.0
        %2290 = vmatpush.msra.mxu0 0.0
        %2291 = vmatpush.msra.mxu0 0.0
        %2292 = vmatpush.msra.mxu0 0.0
        %2293 = vmatpush.msra.mxu0 0.0
        %2294 = vmatpush.msra.mxu0 0.0
        %2295 = vmatpush.msra.mxu0 0.0
        %2296 = vmatpush.msra.mxu0 0.0
        %2297 = vmatpush.msra.mxu0 %v1952
        %2298 = vmatpush.msra.mxu0 %v1936
        %2299 = vmatpush.msra.mxu0 %v1920
        %2300 = vmatpush.msra.mxu0 %v1904
        %2301 = vmatpush.msra.mxu0 %v1888
        %2302 = vmatpush.msra.mxu0 %v1872
        %2303 = vmatpush.msra.mxu0 %v1856
        %2304 = vmatpush.msra.mxu0 %v1840
        %2305 = vmatmul.f32.gmra.mxu0 %v2020
        %v2306 = vpop.f32.mrf.mxu0
        %v2307 = vadd.f32 %v1981, %v2306
        %2308 = vmatmul.f32.gmra.mxu0 %v2023
        %v2309 = vpop.f32.mrf.mxu0
        %v2310 = vadd.f32 %v1986, %v2309
        %2311 = vmatmul.f32.gmra.mxu0 %v2026
        %v2312 = vpop.f32.mrf.mxu0
        %v2313 = vadd.f32 %v1991, %v2312
        %2314 = vmatmul.f32.gmra.mxu0 %v2029
        %v2315 = vpop.f32.mrf.mxu0
        %v2316 = vadd.f32 %v1996, %v2315
        %2317 = vmatmul.f32.gmra.mxu0 %v2032
        %v2318 = vpop.f32.mrf.mxu0
        %v2319 = vadd.f32 %v2001, %v2318
        %2320 = vmatmul.f32.gmra.mxu0 %v2035
        %v2321 = vpop.f32.mrf.mxu0
        %v2322 = vadd.f32 %v2006, %v2321
        %2323 = vmatmul.f32.gmra.mxu0 %v2038
        %v2324 = vpop.f32.mrf.mxu0
        %v2325 = vadd.f32 %v2011, %v2324
        %2326 = vmatmul.f32.gmra.mxu0 %v2041
        %v2327 = vpop.f32.mrf.mxu0
        %v2328 = vadd.f32 %v2016, %v2327
        %2329 = vdwg.mxu0
        %2330 = vmatpush.msra.mxu0 0.0
        %2331 = vmatpush.msra.mxu0 0.0
        %2332 = vmatpush.msra.mxu0 0.0
        %2333 = vmatpush.msra.mxu0 0.0
        %2334 = vmatpush.msra.mxu0 0.0
        %2335 = vmatpush.msra.mxu0 0.0
        %2336 = vmatpush.msra.mxu0 0.0
        %2337 = vmatpush.msra.mxu0 0.0
        %2338 = vmatpush.msra.mxu0 %v1953
        %2339 = vmatpush.msra.mxu0 %v1937
        %2340 = vmatpush.msra.mxu0 %v1921
        %2341 = vmatpush.msra.mxu0 %v1905
        %2342 = vmatpush.msra.mxu0 %v1889
        %2343 = vmatpush.msra.mxu0 %v1873
        %2344 = vmatpush.msra.mxu0 %v1857
        %2345 = vmatpush.msra.mxu0 %v1841
        %2346 = vmatmul.f32.gmra.mxu0 %v2020
        %v2347 = vpop.f32.mrf.mxu0
        %v2348 = vadd.f32 %v1981, %v2347
        %2349 = vmatmul.f32.gmra.mxu0 %v2023
        %v2350 = vpop.f32.mrf.mxu0
        %v2351 = vadd.f32 %v1986, %v2350
        %2352 = vmatmul.f32.gmra.mxu0 %v2026
        %v2353 = vpop.f32.mrf.mxu0
        %v2354 = vadd.f32 %v1991, %v2353
        %2355 = vmatmul.f32.gmra.mxu0 %v2029
        %v2356 = vpop.f32.mrf.mxu0
        %v2357 = vadd.f32 %v1996, %v2356
        %2358 = vmatmul.f32.gmra.mxu0 %v2032
        %v2359 = vpop.f32.mrf.mxu0
        %v2360 = vadd.f32 %v2001, %v2359
        %2361 = vmatmul.f32.gmra.mxu0 %v2035
        %v2362 = vpop.f32.mrf.mxu0
        %v2363 = vadd.f32 %v2006, %v2362
        %2364 = vmatmul.f32.gmra.mxu0 %v2038
        %v2365 = vpop.f32.mrf.mxu0
        %v2366 = vadd.f32 %v2011, %v2365
        %2367 = vmatmul.f32.gmra.mxu0 %v2041
        %v2368 = vpop.f32.mrf.mxu0
        %v2369 = vadd.f32 %v2016, %v2368
        %2370 = vdwg.mxu0
        %2371 = vmatpush.msra.mxu0 0.0
        %2372 = vmatpush.msra.mxu0 0.0
        %2373 = vmatpush.msra.mxu0 0.0
        %2374 = vmatpush.msra.mxu0 0.0
        %2375 = vmatpush.msra.mxu0 0.0
        %2376 = vmatpush.msra.mxu0 0.0
        %2377 = vmatpush.msra.mxu0 0.0
        %2378 = vmatpush.msra.mxu0 0.0
        %2379 = vmatpush.msra.mxu0 %v1954
        %2380 = vmatpush.msra.mxu0 %v1938
        %2381 = vmatpush.msra.mxu0 %v1922
        %2382 = vmatpush.msra.mxu0 %v1906
        %2383 = vmatpush.msra.mxu0 %v1890
        %2384 = vmatpush.msra.mxu0 %v1874
        %2385 = vmatpush.msra.mxu0 %v1858
        %2386 = vmatpush.msra.mxu0 %v1842
        %2387 = vmatmul.f32.gmra.mxu0 %v2020
        %v2388 = vpop.f32.mrf.mxu0
        %v2389 = vadd.f32 %v1981, %v2388
        %2390 = vmatmul.f32.gmra.mxu0 %v2023
        %v2391 = vpop.f32.mrf.mxu0
        %v2392 = vadd.f32 %v1986, %v2391
        %2393 = vmatmul.f32.gmra.mxu0 %v2026
        %v2394 = vpop.f32.mrf.mxu0
        %v2395 = vadd.f32 %v1991, %v2394
        %2396 = vmatmul.f32.gmra.mxu0 %v2029
        %v2397 = vpop.f32.mrf.mxu0
        %v2398 = vadd.f32 %v1996, %v2397
        %2399 = vmatmul.f32.gmra.mxu0 %v2032
        %v2400 = vpop.f32.mrf.mxu0
        %v2401 = vadd.f32 %v2001, %v2400
        %2402 = vmatmul.f32.gmra.mxu0 %v2035
        %v2403 = vpop.f32.mrf.mxu0
        %v2404 = vadd.f32 %v2006, %v2403
        %2405 = vmatmul.f32.gmra.mxu0 %v2038
        %v2406 = vpop.f32.mrf.mxu0
        %v2407 = vadd.f32 %v2011, %v2406
        %2408 = vmatmul.f32.gmra.mxu0 %v2041
        %v2409 = vpop.f32.mrf.mxu0
        %v2410 = vadd.f32 %v2016, %v2409
        %2411 = vdwg.mxu0
        %2412 = vmatpush.msra.mxu0 0.0
        %2413 = vmatpush.msra.mxu0 0.0
        %2414 = vmatpush.msra.mxu0 0.0
        %2415 = vmatpush.msra.mxu0 0.0
        %2416 = vmatpush.msra.mxu0 0.0
        %2417 = vmatpush.msra.mxu0 0.0
        %2418 = vmatpush.msra.mxu0 0.0
        %2419 = vmatpush.msra.mxu0 0.0
        %2420 = vmatpush.msra.mxu0 %v1955
        %2421 = vmatpush.msra.mxu0 %v1939
        %2422 = vmatpush.msra.mxu0 %v1923
        %2423 = vmatpush.msra.mxu0 %v1907
        %2424 = vmatpush.msra.mxu0 %v1891
        %2425 = vmatpush.msra.mxu0 %v1875
        %2426 = vmatpush.msra.mxu0 %v1859
        %2427 = vmatpush.msra.mxu0 %v1843
        %2428 = vmatmul.f32.gmra.mxu0 %v2020
        %v2429 = vpop.f32.mrf.mxu0
        %v2430 = vadd.f32 %v1981, %v2429
        %2431 = vmatmul.f32.gmra.mxu0 %v2023
        %v2432 = vpop.f32.mrf.mxu0
        %v2433 = vadd.f32 %v1986, %v2432
        %2434 = vmatmul.f32.gmra.mxu0 %v2026
        %v2435 = vpop.f32.mrf.mxu0
        %v2436 = vadd.f32 %v1991, %v2435
        %2437 = vmatmul.f32.gmra.mxu0 %v2029
        %v2438 = vpop.f32.mrf.mxu0
        %v2439 = vadd.f32 %v1996, %v2438
        %2440 = vmatmul.f32.gmra.mxu0 %v2032
        %v2441 = vpop.f32.mrf.mxu0
        %v2442 = vadd.f32 %v2001, %v2441
        %2443 = vmatmul.f32.gmra.mxu0 %v2035
        %v2444 = vpop.f32.mrf.mxu0
        %v2445 = vadd.f32 %v2006, %v2444
        %2446 = vmatmul.f32.gmra.mxu0 %v2038
        %v2447 = vpop.f32.mrf.mxu0
        %v2448 = vadd.f32 %v2011, %v2447
        %2449 = vmatmul.f32.gmra.mxu0 %v2041
        %v2450 = vpop.f32.mrf.mxu0
        %v2451 = vadd.f32 %v2016, %v2450
        %2452 = vdwg.mxu0
        %2453 = vmatpush.msra.mxu0 0.0
        %2454 = vmatpush.msra.mxu0 0.0
        %2455 = vmatpush.msra.mxu0 0.0
        %2456 = vmatpush.msra.mxu0 0.0
        %2457 = vmatpush.msra.mxu0 0.0
        %2458 = vmatpush.msra.mxu0 0.0
        %2459 = vmatpush.msra.mxu0 0.0
        %2460 = vmatpush.msra.mxu0 0.0
        %2461 = vmatpush.msra.mxu0 %v1956
        %2462 = vmatpush.msra.mxu0 %v1940
        %2463 = vmatpush.msra.mxu0 %v1924
        %2464 = vmatpush.msra.mxu0 %v1908
        %2465 = vmatpush.msra.mxu0 %v1892
        %2466 = vmatpush.msra.mxu0 %v1876
        %2467 = vmatpush.msra.mxu0 %v1860
        %2468 = vmatpush.msra.mxu0 %v1844
        %2469 = vmatmul.f32.gmra.mxu0 %v2020
        %v2470 = vpop.f32.mrf.mxu0
        %v2471 = vadd.f32 %v1981, %v2470
        %2472 = vmatmul.f32.gmra.mxu0 %v2023
        %v2473 = vpop.f32.mrf.mxu0
        %v2474 = vadd.f32 %v1986, %v2473
        %2475 = vmatmul.f32.gmra.mxu0 %v2026
        %v2476 = vpop.f32.mrf.mxu0
        %v2477 = vadd.f32 %v1991, %v2476
        %2478 = vmatmul.f32.gmra.mxu0 %v2029
        %v2479 = vpop.f32.mrf.mxu0
        %v2480 = vadd.f32 %v1996, %v2479
        %2481 = vmatmul.f32.gmra.mxu0 %v2032
        %v2482 = vpop.f32.mrf.mxu0
        %v2483 = vadd.f32 %v2001, %v2482
        %2484 = vmatmul.f32.gmra.mxu0 %v2035
        %v2485 = vpop.f32.mrf.mxu0
        %v2486 = vadd.f32 %v2006, %v2485
        %2487 = vmatmul.f32.gmra.mxu0 %v2038
        %v2488 = vpop.f32.mrf.mxu0
        %v2489 = vadd.f32 %v2011, %v2488
        %2490 = vmatmul.f32.gmra.mxu0 %v2041
        %v2491 = vpop.f32.mrf.mxu0
        %v2492 = vadd.f32 %v2016, %v2491
        %2493 = vdwg.mxu0
        %2494 = vmatpush.msra.mxu0 0.0
        %2495 = vmatpush.msra.mxu0 0.0
        %2496 = vmatpush.msra.mxu0 0.0
        %2497 = vmatpush.msra.mxu0 0.0
        %2498 = vmatpush.msra.mxu0 0.0
        %2499 = vmatpush.msra.mxu0 0.0
        %2500 = vmatpush.msra.mxu0 0.0
        %2501 = vmatpush.msra.mxu0 0.0
        %2502 = vmatpush.msra.mxu0 %v1957
        %2503 = vmatpush.msra.mxu0 %v1941
        %2504 = vmatpush.msra.mxu0 %v1925
        %2505 = vmatpush.msra.mxu0 %v1909
        %2506 = vmatpush.msra.mxu0 %v1893
        %2507 = vmatpush.msra.mxu0 %v1877
        %2508 = vmatpush.msra.mxu0 %v1861
        %2509 = vmatpush.msra.mxu0 %v1845
        %2510 = vmatmul.f32.gmra.mxu0 %v2020
        %v2511 = vpop.f32.mrf.mxu0
        %v2512 = vadd.f32 %v1981, %v2511
        %2513 = vmatmul.f32.gmra.mxu0 %v2023
        %v2514 = vpop.f32.mrf.mxu0
        %v2515 = vadd.f32 %v1986, %v2514
        %2516 = vmatmul.f32.gmra.mxu0 %v2026
        %v2517 = vpop.f32.mrf.mxu0
        %v2518 = vadd.f32 %v1991, %v2517
        %2519 = vmatmul.f32.gmra.mxu0 %v2029
        %v2520 = vpop.f32.mrf.mxu0
        %v2521 = vadd.f32 %v1996, %v2520
        %2522 = vmatmul.f32.gmra.mxu0 %v2032
        %v2523 = vpop.f32.mrf.mxu0
        %v2524 = vadd.f32 %v2001, %v2523
        %2525 = vmatmul.f32.gmra.mxu0 %v2035
        %v2526 = vpop.f32.mrf.mxu0
        %v2527 = vadd.f32 %v2006, %v2526
        %2528 = vmatmul.f32.gmra.mxu0 %v2038
        %v2529 = vpop.f32.mrf.mxu0
        %v2530 = vadd.f32 %v2011, %v2529
        %2531 = vmatmul.f32.gmra.mxu0 %v2041
        %v2532 = vpop.f32.mrf.mxu0
        %v2533 = vadd.f32 %v2016, %v2532
        %2534 = vdwg.mxu0
        %2535 = vmatpush.msra.mxu0 0.0
        %2536 = vmatpush.msra.mxu0 0.0
        %2537 = vmatpush.msra.mxu0 0.0
        %2538 = vmatpush.msra.mxu0 0.0
        %2539 = vmatpush.msra.mxu0 0.0
        %2540 = vmatpush.msra.mxu0 0.0
        %2541 = vmatpush.msra.mxu0 0.0
        %2542 = vmatpush.msra.mxu0 0.0
        %2543 = vmatpush.msra.mxu0 %v1958
        %2544 = vmatpush.msra.mxu0 %v1942
        %2545 = vmatpush.msra.mxu0 %v1926
        %2546 = vmatpush.msra.mxu0 %v1910
        %2547 = vmatpush.msra.mxu0 %v1894
        %2548 = vmatpush.msra.mxu0 %v1878
        %2549 = vmatpush.msra.mxu0 %v1862
        %2550 = vmatpush.msra.mxu0 %v1846
        %2551 = vmatmul.f32.gmra.mxu0 %v2020
        %v2552 = vpop.f32.mrf.mxu0
        %v2553 = vadd.f32 %v1981, %v2552
        %2554 = vmatmul.f32.gmra.mxu0 %v2023
        %v2555 = vpop.f32.mrf.mxu0
        %v2556 = vadd.f32 %v1986, %v2555
        %2557 = vmatmul.f32.gmra.mxu0 %v2026
        %v2558 = vpop.f32.mrf.mxu0
        %v2559 = vadd.f32 %v1991, %v2558
        %2560 = vmatmul.f32.gmra.mxu0 %v2029
        %v2561 = vpop.f32.mrf.mxu0
        %v2562 = vadd.f32 %v1996, %v2561
        %2563 = vmatmul.f32.gmra.mxu0 %v2032
        %v2564 = vpop.f32.mrf.mxu0
        %v2565 = vadd.f32 %v2001, %v2564
        %2566 = vmatmul.f32.gmra.mxu0 %v2035
        %v2567 = vpop.f32.mrf.mxu0
        %v2568 = vadd.f32 %v2006, %v2567
        %2569 = vmatmul.f32.gmra.mxu0 %v2038
        %v2570 = vpop.f32.mrf.mxu0
        %v2571 = vadd.f32 %v2011, %v2570
        %2572 = vmatmul.f32.gmra.mxu0 %v2041
        %v2573 = vpop.f32.mrf.mxu0
        %v2574 = vadd.f32 %v2016, %v2573
        %2575 = vdwg.mxu0
        %2576 = vmatpush.msra.mxu0 0.0
        %2577 = vmatpush.msra.mxu0 0.0
        %2578 = vmatpush.msra.mxu0 0.0
        %2579 = vmatpush.msra.mxu0 0.0
        %2580 = vmatpush.msra.mxu0 0.0
        %2581 = vmatpush.msra.mxu0 0.0
        %2582 = vmatpush.msra.mxu0 0.0
        %2583 = vmatpush.msra.mxu0 0.0
        %2584 = vmatpush.msra.mxu0 %v1959
        %2585 = vmatpush.msra.mxu0 %v1943
        %2586 = vmatpush.msra.mxu0 %v1927
        %2587 = vmatpush.msra.mxu0 %v1911
        %2588 = vmatpush.msra.mxu0 %v1895
        %2589 = vmatpush.msra.mxu0 %v1879
        %2590 = vmatpush.msra.mxu0 %v1863
        %2591 = vmatpush.msra.mxu0 %v1847
        %2592 = vmatmul.f32.gmra.mxu0 %v2020
        %v2593 = vpop.f32.mrf.mxu0
        %v2594 = vadd.f32 %v1981, %v2593
        %2595 = vmatmul.f32.gmra.mxu0 %v2023
        %v2596 = vpop.f32.mrf.mxu0
        %v2597 = vadd.f32 %v1986, %v2596
        %2598 = vmatmul.f32.gmra.mxu0 %v2026
        %v2599 = vpop.f32.mrf.mxu0
        %v2600 = vadd.f32 %v1991, %v2599
        %2601 = vmatmul.f32.gmra.mxu0 %v2029
        %v2602 = vpop.f32.mrf.mxu0
        %v2603 = vadd.f32 %v1996, %v2602
        %2604 = vmatmul.f32.gmra.mxu0 %v2032
        %v2605 = vpop.f32.mrf.mxu0
        %v2606 = vadd.f32 %v2001, %v2605
        %2607 = vmatmul.f32.gmra.mxu0 %v2035
        %v2608 = vpop.f32.mrf.mxu0
        %v2609 = vadd.f32 %v2006, %v2608
        %2610 = vmatmul.f32.gmra.mxu0 %v2038
        %v2611 = vpop.f32.mrf.mxu0
        %v2612 = vadd.f32 %v2011, %v2611
        %2613 = vmatmul.f32.gmra.mxu0 %v2041
        %v2614 = vpop.f32.mrf.mxu0
        %v2615 = vadd.f32 %v2016, %v2614
        %2616 = vdwg.mxu0
        %2617 = vmatpush.msra.mxu0 0.0
        %2618 = vmatpush.msra.mxu0 0.0
        %2619 = vmatpush.msra.mxu0 0.0
        %2620 = vmatpush.msra.mxu0 0.0
        %2621 = vmatpush.msra.mxu0 0.0
        %2622 = vmatpush.msra.mxu0 0.0
        %2623 = vmatpush.msra.mxu0 0.0
        %2624 = vmatpush.msra.mxu0 0.0
        %2625 = vmatpush.msra.mxu0 %v1960
        %2626 = vmatpush.msra.mxu0 %v1944
        %2627 = vmatpush.msra.mxu0 %v1928
        %2628 = vmatpush.msra.mxu0 %v1912
        %2629 = vmatpush.msra.mxu0 %v1896
        %2630 = vmatpush.msra.mxu0 %v1880
        %2631 = vmatpush.msra.mxu0 %v1864
        %2632 = vmatpush.msra.mxu0 %v1848
        %2633 = vmatmul.f32.gmra.mxu0 %v2020
        %v2634 = vpop.f32.mrf.mxu0
        %v2635 = vadd.f32 %v1981, %v2634
        %2636 = vmatmul.f32.gmra.mxu0 %v2023
        %v2637 = vpop.f32.mrf.mxu0
        %v2638 = vadd.f32 %v1986, %v2637
        %2639 = vmatmul.f32.gmra.mxu0 %v2026
        %v2640 = vpop.f32.mrf.mxu0
        %v2641 = vadd.f32 %v1991, %v2640
        %2642 = vmatmul.f32.gmra.mxu0 %v2029
        %v2643 = vpop.f32.mrf.mxu0
        %v2644 = vadd.f32 %v1996, %v2643
        %2645 = vmatmul.f32.gmra.mxu0 %v2032
        %v2646 = vpop.f32.mrf.mxu0
        %v2647 = vadd.f32 %v2001, %v2646
        %2648 = vmatmul.f32.gmra.mxu0 %v2035
        %v2649 = vpop.f32.mrf.mxu0
        %v2650 = vadd.f32 %v2006, %v2649
        %2651 = vmatmul.f32.gmra.mxu0 %v2038
        %v2652 = vpop.f32.mrf.mxu0
        %v2653 = vadd.f32 %v2011, %v2652
        %2654 = vmatmul.f32.gmra.mxu0 %v2041
        %v2655 = vpop.f32.mrf.mxu0
        %v2656 = vadd.f32 %v2016, %v2655
        %2657 = vdwg.mxu0
        %2658 = vmatpush.msra.mxu0 0.0
        %2659 = vmatpush.msra.mxu0 0.0
        %2660 = vmatpush.msra.mxu0 0.0
        %2661 = vmatpush.msra.mxu0 0.0
        %2662 = vmatpush.msra.mxu0 0.0
        %2663 = vmatpush.msra.mxu0 0.0
        %2664 = vmatpush.msra.mxu0 0.0
        %2665 = vmatpush.msra.mxu0 0.0
        %2666 = vmatpush.msra.mxu0 %v1961
        %2667 = vmatpush.msra.mxu0 %v1945
        %2668 = vmatpush.msra.mxu0 %v1929
        %2669 = vmatpush.msra.mxu0 %v1913
        %2670 = vmatpush.msra.mxu0 %v1897
        %2671 = vmatpush.msra.mxu0 %v1881
        %2672 = vmatpush.msra.mxu0 %v1865
        %2673 = vmatpush.msra.mxu0 %v1849
        %2674 = vmatmul.f32.gmra.mxu0 %v2020
        %v2675 = vpop.f32.mrf.mxu0
        %v2676 = vadd.f32 %v1981, %v2675
        %2677 = vmatmul.f32.gmra.mxu0 %v2023
        %v2678 = vpop.f32.mrf.mxu0
        %v2679 = vadd.f32 %v1986, %v2678
        %2680 = vmatmul.f32.gmra.mxu0 %v2026
        %v2681 = vpop.f32.mrf.mxu0
        %v2682 = vadd.f32 %v1991, %v2681
        %2683 = vmatmul.f32.gmra.mxu0 %v2029
        %v2684 = vpop.f32.mrf.mxu0
        %v2685 = vadd.f32 %v1996, %v2684
        %2686 = vmatmul.f32.gmra.mxu0 %v2032
        %v2687 = vpop.f32.mrf.mxu0
        %v2688 = vadd.f32 %v2001, %v2687
        %2689 = vmatmul.f32.gmra.mxu0 %v2035
        %v2690 = vpop.f32.mrf.mxu0
        %v2691 = vadd.f32 %v2006, %v2690
        %2692 = vmatmul.f32.gmra.mxu0 %v2038
        %v2693 = vpop.f32.mrf.mxu0
        %v2694 = vadd.f32 %v2011, %v2693
        %2695 = vmatmul.f32.gmra.mxu0 %v2041
        %v2696 = vpop.f32.mrf.mxu0
        %v2697 = vadd.f32 %v2016, %v2696
        %2698 = vdwg.mxu0
        %vm2699 = vcmp.gt.f32.partialorder %v2061, 0.0
        %vm2700 = vcmp.gt.f32.partialorder %v2102, 0.0
        %vm2701 = vcmp.gt.f32.partialorder %v2143, 0.0
        %vm2702 = vcmp.gt.f32.partialorder %v2184, 0.0
        %vm2703 = vcmp.gt.f32.partialorder %v2225, 0.0
        %vm2704 = vcmp.gt.f32.partialorder %v2266, 0.0
        %vm2705 = vcmp.gt.f32.partialorder %v2307, 0.0
        %vm2706 = vcmp.gt.f32.partialorder %v2348, 0.0
        %vm2707 = vcmp.gt.f32.partialorder %v2389, 0.0
        %vm2708 = vcmp.gt.f32.partialorder %v2430, 0.0
        %vm2709 = vcmp.gt.f32.partialorder %v2471, 0.0
        %vm2710 = vcmp.gt.f32.partialorder %v2512, 0.0
        %vm2711 = vcmp.gt.f32.partialorder %v2553, 0.0
        %vm2712 = vcmp.gt.f32.partialorder %v2594, 0.0
        %vm2713 = vcmp.gt.f32.partialorder %v2635, 0.0
        %vm2714 = vcmp.gt.f32.partialorder %v2676, 0.0
        %vm2715 = vcmp.gt.f32.partialorder %v2064, 0.0
        %vm2716 = vcmp.gt.f32.partialorder %v2105, 0.0
        %vm2717 = vcmp.gt.f32.partialorder %v2146, 0.0
        %vm2718 = vcmp.gt.f32.partialorder %v2187, 0.0
        %vm2719 = vcmp.gt.f32.partialorder %v2228, 0.0
        %vm2720 = vcmp.gt.f32.partialorder %v2269, 0.0
        %vm2721 = vcmp.gt.f32.partialorder %v2310, 0.0
        %vm2722 = vcmp.gt.f32.partialorder %v2351, 0.0
        %vm2723 = vcmp.gt.f32.partialorder %v2392, 0.0
        %vm2724 = vcmp.gt.f32.partialorder %v2433, 0.0
        %vm2725 = vcmp.gt.f32.partialorder %v2474, 0.0
        %vm2726 = vcmp.gt.f32.partialorder %v2515, 0.0
        %vm2727 = vcmp.gt.f32.partialorder %v2556, 0.0
        %vm2728 = vcmp.gt.f32.partialorder %v2597, 0.0
        %vm2729 = vcmp.gt.f32.partialorder %v2638, 0.0
        %vm2730 = vcmp.gt.f32.partialorder %v2679, 0.0
        %vm2731 = vcmp.gt.f32.partialorder %v2067, 0.0
        %vm2732 = vcmp.gt.f32.partialorder %v2108, 0.0
        %vm2733 = vcmp.gt.f32.partialorder %v2149, 0.0
        %vm2734 = vcmp.gt.f32.partialorder %v2190, 0.0
        %vm2735 = vcmp.gt.f32.partialorder %v2231, 0.0
        %vm2736 = vcmp.gt.f32.partialorder %v2272, 0.0
        %vm2737 = vcmp.gt.f32.partialorder %v2313, 0.0
        %vm2738 = vcmp.gt.f32.partialorder %v2354, 0.0
        %vm2739 = vcmp.gt.f32.partialorder %v2395, 0.0
        %vm2740 = vcmp.gt.f32.partialorder %v2436, 0.0
        %vm2741 = vcmp.gt.f32.partialorder %v2477, 0.0
        %vm2742 = vcmp.gt.f32.partialorder %v2518, 0.0
        %vm2743 = vcmp.gt.f32.partialorder %v2559, 0.0
        %vm2744 = vcmp.gt.f32.partialorder %v2600, 0.0
        %vm2745 = vcmp.gt.f32.partialorder %v2641, 0.0
        %vm2746 = vcmp.gt.f32.partialorder %v2682, 0.0
        %vm2747 = vcmp.gt.f32.partialorder %v2070, 0.0
        %vm2748 = vcmp.gt.f32.partialorder %v2111, 0.0
        %vm2749 = vcmp.gt.f32.partialorder %v2152, 0.0
        %vm2750 = vcmp.gt.f32.partialorder %v2193, 0.0
        %vm2751 = vcmp.gt.f32.partialorder %v2234, 0.0
        %vm2752 = vcmp.gt.f32.partialorder %v2275, 0.0
        %vm2753 = vcmp.gt.f32.partialorder %v2316, 0.0
        %vm2754 = vcmp.gt.f32.partialorder %v2357, 0.0
        %vm2755 = vcmp.gt.f32.partialorder %v2398, 0.0
        %vm2756 = vcmp.gt.f32.partialorder %v2439, 0.0
        %vm2757 = vcmp.gt.f32.partialorder %v2480, 0.0
        %vm2758 = vcmp.gt.f32.partialorder %v2521, 0.0
        %vm2759 = vcmp.gt.f32.partialorder %v2562, 0.0
        %vm2760 = vcmp.gt.f32.partialorder %v2603, 0.0
        %vm2761 = vcmp.gt.f32.partialorder %v2644, 0.0
        %vm2762 = vcmp.gt.f32.partialorder %v2685, 0.0
        %vm2763 = vcmp.gt.f32.partialorder %v2073, 0.0
        %vm2764 = vcmp.gt.f32.partialorder %v2114, 0.0
        %vm2765 = vcmp.gt.f32.partialorder %v2155, 0.0
        %vm2766 = vcmp.gt.f32.partialorder %v2196, 0.0
        %vm2767 = vcmp.gt.f32.partialorder %v2237, 0.0
        %vm2768 = vcmp.gt.f32.partialorder %v2278, 0.0
        %vm2769 = vcmp.gt.f32.partialorder %v2319, 0.0
        %vm2770 = vcmp.gt.f32.partialorder %v2360, 0.0
        %vm2771 = vcmp.gt.f32.partialorder %v2401, 0.0
        %vm2772 = vcmp.gt.f32.partialorder %v2442, 0.0
        %vm2773 = vcmp.gt.f32.partialorder %v2483, 0.0
        %vm2774 = vcmp.gt.f32.partialorder %v2524, 0.0
        %vm2775 = vcmp.gt.f32.partialorder %v2565, 0.0
        %vm2776 = vcmp.gt.f32.partialorder %v2606, 0.0
        %vm2777 = vcmp.gt.f32.partialorder %v2647, 0.0
        %vm2778 = vcmp.gt.f32.partialorder %v2688, 0.0
        %vm2779 = vcmp.gt.f32.partialorder %v2076, 0.0
        %vm2780 = vcmp.gt.f32.partialorder %v2117, 0.0
        %vm2781 = vcmp.gt.f32.partialorder %v2158, 0.0
        %vm2782 = vcmp.gt.f32.partialorder %v2199, 0.0
        %vm2783 = vcmp.gt.f32.partialorder %v2240, 0.0
        %vm2784 = vcmp.gt.f32.partialorder %v2281, 0.0
        %vm2785 = vcmp.gt.f32.partialorder %v2322, 0.0
        %vm2786 = vcmp.gt.f32.partialorder %v2363, 0.0
        %vm2787 = vcmp.gt.f32.partialorder %v2404, 0.0
        %vm2788 = vcmp.gt.f32.partialorder %v2445, 0.0
        %vm2789 = vcmp.gt.f32.partialorder %v2486, 0.0
        %vm2790 = vcmp.gt.f32.partialorder %v2527, 0.0
        %vm2791 = vcmp.gt.f32.partialorder %v2568, 0.0
        %vm2792 = vcmp.gt.f32.partialorder %v2609, 0.0
        %vm2793 = vcmp.gt.f32.partialorder %v2650, 0.0
        %vm2794 = vcmp.gt.f32.partialorder %v2691, 0.0
        %vm2795 = vcmp.gt.f32.partialorder %v2079, 0.0
        %vm2796 = vcmp.gt.f32.partialorder %v2120, 0.0
        %vm2797 = vcmp.gt.f32.partialorder %v2161, 0.0
        %vm2798 = vcmp.gt.f32.partialorder %v2202, 0.0
        %vm2799 = vcmp.gt.f32.partialorder %v2243, 0.0
        %vm2800 = vcmp.gt.f32.partialorder %v2284, 0.0
        %vm2801 = vcmp.gt.f32.partialorder %v2325, 0.0
        %vm2802 = vcmp.gt.f32.partialorder %v2366, 0.0
        %vm2803 = vcmp.gt.f32.partialorder %v2407, 0.0
        %vm2804 = vcmp.gt.f32.partialorder %v2448, 0.0
        %vm2805 = vcmp.gt.f32.partialorder %v2489, 0.0
        %vm2806 = vcmp.gt.f32.partialorder %v2530, 0.0
        %vm2807 = vcmp.gt.f32.partialorder %v2571, 0.0
        %vm2808 = vcmp.gt.f32.partialorder %v2612, 0.0
        %vm2809 = vcmp.gt.f32.partialorder %v2653, 0.0
        %vm2810 = vcmp.gt.f32.partialorder %v2694, 0.0
        %vm2811 = vcmp.gt.f32.partialorder %v2082, 0.0
        %vm2812 = vcmp.gt.f32.partialorder %v2123, 0.0
        %vm2813 = vcmp.gt.f32.partialorder %v2164, 0.0
        %vm2814 = vcmp.gt.f32.partialorder %v2205, 0.0
        %vm2815 = vcmp.gt.f32.partialorder %v2246, 0.0
        %vm2816 = vcmp.gt.f32.partialorder %v2287, 0.0
        %vm2817 = vcmp.gt.f32.partialorder %v2328, 0.0
        %vm2818 = vcmp.gt.f32.partialorder %v2369, 0.0
        %vm2819 = vcmp.gt.f32.partialorder %v2410, 0.0
        %vm2820 = vcmp.gt.f32.partialorder %v2451, 0.0
        %vm2821 = vcmp.gt.f32.partialorder %v2492, 0.0
        %vm2822 = vcmp.gt.f32.partialorder %v2533, 0.0
        %vm2823 = vcmp.gt.f32.partialorder %v2574, 0.0
        %vm2824 = vcmp.gt.f32.partialorder %v2615, 0.0
        %vm2825 = vcmp.gt.f32.partialorder %v2656, 0.0
        %vm2826 = vcmp.gt.f32.partialorder %v2697, 0.0
        %v2827 = vmin.f32 %v2061, 0.0
        %v2828 = vmin.f32 %v2102, 0.0
        %v2829 = vmin.f32 %v2143, 0.0
        %v2830 = vmin.f32 %v2184, 0.0
        %v2831 = vmin.f32 %v2225, 0.0
        %v2832 = vmin.f32 %v2266, 0.0
        %v2833 = vmin.f32 %v2307, 0.0
        %v2834 = vmin.f32 %v2348, 0.0
        %v2835 = vmin.f32 %v2389, 0.0
        %v2836 = vmin.f32 %v2430, 0.0
        %v2837 = vmin.f32 %v2471, 0.0
        %v2838 = vmin.f32 %v2512, 0.0
        %v2839 = vmin.f32 %v2553, 0.0
        %v2840 = vmin.f32 %v2594, 0.0
        %v2841 = vmin.f32 %v2635, 0.0
        %v2842 = vmin.f32 %v2676, 0.0
        %v2843 = vmin.f32 %v2064, 0.0
        %v2844 = vmin.f32 %v2105, 0.0
        %v2845 = vmin.f32 %v2146, 0.0
        %v2846 = vmin.f32 %v2187, 0.0
        %v2847 = vmin.f32 %v2228, 0.0
        %v2848 = vmin.f32 %v2269, 0.0
        %v2849 = vmin.f32 %v2310, 0.0
        %v2850 = vmin.f32 %v2351, 0.0
        %v2851 = vmin.f32 %v2392, 0.0
        %v2852 = vmin.f32 %v2433, 0.0
        %v2853 = vmin.f32 %v2474, 0.0
        %v2854 = vmin.f32 %v2515, 0.0
        %v2855 = vmin.f32 %v2556, 0.0
        %v2856 = vmin.f32 %v2597, 0.0
        %v2857 = vmin.f32 %v2638, 0.0
        %v2858 = vmin.f32 %v2679, 0.0
        %v2859 = vmin.f32 %v2067, 0.0
        %v2860 = vmin.f32 %v2108, 0.0
        %v2861 = vmin.f32 %v2149, 0.0
        %v2862 = vmin.f32 %v2190, 0.0
        %v2863 = vmin.f32 %v2231, 0.0
        %v2864 = vmin.f32 %v2272, 0.0
        %v2865 = vmin.f32 %v2313, 0.0
        %v2866 = vmin.f32 %v2354, 0.0
        %v2867 = vmin.f32 %v2395, 0.0
        %v2868 = vmin.f32 %v2436, 0.0
        %v2869 = vmin.f32 %v2477, 0.0
        %v2870 = vmin.f32 %v2518, 0.0
        %v2871 = vmin.f32 %v2559, 0.0
        %v2872 = vmin.f32 %v2600, 0.0
        %v2873 = vmin.f32 %v2641, 0.0
        %v2874 = vmin.f32 %v2682, 0.0
        %v2875 = vmin.f32 %v2070, 0.0
        %v2876 = vmin.f32 %v2111, 0.0
        %v2877 = vmin.f32 %v2152, 0.0
        %v2878 = vmin.f32 %v2193, 0.0
        %v2879 = vmin.f32 %v2234, 0.0
        %v2880 = vmin.f32 %v2275, 0.0
        %v2881 = vmin.f32 %v2316, 0.0
        %v2882 = vmin.f32 %v2357, 0.0
        %v2883 = vmin.f32 %v2398, 0.0
        %v2884 = vmin.f32 %v2439, 0.0
        %v2885 = vmin.f32 %v2480, 0.0
        %v2886 = vmin.f32 %v2521, 0.0
        %v2887 = vmin.f32 %v2562, 0.0
        %v2888 = vmin.f32 %v2603, 0.0
        %v2889 = vmin.f32 %v2644, 0.0
        %v2890 = vmin.f32 %v2685, 0.0
        %v2891 = vmin.f32 %v2073, 0.0
        %v2892 = vmin.f32 %v2114, 0.0
        %v2893 = vmin.f32 %v2155, 0.0
        %v2894 = vmin.f32 %v2196, 0.0
        %v2895 = vmin.f32 %v2237, 0.0
        %v2896 = vmin.f32 %v2278, 0.0
        %v2897 = vmin.f32 %v2319, 0.0
        %v2898 = vmin.f32 %v2360, 0.0
        %v2899 = vmin.f32 %v2401, 0.0
        %v2900 = vmin.f32 %v2442, 0.0
        %v2901 = vmin.f32 %v2483, 0.0
        %v2902 = vmin.f32 %v2524, 0.0
        %v2903 = vmin.f32 %v2565, 0.0
        %v2904 = vmin.f32 %v2606, 0.0
        %v2905 = vmin.f32 %v2647, 0.0
        %v2906 = vmin.f32 %v2688, 0.0
        %v2907 = vmin.f32 %v2076, 0.0
        %v2908 = vmin.f32 %v2117, 0.0
        %v2909 = vmin.f32 %v2158, 0.0
        %v2910 = vmin.f32 %v2199, 0.0
        %v2911 = vmin.f32 %v2240, 0.0
        %v2912 = vmin.f32 %v2281, 0.0
        %v2913 = vmin.f32 %v2322, 0.0
        %v2914 = vmin.f32 %v2363, 0.0
        %v2915 = vmin.f32 %v2404, 0.0
        %v2916 = vmin.f32 %v2445, 0.0
        %v2917 = vmin.f32 %v2486, 0.0
        %v2918 = vmin.f32 %v2527, 0.0
        %v2919 = vmin.f32 %v2568, 0.0
        %v2920 = vmin.f32 %v2609, 0.0
        %v2921 = vmin.f32 %v2650, 0.0
        %v2922 = vmin.f32 %v2691, 0.0
        %v2923 = vmin.f32 %v2079, 0.0
        %v2924 = vmin.f32 %v2120, 0.0
        %v2925 = vmin.f32 %v2161, 0.0
        %v2926 = vmin.f32 %v2202, 0.0
        %v2927 = vmin.f32 %v2243, 0.0
        %v2928 = vmin.f32 %v2284, 0.0
        %v2929 = vmin.f32 %v2325, 0.0
        %v2930 = vmin.f32 %v2366, 0.0
        %v2931 = vmin.f32 %v2407, 0.0
        %v2932 = vmin.f32 %v2448, 0.0
        %v2933 = vmin.f32 %v2489, 0.0
        %v2934 = vmin.f32 %v2530, 0.0
        %v2935 = vmin.f32 %v2571, 0.0
        %v2936 = vmin.f32 %v2612, 0.0
        %v2937 = vmin.f32 %v2653, 0.0
        %v2938 = vmin.f32 %v2694, 0.0
        %v2939 = vmin.f32 %v2082, 0.0
        %v2940 = vmin.f32 %v2123, 0.0
        %v2941 = vmin.f32 %v2164, 0.0
        %v2942 = vmin.f32 %v2205, 0.0
        %v2943 = vmin.f32 %v2246, 0.0
        %v2944 = vmin.f32 %v2287, 0.0
        %v2945 = vmin.f32 %v2328, 0.0
        %v2946 = vmin.f32 %v2369, 0.0
        %v2947 = vmin.f32 %v2410, 0.0
        %v2948 = vmin.f32 %v2451, 0.0
        %v2949 = vmin.f32 %v2492, 0.0
        %v2950 = vmin.f32 %v2533, 0.0
        %v2951 = vmin.f32 %v2574, 0.0
        %v2952 = vmin.f32 %v2615, 0.0
        %v2953 = vmin.f32 %v2656, 0.0
        %v2954 = vmin.f32 %v2697, 0.0
        %v2955 = vmul.f32 %v2827, 1.442695
        %v2956 = vpow.pop %v2955
        %v2957 = vmul.f32 %v2828, 1.442695
        %v2958 = vpow.pop %v2957
        %v2959 = vmul.f32 %v2829, 1.442695
        %v2960 = vpow.pop %v2959
        %v2961 = vmul.f32 %v2830, 1.442695
        %v2962 = vpow.pop %v2961
        %v2963 = vmul.f32 %v2831, 1.442695
        %v2964 = vpow.pop %v2963
        %v2965 = vmul.f32 %v2832, 1.442695
        %v2966 = vpow.pop %v2965
        %v2967 = vmul.f32 %v2833, 1.442695
        %v2968 = vpow.pop %v2967
        %v2969 = vmul.f32 %v2834, 1.442695
        %v2970 = vpow.pop %v2969
        %v2971 = vmul.f32 %v2835, 1.442695
        %v2972 = vpow.pop %v2971
        %v2973 = vmul.f32 %v2836, 1.442695
        %v2974 = vpow.pop %v2973
        %v2975 = vmul.f32 %v2837, 1.442695
        %v2976 = vpow.pop %v2975
        %v2977 = vmul.f32 %v2838, 1.442695
        %v2978 = vpow.pop %v2977
        %v2979 = vmul.f32 %v2839, 1.442695
        %v2980 = vpow.pop %v2979
        %v2981 = vmul.f32 %v2840, 1.442695
        %v2982 = vpow.pop %v2981
        %v2983 = vmul.f32 %v2841, 1.442695
        %v2984 = vpow.pop %v2983
        %v2985 = vmul.f32 %v2842, 1.442695
        %v2986 = vpow.pop %v2985
        %v2987 = vmul.f32 %v2843, 1.442695
        %v2988 = vpow.pop %v2987
        %v2989 = vmul.f32 %v2844, 1.442695
        %v2990 = vpow.pop %v2989
        %v2991 = vmul.f32 %v2845, 1.442695
        %v2992 = vpow.pop %v2991
        %v2993 = vmul.f32 %v2846, 1.442695
        %v2994 = vpow.pop %v2993
        %v2995 = vmul.f32 %v2847, 1.442695
        %v2996 = vpow.pop %v2995
        %v2997 = vmul.f32 %v2848, 1.442695
        %v2998 = vpow.pop %v2997
        %v2999 = vmul.f32 %v2849, 1.442695
        %v3000 = vpow.pop %v2999
        %v3001 = vmul.f32 %v2850, 1.442695
        %v3002 = vpow.pop %v3001
        %v3003 = vmul.f32 %v2851, 1.442695
        %v3004 = vpow.pop %v3003
        %v3005 = vmul.f32 %v2852, 1.442695
        %v3006 = vpow.pop %v3005
        %v3007 = vmul.f32 %v2853, 1.442695
        %v3008 = vpow.pop %v3007
        %v3009 = vmul.f32 %v2854, 1.442695
        %v3010 = vpow.pop %v3009
        %v3011 = vmul.f32 %v2855, 1.442695
        %v3012 = vpow.pop %v3011
        %v3013 = vmul.f32 %v2856, 1.442695
        %v3014 = vpow.pop %v3013
        %v3015 = vmul.f32 %v2857, 1.442695
        %v3016 = vpow.pop %v3015
        %v3017 = vmul.f32 %v2858, 1.442695
        %v3018 = vpow.pop %v3017
        %v3019 = vmul.f32 %v2859, 1.442695
        %v3020 = vpow.pop %v3019
        %v3021 = vmul.f32 %v2860, 1.442695
        %v3022 = vpow.pop %v3021
        %v3023 = vmul.f32 %v2861, 1.442695
        %v3024 = vpow.pop %v3023
        %v3025 = vmul.f32 %v2862, 1.442695
        %v3026 = vpow.pop %v3025
        %v3027 = vmul.f32 %v2863, 1.442695
        %v3028 = vpow.pop %v3027
        %v3029 = vmul.f32 %v2864, 1.442695
        %v3030 = vpow.pop %v3029
        %v3031 = vmul.f32 %v2865, 1.442695
        %v3032 = vpow.pop %v3031
        %v3033 = vmul.f32 %v2866, 1.442695
        %v3034 = vpow.pop %v3033
        %v3035 = vmul.f32 %v2867, 1.442695
        %v3036 = vpow.pop %v3035
        %v3037 = vmul.f32 %v2868, 1.442695
        %v3038 = vpow.pop %v3037
        %v3039 = vmul.f32 %v2869, 1.442695
        %v3040 = vpow.pop %v3039
        %v3041 = vmul.f32 %v2870, 1.442695
        %v3042 = vpow.pop %v3041
        %v3043 = vmul.f32 %v2871, 1.442695
        %v3044 = vpow.pop %v3043
        %v3045 = vmul.f32 %v2872, 1.442695
        %v3046 = vpow.pop %v3045
        %v3047 = vmul.f32 %v2873, 1.442695
        %v3048 = vpow.pop %v3047
        %v3049 = vmul.f32 %v2874, 1.442695
        %v3050 = vpow.pop %v3049
        %v3051 = vmul.f32 %v2875, 1.442695
        %v3052 = vpow.pop %v3051
        %v3053 = vmul.f32 %v2876, 1.442695
        %v3054 = vpow.pop %v3053
        %v3055 = vmul.f32 %v2877, 1.442695
        %v3056 = vpow.pop %v3055
        %v3057 = vmul.f32 %v2878, 1.442695
        %v3058 = vpow.pop %v3057
        %v3059 = vmul.f32 %v2879, 1.442695
        %v3060 = vpow.pop %v3059
        %v3061 = vmul.f32 %v2880, 1.442695
        %v3062 = vpow.pop %v3061
        %v3063 = vmul.f32 %v2881, 1.442695
        %v3064 = vpow.pop %v3063
        %v3065 = vmul.f32 %v2882, 1.442695
        %v3066 = vpow.pop %v3065
        %v3067 = vmul.f32 %v2883, 1.442695
        %v3068 = vpow.pop %v3067
        %v3069 = vmul.f32 %v2884, 1.442695
        %v3070 = vpow.pop %v3069
        %v3071 = vmul.f32 %v2885, 1.442695
        %v3072 = vpow.pop %v3071
        %v3073 = vmul.f32 %v2886, 1.442695
        %v3074 = vpow.pop %v3073
        %v3075 = vmul.f32 %v2887, 1.442695
        %v3076 = vpow.pop %v3075
        %v3077 = vmul.f32 %v2888, 1.442695
        %v3078 = vpow.pop %v3077
        %v3079 = vmul.f32 %v2889, 1.442695
        %v3080 = vpow.pop %v3079
        %v3081 = vmul.f32 %v2890, 1.442695
        %v3082 = vpow.pop %v3081
        %v3083 = vmul.f32 %v2891, 1.442695
        %v3084 = vpow.pop %v3083
        %v3085 = vmul.f32 %v2892, 1.442695
        %v3086 = vpow.pop %v3085
        %v3087 = vmul.f32 %v2893, 1.442695
        %v3088 = vpow.pop %v3087
        %v3089 = vmul.f32 %v2894, 1.442695
        %v3090 = vpow.pop %v3089
        %v3091 = vmul.f32 %v2895, 1.442695
        %v3092 = vpow.pop %v3091
        %v3093 = vmul.f32 %v2896, 1.442695
        %v3094 = vpow.pop %v3093
        %v3095 = vmul.f32 %v2897, 1.442695
        %v3096 = vpow.pop %v3095
        %v3097 = vmul.f32 %v2898, 1.442695
        %v3098 = vpow.pop %v3097
        %v3099 = vmul.f32 %v2899, 1.442695
        %v3100 = vpow.pop %v3099
        %v3101 = vmul.f32 %v2900, 1.442695
        %v3102 = vpow.pop %v3101
        %v3103 = vmul.f32 %v2901, 1.442695
        %v3104 = vpow.pop %v3103
        %v3105 = vmul.f32 %v2902, 1.442695
        %v3106 = vpow.pop %v3105
        %v3107 = vmul.f32 %v2903, 1.442695
        %v3108 = vpow.pop %v3107
        %v3109 = vmul.f32 %v2904, 1.442695
        %v3110 = vpow.pop %v3109
        %v3111 = vmul.f32 %v2905, 1.442695
        %v3112 = vpow.pop %v3111
        %v3113 = vmul.f32 %v2906, 1.442695
        %v3114 = vpow.pop %v3113
        %v3115 = vmul.f32 %v2907, 1.442695
        %v3116 = vpow.pop %v3115
        %v3117 = vmul.f32 %v2908, 1.442695
        %v3118 = vpow.pop %v3117
        %v3119 = vmul.f32 %v2909, 1.442695
        %v3120 = vpow.pop %v3119
        %v3121 = vmul.f32 %v2910, 1.442695
        %v3122 = vpow.pop %v3121
        %v3123 = vmul.f32 %v2911, 1.442695
        %v3124 = vpow.pop %v3123
        %v3125 = vmul.f32 %v2912, 1.442695
        %v3126 = vpow.pop %v3125
        %v3127 = vmul.f32 %v2913, 1.442695
        %v3128 = vpow.pop %v3127
        %v3129 = vmul.f32 %v2914, 1.442695
        %v3130 = vpow.pop %v3129
        %v3131 = vmul.f32 %v2915, 1.442695
        %v3132 = vpow.pop %v3131
        %v3133 = vmul.f32 %v2916, 1.442695
        %v3134 = vpow.pop %v3133
        %v3135 = vmul.f32 %v2917, 1.442695
        %v3136 = vpow.pop %v3135
        %v3137 = vmul.f32 %v2918, 1.442695
        %v3138 = vpow.pop %v3137
        %v3139 = vmul.f32 %v2919, 1.442695
        %v3140 = vpow.pop %v3139
        %v3141 = vmul.f32 %v2920, 1.442695
        %v3142 = vpow.pop %v3141
        %v3143 = vmul.f32 %v2921, 1.442695
        %v3144 = vpow.pop %v3143
        %v3145 = vmul.f32 %v2922, 1.442695
        %v3146 = vpow.pop %v3145
        %v3147 = vmul.f32 %v2923, 1.442695
        %v3148 = vpow.pop %v3147
        %v3149 = vmul.f32 %v2924, 1.442695
        %v3150 = vpow.pop %v3149
        %v3151 = vmul.f32 %v2925, 1.442695
        %v3152 = vpow.pop %v3151
        %v3153 = vmul.f32 %v2926, 1.442695
        %v3154 = vpow.pop %v3153
        %v3155 = vmul.f32 %v2927, 1.442695
        %v3156 = vpow.pop %v3155
        %v3157 = vmul.f32 %v2928, 1.442695
        %v3158 = vpow.pop %v3157
        %v3159 = vmul.f32 %v2929, 1.442695
        %v3160 = vpow.pop %v3159
        %v3161 = vmul.f32 %v2930, 1.442695
        %v3162 = vpow.pop %v3161
        %v3163 = vmul.f32 %v2931, 1.442695
        %v3164 = vpow.pop %v3163
        %v3165 = vmul.f32 %v2932, 1.442695
        %v3166 = vpow.pop %v3165
        %v3167 = vmul.f32 %v2933, 1.442695
        %v3168 = vpow.pop %v3167
        %v3169 = vmul.f32 %v2934, 1.442695
        %v3170 = vpow.pop %v3169
        %v3171 = vmul.f32 %v2935, 1.442695
        %v3172 = vpow.pop %v3171
        %v3173 = vmul.f32 %v2936, 1.442695
        %v3174 = vpow.pop %v3173
        %v3175 = vmul.f32 %v2937, 1.442695
        %v3176 = vpow.pop %v3175
        %v3177 = vmul.f32 %v2938, 1.442695
        %v3178 = vpow.pop %v3177
        %v3179 = vmul.f32 %v2939, 1.442695
        %v3180 = vpow.pop %v3179
        %v3181 = vmul.f32 %v2940, 1.442695
        %v3182 = vpow.pop %v3181
        %v3183 = vmul.f32 %v2941, 1.442695
        %v3184 = vpow.pop %v3183
        %v3185 = vmul.f32 %v2942, 1.442695
        %v3186 = vpow.pop %v3185
        %v3187 = vmul.f32 %v2943, 1.442695
        %v3188 = vpow.pop %v3187
        %v3189 = vmul.f32 %v2944, 1.442695
        %v3190 = vpow.pop %v3189
        %v3191 = vmul.f32 %v2945, 1.442695
        %v3192 = vpow.pop %v3191
        %v3193 = vmul.f32 %v2946, 1.442695
        %v3194 = vpow.pop %v3193
        %v3195 = vmul.f32 %v2947, 1.442695
        %v3196 = vpow.pop %v3195
        %v3197 = vmul.f32 %v2948, 1.442695
        %v3198 = vpow.pop %v3197
        %v3199 = vmul.f32 %v2949, 1.442695
        %v3200 = vpow.pop %v3199
        %v3201 = vmul.f32 %v2950, 1.442695
        %v3202 = vpow.pop %v3201
        %v3203 = vmul.f32 %v2951, 1.442695
        %v3204 = vpow.pop %v3203
        %v3205 = vmul.f32 %v2952, 1.442695
        %v3206 = vpow.pop %v3205
        %v3207 = vmul.f32 %v2953, 1.442695
        %v3208 = vpow.pop %v3207
        %v3209 = vmul.f32 %v2954, 1.442695
        %v3210 = vpow.pop %v3209
        %v3211 = vsub.f32 %v2956, 1.0
        %v3212 = vsub.f32 %v2958, 1.0
        %v3213 = vsub.f32 %v2960, 1.0
        %v3214 = vsub.f32 %v2962, 1.0
        %v3215 = vsub.f32 %v2964, 1.0
        %v3216 = vsub.f32 %v2966, 1.0
        %v3217 = vsub.f32 %v2968, 1.0
        %v3218 = vsub.f32 %v2970, 1.0
        %v3219 = vsub.f32 %v2972, 1.0
        %v3220 = vsub.f32 %v2974, 1.0
        %v3221 = vsub.f32 %v2976, 1.0
        %v3222 = vsub.f32 %v2978, 1.0
        %v3223 = vsub.f32 %v2980, 1.0
        %v3224 = vsub.f32 %v2982, 1.0
        %v3225 = vsub.f32 %v2984, 1.0
        %v3226 = vsub.f32 %v2986, 1.0
        %v3227 = vsub.f32 %v2988, 1.0
        %v3228 = vsub.f32 %v2990, 1.0
        %v3229 = vsub.f32 %v2992, 1.0
        %v3230 = vsub.f32 %v2994, 1.0
        %v3231 = vsub.f32 %v2996, 1.0
        %v3232 = vsub.f32 %v2998, 1.0
        %v3233 = vsub.f32 %v3000, 1.0
        %v3234 = vsub.f32 %v3002, 1.0
        %v3235 = vsub.f32 %v3004, 1.0
        %v3236 = vsub.f32 %v3006, 1.0
        %v3237 = vsub.f32 %v3008, 1.0
        %v3238 = vsub.f32 %v3010, 1.0
        %v3239 = vsub.f32 %v3012, 1.0
        %v3240 = vsub.f32 %v3014, 1.0
        %v3241 = vsub.f32 %v3016, 1.0
        %v3242 = vsub.f32 %v3018, 1.0
        %v3243 = vsub.f32 %v3020, 1.0
        %v3244 = vsub.f32 %v3022, 1.0
        %v3245 = vsub.f32 %v3024, 1.0
        %v3246 = vsub.f32 %v3026, 1.0
        %v3247 = vsub.f32 %v3028, 1.0
        %v3248 = vsub.f32 %v3030, 1.0
        %v3249 = vsub.f32 %v3032, 1.0
        %v3250 = vsub.f32 %v3034, 1.0
        %v3251 = vsub.f32 %v3036, 1.0
        %v3252 = vsub.f32 %v3038, 1.0
        %v3253 = vsub.f32 %v3040, 1.0
        %v3254 = vsub.f32 %v3042, 1.0
        %v3255 = vsub.f32 %v3044, 1.0
        %v3256 = vsub.f32 %v3046, 1.0
        %v3257 = vsub.f32 %v3048, 1.0
        %v3258 = vsub.f32 %v3050, 1.0
        %v3259 = vsub.f32 %v3052, 1.0
        %v3260 = vsub.f32 %v3054, 1.0
        %v3261 = vsub.f32 %v3056, 1.0
        %v3262 = vsub.f32 %v3058, 1.0
        %v3263 = vsub.f32 %v3060, 1.0
        %v3264 = vsub.f32 %v3062, 1.0
        %v3265 = vsub.f32 %v3064, 1.0
        %v3266 = vsub.f32 %v3066, 1.0
        %v3267 = vsub.f32 %v3068, 1.0
        %v3268 = vsub.f32 %v3070, 1.0
        %v3269 = vsub.f32 %v3072, 1.0
        %v3270 = vsub.f32 %v3074, 1.0
        %v3271 = vsub.f32 %v3076, 1.0
        %v3272 = vsub.f32 %v3078, 1.0
        %v3273 = vsub.f32 %v3080, 1.0
        %v3274 = vsub.f32 %v3082, 1.0
        %v3275 = vsub.f32 %v3084, 1.0
        %v3276 = vsub.f32 %v3086, 1.0
        %v3277 = vsub.f32 %v3088, 1.0
        %v3278 = vsub.f32 %v3090, 1.0
        %v3279 = vsub.f32 %v3092, 1.0
        %v3280 = vsub.f32 %v3094, 1.0
        %v3281 = vsub.f32 %v3096, 1.0
        %v3282 = vsub.f32 %v3098, 1.0
        %v3283 = vsub.f32 %v3100, 1.0
        %v3284 = vsub.f32 %v3102, 1.0
        %v3285 = vsub.f32 %v3104, 1.0
        %v3286 = vsub.f32 %v3106, 1.0
        %v3287 = vsub.f32 %v3108, 1.0
        %v3288 = vsub.f32 %v3110, 1.0
        %v3289 = vsub.f32 %v3112, 1.0
        %v3290 = vsub.f32 %v3114, 1.0
        %v3291 = vsub.f32 %v3116, 1.0
        %v3292 = vsub.f32 %v3118, 1.0
        %v3293 = vsub.f32 %v3120, 1.0
        %v3294 = vsub.f32 %v3122, 1.0
        %v3295 = vsub.f32 %v3124, 1.0
        %v3296 = vsub.f32 %v3126, 1.0
        %v3297 = vsub.f32 %v3128, 1.0
        %v3298 = vsub.f32 %v3130, 1.0
        %v3299 = vsub.f32 %v3132, 1.0
        %v3300 = vsub.f32 %v3134, 1.0
        %v3301 = vsub.f32 %v3136, 1.0
        %v3302 = vsub.f32 %v3138, 1.0
        %v3303 = vsub.f32 %v3140, 1.0
        %v3304 = vsub.f32 %v3142, 1.0
        %v3305 = vsub.f32 %v3144, 1.0
        %v3306 = vsub.f32 %v3146, 1.0
        %v3307 = vsub.f32 %v3148, 1.0
        %v3308 = vsub.f32 %v3150, 1.0
        %v3309 = vsub.f32 %v3152, 1.0
        %v3310 = vsub.f32 %v3154, 1.0
        %v3311 = vsub.f32 %v3156, 1.0
        %v3312 = vsub.f32 %v3158, 1.0
        %v3313 = vsub.f32 %v3160, 1.0
        %v3314 = vsub.f32 %v3162, 1.0
        %v3315 = vsub.f32 %v3164, 1.0
        %v3316 = vsub.f32 %v3166, 1.0
        %v3317 = vsub.f32 %v3168, 1.0
        %v3318 = vsub.f32 %v3170, 1.0
        %v3319 = vsub.f32 %v3172, 1.0
        %v3320 = vsub.f32 %v3174, 1.0
        %v3321 = vsub.f32 %v3176, 1.0
        %v3322 = vsub.f32 %v3178, 1.0
        %v3323 = vsub.f32 %v3180, 1.0
        %v3324 = vsub.f32 %v3182, 1.0
        %v3325 = vsub.f32 %v3184, 1.0
        %v3326 = vsub.f32 %v3186, 1.0
        %v3327 = vsub.f32 %v3188, 1.0
        %v3328 = vsub.f32 %v3190, 1.0
        %v3329 = vsub.f32 %v3192, 1.0
        %v3330 = vsub.f32 %v3194, 1.0
        %v3331 = vsub.f32 %v3196, 1.0
        %v3332 = vsub.f32 %v3198, 1.0
        %v3333 = vsub.f32 %v3200, 1.0
        %v3334 = vsub.f32 %v3202, 1.0
        %v3335 = vsub.f32 %v3204, 1.0
        %v3336 = vsub.f32 %v3206, 1.0
        %v3337 = vsub.f32 %v3208, 1.0
        %v3338 = vsub.f32 %v3210, 1.0
        %v3339 = vsel %vm2699, %v2061, %v3211
        %v3340 = vsel %vm2700, %v2102, %v3212
        %v3341 = vsel %vm2701, %v2143, %v3213
        %v3342 = vsel %vm2702, %v2184, %v3214
        %v3343 = vsel %vm2703, %v2225, %v3215
        %v3344 = vsel %vm2704, %v2266, %v3216
        %v3345 = vsel %vm2705, %v2307, %v3217
        %v3346 = vsel %vm2706, %v2348, %v3218
        %v3347 = vsel %vm2707, %v2389, %v3219
        %v3348 = vsel %vm2708, %v2430, %v3220
        %v3349 = vsel %vm2709, %v2471, %v3221
        %v3350 = vsel %vm2710, %v2512, %v3222
        %v3351 = vsel %vm2711, %v2553, %v3223
        %v3352 = vsel %vm2712, %v2594, %v3224
        %v3353 = vsel %vm2713, %v2635, %v3225
        %v3354 = vsel %vm2714, %v2676, %v3226
        %v3355 = vsel %vm2715, %v2064, %v3227
        %v3356 = vsel %vm2716, %v2105, %v3228
        %v3357 = vsel %vm2717, %v2146, %v3229
        %v3358 = vsel %vm2718, %v2187, %v3230
        %v3359 = vsel %vm2719, %v2228, %v3231
        %v3360 = vsel %vm2720, %v2269, %v3232
        %v3361 = vsel %vm2721, %v2310, %v3233
        %v3362 = vsel %vm2722, %v2351, %v3234
        %v3363 = vsel %vm2723, %v2392, %v3235
        %v3364 = vsel %vm2724, %v2433, %v3236
        %v3365 = vsel %vm2725, %v2474, %v3237
        %v3366 = vsel %vm2726, %v2515, %v3238
        %v3367 = vsel %vm2727, %v2556, %v3239
        %v3368 = vsel %vm2728, %v2597, %v3240
        %v3369 = vsel %vm2729, %v2638, %v3241
        %v3370 = vsel %vm2730, %v2679, %v3242
        %v3371 = vsel %vm2731, %v2067, %v3243
        %v3372 = vsel %vm2732, %v2108, %v3244
        %v3373 = vsel %vm2733, %v2149, %v3245
        %v3374 = vsel %vm2734, %v2190, %v3246
        %v3375 = vsel %vm2735, %v2231, %v3247
        %v3376 = vsel %vm2736, %v2272, %v3248
        %v3377 = vsel %vm2737, %v2313, %v3249
        %v3378 = vsel %vm2738, %v2354, %v3250
        %v3379 = vsel %vm2739, %v2395, %v3251
        %v3380 = vsel %vm2740, %v2436, %v3252
        %v3381 = vsel %vm2741, %v2477, %v3253
        %v3382 = vsel %vm2742, %v2518, %v3254
        %v3383 = vsel %vm2743, %v2559, %v3255
        %v3384 = vsel %vm2744, %v2600, %v3256
        %v3385 = vsel %vm2745, %v2641, %v3257
        %v3386 = vsel %vm2746, %v2682, %v3258
        %v3387 = vsel %vm2747, %v2070, %v3259
        %v3388 = vsel %vm2748, %v2111, %v3260
        %v3389 = vsel %vm2749, %v2152, %v3261
        %v3390 = vsel %vm2750, %v2193, %v3262
        %v3391 = vsel %vm2751, %v2234, %v3263
        %v3392 = vsel %vm2752, %v2275, %v3264
        %v3393 = vsel %vm2753, %v2316, %v3265
        %v3394 = vsel %vm2754, %v2357, %v3266
        %v3395 = vsel %vm2755, %v2398, %v3267
        %v3396 = vsel %vm2756, %v2439, %v3268
        %v3397 = vsel %vm2757, %v2480, %v3269
        %v3398 = vsel %vm2758, %v2521, %v3270
        %v3399 = vsel %vm2759, %v2562, %v3271
        %v3400 = vsel %vm2760, %v2603, %v3272
        %v3401 = vsel %vm2761, %v2644, %v3273
        %v3402 = vsel %vm2762, %v2685, %v3274
        %v3403 = vsel %vm2763, %v2073, %v3275
        %v3404 = vsel %vm2764, %v2114, %v3276
        %v3405 = vsel %vm2765, %v2155, %v3277
        %v3406 = vsel %vm2766, %v2196, %v3278
        %v3407 = vsel %vm2767, %v2237, %v3279
        %v3408 = vsel %vm2768, %v2278, %v3280
        %v3409 = vsel %vm2769, %v2319, %v3281
        %v3410 = vsel %vm2770, %v2360, %v3282
        %v3411 = vsel %vm2771, %v2401, %v3283
        %v3412 = vsel %vm2772, %v2442, %v3284
        %v3413 = vsel %vm2773, %v2483, %v3285
        %v3414 = vsel %vm2774, %v2524, %v3286
        %v3415 = vsel %vm2775, %v2565, %v3287
        %v3416 = vsel %vm2776, %v2606, %v3288
        %v3417 = vsel %vm2777, %v2647, %v3289
        %v3418 = vsel %vm2778, %v2688, %v3290
        %v3419 = vsel %vm2779, %v2076, %v3291
        %v3420 = vsel %vm2780, %v2117, %v3292
        %v3421 = vsel %vm2781, %v2158, %v3293
        %v3422 = vsel %vm2782, %v2199, %v3294
        %v3423 = vsel %vm2783, %v2240, %v3295
        %v3424 = vsel %vm2784, %v2281, %v3296
        %v3425 = vsel %vm2785, %v2322, %v3297
        %v3426 = vsel %vm2786, %v2363, %v3298
        %v3427 = vsel %vm2787, %v2404, %v3299
        %v3428 = vsel %vm2788, %v2445, %v3300
        %v3429 = vsel %vm2789, %v2486, %v3301
        %v3430 = vsel %vm2790, %v2527, %v3302
        %v3431 = vsel %vm2791, %v2568, %v3303
        %v3432 = vsel %vm2792, %v2609, %v3304
        %v3433 = vsel %vm2793, %v2650, %v3305
        %v3434 = vsel %vm2794, %v2691, %v3306
        %v3435 = vsel %vm2795, %v2079, %v3307
        %v3436 = vsel %vm2796, %v2120, %v3308
        %v3437 = vsel %vm2797, %v2161, %v3309
        %v3438 = vsel %vm2798, %v2202, %v3310
        %v3439 = vsel %vm2799, %v2243, %v3311
        %v3440 = vsel %vm2800, %v2284, %v3312
        %v3441 = vsel %vm2801, %v2325, %v3313
        %v3442 = vsel %vm2802, %v2366, %v3314
        %v3443 = vsel %vm2803, %v2407, %v3315
        %v3444 = vsel %vm2804, %v2448, %v3316
        %v3445 = vsel %vm2805, %v2489, %v3317
        %v3446 = vsel %vm2806, %v2530, %v3318
        %v3447 = vsel %vm2807, %v2571, %v3319
        %v3448 = vsel %vm2808, %v2612, %v3320
        %v3449 = vsel %vm2809, %v2653, %v3321
        %v3450 = vsel %vm2810, %v2694, %v3322
        %v3451 = vsel %vm2811, %v2082, %v3323
        %v3452 = vsel %vm2812, %v2123, %v3324
        %v3453 = vsel %vm2813, %v2164, %v3325
        %v3454 = vsel %vm2814, %v2205, %v3326
        %v3455 = vsel %vm2815, %v2246, %v3327
        %v3456 = vsel %vm2816, %v2287, %v3328
        %v3457 = vsel %vm2817, %v2328, %v3329
        %v3458 = vsel %vm2818, %v2369, %v3330
        %v3459 = vsel %vm2819, %v2410, %v3331
        %v3460 = vsel %vm2820, %v2451, %v3332
        %v3461 = vsel %vm2821, %v2492, %v3333
        %v3462 = vsel %vm2822, %v2533, %v3334
        %v3463 = vsel %vm2823, %v2574, %v3335
        %v3464 = vsel %vm2824, %v2615, %v3336
        %v3465 = vsel %vm2825, %v2656, %v3337
        %v3466 = vsel %vm2826, %v2697, %v3338
        %s3467 = scalar_lea.vmem %s4, 64
        %v3468 = vld [vmem:[%s3467] sm:$0xff]
        %v3469 = vld [vmem:[%s3467 + $0x8] sm:$0xff]
        %v3470 = vld [vmem:[%s3467 + $0x10] sm:$0xff]
        %v3471 = vld [vmem:[%s3467 + $0x18] sm:$0xff]
        %v3472 = vld [vmem:[%s3467 + $0x20] sm:$0xff]
        %v3473 = vld [vmem:[%s3467 + $0x28] sm:$0xff]
        %v3474 = vld [vmem:[%s3467 + $0x30] sm:$0xff]
        %v3475 = vld [vmem:[%s3467 + $0x38] sm:$0xff]
        %s3476 = scalar_lea.vmem %s5, 64
        %v3477 = vld [vmem:[%s3476] sm:$0xff]
        %v3478 = vld [vmem:[%s3476 + $0x8] sm:$0xff]
        %v3479 = vld [vmem:[%s3476 + $0x10] sm:$0xff]
        %v3480 = vld [vmem:[%s3476 + $0x18] sm:$0xff]
        %v3481 = vld [vmem:[%s3476 + $0x20] sm:$0xff]
        %v3482 = vld [vmem:[%s3476 + $0x28] sm:$0xff]
        %v3483 = vld [vmem:[%s3476 + $0x30] sm:$0xff]
        %v3484 = vld [vmem:[%s3476 + $0x38] sm:$0xff]
        %3486 = vset.pattern.permute.xlu0 0
        %3487 = vperm.xlu0 %3486, %v3477
        %v3488 = vpop.permute.xlu0 %3487
        %3491 = vset.pattern.permute.xlu0 0
        %3492 = vperm.xlu0 %3491, %v3478
        %v3493 = vpop.permute.xlu0 %3492
        %3496 = vset.pattern.permute.xlu0 0
        %3497 = vperm.xlu0 %3496, %v3479
        %v3498 = vpop.permute.xlu0 %3497
        %3501 = vset.pattern.permute.xlu0 0
        %3502 = vperm.xlu0 %3501, %v3480
        %v3503 = vpop.permute.xlu0 %3502
        %3506 = vset.pattern.permute.xlu0 0
        %3507 = vperm.xlu0 %3506, %v3481
        %v3508 = vpop.permute.xlu0 %3507
        %3511 = vset.pattern.permute.xlu0 0
        %3512 = vperm.xlu0 %3511, %v3482
        %v3513 = vpop.permute.xlu0 %3512
        %3516 = vset.pattern.permute.xlu0 0
        %3517 = vperm.xlu0 %3516, %v3483
        %v3518 = vpop.permute.xlu0 %3517
        %3521 = vset.pattern.permute.xlu0 0
        %3522 = vperm.xlu0 %3521, %v3484
        %v3523 = vpop.permute.xlu0 %3522
        %v3526 = vsel %vm2018, %v3468, 0
        %v3529 = vsel %vm2018, %v3469, 0
        %v3532 = vsel %vm2018, %v3470, 0
        %v3535 = vsel %vm2018, %v3471, 0
        %v3538 = vsel %vm2018, %v3472, 0
        %v3541 = vsel %vm2018, %v3473, 0
        %v3544 = vsel %vm2018, %v3474, 0
        %v3547 = vsel %vm2018, %v3475, 0
        %3549 = vmatpush.msra.mxu0 0.0
        %3550 = vmatpush.msra.mxu0 0.0
        %3551 = vmatpush.msra.mxu0 0.0
        %3552 = vmatpush.msra.mxu0 0.0
        %3553 = vmatpush.msra.mxu0 0.0
        %3554 = vmatpush.msra.mxu0 0.0
        %3555 = vmatpush.msra.mxu0 0.0
        %3556 = vmatpush.msra.mxu0 0.0
        %3557 = vmatpush.msra.mxu0 %v3451
        %3558 = vmatpush.msra.mxu0 %v3435
        %3559 = vmatpush.msra.mxu0 %v3419
        %3560 = vmatpush.msra.mxu0 %v3403
        %3561 = vmatpush.msra.mxu0 %v3387
        %3562 = vmatpush.msra.mxu0 %v3371
        %3563 = vmatpush.msra.mxu0 %v3355
        %3564 = vmatpush.msra.mxu0 %v3339
        %3565 = vmatmul.f32.gmra.mxu0 %v3526
        %v3566 = vpop.f32.mrf.mxu0
        %v3567 = vadd.f32 %v3488, %v3566
        %3568 = vmatmul.f32.gmra.mxu0 %v3529
        %v3569 = vpop.f32.mrf.mxu0
        %v3570 = vadd.f32 %v3493, %v3569
        %3571 = vmatmul.f32.gmra.mxu0 %v3532
        %v3572 = vpop.f32.mrf.mxu0
        %v3573 = vadd.f32 %v3498, %v3572
        %3574 = vmatmul.f32.gmra.mxu0 %v3535
        %v3575 = vpop.f32.mrf.mxu0
        %v3576 = vadd.f32 %v3503, %v3575
        %3577 = vmatmul.f32.gmra.mxu0 %v3538
        %v3578 = vpop.f32.mrf.mxu0
        %v3579 = vadd.f32 %v3508, %v3578
        %3580 = vmatmul.f32.gmra.mxu0 %v3541
        %v3581 = vpop.f32.mrf.mxu0
        %v3582 = vadd.f32 %v3513, %v3581
        %3583 = vmatmul.f32.gmra.mxu0 %v3544
        %v3584 = vpop.f32.mrf.mxu0
        %v3585 = vadd.f32 %v3518, %v3584
        %3586 = vmatmul.f32.gmra.mxu0 %v3547
        %v3587 = vpop.f32.mrf.mxu0
        %v3588 = vadd.f32 %v3523, %v3587
        %3589 = vdwg.mxu0
        %3590 = vmatpush.msra.mxu0 0.0
        %3591 = vmatpush.msra.mxu0 0.0
        %3592 = vmatpush.msra.mxu0 0.0
        %3593 = vmatpush.msra.mxu0 0.0
        %3594 = vmatpush.msra.mxu0 0.0
        %3595 = vmatpush.msra.mxu0 0.0
        %3596 = vmatpush.msra.mxu0 0.0
        %3597 = vmatpush.msra.mxu0 0.0
        %3598 = vmatpush.msra.mxu0 %v3452
        %3599 = vmatpush.msra.mxu0 %v3436
        %3600 = vmatpush.msra.mxu0 %v3420
        %3601 = vmatpush.msra.mxu0 %v3404
        %3602 = vmatpush.msra.mxu0 %v3388
        %3603 = vmatpush.msra.mxu0 %v3372
        %3604 = vmatpush.msra.mxu0 %v3356
        %3605 = vmatpush.msra.mxu0 %v3340
        %3606 = vmatmul.f32.gmra.mxu0 %v3526
        %v3607 = vpop.f32.mrf.mxu0
        %v3608 = vadd.f32 %v3488, %v3607
        %3609 = vmatmul.f32.gmra.mxu0 %v3529
        %v3610 = vpop.f32.mrf.mxu0
        %v3611 = vadd.f32 %v3493, %v3610
        %3612 = vmatmul.f32.gmra.mxu0 %v3532
        %v3613 = vpop.f32.mrf.mxu0
        %v3614 = vadd.f32 %v3498, %v3613
        %3615 = vmatmul.f32.gmra.mxu0 %v3535
        %v3616 = vpop.f32.mrf.mxu0
        %v3617 = vadd.f32 %v3503, %v3616
        %3618 = vmatmul.f32.gmra.mxu0 %v3538
        %v3619 = vpop.f32.mrf.mxu0
        %v3620 = vadd.f32 %v3508, %v3619
        %3621 = vmatmul.f32.gmra.mxu0 %v3541
        %v3622 = vpop.f32.mrf.mxu0
        %v3623 = vadd.f32 %v3513, %v3622
        %3624 = vmatmul.f32.gmra.mxu0 %v3544
        %v3625 = vpop.f32.mrf.mxu0
        %v3626 = vadd.f32 %v3518, %v3625
        %3627 = vmatmul.f32.gmra.mxu0 %v3547
        %v3628 = vpop.f32.mrf.mxu0
        %v3629 = vadd.f32 %v3523, %v3628
        %3630 = vdwg.mxu0
        %3631 = vmatpush.msra.mxu0 0.0
        %3632 = vmatpush.msra.mxu0 0.0
        %3633 = vmatpush.msra.mxu0 0.0
        %3634 = vmatpush.msra.mxu0 0.0
        %3635 = vmatpush.msra.mxu0 0.0
        %3636 = vmatpush.msra.mxu0 0.0
        %3637 = vmatpush.msra.mxu0 0.0
        %3638 = vmatpush.msra.mxu0 0.0
        %3639 = vmatpush.msra.mxu0 %v3453
        %3640 = vmatpush.msra.mxu0 %v3437
        %3641 = vmatpush.msra.mxu0 %v3421
        %3642 = vmatpush.msra.mxu0 %v3405
        %3643 = vmatpush.msra.mxu0 %v3389
        %3644 = vmatpush.msra.mxu0 %v3373
        %3645 = vmatpush.msra.mxu0 %v3357
        %3646 = vmatpush.msra.mxu0 %v3341
        %3647 = vmatmul.f32.gmra.mxu0 %v3526
        %v3648 = vpop.f32.mrf.mxu0
        %v3649 = vadd.f32 %v3488, %v3648
        %3650 = vmatmul.f32.gmra.mxu0 %v3529
        %v3651 = vpop.f32.mrf.mxu0
        %v3652 = vadd.f32 %v3493, %v3651
        %3653 = vmatmul.f32.gmra.mxu0 %v3532
        %v3654 = vpop.f32.mrf.mxu0
        %v3655 = vadd.f32 %v3498, %v3654
        %3656 = vmatmul.f32.gmra.mxu0 %v3535
        %v3657 = vpop.f32.mrf.mxu0
        %v3658 = vadd.f32 %v3503, %v3657
        %3659 = vmatmul.f32.gmra.mxu0 %v3538
        %v3660 = vpop.f32.mrf.mxu0
        %v3661 = vadd.f32 %v3508, %v3660
        %3662 = vmatmul.f32.gmra.mxu0 %v3541
        %v3663 = vpop.f32.mrf.mxu0
        %v3664 = vadd.f32 %v3513, %v3663
        %3665 = vmatmul.f32.gmra.mxu0 %v3544
        %v3666 = vpop.f32.mrf.mxu0
        %v3667 = vadd.f32 %v3518, %v3666
        %3668 = vmatmul.f32.gmra.mxu0 %v3547
        %v3669 = vpop.f32.mrf.mxu0
        %v3670 = vadd.f32 %v3523, %v3669
        %3671 = vdwg.mxu0
        %3672 = vmatpush.msra.mxu0 0.0
        %3673 = vmatpush.msra.mxu0 0.0
        %3674 = vmatpush.msra.mxu0 0.0
        %3675 = vmatpush.msra.mxu0 0.0
        %3676 = vmatpush.msra.mxu0 0.0
        %3677 = vmatpush.msra.mxu0 0.0
        %3678 = vmatpush.msra.mxu0 0.0
        %3679 = vmatpush.msra.mxu0 0.0
        %3680 = vmatpush.msra.mxu0 %v3454
        %3681 = vmatpush.msra.mxu0 %v3438
        %3682 = vmatpush.msra.mxu0 %v3422
        %3683 = vmatpush.msra.mxu0 %v3406
        %3684 = vmatpush.msra.mxu0 %v3390
        %3685 = vmatpush.msra.mxu0 %v3374
        %3686 = vmatpush.msra.mxu0 %v3358
        %3687 = vmatpush.msra.mxu0 %v3342
        %3688 = vmatmul.f32.gmra.mxu0 %v3526
        %v3689 = vpop.f32.mrf.mxu0
        %v3690 = vadd.f32 %v3488, %v3689
        %3691 = vmatmul.f32.gmra.mxu0 %v3529
        %v3692 = vpop.f32.mrf.mxu0
        %v3693 = vadd.f32 %v3493, %v3692
        %3694 = vmatmul.f32.gmra.mxu0 %v3532
        %v3695 = vpop.f32.mrf.mxu0
        %v3696 = vadd.f32 %v3498, %v3695
        %3697 = vmatmul.f32.gmra.mxu0 %v3535
        %v3698 = vpop.f32.mrf.mxu0
        %v3699 = vadd.f32 %v3503, %v3698
        %3700 = vmatmul.f32.gmra.mxu0 %v3538
        %v3701 = vpop.f32.mrf.mxu0
        %v3702 = vadd.f32 %v3508, %v3701
        %3703 = vmatmul.f32.gmra.mxu0 %v3541
        %v3704 = vpop.f32.mrf.mxu0
        %v3705 = vadd.f32 %v3513, %v3704
        %3706 = vmatmul.f32.gmra.mxu0 %v3544
        %v3707 = vpop.f32.mrf.mxu0
        %v3708 = vadd.f32 %v3518, %v3707
        %3709 = vmatmul.f32.gmra.mxu0 %v3547
        %v3710 = vpop.f32.mrf.mxu0
        %v3711 = vadd.f32 %v3523, %v3710
        %3712 = vdwg.mxu0
        %3713 = vmatpush.msra.mxu0 0.0
        %3714 = vmatpush.msra.mxu0 0.0
        %3715 = vmatpush.msra.mxu0 0.0
        %3716 = vmatpush.msra.mxu0 0.0
        %3717 = vmatpush.msra.mxu0 0.0
        %3718 = vmatpush.msra.mxu0 0.0
        %3719 = vmatpush.msra.mxu0 0.0
        %3720 = vmatpush.msra.mxu0 0.0
        %3721 = vmatpush.msra.mxu0 %v3455
        %3722 = vmatpush.msra.mxu0 %v3439
        %3723 = vmatpush.msra.mxu0 %v3423
        %3724 = vmatpush.msra.mxu0 %v3407
        %3725 = vmatpush.msra.mxu0 %v3391
        %3726 = vmatpush.msra.mxu0 %v3375
        %3727 = vmatpush.msra.mxu0 %v3359
        %3728 = vmatpush.msra.mxu0 %v3343
        %3729 = vmatmul.f32.gmra.mxu0 %v3526
        %v3730 = vpop.f32.mrf.mxu0
        %v3731 = vadd.f32 %v3488, %v3730
        %3732 = vmatmul.f32.gmra.mxu0 %v3529
        %v3733 = vpop.f32.mrf.mxu0
        %v3734 = vadd.f32 %v3493, %v3733
        %3735 = vmatmul.f32.gmra.mxu0 %v3532
        %v3736 = vpop.f32.mrf.mxu0
        %v3737 = vadd.f32 %v3498, %v3736
        %3738 = vmatmul.f32.gmra.mxu0 %v3535
        %v3739 = vpop.f32.mrf.mxu0
        %v3740 = vadd.f32 %v3503, %v3739
        %3741 = vmatmul.f32.gmra.mxu0 %v3538
        %v3742 = vpop.f32.mrf.mxu0
        %v3743 = vadd.f32 %v3508, %v3742
        %3744 = vmatmul.f32.gmra.mxu0 %v3541
        %v3745 = vpop.f32.mrf.mxu0
        %v3746 = vadd.f32 %v3513, %v3745
        %3747 = vmatmul.f32.gmra.mxu0 %v3544
        %v3748 = vpop.f32.mrf.mxu0
        %v3749 = vadd.f32 %v3518, %v3748
        %3750 = vmatmul.f32.gmra.mxu0 %v3547
        %v3751 = vpop.f32.mrf.mxu0
        %v3752 = vadd.f32 %v3523, %v3751
        %3753 = vdwg.mxu0
        %3754 = vmatpush.msra.mxu0 0.0
        %3755 = vmatpush.msra.mxu0 0.0
        %3756 = vmatpush.msra.mxu0 0.0
        %3757 = vmatpush.msra.mxu0 0.0
        %3758 = vmatpush.msra.mxu0 0.0
        %3759 = vmatpush.msra.mxu0 0.0
        %3760 = vmatpush.msra.mxu0 0.0
        %3761 = vmatpush.msra.mxu0 0.0
        %3762 = vmatpush.msra.mxu0 %v3456
        %3763 = vmatpush.msra.mxu0 %v3440
        %3764 = vmatpush.msra.mxu0 %v3424
        %3765 = vmatpush.msra.mxu0 %v3408
        %3766 = vmatpush.msra.mxu0 %v3392
        %3767 = vmatpush.msra.mxu0 %v3376
        %3768 = vmatpush.msra.mxu0 %v3360
        %3769 = vmatpush.msra.mxu0 %v3344
        %3770 = vmatmul.f32.gmra.mxu0 %v3526
        %v3771 = vpop.f32.mrf.mxu0
        %v3772 = vadd.f32 %v3488, %v3771
        %3773 = vmatmul.f32.gmra.mxu0 %v3529
        %v3774 = vpop.f32.mrf.mxu0
        %v3775 = vadd.f32 %v3493, %v3774
        %3776 = vmatmul.f32.gmra.mxu0 %v3532
        %v3777 = vpop.f32.mrf.mxu0
        %v3778 = vadd.f32 %v3498, %v3777
        %3779 = vmatmul.f32.gmra.mxu0 %v3535
        %v3780 = vpop.f32.mrf.mxu0
        %v3781 = vadd.f32 %v3503, %v3780
        %3782 = vmatmul.f32.gmra.mxu0 %v3538
        %v3783 = vpop.f32.mrf.mxu0
        %v3784 = vadd.f32 %v3508, %v3783
        %3785 = vmatmul.f32.gmra.mxu0 %v3541
        %v3786 = vpop.f32.mrf.mxu0
        %v3787 = vadd.f32 %v3513, %v3786
        %3788 = vmatmul.f32.gmra.mxu0 %v3544
        %v3789 = vpop.f32.mrf.mxu0
        %v3790 = vadd.f32 %v3518, %v3789
        %3791 = vmatmul.f32.gmra.mxu0 %v3547
        %v3792 = vpop.f32.mrf.mxu0
        %v3793 = vadd.f32 %v3523, %v3792
        %3794 = vdwg.mxu0
        %3795 = vmatpush.msra.mxu0 0.0
        %3796 = vmatpush.msra.mxu0 0.0
        %3797 = vmatpush.msra.mxu0 0.0
        %3798 = vmatpush.msra.mxu0 0.0
        %3799 = vmatpush.msra.mxu0 0.0
        %3800 = vmatpush.msra.mxu0 0.0
        %3801 = vmatpush.msra.mxu0 0.0
        %3802 = vmatpush.msra.mxu0 0.0
        %3803 = vmatpush.msra.mxu0 %v3457
        %3804 = vmatpush.msra.mxu0 %v3441
        %3805 = vmatpush.msra.mxu0 %v3425
        %3806 = vmatpush.msra.mxu0 %v3409
        %3807 = vmatpush.msra.mxu0 %v3393
        %3808 = vmatpush.msra.mxu0 %v3377
        %3809 = vmatpush.msra.mxu0 %v3361
        %3810 = vmatpush.msra.mxu0 %v3345
        %3811 = vmatmul.f32.gmra.mxu0 %v3526
        %v3812 = vpop.f32.mrf.mxu0
        %v3813 = vadd.f32 %v3488, %v3812
        %3814 = vmatmul.f32.gmra.mxu0 %v3529
        %v3815 = vpop.f32.mrf.mxu0
        %v3816 = vadd.f32 %v3493, %v3815
        %3817 = vmatmul.f32.gmra.mxu0 %v3532
        %v3818 = vpop.f32.mrf.mxu0
        %v3819 = vadd.f32 %v3498, %v3818
        %3820 = vmatmul.f32.gmra.mxu0 %v3535
        %v3821 = vpop.f32.mrf.mxu0
        %v3822 = vadd.f32 %v3503, %v3821
        %3823 = vmatmul.f32.gmra.mxu0 %v3538
        %v3824 = vpop.f32.mrf.mxu0
        %v3825 = vadd.f32 %v3508, %v3824
        %3826 = vmatmul.f32.gmra.mxu0 %v3541
        %v3827 = vpop.f32.mrf.mxu0
        %v3828 = vadd.f32 %v3513, %v3827
        %3829 = vmatmul.f32.gmra.mxu0 %v3544
        %v3830 = vpop.f32.mrf.mxu0
        %v3831 = vadd.f32 %v3518, %v3830
        %3832 = vmatmul.f32.gmra.mxu0 %v3547
        %v3833 = vpop.f32.mrf.mxu0
        %v3834 = vadd.f32 %v3523, %v3833
        %3835 = vdwg.mxu0
        %3836 = vmatpush.msra.mxu0 0.0
        %3837 = vmatpush.msra.mxu0 0.0
        %3838 = vmatpush.msra.mxu0 0.0
        %3839 = vmatpush.msra.mxu0 0.0
        %3840 = vmatpush.msra.mxu0 0.0
        %3841 = vmatpush.msra.mxu0 0.0
        %3842 = vmatpush.msra.mxu0 0.0
        %3843 = vmatpush.msra.mxu0 0.0
        %3844 = vmatpush.msra.mxu0 %v3458
        %3845 = vmatpush.msra.mxu0 %v3442
        %3846 = vmatpush.msra.mxu0 %v3426
        %3847 = vmatpush.msra.mxu0 %v3410
        %3848 = vmatpush.msra.mxu0 %v3394
        %3849 = vmatpush.msra.mxu0 %v3378
        %3850 = vmatpush.msra.mxu0 %v3362
        %3851 = vmatpush.msra.mxu0 %v3346
        %3852 = vmatmul.f32.gmra.mxu0 %v3526
        %v3853 = vpop.f32.mrf.mxu0
        %v3854 = vadd.f32 %v3488, %v3853
        %3855 = vmatmul.f32.gmra.mxu0 %v3529
        %v3856 = vpop.f32.mrf.mxu0
        %v3857 = vadd.f32 %v3493, %v3856
        %3858 = vmatmul.f32.gmra.mxu0 %v3532
        %v3859 = vpop.f32.mrf.mxu0
        %v3860 = vadd.f32 %v3498, %v3859
        %3861 = vmatmul.f32.gmra.mxu0 %v3535
        %v3862 = vpop.f32.mrf.mxu0
        %v3863 = vadd.f32 %v3503, %v3862
        %3864 = vmatmul.f32.gmra.mxu0 %v3538
        %v3865 = vpop.f32.mrf.mxu0
        %v3866 = vadd.f32 %v3508, %v3865
        %3867 = vmatmul.f32.gmra.mxu0 %v3541
        %v3868 = vpop.f32.mrf.mxu0
        %v3869 = vadd.f32 %v3513, %v3868
        %3870 = vmatmul.f32.gmra.mxu0 %v3544
        %v3871 = vpop.f32.mrf.mxu0
        %v3872 = vadd.f32 %v3518, %v3871
        %3873 = vmatmul.f32.gmra.mxu0 %v3547
        %v3874 = vpop.f32.mrf.mxu0
        %v3875 = vadd.f32 %v3523, %v3874
        %3876 = vdwg.mxu0
        %3877 = vmatpush.msra.mxu0 0.0
        %3878 = vmatpush.msra.mxu0 0.0
        %3879 = vmatpush.msra.mxu0 0.0
        %3880 = vmatpush.msra.mxu0 0.0
        %3881 = vmatpush.msra.mxu0 0.0
        %3882 = vmatpush.msra.mxu0 0.0
        %3883 = vmatpush.msra.mxu0 0.0
        %3884 = vmatpush.msra.mxu0 0.0
        %3885 = vmatpush.msra.mxu0 %v3459
        %3886 = vmatpush.msra.mxu0 %v3443
        %3887 = vmatpush.msra.mxu0 %v3427
        %3888 = vmatpush.msra.mxu0 %v3411
        %3889 = vmatpush.msra.mxu0 %v3395
        %3890 = vmatpush.msra.mxu0 %v3379
        %3891 = vmatpush.msra.mxu0 %v3363
        %3892 = vmatpush.msra.mxu0 %v3347
        %3893 = vmatmul.f32.gmra.mxu0 %v3526
        %v3894 = vpop.f32.mrf.mxu0
        %v3895 = vadd.f32 %v3488, %v3894
        %3896 = vmatmul.f32.gmra.mxu0 %v3529
        %v3897 = vpop.f32.mrf.mxu0
        %v3898 = vadd.f32 %v3493, %v3897
        %3899 = vmatmul.f32.gmra.mxu0 %v3532
        %v3900 = vpop.f32.mrf.mxu0
        %v3901 = vadd.f32 %v3498, %v3900
        %3902 = vmatmul.f32.gmra.mxu0 %v3535
        %v3903 = vpop.f32.mrf.mxu0
        %v3904 = vadd.f32 %v3503, %v3903
        %3905 = vmatmul.f32.gmra.mxu0 %v3538
        %v3906 = vpop.f32.mrf.mxu0
        %v3907 = vadd.f32 %v3508, %v3906
        %3908 = vmatmul.f32.gmra.mxu0 %v3541
        %v3909 = vpop.f32.mrf.mxu0
        %v3910 = vadd.f32 %v3513, %v3909
        %3911 = vmatmul.f32.gmra.mxu0 %v3544
        %v3912 = vpop.f32.mrf.mxu0
        %v3913 = vadd.f32 %v3518, %v3912
        %3914 = vmatmul.f32.gmra.mxu0 %v3547
        %v3915 = vpop.f32.mrf.mxu0
        %v3916 = vadd.f32 %v3523, %v3915
        %3917 = vdwg.mxu0
        %3918 = vmatpush.msra.mxu0 0.0
        %3919 = vmatpush.msra.mxu0 0.0
        %3920 = vmatpush.msra.mxu0 0.0
        %3921 = vmatpush.msra.mxu0 0.0
        %3922 = vmatpush.msra.mxu0 0.0
        %3923 = vmatpush.msra.mxu0 0.0
        %3924 = vmatpush.msra.mxu0 0.0
        %3925 = vmatpush.msra.mxu0 0.0
        %3926 = vmatpush.msra.mxu0 %v3460
        %3927 = vmatpush.msra.mxu0 %v3444
        %3928 = vmatpush.msra.mxu0 %v3428
        %3929 = vmatpush.msra.mxu0 %v3412
        %3930 = vmatpush.msra.mxu0 %v3396
        %3931 = vmatpush.msra.mxu0 %v3380
        %3932 = vmatpush.msra.mxu0 %v3364
        %3933 = vmatpush.msra.mxu0 %v3348
        %3934 = vmatmul.f32.gmra.mxu0 %v3526
        %v3935 = vpop.f32.mrf.mxu0
        %v3936 = vadd.f32 %v3488, %v3935
        %3937 = vmatmul.f32.gmra.mxu0 %v3529
        %v3938 = vpop.f32.mrf.mxu0
        %v3939 = vadd.f32 %v3493, %v3938
        %3940 = vmatmul.f32.gmra.mxu0 %v3532
        %v3941 = vpop.f32.mrf.mxu0
        %v3942 = vadd.f32 %v3498, %v3941
        %3943 = vmatmul.f32.gmra.mxu0 %v3535
        %v3944 = vpop.f32.mrf.mxu0
        %v3945 = vadd.f32 %v3503, %v3944
        %3946 = vmatmul.f32.gmra.mxu0 %v3538
        %v3947 = vpop.f32.mrf.mxu0
        %v3948 = vadd.f32 %v3508, %v3947
        %3949 = vmatmul.f32.gmra.mxu0 %v3541
        %v3950 = vpop.f32.mrf.mxu0
        %v3951 = vadd.f32 %v3513, %v3950
        %3952 = vmatmul.f32.gmra.mxu0 %v3544
        %v3953 = vpop.f32.mrf.mxu0
        %v3954 = vadd.f32 %v3518, %v3953
        %3955 = vmatmul.f32.gmra.mxu0 %v3547
        %v3956 = vpop.f32.mrf.mxu0
        %v3957 = vadd.f32 %v3523, %v3956
        %3958 = vdwg.mxu0
        %3959 = vmatpush.msra.mxu0 0.0
        %3960 = vmatpush.msra.mxu0 0.0
        %3961 = vmatpush.msra.mxu0 0.0
        %3962 = vmatpush.msra.mxu0 0.0
        %3963 = vmatpush.msra.mxu0 0.0
        %3964 = vmatpush.msra.mxu0 0.0
        %3965 = vmatpush.msra.mxu0 0.0
        %3966 = vmatpush.msra.mxu0 0.0
        %3967 = vmatpush.msra.mxu0 %v3461
        %3968 = vmatpush.msra.mxu0 %v3445
        %3969 = vmatpush.msra.mxu0 %v3429
        %3970 = vmatpush.msra.mxu0 %v3413
        %3971 = vmatpush.msra.mxu0 %v3397
        %3972 = vmatpush.msra.mxu0 %v3381
        %3973 = vmatpush.msra.mxu0 %v3365
        %3974 = vmatpush.msra.mxu0 %v3349
        %3975 = vmatmul.f32.gmra.mxu0 %v3526
        %v3976 = vpop.f32.mrf.mxu0
        %v3977 = vadd.f32 %v3488, %v3976
        %3978 = vmatmul.f32.gmra.mxu0 %v3529
        %v3979 = vpop.f32.mrf.mxu0
        %v3980 = vadd.f32 %v3493, %v3979
        %3981 = vmatmul.f32.gmra.mxu0 %v3532
        %v3982 = vpop.f32.mrf.mxu0
        %v3983 = vadd.f32 %v3498, %v3982
        %3984 = vmatmul.f32.gmra.mxu0 %v3535
        %v3985 = vpop.f32.mrf.mxu0
        %v3986 = vadd.f32 %v3503, %v3985
        %3987 = vmatmul.f32.gmra.mxu0 %v3538
        %v3988 = vpop.f32.mrf.mxu0
        %v3989 = vadd.f32 %v3508, %v3988
        %3990 = vmatmul.f32.gmra.mxu0 %v3541
        %v3991 = vpop.f32.mrf.mxu0
        %v3992 = vadd.f32 %v3513, %v3991
        %3993 = vmatmul.f32.gmra.mxu0 %v3544
        %v3994 = vpop.f32.mrf.mxu0
        %v3995 = vadd.f32 %v3518, %v3994
        %3996 = vmatmul.f32.gmra.mxu0 %v3547
        %v3997 = vpop.f32.mrf.mxu0
        %v3998 = vadd.f32 %v3523, %v3997
        %3999 = vdwg.mxu0
        %4000 = vmatpush.msra.mxu0 0.0
        %4001 = vmatpush.msra.mxu0 0.0
        %4002 = vmatpush.msra.mxu0 0.0
        %4003 = vmatpush.msra.mxu0 0.0
        %4004 = vmatpush.msra.mxu0 0.0
        %4005 = vmatpush.msra.mxu0 0.0
        %4006 = vmatpush.msra.mxu0 0.0
        %4007 = vmatpush.msra.mxu0 0.0
        %4008 = vmatpush.msra.mxu0 %v3462
        %4009 = vmatpush.msra.mxu0 %v3446
        %4010 = vmatpush.msra.mxu0 %v3430
        %4011 = vmatpush.msra.mxu0 %v3414
        %4012 = vmatpush.msra.mxu0 %v3398
        %4013 = vmatpush.msra.mxu0 %v3382
        %4014 = vmatpush.msra.mxu0 %v3366
        %4015 = vmatpush.msra.mxu0 %v3350
        %4016 = vmatmul.f32.gmra.mxu0 %v3526
        %v4017 = vpop.f32.mrf.mxu0
        %v4018 = vadd.f32 %v3488, %v4017
        %4019 = vmatmul.f32.gmra.mxu0 %v3529
        %v4020 = vpop.f32.mrf.mxu0
        %v4021 = vadd.f32 %v3493, %v4020
        %4022 = vmatmul.f32.gmra.mxu0 %v3532
        %v4023 = vpop.f32.mrf.mxu0
        %v4024 = vadd.f32 %v3498, %v4023
        %4025 = vmatmul.f32.gmra.mxu0 %v3535
        %v4026 = vpop.f32.mrf.mxu0
        %v4027 = vadd.f32 %v3503, %v4026
        %4028 = vmatmul.f32.gmra.mxu0 %v3538
        %v4029 = vpop.f32.mrf.mxu0
        %v4030 = vadd.f32 %v3508, %v4029
        %4031 = vmatmul.f32.gmra.mxu0 %v3541
        %v4032 = vpop.f32.mrf.mxu0
        %v4033 = vadd.f32 %v3513, %v4032
        %4034 = vmatmul.f32.gmra.mxu0 %v3544
        %v4035 = vpop.f32.mrf.mxu0
        %v4036 = vadd.f32 %v3518, %v4035
        %4037 = vmatmul.f32.gmra.mxu0 %v3547
        %v4038 = vpop.f32.mrf.mxu0
        %v4039 = vadd.f32 %v3523, %v4038
        %4040 = vdwg.mxu0
        %4041 = vmatpush.msra.mxu0 0.0
        %4042 = vmatpush.msra.mxu0 0.0
        %4043 = vmatpush.msra.mxu0 0.0
        %4044 = vmatpush.msra.mxu0 0.0
        %4045 = vmatpush.msra.mxu0 0.0
        %4046 = vmatpush.msra.mxu0 0.0
        %4047 = vmatpush.msra.mxu0 0.0
        %4048 = vmatpush.msra.mxu0 0.0
        %4049 = vmatpush.msra.mxu0 %v3463
        %4050 = vmatpush.msra.mxu0 %v3447
        %4051 = vmatpush.msra.mxu0 %v3431
        %4052 = vmatpush.msra.mxu0 %v3415
        %4053 = vmatpush.msra.mxu0 %v3399
        %4054 = vmatpush.msra.mxu0 %v3383
        %4055 = vmatpush.msra.mxu0 %v3367
        %4056 = vmatpush.msra.mxu0 %v3351
        %4057 = vmatmul.f32.gmra.mxu0 %v3526
        %v4058 = vpop.f32.mrf.mxu0
        %v4059 = vadd.f32 %v3488, %v4058
        %4060 = vmatmul.f32.gmra.mxu0 %v3529
        %v4061 = vpop.f32.mrf.mxu0
        %v4062 = vadd.f32 %v3493, %v4061
        %4063 = vmatmul.f32.gmra.mxu0 %v3532
        %v4064 = vpop.f32.mrf.mxu0
        %v4065 = vadd.f32 %v3498, %v4064
        %4066 = vmatmul.f32.gmra.mxu0 %v3535
        %v4067 = vpop.f32.mrf.mxu0
        %v4068 = vadd.f32 %v3503, %v4067
        %4069 = vmatmul.f32.gmra.mxu0 %v3538
        %v4070 = vpop.f32.mrf.mxu0
        %v4071 = vadd.f32 %v3508, %v4070
        %4072 = vmatmul.f32.gmra.mxu0 %v3541
        %v4073 = vpop.f32.mrf.mxu0
        %v4074 = vadd.f32 %v3513, %v4073
        %4075 = vmatmul.f32.gmra.mxu0 %v3544
        %v4076 = vpop.f32.mrf.mxu0
        %v4077 = vadd.f32 %v3518, %v4076
        %4078 = vmatmul.f32.gmra.mxu0 %v3547
        %v4079 = vpop.f32.mrf.mxu0
        %v4080 = vadd.f32 %v3523, %v4079
        %4081 = vdwg.mxu0
        %4082 = vmatpush.msra.mxu0 0.0
        %4083 = vmatpush.msra.mxu0 0.0
        %4084 = vmatpush.msra.mxu0 0.0
        %4085 = vmatpush.msra.mxu0 0.0
        %4086 = vmatpush.msra.mxu0 0.0
        %4087 = vmatpush.msra.mxu0 0.0
        %4088 = vmatpush.msra.mxu0 0.0
        %4089 = vmatpush.msra.mxu0 0.0
        %4090 = vmatpush.msra.mxu0 %v3464
        %4091 = vmatpush.msra.mxu0 %v3448
        %4092 = vmatpush.msra.mxu0 %v3432
        %4093 = vmatpush.msra.mxu0 %v3416
        %4094 = vmatpush.msra.mxu0 %v3400
        %4095 = vmatpush.msra.mxu0 %v3384
        %4096 = vmatpush.msra.mxu0 %v3368
        %4097 = vmatpush.msra.mxu0 %v3352
        %4098 = vmatmul.f32.gmra.mxu0 %v3526
        %v4099 = vpop.f32.mrf.mxu0
        %v4100 = vadd.f32 %v3488, %v4099
        %4101 = vmatmul.f32.gmra.mxu0 %v3529
        %v4102 = vpop.f32.mrf.mxu0
        %v4103 = vadd.f32 %v3493, %v4102
        %4104 = vmatmul.f32.gmra.mxu0 %v3532
        %v4105 = vpop.f32.mrf.mxu0
        %v4106 = vadd.f32 %v3498, %v4105
        %4107 = vmatmul.f32.gmra.mxu0 %v3535
        %v4108 = vpop.f32.mrf.mxu0
        %v4109 = vadd.f32 %v3503, %v4108
        %4110 = vmatmul.f32.gmra.mxu0 %v3538
        %v4111 = vpop.f32.mrf.mxu0
        %v4112 = vadd.f32 %v3508, %v4111
        %4113 = vmatmul.f32.gmra.mxu0 %v3541
        %v4114 = vpop.f32.mrf.mxu0
        %v4115 = vadd.f32 %v3513, %v4114
        %4116 = vmatmul.f32.gmra.mxu0 %v3544
        %v4117 = vpop.f32.mrf.mxu0
        %v4118 = vadd.f32 %v3518, %v4117
        %4119 = vmatmul.f32.gmra.mxu0 %v3547
        %v4120 = vpop.f32.mrf.mxu0
        %v4121 = vadd.f32 %v3523, %v4120
        %4122 = vdwg.mxu0
        %4123 = vmatpush.msra.mxu0 0.0
        %4124 = vmatpush.msra.mxu0 0.0
        %4125 = vmatpush.msra.mxu0 0.0
        %4126 = vmatpush.msra.mxu0 0.0
        %4127 = vmatpush.msra.mxu0 0.0
        %4128 = vmatpush.msra.mxu0 0.0
        %4129 = vmatpush.msra.mxu0 0.0
        %4130 = vmatpush.msra.mxu0 0.0
        %4131 = vmatpush.msra.mxu0 %v3465
        %4132 = vmatpush.msra.mxu0 %v3449
        %4133 = vmatpush.msra.mxu0 %v3433
        %4134 = vmatpush.msra.mxu0 %v3417
        %4135 = vmatpush.msra.mxu0 %v3401
        %4136 = vmatpush.msra.mxu0 %v3385
        %4137 = vmatpush.msra.mxu0 %v3369
        %4138 = vmatpush.msra.mxu0 %v3353
        %4139 = vmatmul.f32.gmra.mxu0 %v3526
        %v4140 = vpop.f32.mrf.mxu0
        %v4141 = vadd.f32 %v3488, %v4140
        %4142 = vmatmul.f32.gmra.mxu0 %v3529
        %v4143 = vpop.f32.mrf.mxu0
        %v4144 = vadd.f32 %v3493, %v4143
        %4145 = vmatmul.f32.gmra.mxu0 %v3532
        %v4146 = vpop.f32.mrf.mxu0
        %v4147 = vadd.f32 %v3498, %v4146
        %4148 = vmatmul.f32.gmra.mxu0 %v3535
        %v4149 = vpop.f32.mrf.mxu0
        %v4150 = vadd.f32 %v3503, %v4149
        %4151 = vmatmul.f32.gmra.mxu0 %v3538
        %v4152 = vpop.f32.mrf.mxu0
        %v4153 = vadd.f32 %v3508, %v4152
        %4154 = vmatmul.f32.gmra.mxu0 %v3541
        %v4155 = vpop.f32.mrf.mxu0
        %v4156 = vadd.f32 %v3513, %v4155
        %4157 = vmatmul.f32.gmra.mxu0 %v3544
        %v4158 = vpop.f32.mrf.mxu0
        %v4159 = vadd.f32 %v3518, %v4158
        %4160 = vmatmul.f32.gmra.mxu0 %v3547
        %v4161 = vpop.f32.mrf.mxu0
        %v4162 = vadd.f32 %v3523, %v4161
        %4163 = vdwg.mxu0
        %4164 = vmatpush.msra.mxu0 0.0
        %4165 = vmatpush.msra.mxu0 0.0
        %4166 = vmatpush.msra.mxu0 0.0
        %4167 = vmatpush.msra.mxu0 0.0
        %4168 = vmatpush.msra.mxu0 0.0
        %4169 = vmatpush.msra.mxu0 0.0
        %4170 = vmatpush.msra.mxu0 0.0
        %4171 = vmatpush.msra.mxu0 0.0
        %4172 = vmatpush.msra.mxu0 %v3466
        %4173 = vmatpush.msra.mxu0 %v3450
        %4174 = vmatpush.msra.mxu0 %v3434
        %4175 = vmatpush.msra.mxu0 %v3418
        %4176 = vmatpush.msra.mxu0 %v3402
        %4177 = vmatpush.msra.mxu0 %v3386
        %4178 = vmatpush.msra.mxu0 %v3370
        %4179 = vmatpush.msra.mxu0 %v3354
        %4180 = vmatmul.f32.gmra.mxu0 %v3526
        %v4181 = vpop.f32.mrf.mxu0
        %v4182 = vadd.f32 %v3488, %v4181
        %4183 = vmatmul.f32.gmra.mxu0 %v3529
        %v4184 = vpop.f32.mrf.mxu0
        %v4185 = vadd.f32 %v3493, %v4184
        %4186 = vmatmul.f32.gmra.mxu0 %v3532
        %v4187 = vpop.f32.mrf.mxu0
        %v4188 = vadd.f32 %v3498, %v4187
        %4189 = vmatmul.f32.gmra.mxu0 %v3535
        %v4190 = vpop.f32.mrf.mxu0
        %v4191 = vadd.f32 %v3503, %v4190
        %4192 = vmatmul.f32.gmra.mxu0 %v3538
        %v4193 = vpop.f32.mrf.mxu0
        %v4194 = vadd.f32 %v3508, %v4193
        %4195 = vmatmul.f32.gmra.mxu0 %v3541
        %v4196 = vpop.f32.mrf.mxu0
        %v4197 = vadd.f32 %v3513, %v4196
        %4198 = vmatmul.f32.gmra.mxu0 %v3544
        %v4199 = vpop.f32.mrf.mxu0
        %v4200 = vadd.f32 %v3518, %v4199
        %4201 = vmatmul.f32.gmra.mxu0 %v3547
        %v4202 = vpop.f32.mrf.mxu0
        %v4203 = vadd.f32 %v3523, %v4202
        %4204 = vdwg.mxu0
        %vm4205 = vcmp.gt.f32.partialorder %v3567, 0.0
        %vm4206 = vcmp.gt.f32.partialorder %v3608, 0.0
        %vm4207 = vcmp.gt.f32.partialorder %v3649, 0.0
        %vm4208 = vcmp.gt.f32.partialorder %v3690, 0.0
        %vm4209 = vcmp.gt.f32.partialorder %v3731, 0.0
        %vm4210 = vcmp.gt.f32.partialorder %v3772, 0.0
        %vm4211 = vcmp.gt.f32.partialorder %v3813, 0.0
        %vm4212 = vcmp.gt.f32.partialorder %v3854, 0.0
        %vm4213 = vcmp.gt.f32.partialorder %v3895, 0.0
        %vm4214 = vcmp.gt.f32.partialorder %v3936, 0.0
        %vm4215 = vcmp.gt.f32.partialorder %v3977, 0.0
        %vm4216 = vcmp.gt.f32.partialorder %v4018, 0.0
        %vm4217 = vcmp.gt.f32.partialorder %v4059, 0.0
        %vm4218 = vcmp.gt.f32.partialorder %v4100, 0.0
        %vm4219 = vcmp.gt.f32.partialorder %v4141, 0.0
        %vm4220 = vcmp.gt.f32.partialorder %v4182, 0.0
        %vm4221 = vcmp.gt.f32.partialorder %v3570, 0.0
        %vm4222 = vcmp.gt.f32.partialorder %v3611, 0.0
        %vm4223 = vcmp.gt.f32.partialorder %v3652, 0.0
        %vm4224 = vcmp.gt.f32.partialorder %v3693, 0.0
        %vm4225 = vcmp.gt.f32.partialorder %v3734, 0.0
        %vm4226 = vcmp.gt.f32.partialorder %v3775, 0.0
        %vm4227 = vcmp.gt.f32.partialorder %v3816, 0.0
        %vm4228 = vcmp.gt.f32.partialorder %v3857, 0.0
        %vm4229 = vcmp.gt.f32.partialorder %v3898, 0.0
        %vm4230 = vcmp.gt.f32.partialorder %v3939, 0.0
        %vm4231 = vcmp.gt.f32.partialorder %v3980, 0.0
        %vm4232 = vcmp.gt.f32.partialorder %v4021, 0.0
        %vm4233 = vcmp.gt.f32.partialorder %v4062, 0.0
        %vm4234 = vcmp.gt.f32.partialorder %v4103, 0.0
        %vm4235 = vcmp.gt.f32.partialorder %v4144, 0.0
        %vm4236 = vcmp.gt.f32.partialorder %v4185, 0.0
        %vm4237 = vcmp.gt.f32.partialorder %v3573, 0.0
        %vm4238 = vcmp.gt.f32.partialorder %v3614, 0.0
        %vm4239 = vcmp.gt.f32.partialorder %v3655, 0.0
        %vm4240 = vcmp.gt.f32.partialorder %v3696, 0.0
        %vm4241 = vcmp.gt.f32.partialorder %v3737, 0.0
        %vm4242 = vcmp.gt.f32.partialorder %v3778, 0.0
        %vm4243 = vcmp.gt.f32.partialorder %v3819, 0.0
        %vm4244 = vcmp.gt.f32.partialorder %v3860, 0.0
        %vm4245 = vcmp.gt.f32.partialorder %v3901, 0.0
        %vm4246 = vcmp.gt.f32.partialorder %v3942, 0.0
        %vm4247 = vcmp.gt.f32.partialorder %v3983, 0.0
        %vm4248 = vcmp.gt.f32.partialorder %v4024, 0.0
        %vm4249 = vcmp.gt.f32.partialorder %v4065, 0.0
        %vm4250 = vcmp.gt.f32.partialorder %v4106, 0.0
        %vm4251 = vcmp.gt.f32.partialorder %v4147, 0.0
        %vm4252 = vcmp.gt.f32.partialorder %v4188, 0.0
        %vm4253 = vcmp.gt.f32.partialorder %v3576, 0.0
        %vm4254 = vcmp.gt.f32.partialorder %v3617, 0.0
        %vm4255 = vcmp.gt.f32.partialorder %v3658, 0.0
        %vm4256 = vcmp.gt.f32.partialorder %v3699, 0.0
        %vm4257 = vcmp.gt.f32.partialorder %v3740, 0.0
        %vm4258 = vcmp.gt.f32.partialorder %v3781, 0.0
        %vm4259 = vcmp.gt.f32.partialorder %v3822, 0.0
        %vm4260 = vcmp.gt.f32.partialorder %v3863, 0.0
        %vm4261 = vcmp.gt.f32.partialorder %v3904, 0.0
        %vm4262 = vcmp.gt.f32.partialorder %v3945, 0.0
        %vm4263 = vcmp.gt.f32.partialorder %v3986, 0.0
        %vm4264 = vcmp.gt.f32.partialorder %v4027, 0.0
        %vm4265 = vcmp.gt.f32.partialorder %v4068, 0.0
        %vm4266 = vcmp.gt.f32.partialorder %v4109, 0.0
        %vm4267 = vcmp.gt.f32.partialorder %v4150, 0.0
        %vm4268 = vcmp.gt.f32.partialorder %v4191, 0.0
        %vm4269 = vcmp.gt.f32.partialorder %v3579, 0.0
        %vm4270 = vcmp.gt.f32.partialorder %v3620, 0.0
        %vm4271 = vcmp.gt.f32.partialorder %v3661, 0.0
        %vm4272 = vcmp.gt.f32.partialorder %v3702, 0.0
        %vm4273 = vcmp.gt.f32.partialorder %v3743, 0.0
        %vm4274 = vcmp.gt.f32.partialorder %v3784, 0.0
        %vm4275 = vcmp.gt.f32.partialorder %v3825, 0.0
        %vm4276 = vcmp.gt.f32.partialorder %v3866, 0.0
        %vm4277 = vcmp.gt.f32.partialorder %v3907, 0.0
        %vm4278 = vcmp.gt.f32.partialorder %v3948, 0.0
        %vm4279 = vcmp.gt.f32.partialorder %v3989, 0.0
        %vm4280 = vcmp.gt.f32.partialorder %v4030, 0.0
        %vm4281 = vcmp.gt.f32.partialorder %v4071, 0.0
        %vm4282 = vcmp.gt.f32.partialorder %v4112, 0.0
        %vm4283 = vcmp.gt.f32.partialorder %v4153, 0.0
        %vm4284 = vcmp.gt.f32.partialorder %v4194, 0.0
        %vm4285 = vcmp.gt.f32.partialorder %v3582, 0.0
        %vm4286 = vcmp.gt.f32.partialorder %v3623, 0.0
        %vm4287 = vcmp.gt.f32.partialorder %v3664, 0.0
        %vm4288 = vcmp.gt.f32.partialorder %v3705, 0.0
        %vm4289 = vcmp.gt.f32.partialorder %v3746, 0.0
        %vm4290 = vcmp.gt.f32.partialorder %v3787, 0.0
        %vm4291 = vcmp.gt.f32.partialorder %v3828, 0.0
        %vm4292 = vcmp.gt.f32.partialorder %v3869, 0.0
        %vm4293 = vcmp.gt.f32.partialorder %v3910, 0.0
        %vm4294 = vcmp.gt.f32.partialorder %v3951, 0.0
        %vm4295 = vcmp.gt.f32.partialorder %v3992, 0.0
        %vm4296 = vcmp.gt.f32.partialorder %v4033, 0.0
        %vm4297 = vcmp.gt.f32.partialorder %v4074, 0.0
        %vm4298 = vcmp.gt.f32.partialorder %v4115, 0.0
        %vm4299 = vcmp.gt.f32.partialorder %v4156, 0.0
        %vm4300 = vcmp.gt.f32.partialorder %v4197, 0.0
        %vm4301 = vcmp.gt.f32.partialorder %v3585, 0.0
        %vm4302 = vcmp.gt.f32.partialorder %v3626, 0.0
        %vm4303 = vcmp.gt.f32.partialorder %v3667, 0.0
        %vm4304 = vcmp.gt.f32.partialorder %v3708, 0.0
        %vm4305 = vcmp.gt.f32.partialorder %v3749, 0.0
        %vm4306 = vcmp.gt.f32.partialorder %v3790, 0.0
        %vm4307 = vcmp.gt.f32.partialorder %v3831, 0.0
        %vm4308 = vcmp.gt.f32.partialorder %v3872, 0.0
        %vm4309 = vcmp.gt.f32.partialorder %v3913, 0.0
        %vm4310 = vcmp.gt.f32.partialorder %v3954, 0.0
        %vm4311 = vcmp.gt.f32.partialorder %v3995, 0.0
        %vm4312 = vcmp.gt.f32.partialorder %v4036, 0.0
        %vm4313 = vcmp.gt.f32.partialorder %v4077, 0.0
        %vm4314 = vcmp.gt.f32.partialorder %v4118, 0.0
        %vm4315 = vcmp.gt.f32.partialorder %v4159, 0.0
        %vm4316 = vcmp.gt.f32.partialorder %v4200, 0.0
        %vm4317 = vcmp.gt.f32.partialorder %v3588, 0.0
        %vm4318 = vcmp.gt.f32.partialorder %v3629, 0.0
        %vm4319 = vcmp.gt.f32.partialorder %v3670, 0.0
        %vm4320 = vcmp.gt.f32.partialorder %v3711, 0.0
        %vm4321 = vcmp.gt.f32.partialorder %v3752, 0.0
        %vm4322 = vcmp.gt.f32.partialorder %v3793, 0.0
        %vm4323 = vcmp.gt.f32.partialorder %v3834, 0.0
        %vm4324 = vcmp.gt.f32.partialorder %v3875, 0.0
        %vm4325 = vcmp.gt.f32.partialorder %v3916, 0.0
        %vm4326 = vcmp.gt.f32.partialorder %v3957, 0.0
        %vm4327 = vcmp.gt.f32.partialorder %v3998, 0.0
        %vm4328 = vcmp.gt.f32.partialorder %v4039, 0.0
        %vm4329 = vcmp.gt.f32.partialorder %v4080, 0.0
        %vm4330 = vcmp.gt.f32.partialorder %v4121, 0.0
        %vm4331 = vcmp.gt.f32.partialorder %v4162, 0.0
        %vm4332 = vcmp.gt.f32.partialorder %v4203, 0.0
        %v4333 = vmin.f32 %v3567, 0.0
        %v4334 = vmin.f32 %v3608, 0.0
        %v4335 = vmin.f32 %v3649, 0.0
        %v4336 = vmin.f32 %v3690, 0.0
        %v4337 = vmin.f32 %v3731, 0.0
        %v4338 = vmin.f32 %v3772, 0.0
        %v4339 = vmin.f32 %v3813, 0.0
        %v4340 = vmin.f32 %v3854, 0.0
        %v4341 = vmin.f32 %v3895, 0.0
        %v4342 = vmin.f32 %v3936, 0.0
        %v4343 = vmin.f32 %v3977, 0.0
        %v4344 = vmin.f32 %v4018, 0.0
        %v4345 = vmin.f32 %v4059, 0.0
        %v4346 = vmin.f32 %v4100, 0.0
        %v4347 = vmin.f32 %v4141, 0.0
        %v4348 = vmin.f32 %v4182, 0.0
        %v4349 = vmin.f32 %v3570, 0.0
        %v4350 = vmin.f32 %v3611, 0.0
        %v4351 = vmin.f32 %v3652, 0.0
        %v4352 = vmin.f32 %v3693, 0.0
        %v4353 = vmin.f32 %v3734, 0.0
        %v4354 = vmin.f32 %v3775, 0.0
        %v4355 = vmin.f32 %v3816, 0.0
        %v4356 = vmin.f32 %v3857, 0.0
        %v4357 = vmin.f32 %v3898, 0.0
        %v4358 = vmin.f32 %v3939, 0.0
        %v4359 = vmin.f32 %v3980, 0.0
        %v4360 = vmin.f32 %v4021, 0.0
        %v4361 = vmin.f32 %v4062, 0.0
        %v4362 = vmin.f32 %v4103, 0.0
        %v4363 = vmin.f32 %v4144, 0.0
        %v4364 = vmin.f32 %v4185, 0.0
        %v4365 = vmin.f32 %v3573, 0.0
        %v4366 = vmin.f32 %v3614, 0.0
        %v4367 = vmin.f32 %v3655, 0.0
        %v4368 = vmin.f32 %v3696, 0.0
        %v4369 = vmin.f32 %v3737, 0.0
        %v4370 = vmin.f32 %v3778, 0.0
        %v4371 = vmin.f32 %v3819, 0.0
        %v4372 = vmin.f32 %v3860, 0.0
        %v4373 = vmin.f32 %v3901, 0.0
        %v4374 = vmin.f32 %v3942, 0.0
        %v4375 = vmin.f32 %v3983, 0.0
        %v4376 = vmin.f32 %v4024, 0.0
        %v4377 = vmin.f32 %v4065, 0.0
        %v4378 = vmin.f32 %v4106, 0.0
        %v4379 = vmin.f32 %v4147, 0.0
        %v4380 = vmin.f32 %v4188, 0.0
        %v4381 = vmin.f32 %v3576, 0.0
        %v4382 = vmin.f32 %v3617, 0.0
        %v4383 = vmin.f32 %v3658, 0.0
        %v4384 = vmin.f32 %v3699, 0.0
        %v4385 = vmin.f32 %v3740, 0.0
        %v4386 = vmin.f32 %v3781, 0.0
        %v4387 = vmin.f32 %v3822, 0.0
        %v4388 = vmin.f32 %v3863, 0.0
        %v4389 = vmin.f32 %v3904, 0.0
        %v4390 = vmin.f32 %v3945, 0.0
        %v4391 = vmin.f32 %v3986, 0.0
        %v4392 = vmin.f32 %v4027, 0.0
        %v4393 = vmin.f32 %v4068, 0.0
        %v4394 = vmin.f32 %v4109, 0.0
        %v4395 = vmin.f32 %v4150, 0.0
        %v4396 = vmin.f32 %v4191, 0.0
        %v4397 = vmin.f32 %v3579, 0.0
        %v4398 = vmin.f32 %v3620, 0.0
        %v4399 = vmin.f32 %v3661, 0.0
        %v4400 = vmin.f32 %v3702, 0.0
        %v4401 = vmin.f32 %v3743, 0.0
        %v4402 = vmin.f32 %v3784, 0.0
        %v4403 = vmin.f32 %v3825, 0.0
        %v4404 = vmin.f32 %v3866, 0.0
        %v4405 = vmin.f32 %v3907, 0.0
        %v4406 = vmin.f32 %v3948, 0.0
        %v4407 = vmin.f32 %v3989, 0.0
        %v4408 = vmin.f32 %v4030, 0.0
        %v4409 = vmin.f32 %v4071, 0.0
        %v4410 = vmin.f32 %v4112, 0.0
        %v4411 = vmin.f32 %v4153, 0.0
        %v4412 = vmin.f32 %v4194, 0.0
        %v4413 = vmin.f32 %v3582, 0.0
        %v4414 = vmin.f32 %v3623, 0.0
        %v4415 = vmin.f32 %v3664, 0.0
        %v4416 = vmin.f32 %v3705, 0.0
        %v4417 = vmin.f32 %v3746, 0.0
        %v4418 = vmin.f32 %v3787, 0.0
        %v4419 = vmin.f32 %v3828, 0.0
        %v4420 = vmin.f32 %v3869, 0.0
        %v4421 = vmin.f32 %v3910, 0.0
        %v4422 = vmin.f32 %v3951, 0.0
        %v4423 = vmin.f32 %v3992, 0.0
        %v4424 = vmin.f32 %v4033, 0.0
        %v4425 = vmin.f32 %v4074, 0.0
        %v4426 = vmin.f32 %v4115, 0.0
        %v4427 = vmin.f32 %v4156, 0.0
        %v4428 = vmin.f32 %v4197, 0.0
        %v4429 = vmin.f32 %v3585, 0.0
        %v4430 = vmin.f32 %v3626, 0.0
        %v4431 = vmin.f32 %v3667, 0.0
        %v4432 = vmin.f32 %v3708, 0.0
        %v4433 = vmin.f32 %v3749, 0.0
        %v4434 = vmin.f32 %v3790, 0.0
        %v4435 = vmin.f32 %v3831, 0.0
        %v4436 = vmin.f32 %v3872, 0.0
        %v4437 = vmin.f32 %v3913, 0.0
        %v4438 = vmin.f32 %v3954, 0.0
        %v4439 = vmin.f32 %v3995, 0.0
        %v4440 = vmin.f32 %v4036, 0.0
        %v4441 = vmin.f32 %v4077, 0.0
        %v4442 = vmin.f32 %v4118, 0.0
        %v4443 = vmin.f32 %v4159, 0.0
        %v4444 = vmin.f32 %v4200, 0.0
        %v4445 = vmin.f32 %v3588, 0.0
        %v4446 = vmin.f32 %v3629, 0.0
        %v4447 = vmin.f32 %v3670, 0.0
        %v4448 = vmin.f32 %v3711, 0.0
        %v4449 = vmin.f32 %v3752, 0.0
        %v4450 = vmin.f32 %v3793, 0.0
        %v4451 = vmin.f32 %v3834, 0.0
        %v4452 = vmin.f32 %v3875, 0.0
        %v4453 = vmin.f32 %v3916, 0.0
        %v4454 = vmin.f32 %v3957, 0.0
        %v4455 = vmin.f32 %v3998, 0.0
        %v4456 = vmin.f32 %v4039, 0.0
        %v4457 = vmin.f32 %v4080, 0.0
        %v4458 = vmin.f32 %v4121, 0.0
        %v4459 = vmin.f32 %v4162, 0.0
        %v4460 = vmin.f32 %v4203, 0.0
        %v4461 = vmul.f32 %v4333, 1.442695
        %v4462 = vpow.pop %v4461
        %v4463 = vmul.f32 %v4334, 1.442695
        %v4464 = vpow.pop %v4463
        %v4465 = vmul.f32 %v4335, 1.442695
        %v4466 = vpow.pop %v4465
        %v4467 = vmul.f32 %v4336, 1.442695
        %v4468 = vpow.pop %v4467
        %v4469 = vmul.f32 %v4337, 1.442695
        %v4470 = vpow.pop %v4469
        %v4471 = vmul.f32 %v4338, 1.442695
        %v4472 = vpow.pop %v4471
        %v4473 = vmul.f32 %v4339, 1.442695
        %v4474 = vpow.pop %v4473
        %v4475 = vmul.f32 %v4340, 1.442695
        %v4476 = vpow.pop %v4475
        %v4477 = vmul.f32 %v4341, 1.442695
        %v4478 = vpow.pop %v4477
        %v4479 = vmul.f32 %v4342, 1.442695
        %v4480 = vpow.pop %v4479
        %v4481 = vmul.f32 %v4343, 1.442695
        %v4482 = vpow.pop %v4481
        %v4483 = vmul.f32 %v4344, 1.442695
        %v4484 = vpow.pop %v4483
        %v4485 = vmul.f32 %v4345, 1.442695
        %v4486 = vpow.pop %v4485
        %v4487 = vmul.f32 %v4346, 1.442695
        %v4488 = vpow.pop %v4487
        %v4489 = vmul.f32 %v4347, 1.442695
        %v4490 = vpow.pop %v4489
        %v4491 = vmul.f32 %v4348, 1.442695
        %v4492 = vpow.pop %v4491
        %v4493 = vmul.f32 %v4349, 1.442695
        %v4494 = vpow.pop %v4493
        %v4495 = vmul.f32 %v4350, 1.442695
        %v4496 = vpow.pop %v4495
        %v4497 = vmul.f32 %v4351, 1.442695
        %v4498 = vpow.pop %v4497
        %v4499 = vmul.f32 %v4352, 1.442695
        %v4500 = vpow.pop %v4499
        %v4501 = vmul.f32 %v4353, 1.442695
        %v4502 = vpow.pop %v4501
        %v4503 = vmul.f32 %v4354, 1.442695
        %v4504 = vpow.pop %v4503
        %v4505 = vmul.f32 %v4355, 1.442695
        %v4506 = vpow.pop %v4505
        %v4507 = vmul.f32 %v4356, 1.442695
        %v4508 = vpow.pop %v4507
        %v4509 = vmul.f32 %v4357, 1.442695
        %v4510 = vpow.pop %v4509
        %v4511 = vmul.f32 %v4358, 1.442695
        %v4512 = vpow.pop %v4511
        %v4513 = vmul.f32 %v4359, 1.442695
        %v4514 = vpow.pop %v4513
        %v4515 = vmul.f32 %v4360, 1.442695
        %v4516 = vpow.pop %v4515
        %v4517 = vmul.f32 %v4361, 1.442695
        %v4518 = vpow.pop %v4517
        %v4519 = vmul.f32 %v4362, 1.442695
        %v4520 = vpow.pop %v4519
        %v4521 = vmul.f32 %v4363, 1.442695
        %v4522 = vpow.pop %v4521
        %v4523 = vmul.f32 %v4364, 1.442695
        %v4524 = vpow.pop %v4523
        %v4525 = vmul.f32 %v4365, 1.442695
        %v4526 = vpow.pop %v4525
        %v4527 = vmul.f32 %v4366, 1.442695
        %v4528 = vpow.pop %v4527
        %v4529 = vmul.f32 %v4367, 1.442695
        %v4530 = vpow.pop %v4529
        %v4531 = vmul.f32 %v4368, 1.442695
        %v4532 = vpow.pop %v4531
        %v4533 = vmul.f32 %v4369, 1.442695
        %v4534 = vpow.pop %v4533
        %v4535 = vmul.f32 %v4370, 1.442695
        %v4536 = vpow.pop %v4535
        %v4537 = vmul.f32 %v4371, 1.442695
        %v4538 = vpow.pop %v4537
        %v4539 = vmul.f32 %v4372, 1.442695
        %v4540 = vpow.pop %v4539
        %v4541 = vmul.f32 %v4373, 1.442695
        %v4542 = vpow.pop %v4541
        %v4543 = vmul.f32 %v4374, 1.442695
        %v4544 = vpow.pop %v4543
        %v4545 = vmul.f32 %v4375, 1.442695
        %v4546 = vpow.pop %v4545
        %v4547 = vmul.f32 %v4376, 1.442695
        %v4548 = vpow.pop %v4547
        %v4549 = vmul.f32 %v4377, 1.442695
        %v4550 = vpow.pop %v4549
        %v4551 = vmul.f32 %v4378, 1.442695
        %v4552 = vpow.pop %v4551
        %v4553 = vmul.f32 %v4379, 1.442695
        %v4554 = vpow.pop %v4553
        %v4555 = vmul.f32 %v4380, 1.442695
        %v4556 = vpow.pop %v4555
        %v4557 = vmul.f32 %v4381, 1.442695
        %v4558 = vpow.pop %v4557
        %v4559 = vmul.f32 %v4382, 1.442695
        %v4560 = vpow.pop %v4559
        %v4561 = vmul.f32 %v4383, 1.442695
        %v4562 = vpow.pop %v4561
        %v4563 = vmul.f32 %v4384, 1.442695
        %v4564 = vpow.pop %v4563
        %v4565 = vmul.f32 %v4385, 1.442695
        %v4566 = vpow.pop %v4565
        %v4567 = vmul.f32 %v4386, 1.442695
        %v4568 = vpow.pop %v4567
        %v4569 = vmul.f32 %v4387, 1.442695
        %v4570 = vpow.pop %v4569
        %v4571 = vmul.f32 %v4388, 1.442695
        %v4572 = vpow.pop %v4571
        %v4573 = vmul.f32 %v4389, 1.442695
        %v4574 = vpow.pop %v4573
        %v4575 = vmul.f32 %v4390, 1.442695
        %v4576 = vpow.pop %v4575
        %v4577 = vmul.f32 %v4391, 1.442695
        %v4578 = vpow.pop %v4577
        %v4579 = vmul.f32 %v4392, 1.442695
        %v4580 = vpow.pop %v4579
        %v4581 = vmul.f32 %v4393, 1.442695
        %v4582 = vpow.pop %v4581
        %v4583 = vmul.f32 %v4394, 1.442695
        %v4584 = vpow.pop %v4583
        %v4585 = vmul.f32 %v4395, 1.442695
        %v4586 = vpow.pop %v4585
        %v4587 = vmul.f32 %v4396, 1.442695
        %v4588 = vpow.pop %v4587
        %v4589 = vmul.f32 %v4397, 1.442695
        %v4590 = vpow.pop %v4589
        %v4591 = vmul.f32 %v4398, 1.442695
        %v4592 = vpow.pop %v4591
        %v4593 = vmul.f32 %v4399, 1.442695
        %v4594 = vpow.pop %v4593
        %v4595 = vmul.f32 %v4400, 1.442695
        %v4596 = vpow.pop %v4595
        %v4597 = vmul.f32 %v4401, 1.442695
        %v4598 = vpow.pop %v4597
        %v4599 = vmul.f32 %v4402, 1.442695
        %v4600 = vpow.pop %v4599
        %v4601 = vmul.f32 %v4403, 1.442695
        %v4602 = vpow.pop %v4601
        %v4603 = vmul.f32 %v4404, 1.442695
        %v4604 = vpow.pop %v4603
        %v4605 = vmul.f32 %v4405, 1.442695
        %v4606 = vpow.pop %v4605
        %v4607 = vmul.f32 %v4406, 1.442695
        %v4608 = vpow.pop %v4607
        %v4609 = vmul.f32 %v4407, 1.442695
        %v4610 = vpow.pop %v4609
        %v4611 = vmul.f32 %v4408, 1.442695
        %v4612 = vpow.pop %v4611
        %v4613 = vmul.f32 %v4409, 1.442695
        %v4614 = vpow.pop %v4613
        %v4615 = vmul.f32 %v4410, 1.442695
        %v4616 = vpow.pop %v4615
        %v4617 = vmul.f32 %v4411, 1.442695
        %v4618 = vpow.pop %v4617
        %v4619 = vmul.f32 %v4412, 1.442695
        %v4620 = vpow.pop %v4619
        %v4621 = vmul.f32 %v4413, 1.442695
        %v4622 = vpow.pop %v4621
        %v4623 = vmul.f32 %v4414, 1.442695
        %v4624 = vpow.pop %v4623
        %v4625 = vmul.f32 %v4415, 1.442695
        %v4626 = vpow.pop %v4625
        %v4627 = vmul.f32 %v4416, 1.442695
        %v4628 = vpow.pop %v4627
        %v4629 = vmul.f32 %v4417, 1.442695
        %v4630 = vpow.pop %v4629
        %v4631 = vmul.f32 %v4418, 1.442695
        %v4632 = vpow.pop %v4631
        %v4633 = vmul.f32 %v4419, 1.442695
        %v4634 = vpow.pop %v4633
        %v4635 = vmul.f32 %v4420, 1.442695
        %v4636 = vpow.pop %v4635
        %v4637 = vmul.f32 %v4421, 1.442695
        %v4638 = vpow.pop %v4637
        %v4639 = vmul.f32 %v4422, 1.442695
        %v4640 = vpow.pop %v4639
        %v4641 = vmul.f32 %v4423, 1.442695
        %v4642 = vpow.pop %v4641
        %v4643 = vmul.f32 %v4424, 1.442695
        %v4644 = vpow.pop %v4643
        %v4645 = vmul.f32 %v4425, 1.442695
        %v4646 = vpow.pop %v4645
        %v4647 = vmul.f32 %v4426, 1.442695
        %v4648 = vpow.pop %v4647
        %v4649 = vmul.f32 %v4427, 1.442695
        %v4650 = vpow.pop %v4649
        %v4651 = vmul.f32 %v4428, 1.442695
        %v4652 = vpow.pop %v4651
        %v4653 = vmul.f32 %v4429, 1.442695
        %v4654 = vpow.pop %v4653
        %v4655 = vmul.f32 %v4430, 1.442695
        %v4656 = vpow.pop %v4655
        %v4657 = vmul.f32 %v4431, 1.442695
        %v4658 = vpow.pop %v4657
        %v4659 = vmul.f32 %v4432, 1.442695
        %v4660 = vpow.pop %v4659
        %v4661 = vmul.f32 %v4433, 1.442695
        %v4662 = vpow.pop %v4661
        %v4663 = vmul.f32 %v4434, 1.442695
        %v4664 = vpow.pop %v4663
        %v4665 = vmul.f32 %v4435, 1.442695
        %v4666 = vpow.pop %v4665
        %v4667 = vmul.f32 %v4436, 1.442695
        %v4668 = vpow.pop %v4667
        %v4669 = vmul.f32 %v4437, 1.442695
        %v4670 = vpow.pop %v4669
        %v4671 = vmul.f32 %v4438, 1.442695
        %v4672 = vpow.pop %v4671
        %v4673 = vmul.f32 %v4439, 1.442695
        %v4674 = vpow.pop %v4673
        %v4675 = vmul.f32 %v4440, 1.442695
        %v4676 = vpow.pop %v4675
        %v4677 = vmul.f32 %v4441, 1.442695
        %v4678 = vpow.pop %v4677
        %v4679 = vmul.f32 %v4442, 1.442695
        %v4680 = vpow.pop %v4679
        %v4681 = vmul.f32 %v4443, 1.442695
        %v4682 = vpow.pop %v4681
        %v4683 = vmul.f32 %v4444, 1.442695
        %v4684 = vpow.pop %v4683
        %v4685 = vmul.f32 %v4445, 1.442695
        %v4686 = vpow.pop %v4685
        %v4687 = vmul.f32 %v4446, 1.442695
        %v4688 = vpow.pop %v4687
        %v4689 = vmul.f32 %v4447, 1.442695
        %v4690 = vpow.pop %v4689
        %v4691 = vmul.f32 %v4448, 1.442695
        %v4692 = vpow.pop %v4691
        %v4693 = vmul.f32 %v4449, 1.442695
        %v4694 = vpow.pop %v4693
        %v4695 = vmul.f32 %v4450, 1.442695
        %v4696 = vpow.pop %v4695
        %v4697 = vmul.f32 %v4451, 1.442695
        %v4698 = vpow.pop %v4697
        %v4699 = vmul.f32 %v4452, 1.442695
        %v4700 = vpow.pop %v4699
        %v4701 = vmul.f32 %v4453, 1.442695
        %v4702 = vpow.pop %v4701
        %v4703 = vmul.f32 %v4454, 1.442695
        %v4704 = vpow.pop %v4703
        %v4705 = vmul.f32 %v4455, 1.442695
        %v4706 = vpow.pop %v4705
        %v4707 = vmul.f32 %v4456, 1.442695
        %v4708 = vpow.pop %v4707
        %v4709 = vmul.f32 %v4457, 1.442695
        %v4710 = vpow.pop %v4709
        %v4711 = vmul.f32 %v4458, 1.442695
        %v4712 = vpow.pop %v4711
        %v4713 = vmul.f32 %v4459, 1.442695
        %v4714 = vpow.pop %v4713
        %v4715 = vmul.f32 %v4460, 1.442695
        %v4716 = vpow.pop %v4715
        %v4717 = vsub.f32 %v4462, 1.0
        %v4718 = vsub.f32 %v4464, 1.0
        %v4719 = vsub.f32 %v4466, 1.0
        %v4720 = vsub.f32 %v4468, 1.0
        %v4721 = vsub.f32 %v4470, 1.0
        %v4722 = vsub.f32 %v4472, 1.0
        %v4723 = vsub.f32 %v4474, 1.0
        %v4724 = vsub.f32 %v4476, 1.0
        %v4725 = vsub.f32 %v4478, 1.0
        %v4726 = vsub.f32 %v4480, 1.0
        %v4727 = vsub.f32 %v4482, 1.0
        %v4728 = vsub.f32 %v4484, 1.0
        %v4729 = vsub.f32 %v4486, 1.0
        %v4730 = vsub.f32 %v4488, 1.0
        %v4731 = vsub.f32 %v4490, 1.0
        %v4732 = vsub.f32 %v4492, 1.0
        %v4733 = vsub.f32 %v4494, 1.0
        %v4734 = vsub.f32 %v4496, 1.0
        %v4735 = vsub.f32 %v4498, 1.0
        %v4736 = vsub.f32 %v4500, 1.0
        %v4737 = vsub.f32 %v4502, 1.0
        %v4738 = vsub.f32 %v4504, 1.0
        %v4739 = vsub.f32 %v4506, 1.0
        %v4740 = vsub.f32 %v4508, 1.0
        %v4741 = vsub.f32 %v4510, 1.0
        %v4742 = vsub.f32 %v4512, 1.0
        %v4743 = vsub.f32 %v4514, 1.0
        %v4744 = vsub.f32 %v4516, 1.0
        %v4745 = vsub.f32 %v4518, 1.0
        %v4746 = vsub.f32 %v4520, 1.0
        %v4747 = vsub.f32 %v4522, 1.0
        %v4748 = vsub.f32 %v4524, 1.0
        %v4749 = vsub.f32 %v4526, 1.0
        %v4750 = vsub.f32 %v4528, 1.0
        %v4751 = vsub.f32 %v4530, 1.0
        %v4752 = vsub.f32 %v4532, 1.0
        %v4753 = vsub.f32 %v4534, 1.0
        %v4754 = vsub.f32 %v4536, 1.0
        %v4755 = vsub.f32 %v4538, 1.0
        %v4756 = vsub.f32 %v4540, 1.0
        %v4757 = vsub.f32 %v4542, 1.0
        %v4758 = vsub.f32 %v4544, 1.0
        %v4759 = vsub.f32 %v4546, 1.0
        %v4760 = vsub.f32 %v4548, 1.0
        %v4761 = vsub.f32 %v4550, 1.0
        %v4762 = vsub.f32 %v4552, 1.0
        %v4763 = vsub.f32 %v4554, 1.0
        %v4764 = vsub.f32 %v4556, 1.0
        %v4765 = vsub.f32 %v4558, 1.0
        %v4766 = vsub.f32 %v4560, 1.0
        %v4767 = vsub.f32 %v4562, 1.0
        %v4768 = vsub.f32 %v4564, 1.0
        %v4769 = vsub.f32 %v4566, 1.0
        %v4770 = vsub.f32 %v4568, 1.0
        %v4771 = vsub.f32 %v4570, 1.0
        %v4772 = vsub.f32 %v4572, 1.0
        %v4773 = vsub.f32 %v4574, 1.0
        %v4774 = vsub.f32 %v4576, 1.0
        %v4775 = vsub.f32 %v4578, 1.0
        %v4776 = vsub.f32 %v4580, 1.0
        %v4777 = vsub.f32 %v4582, 1.0
        %v4778 = vsub.f32 %v4584, 1.0
        %v4779 = vsub.f32 %v4586, 1.0
        %v4780 = vsub.f32 %v4588, 1.0
        %v4781 = vsub.f32 %v4590, 1.0
        %v4782 = vsub.f32 %v4592, 1.0
        %v4783 = vsub.f32 %v4594, 1.0
        %v4784 = vsub.f32 %v4596, 1.0
        %v4785 = vsub.f32 %v4598, 1.0
        %v4786 = vsub.f32 %v4600, 1.0
        %v4787 = vsub.f32 %v4602, 1.0
        %v4788 = vsub.f32 %v4604, 1.0
        %v4789 = vsub.f32 %v4606, 1.0
        %v4790 = vsub.f32 %v4608, 1.0
        %v4791 = vsub.f32 %v4610, 1.0
        %v4792 = vsub.f32 %v4612, 1.0
        %v4793 = vsub.f32 %v4614, 1.0
        %v4794 = vsub.f32 %v4616, 1.0
        %v4795 = vsub.f32 %v4618, 1.0
        %v4796 = vsub.f32 %v4620, 1.0
        %v4797 = vsub.f32 %v4622, 1.0
        %v4798 = vsub.f32 %v4624, 1.0
        %v4799 = vsub.f32 %v4626, 1.0
        %v4800 = vsub.f32 %v4628, 1.0
        %v4801 = vsub.f32 %v4630, 1.0
        %v4802 = vsub.f32 %v4632, 1.0
        %v4803 = vsub.f32 %v4634, 1.0
        %v4804 = vsub.f32 %v4636, 1.0
        %v4805 = vsub.f32 %v4638, 1.0
        %v4806 = vsub.f32 %v4640, 1.0
        %v4807 = vsub.f32 %v4642, 1.0
        %v4808 = vsub.f32 %v4644, 1.0
        %v4809 = vsub.f32 %v4646, 1.0
        %v4810 = vsub.f32 %v4648, 1.0
        %v4811 = vsub.f32 %v4650, 1.0
        %v4812 = vsub.f32 %v4652, 1.0
        %v4813 = vsub.f32 %v4654, 1.0
        %v4814 = vsub.f32 %v4656, 1.0
        %v4815 = vsub.f32 %v4658, 1.0
        %v4816 = vsub.f32 %v4660, 1.0
        %v4817 = vsub.f32 %v4662, 1.0
        %v4818 = vsub.f32 %v4664, 1.0
        %v4819 = vsub.f32 %v4666, 1.0
        %v4820 = vsub.f32 %v4668, 1.0
        %v4821 = vsub.f32 %v4670, 1.0
        %v4822 = vsub.f32 %v4672, 1.0
        %v4823 = vsub.f32 %v4674, 1.0
        %v4824 = vsub.f32 %v4676, 1.0
        %v4825 = vsub.f32 %v4678, 1.0
        %v4826 = vsub.f32 %v4680, 1.0
        %v4827 = vsub.f32 %v4682, 1.0
        %v4828 = vsub.f32 %v4684, 1.0
        %v4829 = vsub.f32 %v4686, 1.0
        %v4830 = vsub.f32 %v4688, 1.0
        %v4831 = vsub.f32 %v4690, 1.0
        %v4832 = vsub.f32 %v4692, 1.0
        %v4833 = vsub.f32 %v4694, 1.0
        %v4834 = vsub.f32 %v4696, 1.0
        %v4835 = vsub.f32 %v4698, 1.0
        %v4836 = vsub.f32 %v4700, 1.0
        %v4837 = vsub.f32 %v4702, 1.0
        %v4838 = vsub.f32 %v4704, 1.0
        %v4839 = vsub.f32 %v4706, 1.0
        %v4840 = vsub.f32 %v4708, 1.0
        %v4841 = vsub.f32 %v4710, 1.0
        %v4842 = vsub.f32 %v4712, 1.0
        %v4843 = vsub.f32 %v4714, 1.0
        %v4844 = vsub.f32 %v4716, 1.0
        %v4845 = vsel %vm4205, %v3567, %v4717
        %v4846 = vsel %vm4206, %v3608, %v4718
        %v4847 = vsel %vm4207, %v3649, %v4719
        %v4848 = vsel %vm4208, %v3690, %v4720
        %v4849 = vsel %vm4209, %v3731, %v4721
        %v4850 = vsel %vm4210, %v3772, %v4722
        %v4851 = vsel %vm4211, %v3813, %v4723
        %v4852 = vsel %vm4212, %v3854, %v4724
        %v4853 = vsel %vm4213, %v3895, %v4725
        %v4854 = vsel %vm4214, %v3936, %v4726
        %v4855 = vsel %vm4215, %v3977, %v4727
        %v4856 = vsel %vm4216, %v4018, %v4728
        %v4857 = vsel %vm4217, %v4059, %v4729
        %v4858 = vsel %vm4218, %v4100, %v4730
        %v4859 = vsel %vm4219, %v4141, %v4731
        %v4860 = vsel %vm4220, %v4182, %v4732
        %v4861 = vsel %vm4221, %v3570, %v4733
        %v4862 = vsel %vm4222, %v3611, %v4734
        %v4863 = vsel %vm4223, %v3652, %v4735
        %v4864 = vsel %vm4224, %v3693, %v4736
        %v4865 = vsel %vm4225, %v3734, %v4737
        %v4866 = vsel %vm4226, %v3775, %v4738
        %v4867 = vsel %vm4227, %v3816, %v4739
        %v4868 = vsel %vm4228, %v3857, %v4740
        %v4869 = vsel %vm4229, %v3898, %v4741
        %v4870 = vsel %vm4230, %v3939, %v4742
        %v4871 = vsel %vm4231, %v3980, %v4743
        %v4872 = vsel %vm4232, %v4021, %v4744
        %v4873 = vsel %vm4233, %v4062, %v4745
        %v4874 = vsel %vm4234, %v4103, %v4746
        %v4875 = vsel %vm4235, %v4144, %v4747
        %v4876 = vsel %vm4236, %v4185, %v4748
        %v4877 = vsel %vm4237, %v3573, %v4749
        %v4878 = vsel %vm4238, %v3614, %v4750
        %v4879 = vsel %vm4239, %v3655, %v4751
        %v4880 = vsel %vm4240, %v3696, %v4752
        %v4881 = vsel %vm4241, %v3737, %v4753
        %v4882 = vsel %vm4242, %v3778, %v4754
        %v4883 = vsel %vm4243, %v3819, %v4755
        %v4884 = vsel %vm4244, %v3860, %v4756
        %v4885 = vsel %vm4245, %v3901, %v4757
        %v4886 = vsel %vm4246, %v3942, %v4758
        %v4887 = vsel %vm4247, %v3983, %v4759
        %v4888 = vsel %vm4248, %v4024, %v4760
        %v4889 = vsel %vm4249, %v4065, %v4761
        %v4890 = vsel %vm4250, %v4106, %v4762
        %v4891 = vsel %vm4251, %v4147, %v4763
        %v4892 = vsel %vm4252, %v4188, %v4764
        %v4893 = vsel %vm4253, %v3576, %v4765
        %v4894 = vsel %vm4254, %v3617, %v4766
        %v4895 = vsel %vm4255, %v3658, %v4767
        %v4896 = vsel %vm4256, %v3699, %v4768
        %v4897 = vsel %vm4257, %v3740, %v4769
        %v4898 = vsel %vm4258, %v3781, %v4770
        %v4899 = vsel %vm4259, %v3822, %v4771
        %v4900 = vsel %vm4260, %v3863, %v4772
        %v4901 = vsel %vm4261, %v3904, %v4773
        %v4902 = vsel %vm4262, %v3945, %v4774
        %v4903 = vsel %vm4263, %v3986, %v4775
        %v4904 = vsel %vm4264, %v4027, %v4776
        %v4905 = vsel %vm4265, %v4068, %v4777
        %v4906 = vsel %vm4266, %v4109, %v4778
        %v4907 = vsel %vm4267, %v4150, %v4779
        %v4908 = vsel %vm4268, %v4191, %v4780
        %v4909 = vsel %vm4269, %v3579, %v4781
        %v4910 = vsel %vm4270, %v3620, %v4782
        %v4911 = vsel %vm4271, %v3661, %v4783
        %v4912 = vsel %vm4272, %v3702, %v4784
        %v4913 = vsel %vm4273, %v3743, %v4785
        %v4914 = vsel %vm4274, %v3784, %v4786
        %v4915 = vsel %vm4275, %v3825, %v4787
        %v4916 = vsel %vm4276, %v3866, %v4788
        %v4917 = vsel %vm4277, %v3907, %v4789
        %v4918 = vsel %vm4278, %v3948, %v4790
        %v4919 = vsel %vm4279, %v3989, %v4791
        %v4920 = vsel %vm4280, %v4030, %v4792
        %v4921 = vsel %vm4281, %v4071, %v4793
        %v4922 = vsel %vm4282, %v4112, %v4794
        %v4923 = vsel %vm4283, %v4153, %v4795
        %v4924 = vsel %vm4284, %v4194, %v4796
        %v4925 = vsel %vm4285, %v3582, %v4797
        %v4926 = vsel %vm4286, %v3623, %v4798
        %v4927 = vsel %vm4287, %v3664, %v4799
        %v4928 = vsel %vm4288, %v3705, %v4800
        %v4929 = vsel %vm4289, %v3746, %v4801
        %v4930 = vsel %vm4290, %v3787, %v4802
        %v4931 = vsel %vm4291, %v3828, %v4803
        %v4932 = vsel %vm4292, %v3869, %v4804
        %v4933 = vsel %vm4293, %v3910, %v4805
        %v4934 = vsel %vm4294, %v3951, %v4806
        %v4935 = vsel %vm4295, %v3992, %v4807
        %v4936 = vsel %vm4296, %v4033, %v4808
        %v4937 = vsel %vm4297, %v4074, %v4809
        %v4938 = vsel %vm4298, %v4115, %v4810
        %v4939 = vsel %vm4299, %v4156, %v4811
        %v4940 = vsel %vm4300, %v4197, %v4812
        %v4941 = vsel %vm4301, %v3585, %v4813
        %v4942 = vsel %vm4302, %v3626, %v4814
        %v4943 = vsel %vm4303, %v3667, %v4815
        %v4944 = vsel %vm4304, %v3708, %v4816
        %v4945 = vsel %vm4305, %v3749, %v4817
        %v4946 = vsel %vm4306, %v3790, %v4818
        %v4947 = vsel %vm4307, %v3831, %v4819
        %v4948 = vsel %vm4308, %v3872, %v4820
        %v4949 = vsel %vm4309, %v3913, %v4821
        %v4950 = vsel %vm4310, %v3954, %v4822
        %v4951 = vsel %vm4311, %v3995, %v4823
        %v4952 = vsel %vm4312, %v4036, %v4824
        %v4953 = vsel %vm4313, %v4077, %v4825
        %v4954 = vsel %vm4314, %v4118, %v4826
        %v4955 = vsel %vm4315, %v4159, %v4827
        %v4956 = vsel %vm4316, %v4200, %v4828
        %v4957 = vsel %vm4317, %v3588, %v4829
        %v4958 = vsel %vm4318, %v3629, %v4830
        %v4959 = vsel %vm4319, %v3670, %v4831
        %v4960 = vsel %vm4320, %v3711, %v4832
        %v4961 = vsel %vm4321, %v3752, %v4833
        %v4962 = vsel %vm4322, %v3793, %v4834
        %v4963 = vsel %vm4323, %v3834, %v4835
        %v4964 = vsel %vm4324, %v3875, %v4836
        %v4965 = vsel %vm4325, %v3916, %v4837
        %v4966 = vsel %vm4326, %v3957, %v4838
        %v4967 = vsel %vm4327, %v3998, %v4839
        %v4968 = vsel %vm4328, %v4039, %v4840
        %v4969 = vsel %vm4329, %v4080, %v4841
        %v4970 = vsel %vm4330, %v4121, %v4842
        %v4971 = vsel %vm4331, %v4162, %v4843
        %v4972 = vsel %vm4332, %v4203, %v4844
        %s4973 = scalar_lea.vmem %s4, 128
        %v4974 = vld [vmem:[%s4973] sm:$0xff]
        %v4975 = vld [vmem:[%s4973 + $0x8] sm:$0xff]
        %v4976 = vld [vmem:[%s4973 + $0x10] sm:$0xff]
        %v4977 = vld [vmem:[%s4973 + $0x18] sm:$0xff]
        %v4978 = vld [vmem:[%s4973 + $0x20] sm:$0xff]
        %v4979 = vld [vmem:[%s4973 + $0x28] sm:$0xff]
        %v4980 = vld [vmem:[%s4973 + $0x30] sm:$0xff]
        %v4981 = vld [vmem:[%s4973 + $0x38] sm:$0xff]
        %s4982 = scalar_lea.vmem %s5, 128
        %v4983 = vld [vmem:[%s4982] sm:$0xff]
        %v4984 = vld [vmem:[%s4982 + $0x8] sm:$0xff]
        %v4985 = vld [vmem:[%s4982 + $0x10] sm:$0xff]
        %v4986 = vld [vmem:[%s4982 + $0x18] sm:$0xff]
        %v4987 = vld [vmem:[%s4982 + $0x20] sm:$0xff]
        %v4988 = vld [vmem:[%s4982 + $0x28] sm:$0xff]
        %v4989 = vld [vmem:[%s4982 + $0x30] sm:$0xff]
        %v4990 = vld [vmem:[%s4982 + $0x38] sm:$0xff]
        %4992 = vset.pattern.permute.xlu0 0
        %4993 = vperm.xlu0 %4992, %v4983
        %v4994 = vpop.permute.xlu0 %4993
        %4997 = vset.pattern.permute.xlu0 0
        %4998 = vperm.xlu0 %4997, %v4984
        %v4999 = vpop.permute.xlu0 %4998
        %5002 = vset.pattern.permute.xlu0 0
        %5003 = vperm.xlu0 %5002, %v4985
        %v5004 = vpop.permute.xlu0 %5003
        %5007 = vset.pattern.permute.xlu0 0
        %5008 = vperm.xlu0 %5007, %v4986
        %v5009 = vpop.permute.xlu0 %5008
        %5012 = vset.pattern.permute.xlu0 0
        %5013 = vperm.xlu0 %5012, %v4987
        %v5014 = vpop.permute.xlu0 %5013
        %5017 = vset.pattern.permute.xlu0 0
        %5018 = vperm.xlu0 %5017, %v4988
        %v5019 = vpop.permute.xlu0 %5018
        %5022 = vset.pattern.permute.xlu0 0
        %5023 = vperm.xlu0 %5022, %v4989
        %v5024 = vpop.permute.xlu0 %5023
        %5027 = vset.pattern.permute.xlu0 0
        %5028 = vperm.xlu0 %5027, %v4990
        %v5029 = vpop.permute.xlu0 %5028
        %v5032 = vsel %vm2018, %v4974, 0
        %v5035 = vsel %vm2018, %v4975, 0
        %v5038 = vsel %vm2018, %v4976, 0
        %v5041 = vsel %vm2018, %v4977, 0
        %v5044 = vsel %vm2018, %v4978, 0
        %v5047 = vsel %vm2018, %v4979, 0
        %v5050 = vsel %vm2018, %v4980, 0
        %v5053 = vsel %vm2018, %v4981, 0
        %5055 = vmatpush.msra.mxu0 0.0
        %5056 = vmatpush.msra.mxu0 0.0
        %5057 = vmatpush.msra.mxu0 0.0
        %5058 = vmatpush.msra.mxu0 0.0
        %5059 = vmatpush.msra.mxu0 0.0
        %5060 = vmatpush.msra.mxu0 0.0
        %5061 = vmatpush.msra.mxu0 0.0
        %5062 = vmatpush.msra.mxu0 0.0
        %5063 = vmatpush.msra.mxu0 %v4957
        %5064 = vmatpush.msra.mxu0 %v4941
        %5065 = vmatpush.msra.mxu0 %v4925
        %5066 = vmatpush.msra.mxu0 %v4909
        %5067 = vmatpush.msra.mxu0 %v4893
        %5068 = vmatpush.msra.mxu0 %v4877
        %5069 = vmatpush.msra.mxu0 %v4861
        %5070 = vmatpush.msra.mxu0 %v4845
        %5071 = vmatmul.f32.gmra.mxu0 %v5032
        %v5072 = vpop.f32.mrf.mxu0
        %v5073 = vadd.f32 %v4994, %v5072
        %5074 = vmatmul.f32.gmra.mxu0 %v5035
        %v5075 = vpop.f32.mrf.mxu0
        %v5076 = vadd.f32 %v4999, %v5075
        %5077 = vmatmul.f32.gmra.mxu0 %v5038
        %v5078 = vpop.f32.mrf.mxu0
        %v5079 = vadd.f32 %v5004, %v5078
        %5080 = vmatmul.f32.gmra.mxu0 %v5041
        %v5081 = vpop.f32.mrf.mxu0
        %v5082 = vadd.f32 %v5009, %v5081
        %5083 = vmatmul.f32.gmra.mxu0 %v5044
        %v5084 = vpop.f32.mrf.mxu0
        %v5085 = vadd.f32 %v5014, %v5084
        %5086 = vmatmul.f32.gmra.mxu0 %v5047
        %v5087 = vpop.f32.mrf.mxu0
        %v5088 = vadd.f32 %v5019, %v5087
        %5089 = vmatmul.f32.gmra.mxu0 %v5050
        %v5090 = vpop.f32.mrf.mxu0
        %v5091 = vadd.f32 %v5024, %v5090
        %5092 = vmatmul.f32.gmra.mxu0 %v5053
        %v5093 = vpop.f32.mrf.mxu0
        %v5094 = vadd.f32 %v5029, %v5093
        %5095 = vdwg.mxu0
        %5096 = vmatpush.msra.mxu0 0.0
        %5097 = vmatpush.msra.mxu0 0.0
        %5098 = vmatpush.msra.mxu0 0.0
        %5099 = vmatpush.msra.mxu0 0.0
        %5100 = vmatpush.msra.mxu0 0.0
        %5101 = vmatpush.msra.mxu0 0.0
        %5102 = vmatpush.msra.mxu0 0.0
        %5103 = vmatpush.msra.mxu0 0.0
        %5104 = vmatpush.msra.mxu0 %v4958
        %5105 = vmatpush.msra.mxu0 %v4942
        %5106 = vmatpush.msra.mxu0 %v4926
        %5107 = vmatpush.msra.mxu0 %v4910
        %5108 = vmatpush.msra.mxu0 %v4894
        %5109 = vmatpush.msra.mxu0 %v4878
        %5110 = vmatpush.msra.mxu0 %v4862
        %5111 = vmatpush.msra.mxu0 %v4846
        %5112 = vmatmul.f32.gmra.mxu0 %v5032
        %v5113 = vpop.f32.mrf.mxu0
        %v5114 = vadd.f32 %v4994, %v5113
        %5115 = vmatmul.f32.gmra.mxu0 %v5035
        %v5116 = vpop.f32.mrf.mxu0
        %v5117 = vadd.f32 %v4999, %v5116
        %5118 = vmatmul.f32.gmra.mxu0 %v5038
        %v5119 = vpop.f32.mrf.mxu0
        %v5120 = vadd.f32 %v5004, %v5119
        %5121 = vmatmul.f32.gmra.mxu0 %v5041
        %v5122 = vpop.f32.mrf.mxu0
        %v5123 = vadd.f32 %v5009, %v5122
        %5124 = vmatmul.f32.gmra.mxu0 %v5044
        %v5125 = vpop.f32.mrf.mxu0
        %v5126 = vadd.f32 %v5014, %v5125
        %5127 = vmatmul.f32.gmra.mxu0 %v5047
        %v5128 = vpop.f32.mrf.mxu0
        %v5129 = vadd.f32 %v5019, %v5128
        %5130 = vmatmul.f32.gmra.mxu0 %v5050
        %v5131 = vpop.f32.mrf.mxu0
        %v5132 = vadd.f32 %v5024, %v5131
        %5133 = vmatmul.f32.gmra.mxu0 %v5053
        %v5134 = vpop.f32.mrf.mxu0
        %v5135 = vadd.f32 %v5029, %v5134
        %5136 = vdwg.mxu0
        %5137 = vmatpush.msra.mxu0 0.0
        %5138 = vmatpush.msra.mxu0 0.0
        %5139 = vmatpush.msra.mxu0 0.0
        %5140 = vmatpush.msra.mxu0 0.0
        %5141 = vmatpush.msra.mxu0 0.0
        %5142 = vmatpush.msra.mxu0 0.0
        %5143 = vmatpush.msra.mxu0 0.0
        %5144 = vmatpush.msra.mxu0 0.0
        %5145 = vmatpush.msra.mxu0 %v4959
        %5146 = vmatpush.msra.mxu0 %v4943
        %5147 = vmatpush.msra.mxu0 %v4927
        %5148 = vmatpush.msra.mxu0 %v4911
        %5149 = vmatpush.msra.mxu0 %v4895
        %5150 = vmatpush.msra.mxu0 %v4879
        %5151 = vmatpush.msra.mxu0 %v4863
        %5152 = vmatpush.msra.mxu0 %v4847
        %5153 = vmatmul.f32.gmra.mxu0 %v5032
        %v5154 = vpop.f32.mrf.mxu0
        %v5155 = vadd.f32 %v4994, %v5154
        %5156 = vmatmul.f32.gmra.mxu0 %v5035
        %v5157 = vpop.f32.mrf.mxu0
        %v5158 = vadd.f32 %v4999, %v5157
        %5159 = vmatmul.f32.gmra.mxu0 %v5038
        %v5160 = vpop.f32.mrf.mxu0
        %v5161 = vadd.f32 %v5004, %v5160
        %5162 = vmatmul.f32.gmra.mxu0 %v5041
        %v5163 = vpop.f32.mrf.mxu0
        %v5164 = vadd.f32 %v5009, %v5163
        %5165 = vmatmul.f32.gmra.mxu0 %v5044
        %v5166 = vpop.f32.mrf.mxu0
        %v5167 = vadd.f32 %v5014, %v5166
        %5168 = vmatmul.f32.gmra.mxu0 %v5047
        %v5169 = vpop.f32.mrf.mxu0
        %v5170 = vadd.f32 %v5019, %v5169
        %5171 = vmatmul.f32.gmra.mxu0 %v5050
        %v5172 = vpop.f32.mrf.mxu0
        %v5173 = vadd.f32 %v5024, %v5172
        %5174 = vmatmul.f32.gmra.mxu0 %v5053
        %v5175 = vpop.f32.mrf.mxu0
        %v5176 = vadd.f32 %v5029, %v5175
        %5177 = vdwg.mxu0
        %5178 = vmatpush.msra.mxu0 0.0
        %5179 = vmatpush.msra.mxu0 0.0
        %5180 = vmatpush.msra.mxu0 0.0
        %5181 = vmatpush.msra.mxu0 0.0
        %5182 = vmatpush.msra.mxu0 0.0
        %5183 = vmatpush.msra.mxu0 0.0
        %5184 = vmatpush.msra.mxu0 0.0
        %5185 = vmatpush.msra.mxu0 0.0
        %5186 = vmatpush.msra.mxu0 %v4960
        %5187 = vmatpush.msra.mxu0 %v4944
        %5188 = vmatpush.msra.mxu0 %v4928
        %5189 = vmatpush.msra.mxu0 %v4912
        %5190 = vmatpush.msra.mxu0 %v4896
        %5191 = vmatpush.msra.mxu0 %v4880
        %5192 = vmatpush.msra.mxu0 %v4864
        %5193 = vmatpush.msra.mxu0 %v4848
        %5194 = vmatmul.f32.gmra.mxu0 %v5032
        %v5195 = vpop.f32.mrf.mxu0
        %v5196 = vadd.f32 %v4994, %v5195
        %5197 = vmatmul.f32.gmra.mxu0 %v5035
        %v5198 = vpop.f32.mrf.mxu0
        %v5199 = vadd.f32 %v4999, %v5198
        %5200 = vmatmul.f32.gmra.mxu0 %v5038
        %v5201 = vpop.f32.mrf.mxu0
        %v5202 = vadd.f32 %v5004, %v5201
        %5203 = vmatmul.f32.gmra.mxu0 %v5041
        %v5204 = vpop.f32.mrf.mxu0
        %v5205 = vadd.f32 %v5009, %v5204
        %5206 = vmatmul.f32.gmra.mxu0 %v5044
        %v5207 = vpop.f32.mrf.mxu0
        %v5208 = vadd.f32 %v5014, %v5207
        %5209 = vmatmul.f32.gmra.mxu0 %v5047
        %v5210 = vpop.f32.mrf.mxu0
        %v5211 = vadd.f32 %v5019, %v5210
        %5212 = vmatmul.f32.gmra.mxu0 %v5050
        %v5213 = vpop.f32.mrf.mxu0
        %v5214 = vadd.f32 %v5024, %v5213
        %5215 = vmatmul.f32.gmra.mxu0 %v5053
        %v5216 = vpop.f32.mrf.mxu0
        %v5217 = vadd.f32 %v5029, %v5216
        %5218 = vdwg.mxu0
        %5219 = vmatpush.msra.mxu0 0.0
        %5220 = vmatpush.msra.mxu0 0.0
        %5221 = vmatpush.msra.mxu0 0.0
        %5222 = vmatpush.msra.mxu0 0.0
        %5223 = vmatpush.msra.mxu0 0.0
        %5224 = vmatpush.msra.mxu0 0.0
        %5225 = vmatpush.msra.mxu0 0.0
        %5226 = vmatpush.msra.mxu0 0.0
        %5227 = vmatpush.msra.mxu0 %v4961
        %5228 = vmatpush.msra.mxu0 %v4945
        %5229 = vmatpush.msra.mxu0 %v4929
        %5230 = vmatpush.msra.mxu0 %v4913
        %5231 = vmatpush.msra.mxu0 %v4897
        %5232 = vmatpush.msra.mxu0 %v4881
        %5233 = vmatpush.msra.mxu0 %v4865
        %5234 = vmatpush.msra.mxu0 %v4849
        %5235 = vmatmul.f32.gmra.mxu0 %v5032
        %v5236 = vpop.f32.mrf.mxu0
        %v5237 = vadd.f32 %v4994, %v5236
        %5238 = vmatmul.f32.gmra.mxu0 %v5035
        %v5239 = vpop.f32.mrf.mxu0
        %v5240 = vadd.f32 %v4999, %v5239
        %5241 = vmatmul.f32.gmra.mxu0 %v5038
        %v5242 = vpop.f32.mrf.mxu0
        %v5243 = vadd.f32 %v5004, %v5242
        %5244 = vmatmul.f32.gmra.mxu0 %v5041
        %v5245 = vpop.f32.mrf.mxu0
        %v5246 = vadd.f32 %v5009, %v5245
        %5247 = vmatmul.f32.gmra.mxu0 %v5044
        %v5248 = vpop.f32.mrf.mxu0
        %v5249 = vadd.f32 %v5014, %v5248
        %5250 = vmatmul.f32.gmra.mxu0 %v5047
        %v5251 = vpop.f32.mrf.mxu0
        %v5252 = vadd.f32 %v5019, %v5251
        %5253 = vmatmul.f32.gmra.mxu0 %v5050
        %v5254 = vpop.f32.mrf.mxu0
        %v5255 = vadd.f32 %v5024, %v5254
        %5256 = vmatmul.f32.gmra.mxu0 %v5053
        %v5257 = vpop.f32.mrf.mxu0
        %v5258 = vadd.f32 %v5029, %v5257
        %5259 = vdwg.mxu0
        %5260 = vmatpush.msra.mxu0 0.0
        %5261 = vmatpush.msra.mxu0 0.0
        %5262 = vmatpush.msra.mxu0 0.0
        %5263 = vmatpush.msra.mxu0 0.0
        %5264 = vmatpush.msra.mxu0 0.0
        %5265 = vmatpush.msra.mxu0 0.0
        %5266 = vmatpush.msra.mxu0 0.0
        %5267 = vmatpush.msra.mxu0 0.0
        %5268 = vmatpush.msra.mxu0 %v4962
        %5269 = vmatpush.msra.mxu0 %v4946
        %5270 = vmatpush.msra.mxu0 %v4930
        %5271 = vmatpush.msra.mxu0 %v4914
        %5272 = vmatpush.msra.mxu0 %v4898
        %5273 = vmatpush.msra.mxu0 %v4882
        %5274 = vmatpush.msra.mxu0 %v4866
        %5275 = vmatpush.msra.mxu0 %v4850
        %5276 = vmatmul.f32.gmra.mxu0 %v5032
        %v5277 = vpop.f32.mrf.mxu0
        %v5278 = vadd.f32 %v4994, %v5277
        %5279 = vmatmul.f32.gmra.mxu0 %v5035
        %v5280 = vpop.f32.mrf.mxu0
        %v5281 = vadd.f32 %v4999, %v5280
        %5282 = vmatmul.f32.gmra.mxu0 %v5038
        %v5283 = vpop.f32.mrf.mxu0
        %v5284 = vadd.f32 %v5004, %v5283
        %5285 = vmatmul.f32.gmra.mxu0 %v5041
        %v5286 = vpop.f32.mrf.mxu0
        %v5287 = vadd.f32 %v5009, %v5286
        %5288 = vmatmul.f32.gmra.mxu0 %v5044
        %v5289 = vpop.f32.mrf.mxu0
        %v5290 = vadd.f32 %v5014, %v5289
        %5291 = vmatmul.f32.gmra.mxu0 %v5047
        %v5292 = vpop.f32.mrf.mxu0
        %v5293 = vadd.f32 %v5019, %v5292
        %5294 = vmatmul.f32.gmra.mxu0 %v5050
        %v5295 = vpop.f32.mrf.mxu0
        %v5296 = vadd.f32 %v5024, %v5295
        %5297 = vmatmul.f32.gmra.mxu0 %v5053
        %v5298 = vpop.f32.mrf.mxu0
        %v5299 = vadd.f32 %v5029, %v5298
        %5300 = vdwg.mxu0
        %5301 = vmatpush.msra.mxu0 0.0
        %5302 = vmatpush.msra.mxu0 0.0
        %5303 = vmatpush.msra.mxu0 0.0
        %5304 = vmatpush.msra.mxu0 0.0
        %5305 = vmatpush.msra.mxu0 0.0
        %5306 = vmatpush.msra.mxu0 0.0
        %5307 = vmatpush.msra.mxu0 0.0
        %5308 = vmatpush.msra.mxu0 0.0
        %5309 = vmatpush.msra.mxu0 %v4963
        %5310 = vmatpush.msra.mxu0 %v4947
        %5311 = vmatpush.msra.mxu0 %v4931
        %5312 = vmatpush.msra.mxu0 %v4915
        %5313 = vmatpush.msra.mxu0 %v4899
        %5314 = vmatpush.msra.mxu0 %v4883
        %5315 = vmatpush.msra.mxu0 %v4867
        %5316 = vmatpush.msra.mxu0 %v4851
        %5317 = vmatmul.f32.gmra.mxu0 %v5032
        %v5318 = vpop.f32.mrf.mxu0
        %v5319 = vadd.f32 %v4994, %v5318
        %5320 = vmatmul.f32.gmra.mxu0 %v5035
        %v5321 = vpop.f32.mrf.mxu0
        %v5322 = vadd.f32 %v4999, %v5321
        %5323 = vmatmul.f32.gmra.mxu0 %v5038
        %v5324 = vpop.f32.mrf.mxu0
        %v5325 = vadd.f32 %v5004, %v5324
        %5326 = vmatmul.f32.gmra.mxu0 %v5041
        %v5327 = vpop.f32.mrf.mxu0
        %v5328 = vadd.f32 %v5009, %v5327
        %5329 = vmatmul.f32.gmra.mxu0 %v5044
        %v5330 = vpop.f32.mrf.mxu0
        %v5331 = vadd.f32 %v5014, %v5330
        %5332 = vmatmul.f32.gmra.mxu0 %v5047
        %v5333 = vpop.f32.mrf.mxu0
        %v5334 = vadd.f32 %v5019, %v5333
        %5335 = vmatmul.f32.gmra.mxu0 %v5050
        %v5336 = vpop.f32.mrf.mxu0
        %v5337 = vadd.f32 %v5024, %v5336
        %5338 = vmatmul.f32.gmra.mxu0 %v5053
        %v5339 = vpop.f32.mrf.mxu0
        %v5340 = vadd.f32 %v5029, %v5339
        %5341 = vdwg.mxu0
        %5342 = vmatpush.msra.mxu0 0.0
        %5343 = vmatpush.msra.mxu0 0.0
        %5344 = vmatpush.msra.mxu0 0.0
        %5345 = vmatpush.msra.mxu0 0.0
        %5346 = vmatpush.msra.mxu0 0.0
        %5347 = vmatpush.msra.mxu0 0.0
        %5348 = vmatpush.msra.mxu0 0.0
        %5349 = vmatpush.msra.mxu0 0.0
        %5350 = vmatpush.msra.mxu0 %v4964
        %5351 = vmatpush.msra.mxu0 %v4948
        %5352 = vmatpush.msra.mxu0 %v4932
        %5353 = vmatpush.msra.mxu0 %v4916
        %5354 = vmatpush.msra.mxu0 %v4900
        %5355 = vmatpush.msra.mxu0 %v4884
        %5356 = vmatpush.msra.mxu0 %v4868
        %5357 = vmatpush.msra.mxu0 %v4852
        %5358 = vmatmul.f32.gmra.mxu0 %v5032
        %v5359 = vpop.f32.mrf.mxu0
        %v5360 = vadd.f32 %v4994, %v5359
        %5361 = vmatmul.f32.gmra.mxu0 %v5035
        %v5362 = vpop.f32.mrf.mxu0
        %v5363 = vadd.f32 %v4999, %v5362
        %5364 = vmatmul.f32.gmra.mxu0 %v5038
        %v5365 = vpop.f32.mrf.mxu0
        %v5366 = vadd.f32 %v5004, %v5365
        %5367 = vmatmul.f32.gmra.mxu0 %v5041
        %v5368 = vpop.f32.mrf.mxu0
        %v5369 = vadd.f32 %v5009, %v5368
        %5370 = vmatmul.f32.gmra.mxu0 %v5044
        %v5371 = vpop.f32.mrf.mxu0
        %v5372 = vadd.f32 %v5014, %v5371
        %5373 = vmatmul.f32.gmra.mxu0 %v5047
        %v5374 = vpop.f32.mrf.mxu0
        %v5375 = vadd.f32 %v5019, %v5374
        %5376 = vmatmul.f32.gmra.mxu0 %v5050
        %v5377 = vpop.f32.mrf.mxu0
        %v5378 = vadd.f32 %v5024, %v5377
        %5379 = vmatmul.f32.gmra.mxu0 %v5053
        %v5380 = vpop.f32.mrf.mxu0
        %v5381 = vadd.f32 %v5029, %v5380
        %5382 = vdwg.mxu0
        %5383 = vmatpush.msra.mxu0 0.0
        %5384 = vmatpush.msra.mxu0 0.0
        %5385 = vmatpush.msra.mxu0 0.0
        %5386 = vmatpush.msra.mxu0 0.0
        %5387 = vmatpush.msra.mxu0 0.0
        %5388 = vmatpush.msra.mxu0 0.0
        %5389 = vmatpush.msra.mxu0 0.0
        %5390 = vmatpush.msra.mxu0 0.0
        %5391 = vmatpush.msra.mxu0 %v4965
        %5392 = vmatpush.msra.mxu0 %v4949
        %5393 = vmatpush.msra.mxu0 %v4933
        %5394 = vmatpush.msra.mxu0 %v4917
        %5395 = vmatpush.msra.mxu0 %v4901
        %5396 = vmatpush.msra.mxu0 %v4885
        %5397 = vmatpush.msra.mxu0 %v4869
        %5398 = vmatpush.msra.mxu0 %v4853
        %5399 = vmatmul.f32.gmra.mxu0 %v5032
        %v5400 = vpop.f32.mrf.mxu0
        %v5401 = vadd.f32 %v4994, %v5400
        %5402 = vmatmul.f32.gmra.mxu0 %v5035
        %v5403 = vpop.f32.mrf.mxu0
        %v5404 = vadd.f32 %v4999, %v5403
        %5405 = vmatmul.f32.gmra.mxu0 %v5038
        %v5406 = vpop.f32.mrf.mxu0
        %v5407 = vadd.f32 %v5004, %v5406
        %5408 = vmatmul.f32.gmra.mxu0 %v5041
        %v5409 = vpop.f32.mrf.mxu0
        %v5410 = vadd.f32 %v5009, %v5409
        %5411 = vmatmul.f32.gmra.mxu0 %v5044
        %v5412 = vpop.f32.mrf.mxu0
        %v5413 = vadd.f32 %v5014, %v5412
        %5414 = vmatmul.f32.gmra.mxu0 %v5047
        %v5415 = vpop.f32.mrf.mxu0
        %v5416 = vadd.f32 %v5019, %v5415
        %5417 = vmatmul.f32.gmra.mxu0 %v5050
        %v5418 = vpop.f32.mrf.mxu0
        %v5419 = vadd.f32 %v5024, %v5418
        %5420 = vmatmul.f32.gmra.mxu0 %v5053
        %v5421 = vpop.f32.mrf.mxu0
        %v5422 = vadd.f32 %v5029, %v5421
        %5423 = vdwg.mxu0
        %5424 = vmatpush.msra.mxu0 0.0
        %5425 = vmatpush.msra.mxu0 0.0
        %5426 = vmatpush.msra.mxu0 0.0
        %5427 = vmatpush.msra.mxu0 0.0
        %5428 = vmatpush.msra.mxu0 0.0
        %5429 = vmatpush.msra.mxu0 0.0
        %5430 = vmatpush.msra.mxu0 0.0
        %5431 = vmatpush.msra.mxu0 0.0
        %5432 = vmatpush.msra.mxu0 %v4966
        %5433 = vmatpush.msra.mxu0 %v4950
        %5434 = vmatpush.msra.mxu0 %v4934
        %5435 = vmatpush.msra.mxu0 %v4918
        %5436 = vmatpush.msra.mxu0 %v4902
        %5437 = vmatpush.msra.mxu0 %v4886
        %5438 = vmatpush.msra.mxu0 %v4870
        %5439 = vmatpush.msra.mxu0 %v4854
        %5440 = vmatmul.f32.gmra.mxu0 %v5032
        %v5441 = vpop.f32.mrf.mxu0
        %v5442 = vadd.f32 %v4994, %v5441
        %5443 = vmatmul.f32.gmra.mxu0 %v5035
        %v5444 = vpop.f32.mrf.mxu0
        %v5445 = vadd.f32 %v4999, %v5444
        %5446 = vmatmul.f32.gmra.mxu0 %v5038
        %v5447 = vpop.f32.mrf.mxu0
        %v5448 = vadd.f32 %v5004, %v5447
        %5449 = vmatmul.f32.gmra.mxu0 %v5041
        %v5450 = vpop.f32.mrf.mxu0
        %v5451 = vadd.f32 %v5009, %v5450
        %5452 = vmatmul.f32.gmra.mxu0 %v5044
        %v5453 = vpop.f32.mrf.mxu0
        %v5454 = vadd.f32 %v5014, %v5453
        %5455 = vmatmul.f32.gmra.mxu0 %v5047
        %v5456 = vpop.f32.mrf.mxu0
        %v5457 = vadd.f32 %v5019, %v5456
        %5458 = vmatmul.f32.gmra.mxu0 %v5050
        %v5459 = vpop.f32.mrf.mxu0
        %v5460 = vadd.f32 %v5024, %v5459
        %5461 = vmatmul.f32.gmra.mxu0 %v5053
        %v5462 = vpop.f32.mrf.mxu0
        %v5463 = vadd.f32 %v5029, %v5462
        %5464 = vdwg.mxu0
        %5465 = vmatpush.msra.mxu0 0.0
        %5466 = vmatpush.msra.mxu0 0.0
        %5467 = vmatpush.msra.mxu0 0.0
        %5468 = vmatpush.msra.mxu0 0.0
        %5469 = vmatpush.msra.mxu0 0.0
        %5470 = vmatpush.msra.mxu0 0.0
        %5471 = vmatpush.msra.mxu0 0.0
        %5472 = vmatpush.msra.mxu0 0.0
        %5473 = vmatpush.msra.mxu0 %v4967
        %5474 = vmatpush.msra.mxu0 %v4951
        %5475 = vmatpush.msra.mxu0 %v4935
        %5476 = vmatpush.msra.mxu0 %v4919
        %5477 = vmatpush.msra.mxu0 %v4903
        %5478 = vmatpush.msra.mxu0 %v4887
        %5479 = vmatpush.msra.mxu0 %v4871
        %5480 = vmatpush.msra.mxu0 %v4855
        %5481 = vmatmul.f32.gmra.mxu0 %v5032
        %v5482 = vpop.f32.mrf.mxu0
        %v5483 = vadd.f32 %v4994, %v5482
        %5484 = vmatmul.f32.gmra.mxu0 %v5035
        %v5485 = vpop.f32.mrf.mxu0
        %v5486 = vadd.f32 %v4999, %v5485
        %5487 = vmatmul.f32.gmra.mxu0 %v5038
        %v5488 = vpop.f32.mrf.mxu0
        %v5489 = vadd.f32 %v5004, %v5488
        %5490 = vmatmul.f32.gmra.mxu0 %v5041
        %v5491 = vpop.f32.mrf.mxu0
        %v5492 = vadd.f32 %v5009, %v5491
        %5493 = vmatmul.f32.gmra.mxu0 %v5044
        %v5494 = vpop.f32.mrf.mxu0
        %v5495 = vadd.f32 %v5014, %v5494
        %5496 = vmatmul.f32.gmra.mxu0 %v5047
        %v5497 = vpop.f32.mrf.mxu0
        %v5498 = vadd.f32 %v5019, %v5497
        %5499 = vmatmul.f32.gmra.mxu0 %v5050
        %v5500 = vpop.f32.mrf.mxu0
        %v5501 = vadd.f32 %v5024, %v5500
        %5502 = vmatmul.f32.gmra.mxu0 %v5053
        %v5503 = vpop.f32.mrf.mxu0
        %v5504 = vadd.f32 %v5029, %v5503
        %5505 = vdwg.mxu0
        %5506 = vmatpush.msra.mxu0 0.0
        %5507 = vmatpush.msra.mxu0 0.0
        %5508 = vmatpush.msra.mxu0 0.0
        %5509 = vmatpush.msra.mxu0 0.0
        %5510 = vmatpush.msra.mxu0 0.0
        %5511 = vmatpush.msra.mxu0 0.0
        %5512 = vmatpush.msra.mxu0 0.0
        %5513 = vmatpush.msra.mxu0 0.0
        %5514 = vmatpush.msra.mxu0 %v4968
        %5515 = vmatpush.msra.mxu0 %v4952
        %5516 = vmatpush.msra.mxu0 %v4936
        %5517 = vmatpush.msra.mxu0 %v4920
        %5518 = vmatpush.msra.mxu0 %v4904
        %5519 = vmatpush.msra.mxu0 %v4888
        %5520 = vmatpush.msra.mxu0 %v4872
        %5521 = vmatpush.msra.mxu0 %v4856
        %5522 = vmatmul.f32.gmra.mxu0 %v5032
        %v5523 = vpop.f32.mrf.mxu0
        %v5524 = vadd.f32 %v4994, %v5523
        %5525 = vmatmul.f32.gmra.mxu0 %v5035
        %v5526 = vpop.f32.mrf.mxu0
        %v5527 = vadd.f32 %v4999, %v5526
        %5528 = vmatmul.f32.gmra.mxu0 %v5038
        %v5529 = vpop.f32.mrf.mxu0
        %v5530 = vadd.f32 %v5004, %v5529
        %5531 = vmatmul.f32.gmra.mxu0 %v5041
        %v5532 = vpop.f32.mrf.mxu0
        %v5533 = vadd.f32 %v5009, %v5532
        %5534 = vmatmul.f32.gmra.mxu0 %v5044
        %v5535 = vpop.f32.mrf.mxu0
        %v5536 = vadd.f32 %v5014, %v5535
        %5537 = vmatmul.f32.gmra.mxu0 %v5047
        %v5538 = vpop.f32.mrf.mxu0
        %v5539 = vadd.f32 %v5019, %v5538
        %5540 = vmatmul.f32.gmra.mxu0 %v5050
        %v5541 = vpop.f32.mrf.mxu0
        %v5542 = vadd.f32 %v5024, %v5541
        %5543 = vmatmul.f32.gmra.mxu0 %v5053
        %v5544 = vpop.f32.mrf.mxu0
        %v5545 = vadd.f32 %v5029, %v5544
        %5546 = vdwg.mxu0
        %5547 = vmatpush.msra.mxu0 0.0
        %5548 = vmatpush.msra.mxu0 0.0
        %5549 = vmatpush.msra.mxu0 0.0
        %5550 = vmatpush.msra.mxu0 0.0
        %5551 = vmatpush.msra.mxu0 0.0
        %5552 = vmatpush.msra.mxu0 0.0
        %5553 = vmatpush.msra.mxu0 0.0
        %5554 = vmatpush.msra.mxu0 0.0
        %5555 = vmatpush.msra.mxu0 %v4969
        %5556 = vmatpush.msra.mxu0 %v4953
        %5557 = vmatpush.msra.mxu0 %v4937
        %5558 = vmatpush.msra.mxu0 %v4921
        %5559 = vmatpush.msra.mxu0 %v4905
        %5560 = vmatpush.msra.mxu0 %v4889
        %5561 = vmatpush.msra.mxu0 %v4873
        %5562 = vmatpush.msra.mxu0 %v4857
        %5563 = vmatmul.f32.gmra.mxu0 %v5032
        %v5564 = vpop.f32.mrf.mxu0
        %v5565 = vadd.f32 %v4994, %v5564
        %5566 = vmatmul.f32.gmra.mxu0 %v5035
        %v5567 = vpop.f32.mrf.mxu0
        %v5568 = vadd.f32 %v4999, %v5567
        %5569 = vmatmul.f32.gmra.mxu0 %v5038
        %v5570 = vpop.f32.mrf.mxu0
        %v5571 = vadd.f32 %v5004, %v5570
        %5572 = vmatmul.f32.gmra.mxu0 %v5041
        %v5573 = vpop.f32.mrf.mxu0
        %v5574 = vadd.f32 %v5009, %v5573
        %5575 = vmatmul.f32.gmra.mxu0 %v5044
        %v5576 = vpop.f32.mrf.mxu0
        %v5577 = vadd.f32 %v5014, %v5576
        %5578 = vmatmul.f32.gmra.mxu0 %v5047
        %v5579 = vpop.f32.mrf.mxu0
        %v5580 = vadd.f32 %v5019, %v5579
        %5581 = vmatmul.f32.gmra.mxu0 %v5050
        %v5582 = vpop.f32.mrf.mxu0
        %v5583 = vadd.f32 %v5024, %v5582
        %5584 = vmatmul.f32.gmra.mxu0 %v5053
        %v5585 = vpop.f32.mrf.mxu0
        %v5586 = vadd.f32 %v5029, %v5585
        %5587 = vdwg.mxu0
        %5588 = vmatpush.msra.mxu0 0.0
        %5589 = vmatpush.msra.mxu0 0.0
        %5590 = vmatpush.msra.mxu0 0.0
        %5591 = vmatpush.msra.mxu0 0.0
        %5592 = vmatpush.msra.mxu0 0.0
        %5593 = vmatpush.msra.mxu0 0.0
        %5594 = vmatpush.msra.mxu0 0.0
        %5595 = vmatpush.msra.mxu0 0.0
        %5596 = vmatpush.msra.mxu0 %v4970
        %5597 = vmatpush.msra.mxu0 %v4954
        %5598 = vmatpush.msra.mxu0 %v4938
        %5599 = vmatpush.msra.mxu0 %v4922
        %5600 = vmatpush.msra.mxu0 %v4906
        %5601 = vmatpush.msra.mxu0 %v4890
        %5602 = vmatpush.msra.mxu0 %v4874
        %5603 = vmatpush.msra.mxu0 %v4858
        %5604 = vmatmul.f32.gmra.mxu0 %v5032
        %v5605 = vpop.f32.mrf.mxu0
        %v5606 = vadd.f32 %v4994, %v5605
        %5607 = vmatmul.f32.gmra.mxu0 %v5035
        %v5608 = vpop.f32.mrf.mxu0
        %v5609 = vadd.f32 %v4999, %v5608
        %5610 = vmatmul.f32.gmra.mxu0 %v5038
        %v5611 = vpop.f32.mrf.mxu0
        %v5612 = vadd.f32 %v5004, %v5611
        %5613 = vmatmul.f32.gmra.mxu0 %v5041
        %v5614 = vpop.f32.mrf.mxu0
        %v5615 = vadd.f32 %v5009, %v5614
        %5616 = vmatmul.f32.gmra.mxu0 %v5044
        %v5617 = vpop.f32.mrf.mxu0
        %v5618 = vadd.f32 %v5014, %v5617
        %5619 = vmatmul.f32.gmra.mxu0 %v5047
        %v5620 = vpop.f32.mrf.mxu0
        %v5621 = vadd.f32 %v5019, %v5620
        %5622 = vmatmul.f32.gmra.mxu0 %v5050
        %v5623 = vpop.f32.mrf.mxu0
        %v5624 = vadd.f32 %v5024, %v5623
        %5625 = vmatmul.f32.gmra.mxu0 %v5053
        %v5626 = vpop.f32.mrf.mxu0
        %v5627 = vadd.f32 %v5029, %v5626
        %5628 = vdwg.mxu0
        %5629 = vmatpush.msra.mxu0 0.0
        %5630 = vmatpush.msra.mxu0 0.0
        %5631 = vmatpush.msra.mxu0 0.0
        %5632 = vmatpush.msra.mxu0 0.0
        %5633 = vmatpush.msra.mxu0 0.0
        %5634 = vmatpush.msra.mxu0 0.0
        %5635 = vmatpush.msra.mxu0 0.0
        %5636 = vmatpush.msra.mxu0 0.0
        %5637 = vmatpush.msra.mxu0 %v4971
        %5638 = vmatpush.msra.mxu0 %v4955
        %5639 = vmatpush.msra.mxu0 %v4939
        %5640 = vmatpush.msra.mxu0 %v4923
        %5641 = vmatpush.msra.mxu0 %v4907
        %5642 = vmatpush.msra.mxu0 %v4891
        %5643 = vmatpush.msra.mxu0 %v4875
        %5644 = vmatpush.msra.mxu0 %v4859
        %5645 = vmatmul.f32.gmra.mxu0 %v5032
        %v5646 = vpop.f32.mrf.mxu0
        %v5647 = vadd.f32 %v4994, %v5646
        %5648 = vmatmul.f32.gmra.mxu0 %v5035
        %v5649 = vpop.f32.mrf.mxu0
        %v5650 = vadd.f32 %v4999, %v5649
        %5651 = vmatmul.f32.gmra.mxu0 %v5038
        %v5652 = vpop.f32.mrf.mxu0
        %v5653 = vadd.f32 %v5004, %v5652
        %5654 = vmatmul.f32.gmra.mxu0 %v5041
        %v5655 = vpop.f32.mrf.mxu0
        %v5656 = vadd.f32 %v5009, %v5655
        %5657 = vmatmul.f32.gmra.mxu0 %v5044
        %v5658 = vpop.f32.mrf.mxu0
        %v5659 = vadd.f32 %v5014, %v5658
        %5660 = vmatmul.f32.gmra.mxu0 %v5047
        %v5661 = vpop.f32.mrf.mxu0
        %v5662 = vadd.f32 %v5019, %v5661
        %5663 = vmatmul.f32.gmra.mxu0 %v5050
        %v5664 = vpop.f32.mrf.mxu0
        %v5665 = vadd.f32 %v5024, %v5664
        %5666 = vmatmul.f32.gmra.mxu0 %v5053
        %v5667 = vpop.f32.mrf.mxu0
        %v5668 = vadd.f32 %v5029, %v5667
        %5669 = vdwg.mxu0
        %5670 = vmatpush.msra.mxu0 0.0
        %5671 = vmatpush.msra.mxu0 0.0
        %5672 = vmatpush.msra.mxu0 0.0
        %5673 = vmatpush.msra.mxu0 0.0
        %5674 = vmatpush.msra.mxu0 0.0
        %5675 = vmatpush.msra.mxu0 0.0
        %5676 = vmatpush.msra.mxu0 0.0
        %5677 = vmatpush.msra.mxu0 0.0
        %5678 = vmatpush.msra.mxu0 %v4972
        %5679 = vmatpush.msra.mxu0 %v4956
        %5680 = vmatpush.msra.mxu0 %v4940
        %5681 = vmatpush.msra.mxu0 %v4924
        %5682 = vmatpush.msra.mxu0 %v4908
        %5683 = vmatpush.msra.mxu0 %v4892
        %5684 = vmatpush.msra.mxu0 %v4876
        %5685 = vmatpush.msra.mxu0 %v4860
        %5686 = vmatmul.f32.gmra.mxu0 %v5032
        %v5687 = vpop.f32.mrf.mxu0
        %v5688 = vadd.f32 %v4994, %v5687
        %5689 = vmatmul.f32.gmra.mxu0 %v5035
        %v5690 = vpop.f32.mrf.mxu0
        %v5691 = vadd.f32 %v4999, %v5690
        %5692 = vmatmul.f32.gmra.mxu0 %v5038
        %v5693 = vpop.f32.mrf.mxu0
        %v5694 = vadd.f32 %v5004, %v5693
        %5695 = vmatmul.f32.gmra.mxu0 %v5041
        %v5696 = vpop.f32.mrf.mxu0
        %v5697 = vadd.f32 %v5009, %v5696
        %5698 = vmatmul.f32.gmra.mxu0 %v5044
        %v5699 = vpop.f32.mrf.mxu0
        %v5700 = vadd.f32 %v5014, %v5699
        %5701 = vmatmul.f32.gmra.mxu0 %v5047
        %v5702 = vpop.f32.mrf.mxu0
        %v5703 = vadd.f32 %v5019, %v5702
        %5704 = vmatmul.f32.gmra.mxu0 %v5050
        %v5705 = vpop.f32.mrf.mxu0
        %v5706 = vadd.f32 %v5024, %v5705
        %5707 = vmatmul.f32.gmra.mxu0 %v5053
        %v5708 = vpop.f32.mrf.mxu0
        %v5709 = vadd.f32 %v5029, %v5708
        %5710 = vdwg.mxu0
        %vm5711 = vcmp.gt.f32.partialorder %v5073, 0.0
        %vm5712 = vcmp.gt.f32.partialorder %v5114, 0.0
        %vm5713 = vcmp.gt.f32.partialorder %v5155, 0.0
        %vm5714 = vcmp.gt.f32.partialorder %v5196, 0.0
        %vm5715 = vcmp.gt.f32.partialorder %v5237, 0.0
        %vm5716 = vcmp.gt.f32.partialorder %v5278, 0.0
        %vm5717 = vcmp.gt.f32.partialorder %v5319, 0.0
        %vm5718 = vcmp.gt.f32.partialorder %v5360, 0.0
        %vm5719 = vcmp.gt.f32.partialorder %v5401, 0.0
        %vm5720 = vcmp.gt.f32.partialorder %v5442, 0.0
        %vm5721 = vcmp.gt.f32.partialorder %v5483, 0.0
        %vm5722 = vcmp.gt.f32.partialorder %v5524, 0.0
        %vm5723 = vcmp.gt.f32.partialorder %v5565, 0.0
        %vm5724 = vcmp.gt.f32.partialorder %v5606, 0.0
        %vm5725 = vcmp.gt.f32.partialorder %v5647, 0.0
        %vm5726 = vcmp.gt.f32.partialorder %v5688, 0.0
        %vm5727 = vcmp.gt.f32.partialorder %v5076, 0.0
        %vm5728 = vcmp.gt.f32.partialorder %v5117, 0.0
        %vm5729 = vcmp.gt.f32.partialorder %v5158, 0.0
        %vm5730 = vcmp.gt.f32.partialorder %v5199, 0.0
        %vm5731 = vcmp.gt.f32.partialorder %v5240, 0.0
        %vm5732 = vcmp.gt.f32.partialorder %v5281, 0.0
        %vm5733 = vcmp.gt.f32.partialorder %v5322, 0.0
        %vm5734 = vcmp.gt.f32.partialorder %v5363, 0.0
        %vm5735 = vcmp.gt.f32.partialorder %v5404, 0.0
        %vm5736 = vcmp.gt.f32.partialorder %v5445, 0.0
        %vm5737 = vcmp.gt.f32.partialorder %v5486, 0.0
        %vm5738 = vcmp.gt.f32.partialorder %v5527, 0.0
        %vm5739 = vcmp.gt.f32.partialorder %v5568, 0.0
        %vm5740 = vcmp.gt.f32.partialorder %v5609, 0.0
        %vm5741 = vcmp.gt.f32.partialorder %v5650, 0.0
        %vm5742 = vcmp.gt.f32.partialorder %v5691, 0.0
        %vm5743 = vcmp.gt.f32.partialorder %v5079, 0.0
        %vm5744 = vcmp.gt.f32.partialorder %v5120, 0.0
        %vm5745 = vcmp.gt.f32.partialorder %v5161, 0.0
        %vm5746 = vcmp.gt.f32.partialorder %v5202, 0.0
        %vm5747 = vcmp.gt.f32.partialorder %v5243, 0.0
        %vm5748 = vcmp.gt.f32.partialorder %v5284, 0.0
        %vm5749 = vcmp.gt.f32.partialorder %v5325, 0.0
        %vm5750 = vcmp.gt.f32.partialorder %v5366, 0.0
        %vm5751 = vcmp.gt.f32.partialorder %v5407, 0.0
        %vm5752 = vcmp.gt.f32.partialorder %v5448, 0.0
        %vm5753 = vcmp.gt.f32.partialorder %v5489, 0.0
        %vm5754 = vcmp.gt.f32.partialorder %v5530, 0.0
        %vm5755 = vcmp.gt.f32.partialorder %v5571, 0.0
        %vm5756 = vcmp.gt.f32.partialorder %v5612, 0.0
        %vm5757 = vcmp.gt.f32.partialorder %v5653, 0.0
        %vm5758 = vcmp.gt.f32.partialorder %v5694, 0.0
        %vm5759 = vcmp.gt.f32.partialorder %v5082, 0.0
        %vm5760 = vcmp.gt.f32.partialorder %v5123, 0.0
        %vm5761 = vcmp.gt.f32.partialorder %v5164, 0.0
        %vm5762 = vcmp.gt.f32.partialorder %v5205, 0.0
        %vm5763 = vcmp.gt.f32.partialorder %v5246, 0.0
        %vm5764 = vcmp.gt.f32.partialorder %v5287, 0.0
        %vm5765 = vcmp.gt.f32.partialorder %v5328, 0.0
        %vm5766 = vcmp.gt.f32.partialorder %v5369, 0.0
        %vm5767 = vcmp.gt.f32.partialorder %v5410, 0.0
        %vm5768 = vcmp.gt.f32.partialorder %v5451, 0.0
        %vm5769 = vcmp.gt.f32.partialorder %v5492, 0.0
        %vm5770 = vcmp.gt.f32.partialorder %v5533, 0.0
        %vm5771 = vcmp.gt.f32.partialorder %v5574, 0.0
        %vm5772 = vcmp.gt.f32.partialorder %v5615, 0.0
        %vm5773 = vcmp.gt.f32.partialorder %v5656, 0.0
        %vm5774 = vcmp.gt.f32.partialorder %v5697, 0.0
        %vm5775 = vcmp.gt.f32.partialorder %v5085, 0.0
        %vm5776 = vcmp.gt.f32.partialorder %v5126, 0.0
        %vm5777 = vcmp.gt.f32.partialorder %v5167, 0.0
        %vm5778 = vcmp.gt.f32.partialorder %v5208, 0.0
        %vm5779 = vcmp.gt.f32.partialorder %v5249, 0.0
        %vm5780 = vcmp.gt.f32.partialorder %v5290, 0.0
        %vm5781 = vcmp.gt.f32.partialorder %v5331, 0.0
        %vm5782 = vcmp.gt.f32.partialorder %v5372, 0.0
        %vm5783 = vcmp.gt.f32.partialorder %v5413, 0.0
        %vm5784 = vcmp.gt.f32.partialorder %v5454, 0.0
        %vm5785 = vcmp.gt.f32.partialorder %v5495, 0.0
        %vm5786 = vcmp.gt.f32.partialorder %v5536, 0.0
        %vm5787 = vcmp.gt.f32.partialorder %v5577, 0.0
        %vm5788 = vcmp.gt.f32.partialorder %v5618, 0.0
        %vm5789 = vcmp.gt.f32.partialorder %v5659, 0.0
        %vm5790 = vcmp.gt.f32.partialorder %v5700, 0.0
        %vm5791 = vcmp.gt.f32.partialorder %v5088, 0.0
        %vm5792 = vcmp.gt.f32.partialorder %v5129, 0.0
        %vm5793 = vcmp.gt.f32.partialorder %v5170, 0.0
        %vm5794 = vcmp.gt.f32.partialorder %v5211, 0.0
        %vm5795 = vcmp.gt.f32.partialorder %v5252, 0.0
        %vm5796 = vcmp.gt.f32.partialorder %v5293, 0.0
        %vm5797 = vcmp.gt.f32.partialorder %v5334, 0.0
        %vm5798 = vcmp.gt.f32.partialorder %v5375, 0.0
        %vm5799 = vcmp.gt.f32.partialorder %v5416, 0.0
        %vm5800 = vcmp.gt.f32.partialorder %v5457, 0.0
        %vm5801 = vcmp.gt.f32.partialorder %v5498, 0.0
        %vm5802 = vcmp.gt.f32.partialorder %v5539, 0.0
        %vm5803 = vcmp.gt.f32.partialorder %v5580, 0.0
        %vm5804 = vcmp.gt.f32.partialorder %v5621, 0.0
        %vm5805 = vcmp.gt.f32.partialorder %v5662, 0.0
        %vm5806 = vcmp.gt.f32.partialorder %v5703, 0.0
        %vm5807 = vcmp.gt.f32.partialorder %v5091, 0.0
        %vm5808 = vcmp.gt.f32.partialorder %v5132, 0.0
        %vm5809 = vcmp.gt.f32.partialorder %v5173, 0.0
        %vm5810 = vcmp.gt.f32.partialorder %v5214, 0.0
        %vm5811 = vcmp.gt.f32.partialorder %v5255, 0.0
        %vm5812 = vcmp.gt.f32.partialorder %v5296, 0.0
        %vm5813 = vcmp.gt.f32.partialorder %v5337, 0.0
        %vm5814 = vcmp.gt.f32.partialorder %v5378, 0.0
        %vm5815 = vcmp.gt.f32.partialorder %v5419, 0.0
        %vm5816 = vcmp.gt.f32.partialorder %v5460, 0.0
        %vm5817 = vcmp.gt.f32.partialorder %v5501, 0.0
        %vm5818 = vcmp.gt.f32.partialorder %v5542, 0.0
        %vm5819 = vcmp.gt.f32.partialorder %v5583, 0.0
        %vm5820 = vcmp.gt.f32.partialorder %v5624, 0.0
        %vm5821 = vcmp.gt.f32.partialorder %v5665, 0.0
        %vm5822 = vcmp.gt.f32.partialorder %v5706, 0.0
        %vm5823 = vcmp.gt.f32.partialorder %v5094, 0.0
        %vm5824 = vcmp.gt.f32.partialorder %v5135, 0.0
        %vm5825 = vcmp.gt.f32.partialorder %v5176, 0.0
        %vm5826 = vcmp.gt.f32.partialorder %v5217, 0.0
        %vm5827 = vcmp.gt.f32.partialorder %v5258, 0.0
        %vm5828 = vcmp.gt.f32.partialorder %v5299, 0.0
        %vm5829 = vcmp.gt.f32.partialorder %v5340, 0.0
        %vm5830 = vcmp.gt.f32.partialorder %v5381, 0.0
        %vm5831 = vcmp.gt.f32.partialorder %v5422, 0.0
        %vm5832 = vcmp.gt.f32.partialorder %v5463, 0.0
        %vm5833 = vcmp.gt.f32.partialorder %v5504, 0.0
        %vm5834 = vcmp.gt.f32.partialorder %v5545, 0.0
        %vm5835 = vcmp.gt.f32.partialorder %v5586, 0.0
        %vm5836 = vcmp.gt.f32.partialorder %v5627, 0.0
        %vm5837 = vcmp.gt.f32.partialorder %v5668, 0.0
        %vm5838 = vcmp.gt.f32.partialorder %v5709, 0.0
        %v5839 = vmin.f32 %v5073, 0.0
        %v5840 = vmin.f32 %v5114, 0.0
        %v5841 = vmin.f32 %v5155, 0.0
        %v5842 = vmin.f32 %v5196, 0.0
        %v5843 = vmin.f32 %v5237, 0.0
        %v5844 = vmin.f32 %v5278, 0.0
        %v5845 = vmin.f32 %v5319, 0.0
        %v5846 = vmin.f32 %v5360, 0.0
        %v5847 = vmin.f32 %v5401, 0.0
        %v5848 = vmin.f32 %v5442, 0.0
        %v5849 = vmin.f32 %v5483, 0.0
        %v5850 = vmin.f32 %v5524, 0.0
        %v5851 = vmin.f32 %v5565, 0.0
        %v5852 = vmin.f32 %v5606, 0.0
        %v5853 = vmin.f32 %v5647, 0.0
        %v5854 = vmin.f32 %v5688, 0.0
        %v5855 = vmin.f32 %v5076, 0.0
        %v5856 = vmin.f32 %v5117, 0.0
        %v5857 = vmin.f32 %v5158, 0.0
        %v5858 = vmin.f32 %v5199, 0.0
        %v5859 = vmin.f32 %v5240, 0.0
        %v5860 = vmin.f32 %v5281, 0.0
        %v5861 = vmin.f32 %v5322, 0.0
        %v5862 = vmin.f32 %v5363, 0.0
        %v5863 = vmin.f32 %v5404, 0.0
        %v5864 = vmin.f32 %v5445, 0.0
        %v5865 = vmin.f32 %v5486, 0.0
        %v5866 = vmin.f32 %v5527, 0.0
        %v5867 = vmin.f32 %v5568, 0.0
        %v5868 = vmin.f32 %v5609, 0.0
        %v5869 = vmin.f32 %v5650, 0.0
        %v5870 = vmin.f32 %v5691, 0.0
        %v5871 = vmin.f32 %v5079, 0.0
        %v5872 = vmin.f32 %v5120, 0.0
        %v5873 = vmin.f32 %v5161, 0.0
        %v5874 = vmin.f32 %v5202, 0.0
        %v5875 = vmin.f32 %v5243, 0.0
        %v5876 = vmin.f32 %v5284, 0.0
        %v5877 = vmin.f32 %v5325, 0.0
        %v5878 = vmin.f32 %v5366, 0.0
        %v5879 = vmin.f32 %v5407, 0.0
        %v5880 = vmin.f32 %v5448, 0.0
        %v5881 = vmin.f32 %v5489, 0.0
        %v5882 = vmin.f32 %v5530, 0.0
        %v5883 = vmin.f32 %v5571, 0.0
        %v5884 = vmin.f32 %v5612, 0.0
        %v5885 = vmin.f32 %v5653, 0.0
        %v5886 = vmin.f32 %v5694, 0.0
        %v5887 = vmin.f32 %v5082, 0.0
        %v5888 = vmin.f32 %v5123, 0.0
        %v5889 = vmin.f32 %v5164, 0.0
        %v5890 = vmin.f32 %v5205, 0.0
        %v5891 = vmin.f32 %v5246, 0.0
        %v5892 = vmin.f32 %v5287, 0.0
        %v5893 = vmin.f32 %v5328, 0.0
        %v5894 = vmin.f32 %v5369, 0.0
        %v5895 = vmin.f32 %v5410, 0.0
        %v5896 = vmin.f32 %v5451, 0.0
        %v5897 = vmin.f32 %v5492, 0.0
        %v5898 = vmin.f32 %v5533, 0.0
        %v5899 = vmin.f32 %v5574, 0.0
        %v5900 = vmin.f32 %v5615, 0.0
        %v5901 = vmin.f32 %v5656, 0.0
        %v5902 = vmin.f32 %v5697, 0.0
        %v5903 = vmin.f32 %v5085, 0.0
        %v5904 = vmin.f32 %v5126, 0.0
        %v5905 = vmin.f32 %v5167, 0.0
        %v5906 = vmin.f32 %v5208, 0.0
        %v5907 = vmin.f32 %v5249, 0.0
        %v5908 = vmin.f32 %v5290, 0.0
        %v5909 = vmin.f32 %v5331, 0.0
        %v5910 = vmin.f32 %v5372, 0.0
        %v5911 = vmin.f32 %v5413, 0.0
        %v5912 = vmin.f32 %v5454, 0.0
        %v5913 = vmin.f32 %v5495, 0.0
        %v5914 = vmin.f32 %v5536, 0.0
        %v5915 = vmin.f32 %v5577, 0.0
        %v5916 = vmin.f32 %v5618, 0.0
        %v5917 = vmin.f32 %v5659, 0.0
        %v5918 = vmin.f32 %v5700, 0.0
        %v5919 = vmin.f32 %v5088, 0.0
        %v5920 = vmin.f32 %v5129, 0.0
        %v5921 = vmin.f32 %v5170, 0.0
        %v5922 = vmin.f32 %v5211, 0.0
        %v5923 = vmin.f32 %v5252, 0.0
        %v5924 = vmin.f32 %v5293, 0.0
        %v5925 = vmin.f32 %v5334, 0.0
        %v5926 = vmin.f32 %v5375, 0.0
        %v5927 = vmin.f32 %v5416, 0.0
        %v5928 = vmin.f32 %v5457, 0.0
        %v5929 = vmin.f32 %v5498, 0.0
        %v5930 = vmin.f32 %v5539, 0.0
        %v5931 = vmin.f32 %v5580, 0.0
        %v5932 = vmin.f32 %v5621, 0.0
        %v5933 = vmin.f32 %v5662, 0.0
        %v5934 = vmin.f32 %v5703, 0.0
        %v5935 = vmin.f32 %v5091, 0.0
        %v5936 = vmin.f32 %v5132, 0.0
        %v5937 = vmin.f32 %v5173, 0.0
        %v5938 = vmin.f32 %v5214, 0.0
        %v5939 = vmin.f32 %v5255, 0.0
        %v5940 = vmin.f32 %v5296, 0.0
        %v5941 = vmin.f32 %v5337, 0.0
        %v5942 = vmin.f32 %v5378, 0.0
        %v5943 = vmin.f32 %v5419, 0.0
        %v5944 = vmin.f32 %v5460, 0.0
        %v5945 = vmin.f32 %v5501, 0.0
        %v5946 = vmin.f32 %v5542, 0.0
        %v5947 = vmin.f32 %v5583, 0.0
        %v5948 = vmin.f32 %v5624, 0.0
        %v5949 = vmin.f32 %v5665, 0.0
        %v5950 = vmin.f32 %v5706, 0.0
        %v5951 = vmin.f32 %v5094, 0.0
        %v5952 = vmin.f32 %v5135, 0.0
        %v5953 = vmin.f32 %v5176, 0.0
        %v5954 = vmin.f32 %v5217, 0.0
        %v5955 = vmin.f32 %v5258, 0.0
        %v5956 = vmin.f32 %v5299, 0.0
        %v5957 = vmin.f32 %v5340, 0.0
        %v5958 = vmin.f32 %v5381, 0.0
        %v5959 = vmin.f32 %v5422, 0.0
        %v5960 = vmin.f32 %v5463, 0.0
        %v5961 = vmin.f32 %v5504, 0.0
        %v5962 = vmin.f32 %v5545, 0.0
        %v5963 = vmin.f32 %v5586, 0.0
        %v5964 = vmin.f32 %v5627, 0.0
        %v5965 = vmin.f32 %v5668, 0.0
        %v5966 = vmin.f32 %v5709, 0.0
        %v5967 = vmul.f32 %v5839, 1.442695
        %v5968 = vpow.pop %v5967
        %v5969 = vmul.f32 %v5840, 1.442695
        %v5970 = vpow.pop %v5969
        %v5971 = vmul.f32 %v5841, 1.442695
        %v5972 = vpow.pop %v5971
        %v5973 = vmul.f32 %v5842, 1.442695
        %v5974 = vpow.pop %v5973
        %v5975 = vmul.f32 %v5843, 1.442695
        %v5976 = vpow.pop %v5975
        %v5977 = vmul.f32 %v5844, 1.442695
        %v5978 = vpow.pop %v5977
        %v5979 = vmul.f32 %v5845, 1.442695
        %v5980 = vpow.pop %v5979
        %v5981 = vmul.f32 %v5846, 1.442695
        %v5982 = vpow.pop %v5981
        %v5983 = vmul.f32 %v5847, 1.442695
        %v5984 = vpow.pop %v5983
        %v5985 = vmul.f32 %v5848, 1.442695
        %v5986 = vpow.pop %v5985
        %v5987 = vmul.f32 %v5849, 1.442695
        %v5988 = vpow.pop %v5987
        %v5989 = vmul.f32 %v5850, 1.442695
        %v5990 = vpow.pop %v5989
        %v5991 = vmul.f32 %v5851, 1.442695
        %v5992 = vpow.pop %v5991
        %v5993 = vmul.f32 %v5852, 1.442695
        %v5994 = vpow.pop %v5993
        %v5995 = vmul.f32 %v5853, 1.442695
        %v5996 = vpow.pop %v5995
        %v5997 = vmul.f32 %v5854, 1.442695
        %v5998 = vpow.pop %v5997
        %v5999 = vmul.f32 %v5855, 1.442695
        %v6000 = vpow.pop %v5999
        %v6001 = vmul.f32 %v5856, 1.442695
        %v6002 = vpow.pop %v6001
        %v6003 = vmul.f32 %v5857, 1.442695
        %v6004 = vpow.pop %v6003
        %v6005 = vmul.f32 %v5858, 1.442695
        %v6006 = vpow.pop %v6005
        %v6007 = vmul.f32 %v5859, 1.442695
        %v6008 = vpow.pop %v6007
        %v6009 = vmul.f32 %v5860, 1.442695
        %v6010 = vpow.pop %v6009
        %v6011 = vmul.f32 %v5861, 1.442695
        %v6012 = vpow.pop %v6011
        %v6013 = vmul.f32 %v5862, 1.442695
        %v6014 = vpow.pop %v6013
        %v6015 = vmul.f32 %v5863, 1.442695
        %v6016 = vpow.pop %v6015
        %v6017 = vmul.f32 %v5864, 1.442695
        %v6018 = vpow.pop %v6017
        %v6019 = vmul.f32 %v5865, 1.442695
        %v6020 = vpow.pop %v6019
        %v6021 = vmul.f32 %v5866, 1.442695
        %v6022 = vpow.pop %v6021
        %v6023 = vmul.f32 %v5867, 1.442695
        %v6024 = vpow.pop %v6023
        %v6025 = vmul.f32 %v5868, 1.442695
        %v6026 = vpow.pop %v6025
        %v6027 = vmul.f32 %v5869, 1.442695
        %v6028 = vpow.pop %v6027
        %v6029 = vmul.f32 %v5870, 1.442695
        %v6030 = vpow.pop %v6029
        %v6031 = vmul.f32 %v5871, 1.442695
        %v6032 = vpow.pop %v6031
        %v6033 = vmul.f32 %v5872, 1.442695
        %v6034 = vpow.pop %v6033
        %v6035 = vmul.f32 %v5873, 1.442695
        %v6036 = vpow.pop %v6035
        %v6037 = vmul.f32 %v5874, 1.442695
        %v6038 = vpow.pop %v6037
        %v6039 = vmul.f32 %v5875, 1.442695
        %v6040 = vpow.pop %v6039
        %v6041 = vmul.f32 %v5876, 1.442695
        %v6042 = vpow.pop %v6041
        %v6043 = vmul.f32 %v5877, 1.442695
        %v6044 = vpow.pop %v6043
        %v6045 = vmul.f32 %v5878, 1.442695
        %v6046 = vpow.pop %v6045
        %v6047 = vmul.f32 %v5879, 1.442695
        %v6048 = vpow.pop %v6047
        %v6049 = vmul.f32 %v5880, 1.442695
        %v6050 = vpow.pop %v6049
        %v6051 = vmul.f32 %v5881, 1.442695
        %v6052 = vpow.pop %v6051
        %v6053 = vmul.f32 %v5882, 1.442695
        %v6054 = vpow.pop %v6053
        %v6055 = vmul.f32 %v5883, 1.442695
        %v6056 = vpow.pop %v6055
        %v6057 = vmul.f32 %v5884, 1.442695
        %v6058 = vpow.pop %v6057
        %v6059 = vmul.f32 %v5885, 1.442695
        %v6060 = vpow.pop %v6059
        %v6061 = vmul.f32 %v5886, 1.442695
        %v6062 = vpow.pop %v6061
        %v6063 = vmul.f32 %v5887, 1.442695
        %v6064 = vpow.pop %v6063
        %v6065 = vmul.f32 %v5888, 1.442695
        %v6066 = vpow.pop %v6065
        %v6067 = vmul.f32 %v5889, 1.442695
        %v6068 = vpow.pop %v6067
        %v6069 = vmul.f32 %v5890, 1.442695
        %v6070 = vpow.pop %v6069
        %v6071 = vmul.f32 %v5891, 1.442695
        %v6072 = vpow.pop %v6071
        %v6073 = vmul.f32 %v5892, 1.442695
        %v6074 = vpow.pop %v6073
        %v6075 = vmul.f32 %v5893, 1.442695
        %v6076 = vpow.pop %v6075
        %v6077 = vmul.f32 %v5894, 1.442695
        %v6078 = vpow.pop %v6077
        %v6079 = vmul.f32 %v5895, 1.442695
        %v6080 = vpow.pop %v6079
        %v6081 = vmul.f32 %v5896, 1.442695
        %v6082 = vpow.pop %v6081
        %v6083 = vmul.f32 %v5897, 1.442695
        %v6084 = vpow.pop %v6083
        %v6085 = vmul.f32 %v5898, 1.442695
        %v6086 = vpow.pop %v6085
        %v6087 = vmul.f32 %v5899, 1.442695
        %v6088 = vpow.pop %v6087
        %v6089 = vmul.f32 %v5900, 1.442695
        %v6090 = vpow.pop %v6089
        %v6091 = vmul.f32 %v5901, 1.442695
        %v6092 = vpow.pop %v6091
        %v6093 = vmul.f32 %v5902, 1.442695
        %v6094 = vpow.pop %v6093
        %v6095 = vmul.f32 %v5903, 1.442695
        %v6096 = vpow.pop %v6095
        %v6097 = vmul.f32 %v5904, 1.442695
        %v6098 = vpow.pop %v6097
        %v6099 = vmul.f32 %v5905, 1.442695
        %v6100 = vpow.pop %v6099
        %v6101 = vmul.f32 %v5906, 1.442695
        %v6102 = vpow.pop %v6101
        %v6103 = vmul.f32 %v5907, 1.442695
        %v6104 = vpow.pop %v6103
        %v6105 = vmul.f32 %v5908, 1.442695
        %v6106 = vpow.pop %v6105
        %v6107 = vmul.f32 %v5909, 1.442695
        %v6108 = vpow.pop %v6107
        %v6109 = vmul.f32 %v5910, 1.442695
        %v6110 = vpow.pop %v6109
        %v6111 = vmul.f32 %v5911, 1.442695
        %v6112 = vpow.pop %v6111
        %v6113 = vmul.f32 %v5912, 1.442695
        %v6114 = vpow.pop %v6113
        %v6115 = vmul.f32 %v5913, 1.442695
        %v6116 = vpow.pop %v6115
        %v6117 = vmul.f32 %v5914, 1.442695
        %v6118 = vpow.pop %v6117
        %v6119 = vmul.f32 %v5915, 1.442695
        %v6120 = vpow.pop %v6119
        %v6121 = vmul.f32 %v5916, 1.442695
        %v6122 = vpow.pop %v6121
        %v6123 = vmul.f32 %v5917, 1.442695
        %v6124 = vpow.pop %v6123
        %v6125 = vmul.f32 %v5918, 1.442695
        %v6126 = vpow.pop %v6125
        %v6127 = vmul.f32 %v5919, 1.442695
        %v6128 = vpow.pop %v6127
        %v6129 = vmul.f32 %v5920, 1.442695
        %v6130 = vpow.pop %v6129
        %v6131 = vmul.f32 %v5921, 1.442695
        %v6132 = vpow.pop %v6131
        %v6133 = vmul.f32 %v5922, 1.442695
        %v6134 = vpow.pop %v6133
        %v6135 = vmul.f32 %v5923, 1.442695
        %v6136 = vpow.pop %v6135
        %v6137 = vmul.f32 %v5924, 1.442695
        %v6138 = vpow.pop %v6137
        %v6139 = vmul.f32 %v5925, 1.442695
        %v6140 = vpow.pop %v6139
        %v6141 = vmul.f32 %v5926, 1.442695
        %v6142 = vpow.pop %v6141
        %v6143 = vmul.f32 %v5927, 1.442695
        %v6144 = vpow.pop %v6143
        %v6145 = vmul.f32 %v5928, 1.442695
        %v6146 = vpow.pop %v6145
        %v6147 = vmul.f32 %v5929, 1.442695
        %v6148 = vpow.pop %v6147
        %v6149 = vmul.f32 %v5930, 1.442695
        %v6150 = vpow.pop %v6149
        %v6151 = vmul.f32 %v5931, 1.442695
        %v6152 = vpow.pop %v6151
        %v6153 = vmul.f32 %v5932, 1.442695
        %v6154 = vpow.pop %v6153
        %v6155 = vmul.f32 %v5933, 1.442695
        %v6156 = vpow.pop %v6155
        %v6157 = vmul.f32 %v5934, 1.442695
        %v6158 = vpow.pop %v6157
        %v6159 = vmul.f32 %v5935, 1.442695
        %v6160 = vpow.pop %v6159
        %v6161 = vmul.f32 %v5936, 1.442695
        %v6162 = vpow.pop %v6161
        %v6163 = vmul.f32 %v5937, 1.442695
        %v6164 = vpow.pop %v6163
        %v6165 = vmul.f32 %v5938, 1.442695
        %v6166 = vpow.pop %v6165
        %v6167 = vmul.f32 %v5939, 1.442695
        %v6168 = vpow.pop %v6167
        %v6169 = vmul.f32 %v5940, 1.442695
        %v6170 = vpow.pop %v6169
        %v6171 = vmul.f32 %v5941, 1.442695
        %v6172 = vpow.pop %v6171
        %v6173 = vmul.f32 %v5942, 1.442695
        %v6174 = vpow.pop %v6173
        %v6175 = vmul.f32 %v5943, 1.442695
        %v6176 = vpow.pop %v6175
        %v6177 = vmul.f32 %v5944, 1.442695
        %v6178 = vpow.pop %v6177
        %v6179 = vmul.f32 %v5945, 1.442695
        %v6180 = vpow.pop %v6179
        %v6181 = vmul.f32 %v5946, 1.442695
        %v6182 = vpow.pop %v6181
        %v6183 = vmul.f32 %v5947, 1.442695
        %v6184 = vpow.pop %v6183
        %v6185 = vmul.f32 %v5948, 1.442695
        %v6186 = vpow.pop %v6185
        %v6187 = vmul.f32 %v5949, 1.442695
        %v6188 = vpow.pop %v6187
        %v6189 = vmul.f32 %v5950, 1.442695
        %v6190 = vpow.pop %v6189
        %v6191 = vmul.f32 %v5951, 1.442695
        %v6192 = vpow.pop %v6191
        %v6193 = vmul.f32 %v5952, 1.442695
        %v6194 = vpow.pop %v6193
        %v6195 = vmul.f32 %v5953, 1.442695
        %v6196 = vpow.pop %v6195
        %v6197 = vmul.f32 %v5954, 1.442695
        %v6198 = vpow.pop %v6197
        %v6199 = vmul.f32 %v5955, 1.442695
        %v6200 = vpow.pop %v6199
        %v6201 = vmul.f32 %v5956, 1.442695
        %v6202 = vpow.pop %v6201
        %v6203 = vmul.f32 %v5957, 1.442695
        %v6204 = vpow.pop %v6203
        %v6205 = vmul.f32 %v5958, 1.442695
        %v6206 = vpow.pop %v6205
        %v6207 = vmul.f32 %v5959, 1.442695
        %v6208 = vpow.pop %v6207
        %v6209 = vmul.f32 %v5960, 1.442695
        %v6210 = vpow.pop %v6209
        %v6211 = vmul.f32 %v5961, 1.442695
        %v6212 = vpow.pop %v6211
        %v6213 = vmul.f32 %v5962, 1.442695
        %v6214 = vpow.pop %v6213
        %v6215 = vmul.f32 %v5963, 1.442695
        %v6216 = vpow.pop %v6215
        %v6217 = vmul.f32 %v5964, 1.442695
        %v6218 = vpow.pop %v6217
        %v6219 = vmul.f32 %v5965, 1.442695
        %v6220 = vpow.pop %v6219
        %v6221 = vmul.f32 %v5966, 1.442695
        %v6222 = vpow.pop %v6221
        %v6223 = vsub.f32 %v5968, 1.0
        %v6224 = vsub.f32 %v5970, 1.0
        %v6225 = vsub.f32 %v5972, 1.0
        %v6226 = vsub.f32 %v5974, 1.0
        %v6227 = vsub.f32 %v5976, 1.0
        %v6228 = vsub.f32 %v5978, 1.0
        %v6229 = vsub.f32 %v5980, 1.0
        %v6230 = vsub.f32 %v5982, 1.0
        %v6231 = vsub.f32 %v5984, 1.0
        %v6232 = vsub.f32 %v5986, 1.0
        %v6233 = vsub.f32 %v5988, 1.0
        %v6234 = vsub.f32 %v5990, 1.0
        %v6235 = vsub.f32 %v5992, 1.0
        %v6236 = vsub.f32 %v5994, 1.0
        %v6237 = vsub.f32 %v5996, 1.0
        %v6238 = vsub.f32 %v5998, 1.0
        %v6239 = vsub.f32 %v6000, 1.0
        %v6240 = vsub.f32 %v6002, 1.0
        %v6241 = vsub.f32 %v6004, 1.0
        %v6242 = vsub.f32 %v6006, 1.0
        %v6243 = vsub.f32 %v6008, 1.0
        %v6244 = vsub.f32 %v6010, 1.0
        %v6245 = vsub.f32 %v6012, 1.0
        %v6246 = vsub.f32 %v6014, 1.0
        %v6247 = vsub.f32 %v6016, 1.0
        %v6248 = vsub.f32 %v6018, 1.0
        %v6249 = vsub.f32 %v6020, 1.0
        %v6250 = vsub.f32 %v6022, 1.0
        %v6251 = vsub.f32 %v6024, 1.0
        %v6252 = vsub.f32 %v6026, 1.0
        %v6253 = vsub.f32 %v6028, 1.0
        %v6254 = vsub.f32 %v6030, 1.0
        %v6255 = vsub.f32 %v6032, 1.0
        %v6256 = vsub.f32 %v6034, 1.0
        %v6257 = vsub.f32 %v6036, 1.0
        %v6258 = vsub.f32 %v6038, 1.0
        %v6259 = vsub.f32 %v6040, 1.0
        %v6260 = vsub.f32 %v6042, 1.0
        %v6261 = vsub.f32 %v6044, 1.0
        %v6262 = vsub.f32 %v6046, 1.0
        %v6263 = vsub.f32 %v6048, 1.0
        %v6264 = vsub.f32 %v6050, 1.0
        %v6265 = vsub.f32 %v6052, 1.0
        %v6266 = vsub.f32 %v6054, 1.0
        %v6267 = vsub.f32 %v6056, 1.0
        %v6268 = vsub.f32 %v6058, 1.0
        %v6269 = vsub.f32 %v6060, 1.0
        %v6270 = vsub.f32 %v6062, 1.0
        %v6271 = vsub.f32 %v6064, 1.0
        %v6272 = vsub.f32 %v6066, 1.0
        %v6273 = vsub.f32 %v6068, 1.0
        %v6274 = vsub.f32 %v6070, 1.0
        %v6275 = vsub.f32 %v6072, 1.0
        %v6276 = vsub.f32 %v6074, 1.0
        %v6277 = vsub.f32 %v6076, 1.0
        %v6278 = vsub.f32 %v6078, 1.0
        %v6279 = vsub.f32 %v6080, 1.0
        %v6280 = vsub.f32 %v6082, 1.0
        %v6281 = vsub.f32 %v6084, 1.0
        %v6282 = vsub.f32 %v6086, 1.0
        %v6283 = vsub.f32 %v6088, 1.0
        %v6284 = vsub.f32 %v6090, 1.0
        %v6285 = vsub.f32 %v6092, 1.0
        %v6286 = vsub.f32 %v6094, 1.0
        %v6287 = vsub.f32 %v6096, 1.0
        %v6288 = vsub.f32 %v6098, 1.0
        %v6289 = vsub.f32 %v6100, 1.0
        %v6290 = vsub.f32 %v6102, 1.0
        %v6291 = vsub.f32 %v6104, 1.0
        %v6292 = vsub.f32 %v6106, 1.0
        %v6293 = vsub.f32 %v6108, 1.0
        %v6294 = vsub.f32 %v6110, 1.0
        %v6295 = vsub.f32 %v6112, 1.0
        %v6296 = vsub.f32 %v6114, 1.0
        %v6297 = vsub.f32 %v6116, 1.0
        %v6298 = vsub.f32 %v6118, 1.0
        %v6299 = vsub.f32 %v6120, 1.0
        %v6300 = vsub.f32 %v6122, 1.0
        %v6301 = vsub.f32 %v6124, 1.0
        %v6302 = vsub.f32 %v6126, 1.0
        %v6303 = vsub.f32 %v6128, 1.0
        %v6304 = vsub.f32 %v6130, 1.0
        %v6305 = vsub.f32 %v6132, 1.0
        %v6306 = vsub.f32 %v6134, 1.0
        %v6307 = vsub.f32 %v6136, 1.0
        %v6308 = vsub.f32 %v6138, 1.0
        %v6309 = vsub.f32 %v6140, 1.0
        %v6310 = vsub.f32 %v6142, 1.0
        %v6311 = vsub.f32 %v6144, 1.0
        %v6312 = vsub.f32 %v6146, 1.0
        %v6313 = vsub.f32 %v6148, 1.0
        %v6314 = vsub.f32 %v6150, 1.0
        %v6315 = vsub.f32 %v6152, 1.0
        %v6316 = vsub.f32 %v6154, 1.0
        %v6317 = vsub.f32 %v6156, 1.0
        %v6318 = vsub.f32 %v6158, 1.0
        %v6319 = vsub.f32 %v6160, 1.0
        %v6320 = vsub.f32 %v6162, 1.0
        %v6321 = vsub.f32 %v6164, 1.0
        %v6322 = vsub.f32 %v6166, 1.0
        %v6323 = vsub.f32 %v6168, 1.0
        %v6324 = vsub.f32 %v6170, 1.0
        %v6325 = vsub.f32 %v6172, 1.0
        %v6326 = vsub.f32 %v6174, 1.0
        %v6327 = vsub.f32 %v6176, 1.0
        %v6328 = vsub.f32 %v6178, 1.0
        %v6329 = vsub.f32 %v6180, 1.0
        %v6330 = vsub.f32 %v6182, 1.0
        %v6331 = vsub.f32 %v6184, 1.0
        %v6332 = vsub.f32 %v6186, 1.0
        %v6333 = vsub.f32 %v6188, 1.0
        %v6334 = vsub.f32 %v6190, 1.0
        %v6335 = vsub.f32 %v6192, 1.0
        %v6336 = vsub.f32 %v6194, 1.0
        %v6337 = vsub.f32 %v6196, 1.0
        %v6338 = vsub.f32 %v6198, 1.0
        %v6339 = vsub.f32 %v6200, 1.0
        %v6340 = vsub.f32 %v6202, 1.0
        %v6341 = vsub.f32 %v6204, 1.0
        %v6342 = vsub.f32 %v6206, 1.0
        %v6343 = vsub.f32 %v6208, 1.0
        %v6344 = vsub.f32 %v6210, 1.0
        %v6345 = vsub.f32 %v6212, 1.0
        %v6346 = vsub.f32 %v6214, 1.0
        %v6347 = vsub.f32 %v6216, 1.0
        %v6348 = vsub.f32 %v6218, 1.0
        %v6349 = vsub.f32 %v6220, 1.0
        %v6350 = vsub.f32 %v6222, 1.0
        %v6351 = vsel %vm5711, %v5073, %v6223
        %v6352 = vsel %vm5712, %v5114, %v6224
        %v6353 = vsel %vm5713, %v5155, %v6225
        %v6354 = vsel %vm5714, %v5196, %v6226
        %v6355 = vsel %vm5715, %v5237, %v6227
        %v6356 = vsel %vm5716, %v5278, %v6228
        %v6357 = vsel %vm5717, %v5319, %v6229
        %v6358 = vsel %vm5718, %v5360, %v6230
        %v6359 = vsel %vm5719, %v5401, %v6231
        %v6360 = vsel %vm5720, %v5442, %v6232
        %v6361 = vsel %vm5721, %v5483, %v6233
        %v6362 = vsel %vm5722, %v5524, %v6234
        %v6363 = vsel %vm5723, %v5565, %v6235
        %v6364 = vsel %vm5724, %v5606, %v6236
        %v6365 = vsel %vm5725, %v5647, %v6237
        %v6366 = vsel %vm5726, %v5688, %v6238
        %v6367 = vsel %vm5727, %v5076, %v6239
        %v6368 = vsel %vm5728, %v5117, %v6240
        %v6369 = vsel %vm5729, %v5158, %v6241
        %v6370 = vsel %vm5730, %v5199, %v6242
        %v6371 = vsel %vm5731, %v5240, %v6243
        %v6372 = vsel %vm5732, %v5281, %v6244
        %v6373 = vsel %vm5733, %v5322, %v6245
        %v6374 = vsel %vm5734, %v5363, %v6246
        %v6375 = vsel %vm5735, %v5404, %v6247
        %v6376 = vsel %vm5736, %v5445, %v6248
        %v6377 = vsel %vm5737, %v5486, %v6249
        %v6378 = vsel %vm5738, %v5527, %v6250
        %v6379 = vsel %vm5739, %v5568, %v6251
        %v6380 = vsel %vm5740, %v5609, %v6252
        %v6381 = vsel %vm5741, %v5650, %v6253
        %v6382 = vsel %vm5742, %v5691, %v6254
        %v6383 = vsel %vm5743, %v5079, %v6255
        %v6384 = vsel %vm5744, %v5120, %v6256
        %v6385 = vsel %vm5745, %v5161, %v6257
        %v6386 = vsel %vm5746, %v5202, %v6258
        %v6387 = vsel %vm5747, %v5243, %v6259
        %v6388 = vsel %vm5748, %v5284, %v6260
        %v6389 = vsel %vm5749, %v5325, %v6261
        %v6390 = vsel %vm5750, %v5366, %v6262
        %v6391 = vsel %vm5751, %v5407, %v6263
        %v6392 = vsel %vm5752, %v5448, %v6264
        %v6393 = vsel %vm5753, %v5489, %v6265
        %v6394 = vsel %vm5754, %v5530, %v6266
        %v6395 = vsel %vm5755, %v5571, %v6267
        %v6396 = vsel %vm5756, %v5612, %v6268
        %v6397 = vsel %vm5757, %v5653, %v6269
        %v6398 = vsel %vm5758, %v5694, %v6270
        %v6399 = vsel %vm5759, %v5082, %v6271
        %v6400 = vsel %vm5760, %v5123, %v6272
        %v6401 = vsel %vm5761, %v5164, %v6273
        %v6402 = vsel %vm5762, %v5205, %v6274
        %v6403 = vsel %vm5763, %v5246, %v6275
        %v6404 = vsel %vm5764, %v5287, %v6276
        %v6405 = vsel %vm5765, %v5328, %v6277
        %v6406 = vsel %vm5766, %v5369, %v6278
        %v6407 = vsel %vm5767, %v5410, %v6279
        %v6408 = vsel %vm5768, %v5451, %v6280
        %v6409 = vsel %vm5769, %v5492, %v6281
        %v6410 = vsel %vm5770, %v5533, %v6282
        %v6411 = vsel %vm5771, %v5574, %v6283
        %v6412 = vsel %vm5772, %v5615, %v6284
        %v6413 = vsel %vm5773, %v5656, %v6285
        %v6414 = vsel %vm5774, %v5697, %v6286
        %v6415 = vsel %vm5775, %v5085, %v6287
        %v6416 = vsel %vm5776, %v5126, %v6288
        %v6417 = vsel %vm5777, %v5167, %v6289
        %v6418 = vsel %vm5778, %v5208, %v6290
        %v6419 = vsel %vm5779, %v5249, %v6291
        %v6420 = vsel %vm5780, %v5290, %v6292
        %v6421 = vsel %vm5781, %v5331, %v6293
        %v6422 = vsel %vm5782, %v5372, %v6294
        %v6423 = vsel %vm5783, %v5413, %v6295
        %v6424 = vsel %vm5784, %v5454, %v6296
        %v6425 = vsel %vm5785, %v5495, %v6297
        %v6426 = vsel %vm5786, %v5536, %v6298
        %v6427 = vsel %vm5787, %v5577, %v6299
        %v6428 = vsel %vm5788, %v5618, %v6300
        %v6429 = vsel %vm5789, %v5659, %v6301
        %v6430 = vsel %vm5790, %v5700, %v6302
        %v6431 = vsel %vm5791, %v5088, %v6303
        %v6432 = vsel %vm5792, %v5129, %v6304
        %v6433 = vsel %vm5793, %v5170, %v6305
        %v6434 = vsel %vm5794, %v5211, %v6306
        %v6435 = vsel %vm5795, %v5252, %v6307
        %v6436 = vsel %vm5796, %v5293, %v6308
        %v6437 = vsel %vm5797, %v5334, %v6309
        %v6438 = vsel %vm5798, %v5375, %v6310
        %v6439 = vsel %vm5799, %v5416, %v6311
        %v6440 = vsel %vm5800, %v5457, %v6312
        %v6441 = vsel %vm5801, %v5498, %v6313
        %v6442 = vsel %vm5802, %v5539, %v6314
        %v6443 = vsel %vm5803, %v5580, %v6315
        %v6444 = vsel %vm5804, %v5621, %v6316
        %v6445 = vsel %vm5805, %v5662, %v6317
        %v6446 = vsel %vm5806, %v5703, %v6318
        %v6447 = vsel %vm5807, %v5091, %v6319
        %v6448 = vsel %vm5808, %v5132, %v6320
        %v6449 = vsel %vm5809, %v5173, %v6321
        %v6450 = vsel %vm5810, %v5214, %v6322
        %v6451 = vsel %vm5811, %v5255, %v6323
        %v6452 = vsel %vm5812, %v5296, %v6324
        %v6453 = vsel %vm5813, %v5337, %v6325
        %v6454 = vsel %vm5814, %v5378, %v6326
        %v6455 = vsel %vm5815, %v5419, %v6327
        %v6456 = vsel %vm5816, %v5460, %v6328
        %v6457 = vsel %vm5817, %v5501, %v6329
        %v6458 = vsel %vm5818, %v5542, %v6330
        %v6459 = vsel %vm5819, %v5583, %v6331
        %v6460 = vsel %vm5820, %v5624, %v6332
        %v6461 = vsel %vm5821, %v5665, %v6333
        %v6462 = vsel %vm5822, %v5706, %v6334
        %v6463 = vsel %vm5823, %v5094, %v6335
        %v6464 = vsel %vm5824, %v5135, %v6336
        %v6465 = vsel %vm5825, %v5176, %v6337
        %v6466 = vsel %vm5826, %v5217, %v6338
        %v6467 = vsel %vm5827, %v5258, %v6339
        %v6468 = vsel %vm5828, %v5299, %v6340
        %v6469 = vsel %vm5829, %v5340, %v6341
        %v6470 = vsel %vm5830, %v5381, %v6342
        %v6471 = vsel %vm5831, %v5422, %v6343
        %v6472 = vsel %vm5832, %v5463, %v6344
        %v6473 = vsel %vm5833, %v5504, %v6345
        %v6474 = vsel %vm5834, %v5545, %v6346
        %v6475 = vsel %vm5835, %v5586, %v6347
        %v6476 = vsel %vm5836, %v5627, %v6348
        %v6477 = vsel %vm5837, %v5668, %v6349
        %v6478 = vsel %vm5838, %v5709, %v6350
        %s6479 = scalar_lea.vmem %s4, 192
        %v6480 = vld [vmem:[%s6479] sm:$0xff]
        %v6481 = vld [vmem:[%s6479 + $0x8] sm:$0xff]
        %v6482 = vld [vmem:[%s6479 + $0x10] sm:$0xff]
        %v6483 = vld [vmem:[%s6479 + $0x18] sm:$0xff]
        %v6484 = vld [vmem:[%s6479 + $0x20] sm:$0xff]
        %v6485 = vld [vmem:[%s6479 + $0x28] sm:$0xff]
        %v6486 = vld [vmem:[%s6479 + $0x30] sm:$0xff]
        %v6487 = vld [vmem:[%s6479 + $0x38] sm:$0xff]
        %s6488 = scalar_lea.vmem %s5, 192
        %v6489 = vld [vmem:[%s6488] sm:$0xff]
        %v6490 = vld [vmem:[%s6488 + $0x8] sm:$0xff]
        %v6491 = vld [vmem:[%s6488 + $0x10] sm:$0xff]
        %v6492 = vld [vmem:[%s6488 + $0x18] sm:$0xff]
        %v6493 = vld [vmem:[%s6488 + $0x20] sm:$0xff]
        %v6494 = vld [vmem:[%s6488 + $0x28] sm:$0xff]
        %v6495 = vld [vmem:[%s6488 + $0x30] sm:$0xff]
        %v6496 = vld [vmem:[%s6488 + $0x38] sm:$0xff]
        %6498 = vset.pattern.permute.xlu0 0
        %6499 = vperm.xlu0 %6498, %v6489
        %v6500 = vpop.permute.xlu0 %6499
        %6503 = vset.pattern.permute.xlu0 0
        %6504 = vperm.xlu0 %6503, %v6490
        %v6505 = vpop.permute.xlu0 %6504
        %6508 = vset.pattern.permute.xlu0 0
        %6509 = vperm.xlu0 %6508, %v6491
        %v6510 = vpop.permute.xlu0 %6509
        %6513 = vset.pattern.permute.xlu0 0
        %6514 = vperm.xlu0 %6513, %v6492
        %v6515 = vpop.permute.xlu0 %6514
        %6518 = vset.pattern.permute.xlu0 0
        %6519 = vperm.xlu0 %6518, %v6493
        %v6520 = vpop.permute.xlu0 %6519
        %6523 = vset.pattern.permute.xlu0 0
        %6524 = vperm.xlu0 %6523, %v6494
        %v6525 = vpop.permute.xlu0 %6524
        %6528 = vset.pattern.permute.xlu0 0
        %6529 = vperm.xlu0 %6528, %v6495
        %v6530 = vpop.permute.xlu0 %6529
        %6533 = vset.pattern.permute.xlu0 0
        %6534 = vperm.xlu0 %6533, %v6496
        %v6535 = vpop.permute.xlu0 %6534
        %v6538 = vsel %vm2018, %v6480, 0
        %v6541 = vsel %vm2018, %v6481, 0
        %v6544 = vsel %vm2018, %v6482, 0
        %v6547 = vsel %vm2018, %v6483, 0
        %v6550 = vsel %vm2018, %v6484, 0
        %v6553 = vsel %vm2018, %v6485, 0
        %v6556 = vsel %vm2018, %v6486, 0
        %v6559 = vsel %vm2018, %v6487, 0
        %6561 = vmatpush.msra.mxu0 0.0
        %6562 = vmatpush.msra.mxu0 0.0
        %6563 = vmatpush.msra.mxu0 0.0
        %6564 = vmatpush.msra.mxu0 0.0
        %6565 = vmatpush.msra.mxu0 0.0
        %6566 = vmatpush.msra.mxu0 0.0
        %6567 = vmatpush.msra.mxu0 0.0
        %6568 = vmatpush.msra.mxu0 0.0
        %6569 = vmatpush.msra.mxu0 %v6463
        %6570 = vmatpush.msra.mxu0 %v6447
        %6571 = vmatpush.msra.mxu0 %v6431
        %6572 = vmatpush.msra.mxu0 %v6415
        %6573 = vmatpush.msra.mxu0 %v6399
        %6574 = vmatpush.msra.mxu0 %v6383
        %6575 = vmatpush.msra.mxu0 %v6367
        %6576 = vmatpush.msra.mxu0 %v6351
        %6577 = vmatmul.f32.gmra.mxu0 %v6538
        %v6578 = vpop.f32.mrf.mxu0
        %v6579 = vadd.f32 %v6500, %v6578
        %6580 = vmatmul.f32.gmra.mxu0 %v6541
        %v6581 = vpop.f32.mrf.mxu0
        %v6582 = vadd.f32 %v6505, %v6581
        %6583 = vmatmul.f32.gmra.mxu0 %v6544
        %v6584 = vpop.f32.mrf.mxu0
        %v6585 = vadd.f32 %v6510, %v6584
        %6586 = vmatmul.f32.gmra.mxu0 %v6547
        %v6587 = vpop.f32.mrf.mxu0
        %v6588 = vadd.f32 %v6515, %v6587
        %6589 = vmatmul.f32.gmra.mxu0 %v6550
        %v6590 = vpop.f32.mrf.mxu0
        %v6591 = vadd.f32 %v6520, %v6590
        %6592 = vmatmul.f32.gmra.mxu0 %v6553
        %v6593 = vpop.f32.mrf.mxu0
        %v6594 = vadd.f32 %v6525, %v6593
        %6595 = vmatmul.f32.gmra.mxu0 %v6556
        %v6596 = vpop.f32.mrf.mxu0
        %v6597 = vadd.f32 %v6530, %v6596
        %6598 = vmatmul.f32.gmra.mxu0 %v6559
        %v6599 = vpop.f32.mrf.mxu0
        %v6600 = vadd.f32 %v6535, %v6599
        %6601 = vdwg.mxu0
        %6602 = vmatpush.msra.mxu0 0.0
        %6603 = vmatpush.msra.mxu0 0.0
        %6604 = vmatpush.msra.mxu0 0.0
        %6605 = vmatpush.msra.mxu0 0.0
        %6606 = vmatpush.msra.mxu0 0.0
        %6607 = vmatpush.msra.mxu0 0.0
        %6608 = vmatpush.msra.mxu0 0.0
        %6609 = vmatpush.msra.mxu0 0.0
        %6610 = vmatpush.msra.mxu0 %v6464
        %6611 = vmatpush.msra.mxu0 %v6448
        %6612 = vmatpush.msra.mxu0 %v6432
        %6613 = vmatpush.msra.mxu0 %v6416
        %6614 = vmatpush.msra.mxu0 %v6400
        %6615 = vmatpush.msra.mxu0 %v6384
        %6616 = vmatpush.msra.mxu0 %v6368
        %6617 = vmatpush.msra.mxu0 %v6352
        %6618 = vmatmul.f32.gmra.mxu0 %v6538
        %v6619 = vpop.f32.mrf.mxu0
        %v6620 = vadd.f32 %v6500, %v6619
        %6621 = vmatmul.f32.gmra.mxu0 %v6541
        %v6622 = vpop.f32.mrf.mxu0
        %v6623 = vadd.f32 %v6505, %v6622
        %6624 = vmatmul.f32.gmra.mxu0 %v6544
        %v6625 = vpop.f32.mrf.mxu0
        %v6626 = vadd.f32 %v6510, %v6625
        %6627 = vmatmul.f32.gmra.mxu0 %v6547
        %v6628 = vpop.f32.mrf.mxu0
        %v6629 = vadd.f32 %v6515, %v6628
        %6630 = vmatmul.f32.gmra.mxu0 %v6550
        %v6631 = vpop.f32.mrf.mxu0
        %v6632 = vadd.f32 %v6520, %v6631
        %6633 = vmatmul.f32.gmra.mxu0 %v6553
        %v6634 = vpop.f32.mrf.mxu0
        %v6635 = vadd.f32 %v6525, %v6634
        %6636 = vmatmul.f32.gmra.mxu0 %v6556
        %v6637 = vpop.f32.mrf.mxu0
        %v6638 = vadd.f32 %v6530, %v6637
        %6639 = vmatmul.f32.gmra.mxu0 %v6559
        %v6640 = vpop.f32.mrf.mxu0
        %v6641 = vadd.f32 %v6535, %v6640
        %6642 = vdwg.mxu0
        %6643 = vmatpush.msra.mxu0 0.0
        %6644 = vmatpush.msra.mxu0 0.0
        %6645 = vmatpush.msra.mxu0 0.0
        %6646 = vmatpush.msra.mxu0 0.0
        %6647 = vmatpush.msra.mxu0 0.0
        %6648 = vmatpush.msra.mxu0 0.0
        %6649 = vmatpush.msra.mxu0 0.0
        %6650 = vmatpush.msra.mxu0 0.0
        %6651 = vmatpush.msra.mxu0 %v6465
        %6652 = vmatpush.msra.mxu0 %v6449
        %6653 = vmatpush.msra.mxu0 %v6433
        %6654 = vmatpush.msra.mxu0 %v6417
        %6655 = vmatpush.msra.mxu0 %v6401
        %6656 = vmatpush.msra.mxu0 %v6385
        %6657 = vmatpush.msra.mxu0 %v6369
        %6658 = vmatpush.msra.mxu0 %v6353
        %6659 = vmatmul.f32.gmra.mxu0 %v6538
        %v6660 = vpop.f32.mrf.mxu0
        %v6661 = vadd.f32 %v6500, %v6660
        %6662 = vmatmul.f32.gmra.mxu0 %v6541
        %v6663 = vpop.f32.mrf.mxu0
        %v6664 = vadd.f32 %v6505, %v6663
        %6665 = vmatmul.f32.gmra.mxu0 %v6544
        %v6666 = vpop.f32.mrf.mxu0
        %v6667 = vadd.f32 %v6510, %v6666
        %6668 = vmatmul.f32.gmra.mxu0 %v6547
        %v6669 = vpop.f32.mrf.mxu0
        %v6670 = vadd.f32 %v6515, %v6669
        %6671 = vmatmul.f32.gmra.mxu0 %v6550
        %v6672 = vpop.f32.mrf.mxu0
        %v6673 = vadd.f32 %v6520, %v6672
        %6674 = vmatmul.f32.gmra.mxu0 %v6553
        %v6675 = vpop.f32.mrf.mxu0
        %v6676 = vadd.f32 %v6525, %v6675
        %6677 = vmatmul.f32.gmra.mxu0 %v6556
        %v6678 = vpop.f32.mrf.mxu0
        %v6679 = vadd.f32 %v6530, %v6678
        %6680 = vmatmul.f32.gmra.mxu0 %v6559
        %v6681 = vpop.f32.mrf.mxu0
        %v6682 = vadd.f32 %v6535, %v6681
        %6683 = vdwg.mxu0
        %6684 = vmatpush.msra.mxu0 0.0
        %6685 = vmatpush.msra.mxu0 0.0
        %6686 = vmatpush.msra.mxu0 0.0
        %6687 = vmatpush.msra.mxu0 0.0
        %6688 = vmatpush.msra.mxu0 0.0
        %6689 = vmatpush.msra.mxu0 0.0
        %6690 = vmatpush.msra.mxu0 0.0
        %6691 = vmatpush.msra.mxu0 0.0
        %6692 = vmatpush.msra.mxu0 %v6466
        %6693 = vmatpush.msra.mxu0 %v6450
        %6694 = vmatpush.msra.mxu0 %v6434
        %6695 = vmatpush.msra.mxu0 %v6418
        %6696 = vmatpush.msra.mxu0 %v6402
        %6697 = vmatpush.msra.mxu0 %v6386
        %6698 = vmatpush.msra.mxu0 %v6370
        %6699 = vmatpush.msra.mxu0 %v6354
        %6700 = vmatmul.f32.gmra.mxu0 %v6538
        %v6701 = vpop.f32.mrf.mxu0
        %v6702 = vadd.f32 %v6500, %v6701
        %6703 = vmatmul.f32.gmra.mxu0 %v6541
        %v6704 = vpop.f32.mrf.mxu0
        %v6705 = vadd.f32 %v6505, %v6704
        %6706 = vmatmul.f32.gmra.mxu0 %v6544
        %v6707 = vpop.f32.mrf.mxu0
        %v6708 = vadd.f32 %v6510, %v6707
        %6709 = vmatmul.f32.gmra.mxu0 %v6547
        %v6710 = vpop.f32.mrf.mxu0
        %v6711 = vadd.f32 %v6515, %v6710
        %6712 = vmatmul.f32.gmra.mxu0 %v6550
        %v6713 = vpop.f32.mrf.mxu0
        %v6714 = vadd.f32 %v6520, %v6713
        %6715 = vmatmul.f32.gmra.mxu0 %v6553
        %v6716 = vpop.f32.mrf.mxu0
        %v6717 = vadd.f32 %v6525, %v6716
        %6718 = vmatmul.f32.gmra.mxu0 %v6556
        %v6719 = vpop.f32.mrf.mxu0
        %v6720 = vadd.f32 %v6530, %v6719
        %6721 = vmatmul.f32.gmra.mxu0 %v6559
        %v6722 = vpop.f32.mrf.mxu0
        %v6723 = vadd.f32 %v6535, %v6722
        %6724 = vdwg.mxu0
        %6725 = vmatpush.msra.mxu0 0.0
        %6726 = vmatpush.msra.mxu0 0.0
        %6727 = vmatpush.msra.mxu0 0.0
        %6728 = vmatpush.msra.mxu0 0.0
        %6729 = vmatpush.msra.mxu0 0.0
        %6730 = vmatpush.msra.mxu0 0.0
        %6731 = vmatpush.msra.mxu0 0.0
        %6732 = vmatpush.msra.mxu0 0.0
        %6733 = vmatpush.msra.mxu0 %v6467
        %6734 = vmatpush.msra.mxu0 %v6451
        %6735 = vmatpush.msra.mxu0 %v6435
        %6736 = vmatpush.msra.mxu0 %v6419
        %6737 = vmatpush.msra.mxu0 %v6403
        %6738 = vmatpush.msra.mxu0 %v6387
        %6739 = vmatpush.msra.mxu0 %v6371
        %6740 = vmatpush.msra.mxu0 %v6355
        %6741 = vmatmul.f32.gmra.mxu0 %v6538
        %v6742 = vpop.f32.mrf.mxu0
        %v6743 = vadd.f32 %v6500, %v6742
        %6744 = vmatmul.f32.gmra.mxu0 %v6541
        %v6745 = vpop.f32.mrf.mxu0
        %v6746 = vadd.f32 %v6505, %v6745
        %6747 = vmatmul.f32.gmra.mxu0 %v6544
        %v6748 = vpop.f32.mrf.mxu0
        %v6749 = vadd.f32 %v6510, %v6748
        %6750 = vmatmul.f32.gmra.mxu0 %v6547
        %v6751 = vpop.f32.mrf.mxu0
        %v6752 = vadd.f32 %v6515, %v6751
        %6753 = vmatmul.f32.gmra.mxu0 %v6550
        %v6754 = vpop.f32.mrf.mxu0
        %v6755 = vadd.f32 %v6520, %v6754
        %6756 = vmatmul.f32.gmra.mxu0 %v6553
        %v6757 = vpop.f32.mrf.mxu0
        %v6758 = vadd.f32 %v6525, %v6757
        %6759 = vmatmul.f32.gmra.mxu0 %v6556
        %v6760 = vpop.f32.mrf.mxu0
        %v6761 = vadd.f32 %v6530, %v6760
        %6762 = vmatmul.f32.gmra.mxu0 %v6559
        %v6763 = vpop.f32.mrf.mxu0
        %v6764 = vadd.f32 %v6535, %v6763
        %6765 = vdwg.mxu0
        %6766 = vmatpush.msra.mxu0 0.0
        %6767 = vmatpush.msra.mxu0 0.0
        %6768 = vmatpush.msra.mxu0 0.0
        %6769 = vmatpush.msra.mxu0 0.0
        %6770 = vmatpush.msra.mxu0 0.0
        %6771 = vmatpush.msra.mxu0 0.0
        %6772 = vmatpush.msra.mxu0 0.0
        %6773 = vmatpush.msra.mxu0 0.0
        %6774 = vmatpush.msra.mxu0 %v6468
        %6775 = vmatpush.msra.mxu0 %v6452
        %6776 = vmatpush.msra.mxu0 %v6436
        %6777 = vmatpush.msra.mxu0 %v6420
        %6778 = vmatpush.msra.mxu0 %v6404
        %6779 = vmatpush.msra.mxu0 %v6388
        %6780 = vmatpush.msra.mxu0 %v6372
        %6781 = vmatpush.msra.mxu0 %v6356
        %6782 = vmatmul.f32.gmra.mxu0 %v6538
        %v6783 = vpop.f32.mrf.mxu0
        %v6784 = vadd.f32 %v6500, %v6783
        %6785 = vmatmul.f32.gmra.mxu0 %v6541
        %v6786 = vpop.f32.mrf.mxu0
        %v6787 = vadd.f32 %v6505, %v6786
        %6788 = vmatmul.f32.gmra.mxu0 %v6544
        %v6789 = vpop.f32.mrf.mxu0
        %v6790 = vadd.f32 %v6510, %v6789
        %6791 = vmatmul.f32.gmra.mxu0 %v6547
        %v6792 = vpop.f32.mrf.mxu0
        %v6793 = vadd.f32 %v6515, %v6792
        %6794 = vmatmul.f32.gmra.mxu0 %v6550
        %v6795 = vpop.f32.mrf.mxu0
        %v6796 = vadd.f32 %v6520, %v6795
        %6797 = vmatmul.f32.gmra.mxu0 %v6553
        %v6798 = vpop.f32.mrf.mxu0
        %v6799 = vadd.f32 %v6525, %v6798
        %6800 = vmatmul.f32.gmra.mxu0 %v6556
        %v6801 = vpop.f32.mrf.mxu0
        %v6802 = vadd.f32 %v6530, %v6801
        %6803 = vmatmul.f32.gmra.mxu0 %v6559
        %v6804 = vpop.f32.mrf.mxu0
        %v6805 = vadd.f32 %v6535, %v6804
        %6806 = vdwg.mxu0
        %6807 = vmatpush.msra.mxu0 0.0
        %6808 = vmatpush.msra.mxu0 0.0
        %6809 = vmatpush.msra.mxu0 0.0
        %6810 = vmatpush.msra.mxu0 0.0
        %6811 = vmatpush.msra.mxu0 0.0
        %6812 = vmatpush.msra.mxu0 0.0
        %6813 = vmatpush.msra.mxu0 0.0
        %6814 = vmatpush.msra.mxu0 0.0
        %6815 = vmatpush.msra.mxu0 %v6469
        %6816 = vmatpush.msra.mxu0 %v6453
        %6817 = vmatpush.msra.mxu0 %v6437
        %6818 = vmatpush.msra.mxu0 %v6421
        %6819 = vmatpush.msra.mxu0 %v6405
        %6820 = vmatpush.msra.mxu0 %v6389
        %6821 = vmatpush.msra.mxu0 %v6373
        %6822 = vmatpush.msra.mxu0 %v6357
        %6823 = vmatmul.f32.gmra.mxu0 %v6538
        %v6824 = vpop.f32.mrf.mxu0
        %v6825 = vadd.f32 %v6500, %v6824
        %6826 = vmatmul.f32.gmra.mxu0 %v6541
        %v6827 = vpop.f32.mrf.mxu0
        %v6828 = vadd.f32 %v6505, %v6827
        %6829 = vmatmul.f32.gmra.mxu0 %v6544
        %v6830 = vpop.f32.mrf.mxu0
        %v6831 = vadd.f32 %v6510, %v6830
        %6832 = vmatmul.f32.gmra.mxu0 %v6547
        %v6833 = vpop.f32.mrf.mxu0
        %v6834 = vadd.f32 %v6515, %v6833
        %6835 = vmatmul.f32.gmra.mxu0 %v6550
        %v6836 = vpop.f32.mrf.mxu0
        %v6837 = vadd.f32 %v6520, %v6836
        %6838 = vmatmul.f32.gmra.mxu0 %v6553
        %v6839 = vpop.f32.mrf.mxu0
        %v6840 = vadd.f32 %v6525, %v6839
        %6841 = vmatmul.f32.gmra.mxu0 %v6556
        %v6842 = vpop.f32.mrf.mxu0
        %v6843 = vadd.f32 %v6530, %v6842
        %6844 = vmatmul.f32.gmra.mxu0 %v6559
        %v6845 = vpop.f32.mrf.mxu0
        %v6846 = vadd.f32 %v6535, %v6845
        %6847 = vdwg.mxu0
        %6848 = vmatpush.msra.mxu0 0.0
        %6849 = vmatpush.msra.mxu0 0.0
        %6850 = vmatpush.msra.mxu0 0.0
        %6851 = vmatpush.msra.mxu0 0.0
        %6852 = vmatpush.msra.mxu0 0.0
        %6853 = vmatpush.msra.mxu0 0.0
        %6854 = vmatpush.msra.mxu0 0.0
        %6855 = vmatpush.msra.mxu0 0.0
        %6856 = vmatpush.msra.mxu0 %v6470
        %6857 = vmatpush.msra.mxu0 %v6454
        %6858 = vmatpush.msra.mxu0 %v6438
        %6859 = vmatpush.msra.mxu0 %v6422
        %6860 = vmatpush.msra.mxu0 %v6406
        %6861 = vmatpush.msra.mxu0 %v6390
        %6862 = vmatpush.msra.mxu0 %v6374
        %6863 = vmatpush.msra.mxu0 %v6358
        %6864 = vmatmul.f32.gmra.mxu0 %v6538
        %v6865 = vpop.f32.mrf.mxu0
        %v6866 = vadd.f32 %v6500, %v6865
        %6867 = vmatmul.f32.gmra.mxu0 %v6541
        %v6868 = vpop.f32.mrf.mxu0
        %v6869 = vadd.f32 %v6505, %v6868
        %6870 = vmatmul.f32.gmra.mxu0 %v6544
        %v6871 = vpop.f32.mrf.mxu0
        %v6872 = vadd.f32 %v6510, %v6871
        %6873 = vmatmul.f32.gmra.mxu0 %v6547
        %v6874 = vpop.f32.mrf.mxu0
        %v6875 = vadd.f32 %v6515, %v6874
        %6876 = vmatmul.f32.gmra.mxu0 %v6550
        %v6877 = vpop.f32.mrf.mxu0
        %v6878 = vadd.f32 %v6520, %v6877
        %6879 = vmatmul.f32.gmra.mxu0 %v6553
        %v6880 = vpop.f32.mrf.mxu0
        %v6881 = vadd.f32 %v6525, %v6880
        %6882 = vmatmul.f32.gmra.mxu0 %v6556
        %v6883 = vpop.f32.mrf.mxu0
        %v6884 = vadd.f32 %v6530, %v6883
        %6885 = vmatmul.f32.gmra.mxu0 %v6559
        %v6886 = vpop.f32.mrf.mxu0
        %v6887 = vadd.f32 %v6535, %v6886
        %6888 = vdwg.mxu0
        %6889 = vmatpush.msra.mxu0 0.0
        %6890 = vmatpush.msra.mxu0 0.0
        %6891 = vmatpush.msra.mxu0 0.0
        %6892 = vmatpush.msra.mxu0 0.0
        %6893 = vmatpush.msra.mxu0 0.0
        %6894 = vmatpush.msra.mxu0 0.0
        %6895 = vmatpush.msra.mxu0 0.0
        %6896 = vmatpush.msra.mxu0 0.0
        %6897 = vmatpush.msra.mxu0 %v6471
        %6898 = vmatpush.msra.mxu0 %v6455
        %6899 = vmatpush.msra.mxu0 %v6439
        %6900 = vmatpush.msra.mxu0 %v6423
        %6901 = vmatpush.msra.mxu0 %v6407
        %6902 = vmatpush.msra.mxu0 %v6391
        %6903 = vmatpush.msra.mxu0 %v6375
        %6904 = vmatpush.msra.mxu0 %v6359
        %6905 = vmatmul.f32.gmra.mxu0 %v6538
        %v6906 = vpop.f32.mrf.mxu0
        %v6907 = vadd.f32 %v6500, %v6906
        %6908 = vmatmul.f32.gmra.mxu0 %v6541
        %v6909 = vpop.f32.mrf.mxu0
        %v6910 = vadd.f32 %v6505, %v6909
        %6911 = vmatmul.f32.gmra.mxu0 %v6544
        %v6912 = vpop.f32.mrf.mxu0
        %v6913 = vadd.f32 %v6510, %v6912
        %6914 = vmatmul.f32.gmra.mxu0 %v6547
        %v6915 = vpop.f32.mrf.mxu0
        %v6916 = vadd.f32 %v6515, %v6915
        %6917 = vmatmul.f32.gmra.mxu0 %v6550
        %v6918 = vpop.f32.mrf.mxu0
        %v6919 = vadd.f32 %v6520, %v6918
        %6920 = vmatmul.f32.gmra.mxu0 %v6553
        %v6921 = vpop.f32.mrf.mxu0
        %v6922 = vadd.f32 %v6525, %v6921
        %6923 = vmatmul.f32.gmra.mxu0 %v6556
        %v6924 = vpop.f32.mrf.mxu0
        %v6925 = vadd.f32 %v6530, %v6924
        %6926 = vmatmul.f32.gmra.mxu0 %v6559
        %v6927 = vpop.f32.mrf.mxu0
        %v6928 = vadd.f32 %v6535, %v6927
        %6929 = vdwg.mxu0
        %6930 = vmatpush.msra.mxu0 0.0
        %6931 = vmatpush.msra.mxu0 0.0
        %6932 = vmatpush.msra.mxu0 0.0
        %6933 = vmatpush.msra.mxu0 0.0
        %6934 = vmatpush.msra.mxu0 0.0
        %6935 = vmatpush.msra.mxu0 0.0
        %6936 = vmatpush.msra.mxu0 0.0
        %6937 = vmatpush.msra.mxu0 0.0
        %6938 = vmatpush.msra.mxu0 %v6472
        %6939 = vmatpush.msra.mxu0 %v6456
        %6940 = vmatpush.msra.mxu0 %v6440
        %6941 = vmatpush.msra.mxu0 %v6424
        %6942 = vmatpush.msra.mxu0 %v6408
        %6943 = vmatpush.msra.mxu0 %v6392
        %6944 = vmatpush.msra.mxu0 %v6376
        %6945 = vmatpush.msra.mxu0 %v6360
        %6946 = vmatmul.f32.gmra.mxu0 %v6538
        %v6947 = vpop.f32.mrf.mxu0
        %v6948 = vadd.f32 %v6500, %v6947
        %6949 = vmatmul.f32.gmra.mxu0 %v6541
        %v6950 = vpop.f32.mrf.mxu0
        %v6951 = vadd.f32 %v6505, %v6950
        %6952 = vmatmul.f32.gmra.mxu0 %v6544
        %v6953 = vpop.f32.mrf.mxu0
        %v6954 = vadd.f32 %v6510, %v6953
        %6955 = vmatmul.f32.gmra.mxu0 %v6547
        %v6956 = vpop.f32.mrf.mxu0
        %v6957 = vadd.f32 %v6515, %v6956
        %6958 = vmatmul.f32.gmra.mxu0 %v6550
        %v6959 = vpop.f32.mrf.mxu0
        %v6960 = vadd.f32 %v6520, %v6959
        %6961 = vmatmul.f32.gmra.mxu0 %v6553
        %v6962 = vpop.f32.mrf.mxu0
        %v6963 = vadd.f32 %v6525, %v6962
        %6964 = vmatmul.f32.gmra.mxu0 %v6556
        %v6965 = vpop.f32.mrf.mxu0
        %v6966 = vadd.f32 %v6530, %v6965
        %6967 = vmatmul.f32.gmra.mxu0 %v6559
        %v6968 = vpop.f32.mrf.mxu0
        %v6969 = vadd.f32 %v6535, %v6968
        %6970 = vdwg.mxu0
        %6971 = vmatpush.msra.mxu0 0.0
        %6972 = vmatpush.msra.mxu0 0.0
        %6973 = vmatpush.msra.mxu0 0.0
        %6974 = vmatpush.msra.mxu0 0.0
        %6975 = vmatpush.msra.mxu0 0.0
        %6976 = vmatpush.msra.mxu0 0.0
        %6977 = vmatpush.msra.mxu0 0.0
        %6978 = vmatpush.msra.mxu0 0.0
        %6979 = vmatpush.msra.mxu0 %v6473
        %6980 = vmatpush.msra.mxu0 %v6457
        %6981 = vmatpush.msra.mxu0 %v6441
        %6982 = vmatpush.msra.mxu0 %v6425
        %6983 = vmatpush.msra.mxu0 %v6409
        %6984 = vmatpush.msra.mxu0 %v6393
        %6985 = vmatpush.msra.mxu0 %v6377
        %6986 = vmatpush.msra.mxu0 %v6361
        %6987 = vmatmul.f32.gmra.mxu0 %v6538
        %v6988 = vpop.f32.mrf.mxu0
        %v6989 = vadd.f32 %v6500, %v6988
        %6990 = vmatmul.f32.gmra.mxu0 %v6541
        %v6991 = vpop.f32.mrf.mxu0
        %v6992 = vadd.f32 %v6505, %v6991
        %6993 = vmatmul.f32.gmra.mxu0 %v6544
        %v6994 = vpop.f32.mrf.mxu0
        %v6995 = vadd.f32 %v6510, %v6994
        %6996 = vmatmul.f32.gmra.mxu0 %v6547
        %v6997 = vpop.f32.mrf.mxu0
        %v6998 = vadd.f32 %v6515, %v6997
        %6999 = vmatmul.f32.gmra.mxu0 %v6550
        %v7000 = vpop.f32.mrf.mxu0
        %v7001 = vadd.f32 %v6520, %v7000
        %7002 = vmatmul.f32.gmra.mxu0 %v6553
        %v7003 = vpop.f32.mrf.mxu0
        %v7004 = vadd.f32 %v6525, %v7003
        %7005 = vmatmul.f32.gmra.mxu0 %v6556
        %v7006 = vpop.f32.mrf.mxu0
        %v7007 = vadd.f32 %v6530, %v7006
        %7008 = vmatmul.f32.gmra.mxu0 %v6559
        %v7009 = vpop.f32.mrf.mxu0
        %v7010 = vadd.f32 %v6535, %v7009
        %7011 = vdwg.mxu0
        %7012 = vmatpush.msra.mxu0 0.0
        %7013 = vmatpush.msra.mxu0 0.0
        %7014 = vmatpush.msra.mxu0 0.0
        %7015 = vmatpush.msra.mxu0 0.0
        %7016 = vmatpush.msra.mxu0 0.0
        %7017 = vmatpush.msra.mxu0 0.0
        %7018 = vmatpush.msra.mxu0 0.0
        %7019 = vmatpush.msra.mxu0 0.0
        %7020 = vmatpush.msra.mxu0 %v6474
        %7021 = vmatpush.msra.mxu0 %v6458
        %7022 = vmatpush.msra.mxu0 %v6442
        %7023 = vmatpush.msra.mxu0 %v6426
        %7024 = vmatpush.msra.mxu0 %v6410
        %7025 = vmatpush.msra.mxu0 %v6394
        %7026 = vmatpush.msra.mxu0 %v6378
        %7027 = vmatpush.msra.mxu0 %v6362
        %7028 = vmatmul.f32.gmra.mxu0 %v6538
        %v7029 = vpop.f32.mrf.mxu0
        %v7030 = vadd.f32 %v6500, %v7029
        %7031 = vmatmul.f32.gmra.mxu0 %v6541
        %v7032 = vpop.f32.mrf.mxu0
        %v7033 = vadd.f32 %v6505, %v7032
        %7034 = vmatmul.f32.gmra.mxu0 %v6544
        %v7035 = vpop.f32.mrf.mxu0
        %v7036 = vadd.f32 %v6510, %v7035
        %7037 = vmatmul.f32.gmra.mxu0 %v6547
        %v7038 = vpop.f32.mrf.mxu0
        %v7039 = vadd.f32 %v6515, %v7038
        %7040 = vmatmul.f32.gmra.mxu0 %v6550
        %v7041 = vpop.f32.mrf.mxu0
        %v7042 = vadd.f32 %v6520, %v7041
        %7043 = vmatmul.f32.gmra.mxu0 %v6553
        %v7044 = vpop.f32.mrf.mxu0
        %v7045 = vadd.f32 %v6525, %v7044
        %7046 = vmatmul.f32.gmra.mxu0 %v6556
        %v7047 = vpop.f32.mrf.mxu0
        %v7048 = vadd.f32 %v6530, %v7047
        %7049 = vmatmul.f32.gmra.mxu0 %v6559
        %v7050 = vpop.f32.mrf.mxu0
        %v7051 = vadd.f32 %v6535, %v7050
        %7052 = vdwg.mxu0
        %7053 = vmatpush.msra.mxu0 0.0
        %7054 = vmatpush.msra.mxu0 0.0
        %7055 = vmatpush.msra.mxu0 0.0
        %7056 = vmatpush.msra.mxu0 0.0
        %7057 = vmatpush.msra.mxu0 0.0
        %7058 = vmatpush.msra.mxu0 0.0
        %7059 = vmatpush.msra.mxu0 0.0
        %7060 = vmatpush.msra.mxu0 0.0
        %7061 = vmatpush.msra.mxu0 %v6475
        %7062 = vmatpush.msra.mxu0 %v6459
        %7063 = vmatpush.msra.mxu0 %v6443
        %7064 = vmatpush.msra.mxu0 %v6427
        %7065 = vmatpush.msra.mxu0 %v6411
        %7066 = vmatpush.msra.mxu0 %v6395
        %7067 = vmatpush.msra.mxu0 %v6379
        %7068 = vmatpush.msra.mxu0 %v6363
        %7069 = vmatmul.f32.gmra.mxu0 %v6538
        %v7070 = vpop.f32.mrf.mxu0
        %v7071 = vadd.f32 %v6500, %v7070
        %7072 = vmatmul.f32.gmra.mxu0 %v6541
        %v7073 = vpop.f32.mrf.mxu0
        %v7074 = vadd.f32 %v6505, %v7073
        %7075 = vmatmul.f32.gmra.mxu0 %v6544
        %v7076 = vpop.f32.mrf.mxu0
        %v7077 = vadd.f32 %v6510, %v7076
        %7078 = vmatmul.f32.gmra.mxu0 %v6547
        %v7079 = vpop.f32.mrf.mxu0
        %v7080 = vadd.f32 %v6515, %v7079
        %7081 = vmatmul.f32.gmra.mxu0 %v6550
        %v7082 = vpop.f32.mrf.mxu0
        %v7083 = vadd.f32 %v6520, %v7082
        %7084 = vmatmul.f32.gmra.mxu0 %v6553
        %v7085 = vpop.f32.mrf.mxu0
        %v7086 = vadd.f32 %v6525, %v7085
        %7087 = vmatmul.f32.gmra.mxu0 %v6556
        %v7088 = vpop.f32.mrf.mxu0
        %v7089 = vadd.f32 %v6530, %v7088
        %7090 = vmatmul.f32.gmra.mxu0 %v6559
        %v7091 = vpop.f32.mrf.mxu0
        %v7092 = vadd.f32 %v6535, %v7091
        %7093 = vdwg.mxu0
        %7094 = vmatpush.msra.mxu0 0.0
        %7095 = vmatpush.msra.mxu0 0.0
        %7096 = vmatpush.msra.mxu0 0.0
        %7097 = vmatpush.msra.mxu0 0.0
        %7098 = vmatpush.msra.mxu0 0.0
        %7099 = vmatpush.msra.mxu0 0.0
        %7100 = vmatpush.msra.mxu0 0.0
        %7101 = vmatpush.msra.mxu0 0.0
        %7102 = vmatpush.msra.mxu0 %v6476
        %7103 = vmatpush.msra.mxu0 %v6460
        %7104 = vmatpush.msra.mxu0 %v6444
        %7105 = vmatpush.msra.mxu0 %v6428
        %7106 = vmatpush.msra.mxu0 %v6412
        %7107 = vmatpush.msra.mxu0 %v6396
        %7108 = vmatpush.msra.mxu0 %v6380
        %7109 = vmatpush.msra.mxu0 %v6364
        %7110 = vmatmul.f32.gmra.mxu0 %v6538
        %v7111 = vpop.f32.mrf.mxu0
        %v7112 = vadd.f32 %v6500, %v7111
        %7113 = vmatmul.f32.gmra.mxu0 %v6541
        %v7114 = vpop.f32.mrf.mxu0
        %v7115 = vadd.f32 %v6505, %v7114
        %7116 = vmatmul.f32.gmra.mxu0 %v6544
        %v7117 = vpop.f32.mrf.mxu0
        %v7118 = vadd.f32 %v6510, %v7117
        %7119 = vmatmul.f32.gmra.mxu0 %v6547
        %v7120 = vpop.f32.mrf.mxu0
        %v7121 = vadd.f32 %v6515, %v7120
        %7122 = vmatmul.f32.gmra.mxu0 %v6550
        %v7123 = vpop.f32.mrf.mxu0
        %v7124 = vadd.f32 %v6520, %v7123
        %7125 = vmatmul.f32.gmra.mxu0 %v6553
        %v7126 = vpop.f32.mrf.mxu0
        %v7127 = vadd.f32 %v6525, %v7126
        %7128 = vmatmul.f32.gmra.mxu0 %v6556
        %v7129 = vpop.f32.mrf.mxu0
        %v7130 = vadd.f32 %v6530, %v7129
        %7131 = vmatmul.f32.gmra.mxu0 %v6559
        %v7132 = vpop.f32.mrf.mxu0
        %v7133 = vadd.f32 %v6535, %v7132
        %7134 = vdwg.mxu0
        %7135 = vmatpush.msra.mxu0 0.0
        %7136 = vmatpush.msra.mxu0 0.0
        %7137 = vmatpush.msra.mxu0 0.0
        %7138 = vmatpush.msra.mxu0 0.0
        %7139 = vmatpush.msra.mxu0 0.0
        %7140 = vmatpush.msra.mxu0 0.0
        %7141 = vmatpush.msra.mxu0 0.0
        %7142 = vmatpush.msra.mxu0 0.0
        %7143 = vmatpush.msra.mxu0 %v6477
        %7144 = vmatpush.msra.mxu0 %v6461
        %7145 = vmatpush.msra.mxu0 %v6445
        %7146 = vmatpush.msra.mxu0 %v6429
        %7147 = vmatpush.msra.mxu0 %v6413
        %7148 = vmatpush.msra.mxu0 %v6397
        %7149 = vmatpush.msra.mxu0 %v6381
        %7150 = vmatpush.msra.mxu0 %v6365
        %7151 = vmatmul.f32.gmra.mxu0 %v6538
        %v7152 = vpop.f32.mrf.mxu0
        %v7153 = vadd.f32 %v6500, %v7152
        %7154 = vmatmul.f32.gmra.mxu0 %v6541
        %v7155 = vpop.f32.mrf.mxu0
        %v7156 = vadd.f32 %v6505, %v7155
        %7157 = vmatmul.f32.gmra.mxu0 %v6544
        %v7158 = vpop.f32.mrf.mxu0
        %v7159 = vadd.f32 %v6510, %v7158
        %7160 = vmatmul.f32.gmra.mxu0 %v6547
        %v7161 = vpop.f32.mrf.mxu0
        %v7162 = vadd.f32 %v6515, %v7161
        %7163 = vmatmul.f32.gmra.mxu0 %v6550
        %v7164 = vpop.f32.mrf.mxu0
        %v7165 = vadd.f32 %v6520, %v7164
        %7166 = vmatmul.f32.gmra.mxu0 %v6553
        %v7167 = vpop.f32.mrf.mxu0
        %v7168 = vadd.f32 %v6525, %v7167
        %7169 = vmatmul.f32.gmra.mxu0 %v6556
        %v7170 = vpop.f32.mrf.mxu0
        %v7171 = vadd.f32 %v6530, %v7170
        %7172 = vmatmul.f32.gmra.mxu0 %v6559
        %v7173 = vpop.f32.mrf.mxu0
        %v7174 = vadd.f32 %v6535, %v7173
        %7175 = vdwg.mxu0
        %7176 = vmatpush.msra.mxu0 0.0
        %7177 = vmatpush.msra.mxu0 0.0
        %7178 = vmatpush.msra.mxu0 0.0
        %7179 = vmatpush.msra.mxu0 0.0
        %7180 = vmatpush.msra.mxu0 0.0
        %7181 = vmatpush.msra.mxu0 0.0
        %7182 = vmatpush.msra.mxu0 0.0
        %7183 = vmatpush.msra.mxu0 0.0
        %7184 = vmatpush.msra.mxu0 %v6478
        %7185 = vmatpush.msra.mxu0 %v6462
        %7186 = vmatpush.msra.mxu0 %v6446
        %7187 = vmatpush.msra.mxu0 %v6430
        %7188 = vmatpush.msra.mxu0 %v6414
        %7189 = vmatpush.msra.mxu0 %v6398
        %7190 = vmatpush.msra.mxu0 %v6382
        %7191 = vmatpush.msra.mxu0 %v6366
        %7192 = vmatmul.f32.gmra.mxu0 %v6538
        %v7193 = vpop.f32.mrf.mxu0
        %v7194 = vadd.f32 %v6500, %v7193
        %7195 = vmatmul.f32.gmra.mxu0 %v6541
        %v7196 = vpop.f32.mrf.mxu0
        %v7197 = vadd.f32 %v6505, %v7196
        %7198 = vmatmul.f32.gmra.mxu0 %v6544
        %v7199 = vpop.f32.mrf.mxu0
        %v7200 = vadd.f32 %v6510, %v7199
        %7201 = vmatmul.f32.gmra.mxu0 %v6547
        %v7202 = vpop.f32.mrf.mxu0
        %v7203 = vadd.f32 %v6515, %v7202
        %7204 = vmatmul.f32.gmra.mxu0 %v6550
        %v7205 = vpop.f32.mrf.mxu0
        %v7206 = vadd.f32 %v6520, %v7205
        %7207 = vmatmul.f32.gmra.mxu0 %v6553
        %v7208 = vpop.f32.mrf.mxu0
        %v7209 = vadd.f32 %v6525, %v7208
        %7210 = vmatmul.f32.gmra.mxu0 %v6556
        %v7211 = vpop.f32.mrf.mxu0
        %v7212 = vadd.f32 %v6530, %v7211
        %7213 = vmatmul.f32.gmra.mxu0 %v6559
        %v7214 = vpop.f32.mrf.mxu0
        %v7215 = vadd.f32 %v6535, %v7214
        %7216 = vdwg.mxu0
        %vm7217 = vcmp.gt.f32.partialorder %v6579, 0.0
        %vm7218 = vcmp.gt.f32.partialorder %v6620, 0.0
        %vm7219 = vcmp.gt.f32.partialorder %v6661, 0.0
        %vm7220 = vcmp.gt.f32.partialorder %v6702, 0.0
        %vm7221 = vcmp.gt.f32.partialorder %v6743, 0.0
        %vm7222 = vcmp.gt.f32.partialorder %v6784, 0.0
        %vm7223 = vcmp.gt.f32.partialorder %v6825, 0.0
        %vm7224 = vcmp.gt.f32.partialorder %v6866, 0.0
        %vm7225 = vcmp.gt.f32.partialorder %v6907, 0.0
        %vm7226 = vcmp.gt.f32.partialorder %v6948, 0.0
        %vm7227 = vcmp.gt.f32.partialorder %v6989, 0.0
        %vm7228 = vcmp.gt.f32.partialorder %v7030, 0.0
        %vm7229 = vcmp.gt.f32.partialorder %v7071, 0.0
        %vm7230 = vcmp.gt.f32.partialorder %v7112, 0.0
        %vm7231 = vcmp.gt.f32.partialorder %v7153, 0.0
        %vm7232 = vcmp.gt.f32.partialorder %v7194, 0.0
        %vm7233 = vcmp.gt.f32.partialorder %v6582, 0.0
        %vm7234 = vcmp.gt.f32.partialorder %v6623, 0.0
        %vm7235 = vcmp.gt.f32.partialorder %v6664, 0.0
        %vm7236 = vcmp.gt.f32.partialorder %v6705, 0.0
        %vm7237 = vcmp.gt.f32.partialorder %v6746, 0.0
        %vm7238 = vcmp.gt.f32.partialorder %v6787, 0.0
        %vm7239 = vcmp.gt.f32.partialorder %v6828, 0.0
        %vm7240 = vcmp.gt.f32.partialorder %v6869, 0.0
        %vm7241 = vcmp.gt.f32.partialorder %v6910, 0.0
        %vm7242 = vcmp.gt.f32.partialorder %v6951, 0.0
        %vm7243 = vcmp.gt.f32.partialorder %v6992, 0.0
        %vm7244 = vcmp.gt.f32.partialorder %v7033, 0.0
        %vm7245 = vcmp.gt.f32.partialorder %v7074, 0.0
        %vm7246 = vcmp.gt.f32.partialorder %v7115, 0.0
        %vm7247 = vcmp.gt.f32.partialorder %v7156, 0.0
        %vm7248 = vcmp.gt.f32.partialorder %v7197, 0.0
        %vm7249 = vcmp.gt.f32.partialorder %v6585, 0.0
        %vm7250 = vcmp.gt.f32.partialorder %v6626, 0.0
        %vm7251 = vcmp.gt.f32.partialorder %v6667, 0.0
        %vm7252 = vcmp.gt.f32.partialorder %v6708, 0.0
        %vm7253 = vcmp.gt.f32.partialorder %v6749, 0.0
        %vm7254 = vcmp.gt.f32.partialorder %v6790, 0.0
        %vm7255 = vcmp.gt.f32.partialorder %v6831, 0.0
        %vm7256 = vcmp.gt.f32.partialorder %v6872, 0.0
        %vm7257 = vcmp.gt.f32.partialorder %v6913, 0.0
        %vm7258 = vcmp.gt.f32.partialorder %v6954, 0.0
        %vm7259 = vcmp.gt.f32.partialorder %v6995, 0.0
        %vm7260 = vcmp.gt.f32.partialorder %v7036, 0.0
        %vm7261 = vcmp.gt.f32.partialorder %v7077, 0.0
        %vm7262 = vcmp.gt.f32.partialorder %v7118, 0.0
        %vm7263 = vcmp.gt.f32.partialorder %v7159, 0.0
        %vm7264 = vcmp.gt.f32.partialorder %v7200, 0.0
        %vm7265 = vcmp.gt.f32.partialorder %v6588, 0.0
        %vm7266 = vcmp.gt.f32.partialorder %v6629, 0.0
        %vm7267 = vcmp.gt.f32.partialorder %v6670, 0.0
        %vm7268 = vcmp.gt.f32.partialorder %v6711, 0.0
        %vm7269 = vcmp.gt.f32.partialorder %v6752, 0.0
        %vm7270 = vcmp.gt.f32.partialorder %v6793, 0.0
        %vm7271 = vcmp.gt.f32.partialorder %v6834, 0.0
        %vm7272 = vcmp.gt.f32.partialorder %v6875, 0.0
        %vm7273 = vcmp.gt.f32.partialorder %v6916, 0.0
        %vm7274 = vcmp.gt.f32.partialorder %v6957, 0.0
        %vm7275 = vcmp.gt.f32.partialorder %v6998, 0.0
        %vm7276 = vcmp.gt.f32.partialorder %v7039, 0.0
        %vm7277 = vcmp.gt.f32.partialorder %v7080, 0.0
        %vm7278 = vcmp.gt.f32.partialorder %v7121, 0.0
        %vm7279 = vcmp.gt.f32.partialorder %v7162, 0.0
        %vm7280 = vcmp.gt.f32.partialorder %v7203, 0.0
        %vm7281 = vcmp.gt.f32.partialorder %v6591, 0.0
        %vm7282 = vcmp.gt.f32.partialorder %v6632, 0.0
        %vm7283 = vcmp.gt.f32.partialorder %v6673, 0.0
        %vm7284 = vcmp.gt.f32.partialorder %v6714, 0.0
        %vm7285 = vcmp.gt.f32.partialorder %v6755, 0.0
        %vm7286 = vcmp.gt.f32.partialorder %v6796, 0.0
        %vm7287 = vcmp.gt.f32.partialorder %v6837, 0.0
        %vm7288 = vcmp.gt.f32.partialorder %v6878, 0.0
        %vm7289 = vcmp.gt.f32.partialorder %v6919, 0.0
        %vm7290 = vcmp.gt.f32.partialorder %v6960, 0.0
        %vm7291 = vcmp.gt.f32.partialorder %v7001, 0.0
        %vm7292 = vcmp.gt.f32.partialorder %v7042, 0.0
        %vm7293 = vcmp.gt.f32.partialorder %v7083, 0.0
        %vm7294 = vcmp.gt.f32.partialorder %v7124, 0.0
        %vm7295 = vcmp.gt.f32.partialorder %v7165, 0.0
        %vm7296 = vcmp.gt.f32.partialorder %v7206, 0.0
        %vm7297 = vcmp.gt.f32.partialorder %v6594, 0.0
        %vm7298 = vcmp.gt.f32.partialorder %v6635, 0.0
        %vm7299 = vcmp.gt.f32.partialorder %v6676, 0.0
        %vm7300 = vcmp.gt.f32.partialorder %v6717, 0.0
        %vm7301 = vcmp.gt.f32.partialorder %v6758, 0.0
        %vm7302 = vcmp.gt.f32.partialorder %v6799, 0.0
        %vm7303 = vcmp.gt.f32.partialorder %v6840, 0.0
        %vm7304 = vcmp.gt.f32.partialorder %v6881, 0.0
        %vm7305 = vcmp.gt.f32.partialorder %v6922, 0.0
        %vm7306 = vcmp.gt.f32.partialorder %v6963, 0.0
        %vm7307 = vcmp.gt.f32.partialorder %v7004, 0.0
        %vm7308 = vcmp.gt.f32.partialorder %v7045, 0.0
        %vm7309 = vcmp.gt.f32.partialorder %v7086, 0.0
        %vm7310 = vcmp.gt.f32.partialorder %v7127, 0.0
        %vm7311 = vcmp.gt.f32.partialorder %v7168, 0.0
        %vm7312 = vcmp.gt.f32.partialorder %v7209, 0.0
        %vm7313 = vcmp.gt.f32.partialorder %v6597, 0.0
        %vm7314 = vcmp.gt.f32.partialorder %v6638, 0.0
        %vm7315 = vcmp.gt.f32.partialorder %v6679, 0.0
        %vm7316 = vcmp.gt.f32.partialorder %v6720, 0.0
        %vm7317 = vcmp.gt.f32.partialorder %v6761, 0.0
        %vm7318 = vcmp.gt.f32.partialorder %v6802, 0.0
        %vm7319 = vcmp.gt.f32.partialorder %v6843, 0.0
        %vm7320 = vcmp.gt.f32.partialorder %v6884, 0.0
        %vm7321 = vcmp.gt.f32.partialorder %v6925, 0.0
        %vm7322 = vcmp.gt.f32.partialorder %v6966, 0.0
        %vm7323 = vcmp.gt.f32.partialorder %v7007, 0.0
        %vm7324 = vcmp.gt.f32.partialorder %v7048, 0.0
        %vm7325 = vcmp.gt.f32.partialorder %v7089, 0.0
        %vm7326 = vcmp.gt.f32.partialorder %v7130, 0.0
        %vm7327 = vcmp.gt.f32.partialorder %v7171, 0.0
        %vm7328 = vcmp.gt.f32.partialorder %v7212, 0.0
        %vm7329 = vcmp.gt.f32.partialorder %v6600, 0.0
        %vm7330 = vcmp.gt.f32.partialorder %v6641, 0.0
        %vm7331 = vcmp.gt.f32.partialorder %v6682, 0.0
        %vm7332 = vcmp.gt.f32.partialorder %v6723, 0.0
        %vm7333 = vcmp.gt.f32.partialorder %v6764, 0.0
        %vm7334 = vcmp.gt.f32.partialorder %v6805, 0.0
        %vm7335 = vcmp.gt.f32.partialorder %v6846, 0.0
        %vm7336 = vcmp.gt.f32.partialorder %v6887, 0.0
        %vm7337 = vcmp.gt.f32.partialorder %v6928, 0.0
        %vm7338 = vcmp.gt.f32.partialorder %v6969, 0.0
        %vm7339 = vcmp.gt.f32.partialorder %v7010, 0.0
        %vm7340 = vcmp.gt.f32.partialorder %v7051, 0.0
        %vm7341 = vcmp.gt.f32.partialorder %v7092, 0.0
        %vm7342 = vcmp.gt.f32.partialorder %v7133, 0.0
        %vm7343 = vcmp.gt.f32.partialorder %v7174, 0.0
        %vm7344 = vcmp.gt.f32.partialorder %v7215, 0.0
        %v7345 = vmin.f32 %v6579, 0.0
        %v7346 = vmin.f32 %v6620, 0.0
        %v7347 = vmin.f32 %v6661, 0.0
        %v7348 = vmin.f32 %v6702, 0.0
        %v7349 = vmin.f32 %v6743, 0.0
        %v7350 = vmin.f32 %v6784, 0.0
        %v7351 = vmin.f32 %v6825, 0.0
        %v7352 = vmin.f32 %v6866, 0.0
        %v7353 = vmin.f32 %v6907, 0.0
        %v7354 = vmin.f32 %v6948, 0.0
        %v7355 = vmin.f32 %v6989, 0.0
        %v7356 = vmin.f32 %v7030, 0.0
        %v7357 = vmin.f32 %v7071, 0.0
        %v7358 = vmin.f32 %v7112, 0.0
        %v7359 = vmin.f32 %v7153, 0.0
        %v7360 = vmin.f32 %v7194, 0.0
        %v7361 = vmin.f32 %v6582, 0.0
        %v7362 = vmin.f32 %v6623, 0.0
        %v7363 = vmin.f32 %v6664, 0.0
        %v7364 = vmin.f32 %v6705, 0.0
        %v7365 = vmin.f32 %v6746, 0.0
        %v7366 = vmin.f32 %v6787, 0.0
        %v7367 = vmin.f32 %v6828, 0.0
        %v7368 = vmin.f32 %v6869, 0.0
        %v7369 = vmin.f32 %v6910, 0.0
        %v7370 = vmin.f32 %v6951, 0.0
        %v7371 = vmin.f32 %v6992, 0.0
        %v7372 = vmin.f32 %v7033, 0.0
        %v7373 = vmin.f32 %v7074, 0.0
        %v7374 = vmin.f32 %v7115, 0.0
        %v7375 = vmin.f32 %v7156, 0.0
        %v7376 = vmin.f32 %v7197, 0.0
        %v7377 = vmin.f32 %v6585, 0.0
        %v7378 = vmin.f32 %v6626, 0.0
        %v7379 = vmin.f32 %v6667, 0.0
        %v7380 = vmin.f32 %v6708, 0.0
        %v7381 = vmin.f32 %v6749, 0.0
        %v7382 = vmin.f32 %v6790, 0.0
        %v7383 = vmin.f32 %v6831, 0.0
        %v7384 = vmin.f32 %v6872, 0.0
        %v7385 = vmin.f32 %v6913, 0.0
        %v7386 = vmin.f32 %v6954, 0.0
        %v7387 = vmin.f32 %v6995, 0.0
        %v7388 = vmin.f32 %v7036, 0.0
        %v7389 = vmin.f32 %v7077, 0.0
        %v7390 = vmin.f32 %v7118, 0.0
        %v7391 = vmin.f32 %v7159, 0.0
        %v7392 = vmin.f32 %v7200, 0.0
        %v7393 = vmin.f32 %v6588, 0.0
        %v7394 = vmin.f32 %v6629, 0.0
        %v7395 = vmin.f32 %v6670, 0.0
        %v7396 = vmin.f32 %v6711, 0.0
        %v7397 = vmin.f32 %v6752, 0.0
        %v7398 = vmin.f32 %v6793, 0.0
        %v7399 = vmin.f32 %v6834, 0.0
        %v7400 = vmin.f32 %v6875, 0.0
        %v7401 = vmin.f32 %v6916, 0.0
        %v7402 = vmin.f32 %v6957, 0.0
        %v7403 = vmin.f32 %v6998, 0.0
        %v7404 = vmin.f32 %v7039, 0.0
        %v7405 = vmin.f32 %v7080, 0.0
        %v7406 = vmin.f32 %v7121, 0.0
        %v7407 = vmin.f32 %v7162, 0.0
        %v7408 = vmin.f32 %v7203, 0.0
        %v7409 = vmin.f32 %v6591, 0.0
        %v7410 = vmin.f32 %v6632, 0.0
        %v7411 = vmin.f32 %v6673, 0.0
        %v7412 = vmin.f32 %v6714, 0.0
        %v7413 = vmin.f32 %v6755, 0.0
        %v7414 = vmin.f32 %v6796, 0.0
        %v7415 = vmin.f32 %v6837, 0.0
        %v7416 = vmin.f32 %v6878, 0.0
        %v7417 = vmin.f32 %v6919, 0.0
        %v7418 = vmin.f32 %v6960, 0.0
        %v7419 = vmin.f32 %v7001, 0.0
        %v7420 = vmin.f32 %v7042, 0.0
        %v7421 = vmin.f32 %v7083, 0.0
        %v7422 = vmin.f32 %v7124, 0.0
        %v7423 = vmin.f32 %v7165, 0.0
        %v7424 = vmin.f32 %v7206, 0.0
        %v7425 = vmin.f32 %v6594, 0.0
        %v7426 = vmin.f32 %v6635, 0.0
        %v7427 = vmin.f32 %v6676, 0.0
        %v7428 = vmin.f32 %v6717, 0.0
        %v7429 = vmin.f32 %v6758, 0.0
        %v7430 = vmin.f32 %v6799, 0.0
        %v7431 = vmin.f32 %v6840, 0.0
        %v7432 = vmin.f32 %v6881, 0.0
        %v7433 = vmin.f32 %v6922, 0.0
        %v7434 = vmin.f32 %v6963, 0.0
        %v7435 = vmin.f32 %v7004, 0.0
        %v7436 = vmin.f32 %v7045, 0.0
        %v7437 = vmin.f32 %v7086, 0.0
        %v7438 = vmin.f32 %v7127, 0.0
        %v7439 = vmin.f32 %v7168, 0.0
        %v7440 = vmin.f32 %v7209, 0.0
        %v7441 = vmin.f32 %v6597, 0.0
        %v7442 = vmin.f32 %v6638, 0.0
        %v7443 = vmin.f32 %v6679, 0.0
        %v7444 = vmin.f32 %v6720, 0.0
        %v7445 = vmin.f32 %v6761, 0.0
        %v7446 = vmin.f32 %v6802, 0.0
        %v7447 = vmin.f32 %v6843, 0.0
        %v7448 = vmin.f32 %v6884, 0.0
        %v7449 = vmin.f32 %v6925, 0.0
        %v7450 = vmin.f32 %v6966, 0.0
        %v7451 = vmin.f32 %v7007, 0.0
        %v7452 = vmin.f32 %v7048, 0.0
        %v7453 = vmin.f32 %v7089, 0.0
        %v7454 = vmin.f32 %v7130, 0.0
        %v7455 = vmin.f32 %v7171, 0.0
        %v7456 = vmin.f32 %v7212, 0.0
        %v7457 = vmin.f32 %v6600, 0.0
        %v7458 = vmin.f32 %v6641, 0.0
        %v7459 = vmin.f32 %v6682, 0.0
        %v7460 = vmin.f32 %v6723, 0.0
        %v7461 = vmin.f32 %v6764, 0.0
        %v7462 = vmin.f32 %v6805, 0.0
        %v7463 = vmin.f32 %v6846, 0.0
        %v7464 = vmin.f32 %v6887, 0.0
        %v7465 = vmin.f32 %v6928, 0.0
        %v7466 = vmin.f32 %v6969, 0.0
        %v7467 = vmin.f32 %v7010, 0.0
        %v7468 = vmin.f32 %v7051, 0.0
        %v7469 = vmin.f32 %v7092, 0.0
        %v7470 = vmin.f32 %v7133, 0.0
        %v7471 = vmin.f32 %v7174, 0.0
        %v7472 = vmin.f32 %v7215, 0.0
        %v7473 = vmul.f32 %v7345, 1.442695
        %v7474 = vpow.pop %v7473
        %v7475 = vmul.f32 %v7346, 1.442695
        %v7476 = vpow.pop %v7475
        %v7477 = vmul.f32 %v7347, 1.442695
        %v7478 = vpow.pop %v7477
        %v7479 = vmul.f32 %v7348, 1.442695
        %v7480 = vpow.pop %v7479
        %v7481 = vmul.f32 %v7349, 1.442695
        %v7482 = vpow.pop %v7481
        %v7483 = vmul.f32 %v7350, 1.442695
        %v7484 = vpow.pop %v7483
        %v7485 = vmul.f32 %v7351, 1.442695
        %v7486 = vpow.pop %v7485
        %v7487 = vmul.f32 %v7352, 1.442695
        %v7488 = vpow.pop %v7487
        %v7489 = vmul.f32 %v7353, 1.442695
        %v7490 = vpow.pop %v7489
        %v7491 = vmul.f32 %v7354, 1.442695
        %v7492 = vpow.pop %v7491
        %v7493 = vmul.f32 %v7355, 1.442695
        %v7494 = vpow.pop %v7493
        %v7495 = vmul.f32 %v7356, 1.442695
        %v7496 = vpow.pop %v7495
        %v7497 = vmul.f32 %v7357, 1.442695
        %v7498 = vpow.pop %v7497
        %v7499 = vmul.f32 %v7358, 1.442695
        %v7500 = vpow.pop %v7499
        %v7501 = vmul.f32 %v7359, 1.442695
        %v7502 = vpow.pop %v7501
        %v7503 = vmul.f32 %v7360, 1.442695
        %v7504 = vpow.pop %v7503
        %v7505 = vmul.f32 %v7361, 1.442695
        %v7506 = vpow.pop %v7505
        %v7507 = vmul.f32 %v7362, 1.442695
        %v7508 = vpow.pop %v7507
        %v7509 = vmul.f32 %v7363, 1.442695
        %v7510 = vpow.pop %v7509
        %v7511 = vmul.f32 %v7364, 1.442695
        %v7512 = vpow.pop %v7511
        %v7513 = vmul.f32 %v7365, 1.442695
        %v7514 = vpow.pop %v7513
        %v7515 = vmul.f32 %v7366, 1.442695
        %v7516 = vpow.pop %v7515
        %v7517 = vmul.f32 %v7367, 1.442695
        %v7518 = vpow.pop %v7517
        %v7519 = vmul.f32 %v7368, 1.442695
        %v7520 = vpow.pop %v7519
        %v7521 = vmul.f32 %v7369, 1.442695
        %v7522 = vpow.pop %v7521
        %v7523 = vmul.f32 %v7370, 1.442695
        %v7524 = vpow.pop %v7523
        %v7525 = vmul.f32 %v7371, 1.442695
        %v7526 = vpow.pop %v7525
        %v7527 = vmul.f32 %v7372, 1.442695
        %v7528 = vpow.pop %v7527
        %v7529 = vmul.f32 %v7373, 1.442695
        %v7530 = vpow.pop %v7529
        %v7531 = vmul.f32 %v7374, 1.442695
        %v7532 = vpow.pop %v7531
        %v7533 = vmul.f32 %v7375, 1.442695
        %v7534 = vpow.pop %v7533
        %v7535 = vmul.f32 %v7376, 1.442695
        %v7536 = vpow.pop %v7535
        %v7537 = vmul.f32 %v7377, 1.442695
        %v7538 = vpow.pop %v7537
        %v7539 = vmul.f32 %v7378, 1.442695
        %v7540 = vpow.pop %v7539
        %v7541 = vmul.f32 %v7379, 1.442695
        %v7542 = vpow.pop %v7541
        %v7543 = vmul.f32 %v7380, 1.442695
        %v7544 = vpow.pop %v7543
        %v7545 = vmul.f32 %v7381, 1.442695
        %v7546 = vpow.pop %v7545
        %v7547 = vmul.f32 %v7382, 1.442695
        %v7548 = vpow.pop %v7547
        %v7549 = vmul.f32 %v7383, 1.442695
        %v7550 = vpow.pop %v7549
        %v7551 = vmul.f32 %v7384, 1.442695
        %v7552 = vpow.pop %v7551
        %v7553 = vmul.f32 %v7385, 1.442695
        %v7554 = vpow.pop %v7553
        %v7555 = vmul.f32 %v7386, 1.442695
        %v7556 = vpow.pop %v7555
        %v7557 = vmul.f32 %v7387, 1.442695
        %v7558 = vpow.pop %v7557
        %v7559 = vmul.f32 %v7388, 1.442695
        %v7560 = vpow.pop %v7559
        %v7561 = vmul.f32 %v7389, 1.442695
        %v7562 = vpow.pop %v7561
        %v7563 = vmul.f32 %v7390, 1.442695
        %v7564 = vpow.pop %v7563
        %v7565 = vmul.f32 %v7391, 1.442695
        %v7566 = vpow.pop %v7565
        %v7567 = vmul.f32 %v7392, 1.442695
        %v7568 = vpow.pop %v7567
        %v7569 = vmul.f32 %v7393, 1.442695
        %v7570 = vpow.pop %v7569
        %v7571 = vmul.f32 %v7394, 1.442695
        %v7572 = vpow.pop %v7571
        %v7573 = vmul.f32 %v7395, 1.442695
        %v7574 = vpow.pop %v7573
        %v7575 = vmul.f32 %v7396, 1.442695
        %v7576 = vpow.pop %v7575
        %v7577 = vmul.f32 %v7397, 1.442695
        %v7578 = vpow.pop %v7577
        %v7579 = vmul.f32 %v7398, 1.442695
        %v7580 = vpow.pop %v7579
        %v7581 = vmul.f32 %v7399, 1.442695
        %v7582 = vpow.pop %v7581
        %v7583 = vmul.f32 %v7400, 1.442695
        %v7584 = vpow.pop %v7583
        %v7585 = vmul.f32 %v7401, 1.442695
        %v7586 = vpow.pop %v7585
        %v7587 = vmul.f32 %v7402, 1.442695
        %v7588 = vpow.pop %v7587
        %v7589 = vmul.f32 %v7403, 1.442695
        %v7590 = vpow.pop %v7589
        %v7591 = vmul.f32 %v7404, 1.442695
        %v7592 = vpow.pop %v7591
        %v7593 = vmul.f32 %v7405, 1.442695
        %v7594 = vpow.pop %v7593
        %v7595 = vmul.f32 %v7406, 1.442695
        %v7596 = vpow.pop %v7595
        %v7597 = vmul.f32 %v7407, 1.442695
        %v7598 = vpow.pop %v7597
        %v7599 = vmul.f32 %v7408, 1.442695
        %v7600 = vpow.pop %v7599
        %v7601 = vmul.f32 %v7409, 1.442695
        %v7602 = vpow.pop %v7601
        %v7603 = vmul.f32 %v7410, 1.442695
        %v7604 = vpow.pop %v7603
        %v7605 = vmul.f32 %v7411, 1.442695
        %v7606 = vpow.pop %v7605
        %v7607 = vmul.f32 %v7412, 1.442695
        %v7608 = vpow.pop %v7607
        %v7609 = vmul.f32 %v7413, 1.442695
        %v7610 = vpow.pop %v7609
        %v7611 = vmul.f32 %v7414, 1.442695
        %v7612 = vpow.pop %v7611
        %v7613 = vmul.f32 %v7415, 1.442695
        %v7614 = vpow.pop %v7613
        %v7615 = vmul.f32 %v7416, 1.442695
        %v7616 = vpow.pop %v7615
        %v7617 = vmul.f32 %v7417, 1.442695
        %v7618 = vpow.pop %v7617
        %v7619 = vmul.f32 %v7418, 1.442695
        %v7620 = vpow.pop %v7619
        %v7621 = vmul.f32 %v7419, 1.442695
        %v7622 = vpow.pop %v7621
        %v7623 = vmul.f32 %v7420, 1.442695
        %v7624 = vpow.pop %v7623
        %v7625 = vmul.f32 %v7421, 1.442695
        %v7626 = vpow.pop %v7625
        %v7627 = vmul.f32 %v7422, 1.442695
        %v7628 = vpow.pop %v7627
        %v7629 = vmul.f32 %v7423, 1.442695
        %v7630 = vpow.pop %v7629
        %v7631 = vmul.f32 %v7424, 1.442695
        %v7632 = vpow.pop %v7631
        %v7633 = vmul.f32 %v7425, 1.442695
        %v7634 = vpow.pop %v7633
        %v7635 = vmul.f32 %v7426, 1.442695
        %v7636 = vpow.pop %v7635
        %v7637 = vmul.f32 %v7427, 1.442695
        %v7638 = vpow.pop %v7637
        %v7639 = vmul.f32 %v7428, 1.442695
        %v7640 = vpow.pop %v7639
        %v7641 = vmul.f32 %v7429, 1.442695
        %v7642 = vpow.pop %v7641
        %v7643 = vmul.f32 %v7430, 1.442695
        %v7644 = vpow.pop %v7643
        %v7645 = vmul.f32 %v7431, 1.442695
        %v7646 = vpow.pop %v7645
        %v7647 = vmul.f32 %v7432, 1.442695
        %v7648 = vpow.pop %v7647
        %v7649 = vmul.f32 %v7433, 1.442695
        %v7650 = vpow.pop %v7649
        %v7651 = vmul.f32 %v7434, 1.442695
        %v7652 = vpow.pop %v7651
        %v7653 = vmul.f32 %v7435, 1.442695
        %v7654 = vpow.pop %v7653
        %v7655 = vmul.f32 %v7436, 1.442695
        %v7656 = vpow.pop %v7655
        %v7657 = vmul.f32 %v7437, 1.442695
        %v7658 = vpow.pop %v7657
        %v7659 = vmul.f32 %v7438, 1.442695
        %v7660 = vpow.pop %v7659
        %v7661 = vmul.f32 %v7439, 1.442695
        %v7662 = vpow.pop %v7661
        %v7663 = vmul.f32 %v7440, 1.442695
        %v7664 = vpow.pop %v7663
        %v7665 = vmul.f32 %v7441, 1.442695
        %v7666 = vpow.pop %v7665
        %v7667 = vmul.f32 %v7442, 1.442695
        %v7668 = vpow.pop %v7667
        %v7669 = vmul.f32 %v7443, 1.442695
        %v7670 = vpow.pop %v7669
        %v7671 = vmul.f32 %v7444, 1.442695
        %v7672 = vpow.pop %v7671
        %v7673 = vmul.f32 %v7445, 1.442695
        %v7674 = vpow.pop %v7673
        %v7675 = vmul.f32 %v7446, 1.442695
        %v7676 = vpow.pop %v7675
        %v7677 = vmul.f32 %v7447, 1.442695
        %v7678 = vpow.pop %v7677
        %v7679 = vmul.f32 %v7448, 1.442695
        %v7680 = vpow.pop %v7679
        %v7681 = vmul.f32 %v7449, 1.442695
        %v7682 = vpow.pop %v7681
        %v7683 = vmul.f32 %v7450, 1.442695
        %v7684 = vpow.pop %v7683
        %v7685 = vmul.f32 %v7451, 1.442695
        %v7686 = vpow.pop %v7685
        %v7687 = vmul.f32 %v7452, 1.442695
        %v7688 = vpow.pop %v7687
        %v7689 = vmul.f32 %v7453, 1.442695
        %v7690 = vpow.pop %v7689
        %v7691 = vmul.f32 %v7454, 1.442695
        %v7692 = vpow.pop %v7691
        %v7693 = vmul.f32 %v7455, 1.442695
        %v7694 = vpow.pop %v7693
        %v7695 = vmul.f32 %v7456, 1.442695
        %v7696 = vpow.pop %v7695
        %v7697 = vmul.f32 %v7457, 1.442695
        %v7698 = vpow.pop %v7697
        %v7699 = vmul.f32 %v7458, 1.442695
        %v7700 = vpow.pop %v7699
        %v7701 = vmul.f32 %v7459, 1.442695
        %v7702 = vpow.pop %v7701
        %v7703 = vmul.f32 %v7460, 1.442695
        %v7704 = vpow.pop %v7703
        %v7705 = vmul.f32 %v7461, 1.442695
        %v7706 = vpow.pop %v7705
        %v7707 = vmul.f32 %v7462, 1.442695
        %v7708 = vpow.pop %v7707
        %v7709 = vmul.f32 %v7463, 1.442695
        %v7710 = vpow.pop %v7709
        %v7711 = vmul.f32 %v7464, 1.442695
        %v7712 = vpow.pop %v7711
        %v7713 = vmul.f32 %v7465, 1.442695
        %v7714 = vpow.pop %v7713
        %v7715 = vmul.f32 %v7466, 1.442695
        %v7716 = vpow.pop %v7715
        %v7717 = vmul.f32 %v7467, 1.442695
        %v7718 = vpow.pop %v7717
        %v7719 = vmul.f32 %v7468, 1.442695
        %v7720 = vpow.pop %v7719
        %v7721 = vmul.f32 %v7469, 1.442695
        %v7722 = vpow.pop %v7721
        %v7723 = vmul.f32 %v7470, 1.442695
        %v7724 = vpow.pop %v7723
        %v7725 = vmul.f32 %v7471, 1.442695
        %v7726 = vpow.pop %v7725
        %v7727 = vmul.f32 %v7472, 1.442695
        %v7728 = vpow.pop %v7727
        %v7729 = vsub.f32 %v7474, 1.0
        %v7730 = vsub.f32 %v7476, 1.0
        %v7731 = vsub.f32 %v7478, 1.0
        %v7732 = vsub.f32 %v7480, 1.0
        %v7733 = vsub.f32 %v7482, 1.0
        %v7734 = vsub.f32 %v7484, 1.0
        %v7735 = vsub.f32 %v7486, 1.0
        %v7736 = vsub.f32 %v7488, 1.0
        %v7737 = vsub.f32 %v7490, 1.0
        %v7738 = vsub.f32 %v7492, 1.0
        %v7739 = vsub.f32 %v7494, 1.0
        %v7740 = vsub.f32 %v7496, 1.0
        %v7741 = vsub.f32 %v7498, 1.0
        %v7742 = vsub.f32 %v7500, 1.0
        %v7743 = vsub.f32 %v7502, 1.0
        %v7744 = vsub.f32 %v7504, 1.0
        %v7745 = vsub.f32 %v7506, 1.0
        %v7746 = vsub.f32 %v7508, 1.0
        %v7747 = vsub.f32 %v7510, 1.0
        %v7748 = vsub.f32 %v7512, 1.0
        %v7749 = vsub.f32 %v7514, 1.0
        %v7750 = vsub.f32 %v7516, 1.0
        %v7751 = vsub.f32 %v7518, 1.0
        %v7752 = vsub.f32 %v7520, 1.0
        %v7753 = vsub.f32 %v7522, 1.0
        %v7754 = vsub.f32 %v7524, 1.0
        %v7755 = vsub.f32 %v7526, 1.0
        %v7756 = vsub.f32 %v7528, 1.0
        %v7757 = vsub.f32 %v7530, 1.0
        %v7758 = vsub.f32 %v7532, 1.0
        %v7759 = vsub.f32 %v7534, 1.0
        %v7760 = vsub.f32 %v7536, 1.0
        %v7761 = vsub.f32 %v7538, 1.0
        %v7762 = vsub.f32 %v7540, 1.0
        %v7763 = vsub.f32 %v7542, 1.0
        %v7764 = vsub.f32 %v7544, 1.0
        %v7765 = vsub.f32 %v7546, 1.0
        %v7766 = vsub.f32 %v7548, 1.0
        %v7767 = vsub.f32 %v7550, 1.0
        %v7768 = vsub.f32 %v7552, 1.0
        %v7769 = vsub.f32 %v7554, 1.0
        %v7770 = vsub.f32 %v7556, 1.0
        %v7771 = vsub.f32 %v7558, 1.0
        %v7772 = vsub.f32 %v7560, 1.0
        %v7773 = vsub.f32 %v7562, 1.0
        %v7774 = vsub.f32 %v7564, 1.0
        %v7775 = vsub.f32 %v7566, 1.0
        %v7776 = vsub.f32 %v7568, 1.0
        %v7777 = vsub.f32 %v7570, 1.0
        %v7778 = vsub.f32 %v7572, 1.0
        %v7779 = vsub.f32 %v7574, 1.0
        %v7780 = vsub.f32 %v7576, 1.0
        %v7781 = vsub.f32 %v7578, 1.0
        %v7782 = vsub.f32 %v7580, 1.0
        %v7783 = vsub.f32 %v7582, 1.0
        %v7784 = vsub.f32 %v7584, 1.0
        %v7785 = vsub.f32 %v7586, 1.0
        %v7786 = vsub.f32 %v7588, 1.0
        %v7787 = vsub.f32 %v7590, 1.0
        %v7788 = vsub.f32 %v7592, 1.0
        %v7789 = vsub.f32 %v7594, 1.0
        %v7790 = vsub.f32 %v7596, 1.0
        %v7791 = vsub.f32 %v7598, 1.0
        %v7792 = vsub.f32 %v7600, 1.0
        %v7793 = vsub.f32 %v7602, 1.0
        %v7794 = vsub.f32 %v7604, 1.0
        %v7795 = vsub.f32 %v7606, 1.0
        %v7796 = vsub.f32 %v7608, 1.0
        %v7797 = vsub.f32 %v7610, 1.0
        %v7798 = vsub.f32 %v7612, 1.0
        %v7799 = vsub.f32 %v7614, 1.0
        %v7800 = vsub.f32 %v7616, 1.0
        %v7801 = vsub.f32 %v7618, 1.0
        %v7802 = vsub.f32 %v7620, 1.0
        %v7803 = vsub.f32 %v7622, 1.0
        %v7804 = vsub.f32 %v7624, 1.0
        %v7805 = vsub.f32 %v7626, 1.0
        %v7806 = vsub.f32 %v7628, 1.0
        %v7807 = vsub.f32 %v7630, 1.0
        %v7808 = vsub.f32 %v7632, 1.0
        %v7809 = vsub.f32 %v7634, 1.0
        %v7810 = vsub.f32 %v7636, 1.0
        %v7811 = vsub.f32 %v7638, 1.0
        %v7812 = vsub.f32 %v7640, 1.0
        %v7813 = vsub.f32 %v7642, 1.0
        %v7814 = vsub.f32 %v7644, 1.0
        %v7815 = vsub.f32 %v7646, 1.0
        %v7816 = vsub.f32 %v7648, 1.0
        %v7817 = vsub.f32 %v7650, 1.0
        %v7818 = vsub.f32 %v7652, 1.0
        %v7819 = vsub.f32 %v7654, 1.0
        %v7820 = vsub.f32 %v7656, 1.0
        %v7821 = vsub.f32 %v7658, 1.0
        %v7822 = vsub.f32 %v7660, 1.0
        %v7823 = vsub.f32 %v7662, 1.0
        %v7824 = vsub.f32 %v7664, 1.0
        %v7825 = vsub.f32 %v7666, 1.0
        %v7826 = vsub.f32 %v7668, 1.0
        %v7827 = vsub.f32 %v7670, 1.0
        %v7828 = vsub.f32 %v7672, 1.0
        %v7829 = vsub.f32 %v7674, 1.0
        %v7830 = vsub.f32 %v7676, 1.0
        %v7831 = vsub.f32 %v7678, 1.0
        %v7832 = vsub.f32 %v7680, 1.0
        %v7833 = vsub.f32 %v7682, 1.0
        %v7834 = vsub.f32 %v7684, 1.0
        %v7835 = vsub.f32 %v7686, 1.0
        %v7836 = vsub.f32 %v7688, 1.0
        %v7837 = vsub.f32 %v7690, 1.0
        %v7838 = vsub.f32 %v7692, 1.0
        %v7839 = vsub.f32 %v7694, 1.0
        %v7840 = vsub.f32 %v7696, 1.0
        %v7841 = vsub.f32 %v7698, 1.0
        %v7842 = vsub.f32 %v7700, 1.0
        %v7843 = vsub.f32 %v7702, 1.0
        %v7844 = vsub.f32 %v7704, 1.0
        %v7845 = vsub.f32 %v7706, 1.0
        %v7846 = vsub.f32 %v7708, 1.0
        %v7847 = vsub.f32 %v7710, 1.0
        %v7848 = vsub.f32 %v7712, 1.0
        %v7849 = vsub.f32 %v7714, 1.0
        %v7850 = vsub.f32 %v7716, 1.0
        %v7851 = vsub.f32 %v7718, 1.0
        %v7852 = vsub.f32 %v7720, 1.0
        %v7853 = vsub.f32 %v7722, 1.0
        %v7854 = vsub.f32 %v7724, 1.0
        %v7855 = vsub.f32 %v7726, 1.0
        %v7856 = vsub.f32 %v7728, 1.0
        %v7857 = vsel %vm7217, %v6579, %v7729
        %v7858 = vsel %vm7218, %v6620, %v7730
        %v7859 = vsel %vm7219, %v6661, %v7731
        %v7860 = vsel %vm7220, %v6702, %v7732
        %v7861 = vsel %vm7221, %v6743, %v7733
        %v7862 = vsel %vm7222, %v6784, %v7734
        %v7863 = vsel %vm7223, %v6825, %v7735
        %v7864 = vsel %vm7224, %v6866, %v7736
        %v7865 = vsel %vm7225, %v6907, %v7737
        %v7866 = vsel %vm7226, %v6948, %v7738
        %v7867 = vsel %vm7227, %v6989, %v7739
        %v7868 = vsel %vm7228, %v7030, %v7740
        %v7869 = vsel %vm7229, %v7071, %v7741
        %v7870 = vsel %vm7230, %v7112, %v7742
        %v7871 = vsel %vm7231, %v7153, %v7743
        %v7872 = vsel %vm7232, %v7194, %v7744
        %v7873 = vsel %vm7233, %v6582, %v7745
        %v7874 = vsel %vm7234, %v6623, %v7746
        %v7875 = vsel %vm7235, %v6664, %v7747
        %v7876 = vsel %vm7236, %v6705, %v7748
        %v7877 = vsel %vm7237, %v6746, %v7749
        %v7878 = vsel %vm7238, %v6787, %v7750
        %v7879 = vsel %vm7239, %v6828, %v7751
        %v7880 = vsel %vm7240, %v6869, %v7752
        %v7881 = vsel %vm7241, %v6910, %v7753
        %v7882 = vsel %vm7242, %v6951, %v7754
        %v7883 = vsel %vm7243, %v6992, %v7755
        %v7884 = vsel %vm7244, %v7033, %v7756
        %v7885 = vsel %vm7245, %v7074, %v7757
        %v7886 = vsel %vm7246, %v7115, %v7758
        %v7887 = vsel %vm7247, %v7156, %v7759
        %v7888 = vsel %vm7248, %v7197, %v7760
        %v7889 = vsel %vm7249, %v6585, %v7761
        %v7890 = vsel %vm7250, %v6626, %v7762
        %v7891 = vsel %vm7251, %v6667, %v7763
        %v7892 = vsel %vm7252, %v6708, %v7764
        %v7893 = vsel %vm7253, %v6749, %v7765
        %v7894 = vsel %vm7254, %v6790, %v7766
        %v7895 = vsel %vm7255, %v6831, %v7767
        %v7896 = vsel %vm7256, %v6872, %v7768
        %v7897 = vsel %vm7257, %v6913, %v7769
        %v7898 = vsel %vm7258, %v6954, %v7770
        %v7899 = vsel %vm7259, %v6995, %v7771
        %v7900 = vsel %vm7260, %v7036, %v7772
        %v7901 = vsel %vm7261, %v7077, %v7773
        %v7902 = vsel %vm7262, %v7118, %v7774
        %v7903 = vsel %vm7263, %v7159, %v7775
        %v7904 = vsel %vm7264, %v7200, %v7776
        %v7905 = vsel %vm7265, %v6588, %v7777
        %v7906 = vsel %vm7266, %v6629, %v7778
        %v7907 = vsel %vm7267, %v6670, %v7779
        %v7908 = vsel %vm7268, %v6711, %v7780
        %v7909 = vsel %vm7269, %v6752, %v7781
        %v7910 = vsel %vm7270, %v6793, %v7782
        %v7911 = vsel %vm7271, %v6834, %v7783
        %v7912 = vsel %vm7272, %v6875, %v7784
        %v7913 = vsel %vm7273, %v6916, %v7785
        %v7914 = vsel %vm7274, %v6957, %v7786
        %v7915 = vsel %vm7275, %v6998, %v7787
        %v7916 = vsel %vm7276, %v7039, %v7788
        %v7917 = vsel %vm7277, %v7080, %v7789
        %v7918 = vsel %vm7278, %v7121, %v7790
        %v7919 = vsel %vm7279, %v7162, %v7791
        %v7920 = vsel %vm7280, %v7203, %v7792
        %v7921 = vsel %vm7281, %v6591, %v7793
        %v7922 = vsel %vm7282, %v6632, %v7794
        %v7923 = vsel %vm7283, %v6673, %v7795
        %v7924 = vsel %vm7284, %v6714, %v7796
        %v7925 = vsel %vm7285, %v6755, %v7797
        %v7926 = vsel %vm7286, %v6796, %v7798
        %v7927 = vsel %vm7287, %v6837, %v7799
        %v7928 = vsel %vm7288, %v6878, %v7800
        %v7929 = vsel %vm7289, %v6919, %v7801
        %v7930 = vsel %vm7290, %v6960, %v7802
        %v7931 = vsel %vm7291, %v7001, %v7803
        %v7932 = vsel %vm7292, %v7042, %v7804
        %v7933 = vsel %vm7293, %v7083, %v7805
        %v7934 = vsel %vm7294, %v7124, %v7806
        %v7935 = vsel %vm7295, %v7165, %v7807
        %v7936 = vsel %vm7296, %v7206, %v7808
        %v7937 = vsel %vm7297, %v6594, %v7809
        %v7938 = vsel %vm7298, %v6635, %v7810
        %v7939 = vsel %vm7299, %v6676, %v7811
        %v7940 = vsel %vm7300, %v6717, %v7812
        %v7941 = vsel %vm7301, %v6758, %v7813
        %v7942 = vsel %vm7302, %v6799, %v7814
        %v7943 = vsel %vm7303, %v6840, %v7815
        %v7944 = vsel %vm7304, %v6881, %v7816
        %v7945 = vsel %vm7305, %v6922, %v7817
        %v7946 = vsel %vm7306, %v6963, %v7818
        %v7947 = vsel %vm7307, %v7004, %v7819
        %v7948 = vsel %vm7308, %v7045, %v7820
        %v7949 = vsel %vm7309, %v7086, %v7821
        %v7950 = vsel %vm7310, %v7127, %v7822
        %v7951 = vsel %vm7311, %v7168, %v7823
        %v7952 = vsel %vm7312, %v7209, %v7824
        %v7953 = vsel %vm7313, %v6597, %v7825
        %v7954 = vsel %vm7314, %v6638, %v7826
        %v7955 = vsel %vm7315, %v6679, %v7827
        %v7956 = vsel %vm7316, %v6720, %v7828
        %v7957 = vsel %vm7317, %v6761, %v7829
        %v7958 = vsel %vm7318, %v6802, %v7830
        %v7959 = vsel %vm7319, %v6843, %v7831
        %v7960 = vsel %vm7320, %v6884, %v7832
        %v7961 = vsel %vm7321, %v6925, %v7833
        %v7962 = vsel %vm7322, %v6966, %v7834
        %v7963 = vsel %vm7323, %v7007, %v7835
        %v7964 = vsel %vm7324, %v7048, %v7836
        %v7965 = vsel %vm7325, %v7089, %v7837
        %v7966 = vsel %vm7326, %v7130, %v7838
        %v7967 = vsel %vm7327, %v7171, %v7839
        %v7968 = vsel %vm7328, %v7212, %v7840
        %v7969 = vsel %vm7329, %v6600, %v7841
        %v7970 = vsel %vm7330, %v6641, %v7842
        %v7971 = vsel %vm7331, %v6682, %v7843
        %v7972 = vsel %vm7332, %v6723, %v7844
        %v7973 = vsel %vm7333, %v6764, %v7845
        %v7974 = vsel %vm7334, %v6805, %v7846
        %v7975 = vsel %vm7335, %v6846, %v7847
        %v7976 = vsel %vm7336, %v6887, %v7848
        %v7977 = vsel %vm7337, %v6928, %v7849
        %v7978 = vsel %vm7338, %v6969, %v7850
        %v7979 = vsel %vm7339, %v7010, %v7851
        %v7980 = vsel %vm7340, %v7051, %v7852
        %v7981 = vsel %vm7341, %v7092, %v7853
        %v7982 = vsel %vm7342, %v7133, %v7854
        %v7983 = vsel %vm7343, %v7174, %v7855
        %v7984 = vsel %vm7344, %v7215, %v7856
        %v7985 = vld [vmem:[%s6] sm:$0xf]
        %v7986 = vld [vmem:[%s7] sm:$0xf]
        %7988 = vset.pattern.permute.xlu0 0
        %7989 = vperm.xlu0 %7988, %v7986
        %v7990 = vpop.permute.xlu0 %7989
        %v7993 = vsel %vm2018, %v7985, 0
        %7995 = vmatpush.msra.mxu0 0.0
        %7996 = vmatpush.msra.mxu0 0.0
        %7997 = vmatpush.msra.mxu0 0.0
        %7998 = vmatpush.msra.mxu0 0.0
        %7999 = vmatpush.msra.mxu0 0.0
        %8000 = vmatpush.msra.mxu0 0.0
        %8001 = vmatpush.msra.mxu0 0.0
        %8002 = vmatpush.msra.mxu0 0.0
        %8003 = vmatpush.msra.mxu0 %v7969
        %8004 = vmatpush.msra.mxu0 %v7953
        %8005 = vmatpush.msra.mxu0 %v7937
        %8006 = vmatpush.msra.mxu0 %v7921
        %8007 = vmatpush.msra.mxu0 %v7905
        %8008 = vmatpush.msra.mxu0 %v7889
        %8009 = vmatpush.msra.mxu0 %v7873
        %8010 = vmatpush.msra.mxu0 %v7857
        %8011 = vmatmul.f32.gmra.mxu0 %v7993
        %v8012 = vpop.f32.mrf.mxu0
        %v8013 = vadd.f32 %v7990, %v8012
        %8014 = vdwg.mxu0
        %8015 = vmatpush.msra.mxu0 0.0
        %8016 = vmatpush.msra.mxu0 0.0
        %8017 = vmatpush.msra.mxu0 0.0
        %8018 = vmatpush.msra.mxu0 0.0
        %8019 = vmatpush.msra.mxu0 0.0
        %8020 = vmatpush.msra.mxu0 0.0
        %8021 = vmatpush.msra.mxu0 0.0
        %8022 = vmatpush.msra.mxu0 0.0
        %8023 = vmatpush.msra.mxu0 %v7970
        %8024 = vmatpush.msra.mxu0 %v7954
        %8025 = vmatpush.msra.mxu0 %v7938
        %8026 = vmatpush.msra.mxu0 %v7922
        %8027 = vmatpush.msra.mxu0 %v7906
        %8028 = vmatpush.msra.mxu0 %v7890
        %8029 = vmatpush.msra.mxu0 %v7874
        %8030 = vmatpush.msra.mxu0 %v7858
        %8031 = vmatmul.f32.gmra.mxu0 %v7993
        %v8032 = vpop.f32.mrf.mxu0
        %v8033 = vadd.f32 %v7990, %v8032
        %8034 = vdwg.mxu0
        %8035 = vmatpush.msra.mxu0 0.0
        %8036 = vmatpush.msra.mxu0 0.0
        %8037 = vmatpush.msra.mxu0 0.0
        %8038 = vmatpush.msra.mxu0 0.0
        %8039 = vmatpush.msra.mxu0 0.0
        %8040 = vmatpush.msra.mxu0 0.0
        %8041 = vmatpush.msra.mxu0 0.0
        %8042 = vmatpush.msra.mxu0 0.0
        %8043 = vmatpush.msra.mxu0 %v7971
        %8044 = vmatpush.msra.mxu0 %v7955
        %8045 = vmatpush.msra.mxu0 %v7939
        %8046 = vmatpush.msra.mxu0 %v7923
        %8047 = vmatpush.msra.mxu0 %v7907
        %8048 = vmatpush.msra.mxu0 %v7891
        %8049 = vmatpush.msra.mxu0 %v7875
        %8050 = vmatpush.msra.mxu0 %v7859
        %8051 = vmatmul.f32.gmra.mxu0 %v7993
        %v8052 = vpop.f32.mrf.mxu0
        %v8053 = vadd.f32 %v7990, %v8052
        %8054 = vdwg.mxu0
        %8055 = vmatpush.msra.mxu0 0.0
        %8056 = vmatpush.msra.mxu0 0.0
        %8057 = vmatpush.msra.mxu0 0.0
        %8058 = vmatpush.msra.mxu0 0.0
        %8059 = vmatpush.msra.mxu0 0.0
        %8060 = vmatpush.msra.mxu0 0.0
        %8061 = vmatpush.msra.mxu0 0.0
        %8062 = vmatpush.msra.mxu0 0.0
        %8063 = vmatpush.msra.mxu0 %v7972
        %8064 = vmatpush.msra.mxu0 %v7956
        %8065 = vmatpush.msra.mxu0 %v7940
        %8066 = vmatpush.msra.mxu0 %v7924
        %8067 = vmatpush.msra.mxu0 %v7908
        %8068 = vmatpush.msra.mxu0 %v7892
        %8069 = vmatpush.msra.mxu0 %v7876
        %8070 = vmatpush.msra.mxu0 %v7860
        %8071 = vmatmul.f32.gmra.mxu0 %v7993
        %v8072 = vpop.f32.mrf.mxu0
        %v8073 = vadd.f32 %v7990, %v8072
        %8074 = vdwg.mxu0
        %8075 = vmatpush.msra.mxu0 0.0
        %8076 = vmatpush.msra.mxu0 0.0
        %8077 = vmatpush.msra.mxu0 0.0
        %8078 = vmatpush.msra.mxu0 0.0
        %8079 = vmatpush.msra.mxu0 0.0
        %8080 = vmatpush.msra.mxu0 0.0
        %8081 = vmatpush.msra.mxu0 0.0
        %8082 = vmatpush.msra.mxu0 0.0
        %8083 = vmatpush.msra.mxu0 %v7973
        %8084 = vmatpush.msra.mxu0 %v7957
        %8085 = vmatpush.msra.mxu0 %v7941
        %8086 = vmatpush.msra.mxu0 %v7925
        %8087 = vmatpush.msra.mxu0 %v7909
        %8088 = vmatpush.msra.mxu0 %v7893
        %8089 = vmatpush.msra.mxu0 %v7877
        %8090 = vmatpush.msra.mxu0 %v7861
        %8091 = vmatmul.f32.gmra.mxu0 %v7993
        %v8092 = vpop.f32.mrf.mxu0
        %v8093 = vadd.f32 %v7990, %v8092
        %8094 = vdwg.mxu0
        %8095 = vmatpush.msra.mxu0 0.0
        %8096 = vmatpush.msra.mxu0 0.0
        %8097 = vmatpush.msra.mxu0 0.0
        %8098 = vmatpush.msra.mxu0 0.0
        %8099 = vmatpush.msra.mxu0 0.0
        %8100 = vmatpush.msra.mxu0 0.0
        %8101 = vmatpush.msra.mxu0 0.0
        %8102 = vmatpush.msra.mxu0 0.0
        %8103 = vmatpush.msra.mxu0 %v7974
        %8104 = vmatpush.msra.mxu0 %v7958
        %8105 = vmatpush.msra.mxu0 %v7942
        %8106 = vmatpush.msra.mxu0 %v7926
        %8107 = vmatpush.msra.mxu0 %v7910
        %8108 = vmatpush.msra.mxu0 %v7894
        %8109 = vmatpush.msra.mxu0 %v7878
        %8110 = vmatpush.msra.mxu0 %v7862
        %8111 = vmatmul.f32.gmra.mxu0 %v7993
        %v8112 = vpop.f32.mrf.mxu0
        %v8113 = vadd.f32 %v7990, %v8112
        %8114 = vdwg.mxu0
        %8115 = vmatpush.msra.mxu0 0.0
        %8116 = vmatpush.msra.mxu0 0.0
        %8117 = vmatpush.msra.mxu0 0.0
        %8118 = vmatpush.msra.mxu0 0.0
        %8119 = vmatpush.msra.mxu0 0.0
        %8120 = vmatpush.msra.mxu0 0.0
        %8121 = vmatpush.msra.mxu0 0.0
        %8122 = vmatpush.msra.mxu0 0.0
        %8123 = vmatpush.msra.mxu0 %v7975
        %8124 = vmatpush.msra.mxu0 %v7959
        %8125 = vmatpush.msra.mxu0 %v7943
        %8126 = vmatpush.msra.mxu0 %v7927
        %8127 = vmatpush.msra.mxu0 %v7911
        %8128 = vmatpush.msra.mxu0 %v7895
        %8129 = vmatpush.msra.mxu0 %v7879
        %8130 = vmatpush.msra.mxu0 %v7863
        %8131 = vmatmul.f32.gmra.mxu0 %v7993
        %v8132 = vpop.f32.mrf.mxu0
        %v8133 = vadd.f32 %v7990, %v8132
        %8134 = vdwg.mxu0
        %8135 = vmatpush.msra.mxu0 0.0
        %8136 = vmatpush.msra.mxu0 0.0
        %8137 = vmatpush.msra.mxu0 0.0
        %8138 = vmatpush.msra.mxu0 0.0
        %8139 = vmatpush.msra.mxu0 0.0
        %8140 = vmatpush.msra.mxu0 0.0
        %8141 = vmatpush.msra.mxu0 0.0
        %8142 = vmatpush.msra.mxu0 0.0
        %8143 = vmatpush.msra.mxu0 %v7976
        %8144 = vmatpush.msra.mxu0 %v7960
        %8145 = vmatpush.msra.mxu0 %v7944
        %8146 = vmatpush.msra.mxu0 %v7928
        %8147 = vmatpush.msra.mxu0 %v7912
        %8148 = vmatpush.msra.mxu0 %v7896
        %8149 = vmatpush.msra.mxu0 %v7880
        %8150 = vmatpush.msra.mxu0 %v7864
        %8151 = vmatmul.f32.gmra.mxu0 %v7993
        %v8152 = vpop.f32.mrf.mxu0
        %v8153 = vadd.f32 %v7990, %v8152
        %8154 = vdwg.mxu0
        %8155 = vmatpush.msra.mxu0 0.0
        %8156 = vmatpush.msra.mxu0 0.0
        %8157 = vmatpush.msra.mxu0 0.0
        %8158 = vmatpush.msra.mxu0 0.0
        %8159 = vmatpush.msra.mxu0 0.0
        %8160 = vmatpush.msra.mxu0 0.0
        %8161 = vmatpush.msra.mxu0 0.0
        %8162 = vmatpush.msra.mxu0 0.0
        %8163 = vmatpush.msra.mxu0 %v7977
        %8164 = vmatpush.msra.mxu0 %v7961
        %8165 = vmatpush.msra.mxu0 %v7945
        %8166 = vmatpush.msra.mxu0 %v7929
        %8167 = vmatpush.msra.mxu0 %v7913
        %8168 = vmatpush.msra.mxu0 %v7897
        %8169 = vmatpush.msra.mxu0 %v7881
        %8170 = vmatpush.msra.mxu0 %v7865
        %8171 = vmatmul.f32.gmra.mxu0 %v7993
        %v8172 = vpop.f32.mrf.mxu0
        %v8173 = vadd.f32 %v7990, %v8172
        %8174 = vdwg.mxu0
        %8175 = vmatpush.msra.mxu0 0.0
        %8176 = vmatpush.msra.mxu0 0.0
        %8177 = vmatpush.msra.mxu0 0.0
        %8178 = vmatpush.msra.mxu0 0.0
        %8179 = vmatpush.msra.mxu0 0.0
        %8180 = vmatpush.msra.mxu0 0.0
        %8181 = vmatpush.msra.mxu0 0.0
        %8182 = vmatpush.msra.mxu0 0.0
        %8183 = vmatpush.msra.mxu0 %v7978
        %8184 = vmatpush.msra.mxu0 %v7962
        %8185 = vmatpush.msra.mxu0 %v7946
        %8186 = vmatpush.msra.mxu0 %v7930
        %8187 = vmatpush.msra.mxu0 %v7914
        %8188 = vmatpush.msra.mxu0 %v7898
        %8189 = vmatpush.msra.mxu0 %v7882
        %8190 = vmatpush.msra.mxu0 %v7866
        %8191 = vmatmul.f32.gmra.mxu0 %v7993
        %v8192 = vpop.f32.mrf.mxu0
        %v8193 = vadd.f32 %v7990, %v8192
        %8194 = vdwg.mxu0
        %8195 = vmatpush.msra.mxu0 0.0
        %8196 = vmatpush.msra.mxu0 0.0
        %8197 = vmatpush.msra.mxu0 0.0
        %8198 = vmatpush.msra.mxu0 0.0
        %8199 = vmatpush.msra.mxu0 0.0
        %8200 = vmatpush.msra.mxu0 0.0
        %8201 = vmatpush.msra.mxu0 0.0
        %8202 = vmatpush.msra.mxu0 0.0
        %8203 = vmatpush.msra.mxu0 %v7979
        %8204 = vmatpush.msra.mxu0 %v7963
        %8205 = vmatpush.msra.mxu0 %v7947
        %8206 = vmatpush.msra.mxu0 %v7931
        %8207 = vmatpush.msra.mxu0 %v7915
        %8208 = vmatpush.msra.mxu0 %v7899
        %8209 = vmatpush.msra.mxu0 %v7883
        %8210 = vmatpush.msra.mxu0 %v7867
        %8211 = vmatmul.f32.gmra.mxu0 %v7993
        %v8212 = vpop.f32.mrf.mxu0
        %v8213 = vadd.f32 %v7990, %v8212
        %8214 = vdwg.mxu0
        %8215 = vmatpush.msra.mxu0 0.0
        %8216 = vmatpush.msra.mxu0 0.0
        %8217 = vmatpush.msra.mxu0 0.0
        %8218 = vmatpush.msra.mxu0 0.0
        %8219 = vmatpush.msra.mxu0 0.0
        %8220 = vmatpush.msra.mxu0 0.0
        %8221 = vmatpush.msra.mxu0 0.0
        %8222 = vmatpush.msra.mxu0 0.0
        %8223 = vmatpush.msra.mxu0 %v7980
        %8224 = vmatpush.msra.mxu0 %v7964
        %8225 = vmatpush.msra.mxu0 %v7948
        %8226 = vmatpush.msra.mxu0 %v7932
        %8227 = vmatpush.msra.mxu0 %v7916
        %8228 = vmatpush.msra.mxu0 %v7900
        %8229 = vmatpush.msra.mxu0 %v7884
        %8230 = vmatpush.msra.mxu0 %v7868
        %8231 = vmatmul.f32.gmra.mxu0 %v7993
        %v8232 = vpop.f32.mrf.mxu0
        %v8233 = vadd.f32 %v7990, %v8232
        %8234 = vdwg.mxu0
        %8235 = vmatpush.msra.mxu0 0.0
        %8236 = vmatpush.msra.mxu0 0.0
        %8237 = vmatpush.msra.mxu0 0.0
        %8238 = vmatpush.msra.mxu0 0.0
        %8239 = vmatpush.msra.mxu0 0.0
        %8240 = vmatpush.msra.mxu0 0.0
        %8241 = vmatpush.msra.mxu0 0.0
        %8242 = vmatpush.msra.mxu0 0.0
        %8243 = vmatpush.msra.mxu0 %v7981
        %8244 = vmatpush.msra.mxu0 %v7965
        %8245 = vmatpush.msra.mxu0 %v7949
        %8246 = vmatpush.msra.mxu0 %v7933
        %8247 = vmatpush.msra.mxu0 %v7917
        %8248 = vmatpush.msra.mxu0 %v7901
        %8249 = vmatpush.msra.mxu0 %v7885
        %8250 = vmatpush.msra.mxu0 %v7869
        %8251 = vmatmul.f32.gmra.mxu0 %v7993
        %v8252 = vpop.f32.mrf.mxu0
        %v8253 = vadd.f32 %v7990, %v8252
        %8254 = vdwg.mxu0
        %8255 = vmatpush.msra.mxu0 0.0
        %8256 = vmatpush.msra.mxu0 0.0
        %8257 = vmatpush.msra.mxu0 0.0
        %8258 = vmatpush.msra.mxu0 0.0
        %8259 = vmatpush.msra.mxu0 0.0
        %8260 = vmatpush.msra.mxu0 0.0
        %8261 = vmatpush.msra.mxu0 0.0
        %8262 = vmatpush.msra.mxu0 0.0
        %8263 = vmatpush.msra.mxu0 %v7982
        %8264 = vmatpush.msra.mxu0 %v7966
        %8265 = vmatpush.msra.mxu0 %v7950
        %8266 = vmatpush.msra.mxu0 %v7934
        %8267 = vmatpush.msra.mxu0 %v7918
        %8268 = vmatpush.msra.mxu0 %v7902
        %8269 = vmatpush.msra.mxu0 %v7886
        %8270 = vmatpush.msra.mxu0 %v7870
        %8271 = vmatmul.f32.gmra.mxu0 %v7993
        %v8272 = vpop.f32.mrf.mxu0
        %v8273 = vadd.f32 %v7990, %v8272
        %8274 = vdwg.mxu0
        %8275 = vmatpush.msra.mxu0 0.0
        %8276 = vmatpush.msra.mxu0 0.0
        %8277 = vmatpush.msra.mxu0 0.0
        %8278 = vmatpush.msra.mxu0 0.0
        %8279 = vmatpush.msra.mxu0 0.0
        %8280 = vmatpush.msra.mxu0 0.0
        %8281 = vmatpush.msra.mxu0 0.0
        %8282 = vmatpush.msra.mxu0 0.0
        %8283 = vmatpush.msra.mxu0 %v7983
        %8284 = vmatpush.msra.mxu0 %v7967
        %8285 = vmatpush.msra.mxu0 %v7951
        %8286 = vmatpush.msra.mxu0 %v7935
        %8287 = vmatpush.msra.mxu0 %v7919
        %8288 = vmatpush.msra.mxu0 %v7903
        %8289 = vmatpush.msra.mxu0 %v7887
        %8290 = vmatpush.msra.mxu0 %v7871
        %8291 = vmatmul.f32.gmra.mxu0 %v7993
        %v8292 = vpop.f32.mrf.mxu0
        %v8293 = vadd.f32 %v7990, %v8292
        %8294 = vdwg.mxu0
        %8295 = vmatpush.msra.mxu0 0.0
        %8296 = vmatpush.msra.mxu0 0.0
        %8297 = vmatpush.msra.mxu0 0.0
        %8298 = vmatpush.msra.mxu0 0.0
        %8299 = vmatpush.msra.mxu0 0.0
        %8300 = vmatpush.msra.mxu0 0.0
        %8301 = vmatpush.msra.mxu0 0.0
        %8302 = vmatpush.msra.mxu0 0.0
        %8303 = vmatpush.msra.mxu0 %v7984
        %8304 = vmatpush.msra.mxu0 %v7968
        %8305 = vmatpush.msra.mxu0 %v7952
        %8306 = vmatpush.msra.mxu0 %v7936
        %8307 = vmatpush.msra.mxu0 %v7920
        %8308 = vmatpush.msra.mxu0 %v7904
        %8309 = vmatpush.msra.mxu0 %v7888
        %8310 = vmatpush.msra.mxu0 %v7872
        %8311 = vmatmul.f32.gmra.mxu0 %v7993
        %v8312 = vpop.f32.mrf.mxu0
        %v8313 = vadd.f32 %v7990, %v8312
        %8314 = vdwg.mxu0
        %v8315 = vsub.f32 0.0, %v8013
        %v8316 = vsub.f32 0.0, %v8033
        %v8317 = vsub.f32 0.0, %v8053
        %v8318 = vsub.f32 0.0, %v8073
        %v8319 = vsub.f32 0.0, %v8093
        %v8320 = vsub.f32 0.0, %v8113
        %v8321 = vsub.f32 0.0, %v8133
        %v8322 = vsub.f32 0.0, %v8153
        %v8323 = vsub.f32 0.0, %v8173
        %v8324 = vsub.f32 0.0, %v8193
        %v8325 = vsub.f32 0.0, %v8213
        %v8326 = vsub.f32 0.0, %v8233
        %v8327 = vsub.f32 0.0, %v8253
        %v8328 = vsub.f32 0.0, %v8273
        %v8329 = vsub.f32 0.0, %v8293
        %v8330 = vsub.f32 0.0, %v8313
        %v8331 = vmul.f32 %v8315, 1.442695
        %v8332 = vpow.pop %v8331
        %v8333 = vmul.f32 %v8316, 1.442695
        %v8334 = vpow.pop %v8333
        %v8335 = vmul.f32 %v8317, 1.442695
        %v8336 = vpow.pop %v8335
        %v8337 = vmul.f32 %v8318, 1.442695
        %v8338 = vpow.pop %v8337
        %v8339 = vmul.f32 %v8319, 1.442695
        %v8340 = vpow.pop %v8339
        %v8341 = vmul.f32 %v8320, 1.442695
        %v8342 = vpow.pop %v8341
        %v8343 = vmul.f32 %v8321, 1.442695
        %v8344 = vpow.pop %v8343
        %v8345 = vmul.f32 %v8322, 1.442695
        %v8346 = vpow.pop %v8345
        %v8347 = vmul.f32 %v8323, 1.442695
        %v8348 = vpow.pop %v8347
        %v8349 = vmul.f32 %v8324, 1.442695
        %v8350 = vpow.pop %v8349
        %v8351 = vmul.f32 %v8325, 1.442695
        %v8352 = vpow.pop %v8351
        %v8353 = vmul.f32 %v8326, 1.442695
        %v8354 = vpow.pop %v8353
        %v8355 = vmul.f32 %v8327, 1.442695
        %v8356 = vpow.pop %v8355
        %v8357 = vmul.f32 %v8328, 1.442695
        %v8358 = vpow.pop %v8357
        %v8359 = vmul.f32 %v8329, 1.442695
        %v8360 = vpow.pop %v8359
        %v8361 = vmul.f32 %v8330, 1.442695
        %v8362 = vpow.pop %v8361
        %v8363 = vadd.f32 %v8332, 1.0
        %v8364 = vadd.f32 %v8334, 1.0
        %v8365 = vadd.f32 %v8336, 1.0
        %v8366 = vadd.f32 %v8338, 1.0
        %v8367 = vadd.f32 %v8340, 1.0
        %v8368 = vadd.f32 %v8342, 1.0
        %v8369 = vadd.f32 %v8344, 1.0
        %v8370 = vadd.f32 %v8346, 1.0
        %v8371 = vadd.f32 %v8348, 1.0
        %v8372 = vadd.f32 %v8350, 1.0
        %v8373 = vadd.f32 %v8352, 1.0
        %v8374 = vadd.f32 %v8354, 1.0
        %v8375 = vadd.f32 %v8356, 1.0
        %v8376 = vadd.f32 %v8358, 1.0
        %v8377 = vadd.f32 %v8360, 1.0
        %v8378 = vadd.f32 %v8362, 1.0
        %v8379 = vrcp.pop %v8363
        %v8380 = vrcp.pop %v8364
        %v8381 = vrcp.pop %v8365
        %v8382 = vrcp.pop %v8366
        %v8383 = vrcp.pop %v8367
        %v8384 = vrcp.pop %v8368
        %v8385 = vrcp.pop %v8369
        %v8386 = vrcp.pop %v8370
        %v8387 = vrcp.pop %v8371
        %v8388 = vrcp.pop %v8372
        %v8389 = vrcp.pop %v8373
        %v8390 = vrcp.pop %v8374
        %v8391 = vrcp.pop %v8375
        %v8392 = vrcp.pop %v8376
        %v8393 = vrcp.pop %v8377
        %v8394 = vrcp.pop %v8378
        %v8395 = vmul.f32 %v8379, 0.695
        %v8396 = vmul.f32 %v8380, 0.695
        %v8397 = vmul.f32 %v8381, 0.695
        %v8398 = vmul.f32 %v8382, 0.695
        %v8399 = vmul.f32 %v8383, 0.695
        %v8400 = vmul.f32 %v8384, 0.695
        %v8401 = vmul.f32 %v8385, 0.695
        %v8402 = vmul.f32 %v8386, 0.695
        %v8403 = vmul.f32 %v8387, 0.695
        %v8404 = vmul.f32 %v8388, 0.695
        %v8405 = vmul.f32 %v8389, 0.695
        %v8406 = vmul.f32 %v8390, 0.695
        %v8407 = vmul.f32 %v8391, 0.695
        %v8408 = vmul.f32 %v8392, 0.695
        %v8409 = vmul.f32 %v8393, 0.695
        %v8410 = vmul.f32 %v8394, 0.695
        %v8411 = vadd.f32 %v8395, 0.005
        %v8412 = vadd.f32 %v8396, 0.005
        %v8413 = vadd.f32 %v8397, 0.005
        %v8414 = vadd.f32 %v8398, 0.005
        %v8415 = vadd.f32 %v8399, 0.005
        %v8416 = vadd.f32 %v8400, 0.005
        %v8417 = vadd.f32 %v8401, 0.005
        %v8418 = vadd.f32 %v8402, 0.005
        %v8419 = vadd.f32 %v8403, 0.005
        %v8420 = vadd.f32 %v8404, 0.005
        %v8421 = vadd.f32 %v8405, 0.005
        %v8422 = vadd.f32 %v8406, 0.005
        %v8423 = vadd.f32 %v8407, 0.005
        %v8424 = vadd.f32 %v8408, 0.005
        %v8425 = vadd.f32 %v8409, 0.005
        %v8426 = vadd.f32 %v8410, 0.005
        %v8427 = vmul.f32 %v8379, 0.005
        %v8428 = vmul.f32 %v8380, 0.005
        %v8429 = vmul.f32 %v8381, 0.005
        %v8430 = vmul.f32 %v8382, 0.005
        %v8431 = vmul.f32 %v8383, 0.005
        %v8432 = vmul.f32 %v8384, 0.005
        %v8433 = vmul.f32 %v8385, 0.005
        %v8434 = vmul.f32 %v8386, 0.005
        %v8435 = vmul.f32 %v8387, 0.005
        %v8436 = vmul.f32 %v8388, 0.005
        %v8437 = vmul.f32 %v8389, 0.005
        %v8438 = vmul.f32 %v8390, 0.005
        %v8439 = vmul.f32 %v8391, 0.005
        %v8440 = vmul.f32 %v8392, 0.005
        %v8441 = vmul.f32 %v8393, 0.005
        %v8442 = vmul.f32 %v8394, 0.005
        %v8443 = vadd.f32 %v8427, 0.0
        %v8444 = vadd.f32 %v8428, 0.0
        %v8445 = vadd.f32 %v8429, 0.0
        %v8446 = vadd.f32 %v8430, 0.0
        %v8447 = vadd.f32 %v8431, 0.0
        %v8448 = vadd.f32 %v8432, 0.0
        %v8449 = vadd.f32 %v8433, 0.0
        %v8450 = vadd.f32 %v8434, 0.0
        %v8451 = vadd.f32 %v8435, 0.0
        %v8452 = vadd.f32 %v8436, 0.0
        %v8453 = vadd.f32 %v8437, 0.0
        %v8454 = vadd.f32 %v8438, 0.0
        %v8455 = vadd.f32 %v8439, 0.0
        %v8456 = vadd.f32 %v8440, 0.0
        %v8457 = vadd.f32 %v8441, 0.0
        %v8458 = vadd.f32 %v8442, 0.0
        %v8459 = vmul.f32 %v8379, 0.7
        %v8460 = vmul.f32 %v8380, 0.7
        %v8461 = vmul.f32 %v8381, 0.7
        %v8462 = vmul.f32 %v8382, 0.7
        %v8463 = vmul.f32 %v8383, 0.7
        %v8464 = vmul.f32 %v8384, 0.7
        %v8465 = vmul.f32 %v8385, 0.7
        %v8466 = vmul.f32 %v8386, 0.7
        %v8467 = vmul.f32 %v8387, 0.7
        %v8468 = vmul.f32 %v8388, 0.7
        %v8469 = vmul.f32 %v8389, 0.7
        %v8470 = vmul.f32 %v8390, 0.7
        %v8471 = vmul.f32 %v8391, 0.7
        %v8472 = vmul.f32 %v8392, 0.7
        %v8473 = vmul.f32 %v8393, 0.7
        %v8474 = vmul.f32 %v8394, 0.7
        %v8475 = vadd.f32 %v8459, 0.0
        %v8476 = vadd.f32 %v8460, 0.0
        %v8477 = vadd.f32 %v8461, 0.0
        %v8478 = vadd.f32 %v8462, 0.0
        %v8479 = vadd.f32 %v8463, 0.0
        %v8480 = vadd.f32 %v8464, 0.0
        %v8481 = vadd.f32 %v8465, 0.0
        %v8482 = vadd.f32 %v8466, 0.0
        %v8483 = vadd.f32 %v8467, 0.0
        %v8484 = vadd.f32 %v8468, 0.0
        %v8485 = vadd.f32 %v8469, 0.0
        %v8486 = vadd.f32 %v8470, 0.0
        %v8487 = vadd.f32 %v8471, 0.0
        %v8488 = vadd.f32 %v8472, 0.0
        %v8489 = vadd.f32 %v8473, 0.0
        %v8490 = vadd.f32 %v8474, 0.0
        %v8491 = vmul.f32 %v8379, 0.4
        %v8492 = vmul.f32 %v8380, 0.4
        %v8493 = vmul.f32 %v8381, 0.4
        %v8494 = vmul.f32 %v8382, 0.4
        %v8495 = vmul.f32 %v8383, 0.4
        %v8496 = vmul.f32 %v8384, 0.4
        %v8497 = vmul.f32 %v8385, 0.4
        %v8498 = vmul.f32 %v8386, 0.4
        %v8499 = vmul.f32 %v8387, 0.4
        %v8500 = vmul.f32 %v8388, 0.4
        %v8501 = vmul.f32 %v8389, 0.4
        %v8502 = vmul.f32 %v8390, 0.4
        %v8503 = vmul.f32 %v8391, 0.4
        %v8504 = vmul.f32 %v8392, 0.4
        %v8505 = vmul.f32 %v8393, 0.4
        %v8506 = vmul.f32 %v8394, 0.4
        %v8507 = vadd.f32 %v8491, 0.8
        %v8508 = vadd.f32 %v8492, 0.8
        %v8509 = vadd.f32 %v8493, 0.8
        %v8510 = vadd.f32 %v8494, 0.8
        %v8511 = vadd.f32 %v8495, 0.8
        %v8512 = vadd.f32 %v8496, 0.8
        %v8513 = vadd.f32 %v8497, 0.8
        %v8514 = vadd.f32 %v8498, 0.8
        %v8515 = vadd.f32 %v8499, 0.8
        %v8516 = vadd.f32 %v8500, 0.8
        %v8517 = vadd.f32 %v8501, 0.8
        %v8518 = vadd.f32 %v8502, 0.8
        %v8519 = vadd.f32 %v8503, 0.8
        %v8520 = vadd.f32 %v8504, 0.8
        %v8521 = vadd.f32 %v8505, 0.8
        %v8522 = vadd.f32 %v8506, 0.8
        %v8523 = vld [vmem:[%s0] sm:$0xff]
        %v8524 = vld [vmem:[%s0 + $0x8] sm:$0xff]
        %v8525 = vsub.f32 0.0, %v8523
        %v8526 = vsub.f32 0.0, %v8524
        %8528 = vset.pattern.permute.xlu0 0
        %8529 = vperm.xlu0 %8528, %v8525
        %v8530 = vpop.permute.xlu0 %8529
        %8533 = vset.pattern.permute.xlu0 0
        %8534 = vperm.xlu0 %8533, %v8526
        %v8535 = vpop.permute.xlu0 %8534
        %v8537 = vperm.slane %v8411, 0
        %v8538 = vperm.slane %v8412, 0
        %v8539 = vperm.slane %v8413, 0
        %v8540 = vperm.slane %v8414, 0
        %v8541 = vperm.slane %v8415, 0
        %v8542 = vperm.slane %v8416, 0
        %v8543 = vperm.slane %v8417, 0
        %v8544 = vperm.slane %v8418, 0
        %v8545 = vperm.slane %v8419, 0
        %v8546 = vperm.slane %v8420, 0
        %v8547 = vperm.slane %v8421, 0
        %v8548 = vperm.slane %v8422, 0
        %v8549 = vperm.slane %v8423, 0
        %v8550 = vperm.slane %v8424, 0
        %v8551 = vperm.slane %v8425, 0
        %v8552 = vperm.slane %v8426, 0
        %v8553 = vmul.f32 %v8530, %v8537
        %v8554 = vmul.f32 %v8530, %v8538
        %v8555 = vmul.f32 %v8530, %v8539
        %v8556 = vmul.f32 %v8530, %v8540
        %v8557 = vmul.f32 %v8530, %v8541
        %v8558 = vmul.f32 %v8530, %v8542
        %v8559 = vmul.f32 %v8530, %v8543
        %v8560 = vmul.f32 %v8530, %v8544
        %v8561 = vmul.f32 %v8530, %v8545
        %v8562 = vmul.f32 %v8530, %v8546
        %v8563 = vmul.f32 %v8530, %v8547
        %v8564 = vmul.f32 %v8530, %v8548
        %v8565 = vmul.f32 %v8530, %v8549
        %v8566 = vmul.f32 %v8530, %v8550
        %v8567 = vmul.f32 %v8530, %v8551
        %v8568 = vmul.f32 %v8530, %v8552
        %v8569 = vmul.f32 %v8535, %v8537
        %v8570 = vmul.f32 %v8535, %v8538
        %v8571 = vmul.f32 %v8535, %v8539
        %v8572 = vmul.f32 %v8535, %v8540
        %v8573 = vmul.f32 %v8535, %v8541
        %v8574 = vmul.f32 %v8535, %v8542
        %v8575 = vmul.f32 %v8535, %v8543
        %v8576 = vmul.f32 %v8535, %v8544
        %v8577 = vmul.f32 %v8535, %v8545
        %v8578 = vmul.f32 %v8535, %v8546
        %v8579 = vmul.f32 %v8535, %v8547
        %v8580 = vmul.f32 %v8535, %v8548
        %v8581 = vmul.f32 %v8535, %v8549
        %v8582 = vmul.f32 %v8535, %v8550
        %v8583 = vmul.f32 %v8535, %v8551
        %v8584 = vmul.f32 %v8535, %v8552
        %v8585 = vmul.f32 %v8553, 1.442695
        %v8586 = vpow.pop %v8585
        %v8587 = vmul.f32 %v8554, 1.442695
        %v8588 = vpow.pop %v8587
        %v8589 = vmul.f32 %v8555, 1.442695
        %v8590 = vpow.pop %v8589
        %v8591 = vmul.f32 %v8556, 1.442695
        %v8592 = vpow.pop %v8591
        %v8593 = vmul.f32 %v8557, 1.442695
        %v8594 = vpow.pop %v8593
        %v8595 = vmul.f32 %v8558, 1.442695
        %v8596 = vpow.pop %v8595
        %v8597 = vmul.f32 %v8559, 1.442695
        %v8598 = vpow.pop %v8597
        %v8599 = vmul.f32 %v8560, 1.442695
        %v8600 = vpow.pop %v8599
        %v8601 = vmul.f32 %v8561, 1.442695
        %v8602 = vpow.pop %v8601
        %v8603 = vmul.f32 %v8562, 1.442695
        %v8604 = vpow.pop %v8603
        %v8605 = vmul.f32 %v8563, 1.442695
        %v8606 = vpow.pop %v8605
        %v8607 = vmul.f32 %v8564, 1.442695
        %v8608 = vpow.pop %v8607
        %v8609 = vmul.f32 %v8565, 1.442695
        %v8610 = vpow.pop %v8609
        %v8611 = vmul.f32 %v8566, 1.442695
        %v8612 = vpow.pop %v8611
        %v8613 = vmul.f32 %v8567, 1.442695
        %v8614 = vpow.pop %v8613
        %v8615 = vmul.f32 %v8568, 1.442695
        %v8616 = vpow.pop %v8615
        %v8617 = vmul.f32 %v8569, 1.442695
        %v8618 = vpow.pop %v8617
        %v8619 = vmul.f32 %v8570, 1.442695
        %v8620 = vpow.pop %v8619
        %v8621 = vmul.f32 %v8571, 1.442695
        %v8622 = vpow.pop %v8621
        %v8623 = vmul.f32 %v8572, 1.442695
        %v8624 = vpow.pop %v8623
        %v8625 = vmul.f32 %v8573, 1.442695
        %v8626 = vpow.pop %v8625
        %v8627 = vmul.f32 %v8574, 1.442695
        %v8628 = vpow.pop %v8627
        %v8629 = vmul.f32 %v8575, 1.442695
        %v8630 = vpow.pop %v8629
        %v8631 = vmul.f32 %v8576, 1.442695
        %v8632 = vpow.pop %v8631
        %v8633 = vmul.f32 %v8577, 1.442695
        %v8634 = vpow.pop %v8633
        %v8635 = vmul.f32 %v8578, 1.442695
        %v8636 = vpow.pop %v8635
        %v8637 = vmul.f32 %v8579, 1.442695
        %v8638 = vpow.pop %v8637
        %v8639 = vmul.f32 %v8580, 1.442695
        %v8640 = vpow.pop %v8639
        %v8641 = vmul.f32 %v8581, 1.442695
        %v8642 = vpow.pop %v8641
        %v8643 = vmul.f32 %v8582, 1.442695
        %v8644 = vpow.pop %v8643
        %v8645 = vmul.f32 %v8583, 1.442695
        %v8646 = vpow.pop %v8645
        %v8647 = vmul.f32 %v8584, 1.442695
        %v8648 = vpow.pop %v8647
        %v8649 = vperm.slane %v8475, 2
        %v8650 = vperm.slane %v8476, 2
        %v8651 = vperm.slane %v8477, 2
        %v8652 = vperm.slane %v8478, 2
        %v8653 = vperm.slane %v8479, 2
        %v8654 = vperm.slane %v8480, 2
        %v8655 = vperm.slane %v8481, 2
        %v8656 = vperm.slane %v8482, 2
        %v8657 = vperm.slane %v8483, 2
        %v8658 = vperm.slane %v8484, 2
        %v8659 = vperm.slane %v8485, 2
        %v8660 = vperm.slane %v8486, 2
        %v8661 = vperm.slane %v8487, 2
        %v8662 = vperm.slane %v8488, 2
        %v8663 = vperm.slane %v8489, 2
        %v8664 = vperm.slane %v8490, 2
        %v8665 = vmul.f32 %v8649, %v8586
        %v8666 = vmul.f32 %v8650, %v8588
        %v8667 = vmul.f32 %v8651, %v8590
        %v8668 = vmul.f32 %v8652, %v8592
        %v8669 = vmul.f32 %v8653, %v8594
        %v8670 = vmul.f32 %v8654, %v8596
        %v8671 = vmul.f32 %v8655, %v8598
        %v8672 = vmul.f32 %v8656, %v8600
        %v8673 = vmul.f32 %v8657, %v8602
        %v8674 = vmul.f32 %v8658, %v8604
        %v8675 = vmul.f32 %v8659, %v8606
        %v8676 = vmul.f32 %v8660, %v8608
        %v8677 = vmul.f32 %v8661, %v8610
        %v8678 = vmul.f32 %v8662, %v8612
        %v8679 = vmul.f32 %v8663, %v8614
        %v8680 = vmul.f32 %v8664, %v8616
        %v8681 = vmul.f32 %v8649, %v8618
        %v8682 = vmul.f32 %v8650, %v8620
        %v8683 = vmul.f32 %v8651, %v8622
        %v8684 = vmul.f32 %v8652, %v8624
        %v8685 = vmul.f32 %v8653, %v8626
        %v8686 = vmul.f32 %v8654, %v8628
        %v8687 = vmul.f32 %v8655, %v8630
        %v8688 = vmul.f32 %v8656, %v8632
        %v8689 = vmul.f32 %v8657, %v8634
        %v8690 = vmul.f32 %v8658, %v8636
        %v8691 = vmul.f32 %v8659, %v8638
        %v8692 = vmul.f32 %v8660, %v8640
        %v8693 = vmul.f32 %v8661, %v8642
        %v8694 = vmul.f32 %v8662, %v8644
        %v8695 = vmul.f32 %v8663, %v8646
        %v8696 = vmul.f32 %v8664, %v8648
        %v8697 = vsub.f32 1.0, %v8475
        %v8698 = vsub.f32 1.0, %v8476
        %v8699 = vsub.f32 1.0, %v8477
        %v8700 = vsub.f32 1.0, %v8478
        %v8701 = vsub.f32 1.0, %v8479
        %v8702 = vsub.f32 1.0, %v8480
        %v8703 = vsub.f32 1.0, %v8481
        %v8704 = vsub.f32 1.0, %v8482
        %v8705 = vsub.f32 1.0, %v8483
        %v8706 = vsub.f32 1.0, %v8484
        %v8707 = vsub.f32 1.0, %v8485
        %v8708 = vsub.f32 1.0, %v8486
        %v8709 = vsub.f32 1.0, %v8487
        %v8710 = vsub.f32 1.0, %v8488
        %v8711 = vsub.f32 1.0, %v8489
        %v8712 = vsub.f32 1.0, %v8490
        %v8713 = vperm.slane %v8443, 1
        %v8714 = vperm.slane %v8444, 1
        %v8715 = vperm.slane %v8445, 1
        %v8716 = vperm.slane %v8446, 1
        %v8717 = vperm.slane %v8447, 1
        %v8718 = vperm.slane %v8448, 1
        %v8719 = vperm.slane %v8449, 1
        %v8720 = vperm.slane %v8450, 1
        %v8721 = vperm.slane %v8451, 1
        %v8722 = vperm.slane %v8452, 1
        %v8723 = vperm.slane %v8453, 1
        %v8724 = vperm.slane %v8454, 1
        %v8725 = vperm.slane %v8455, 1
        %v8726 = vperm.slane %v8456, 1
        %v8727 = vperm.slane %v8457, 1
        %v8728 = vperm.slane %v8458, 1
        %v8729 = vmul.f32 %v8530, %v8713
        %v8730 = vmul.f32 %v8530, %v8714
        %v8731 = vmul.f32 %v8530, %v8715
        %v8732 = vmul.f32 %v8530, %v8716
        %v8733 = vmul.f32 %v8530, %v8717
        %v8734 = vmul.f32 %v8530, %v8718
        %v8735 = vmul.f32 %v8530, %v8719
        %v8736 = vmul.f32 %v8530, %v8720
        %v8737 = vmul.f32 %v8530, %v8721
        %v8738 = vmul.f32 %v8530, %v8722
        %v8739 = vmul.f32 %v8530, %v8723
        %v8740 = vmul.f32 %v8530, %v8724
        %v8741 = vmul.f32 %v8530, %v8725
        %v8742 = vmul.f32 %v8530, %v8726
        %v8743 = vmul.f32 %v8530, %v8727
        %v8744 = vmul.f32 %v8530, %v8728
        %v8745 = vmul.f32 %v8535, %v8713
        %v8746 = vmul.f32 %v8535, %v8714
        %v8747 = vmul.f32 %v8535, %v8715
        %v8748 = vmul.f32 %v8535, %v8716
        %v8749 = vmul.f32 %v8535, %v8717
        %v8750 = vmul.f32 %v8535, %v8718
        %v8751 = vmul.f32 %v8535, %v8719
        %v8752 = vmul.f32 %v8535, %v8720
        %v8753 = vmul.f32 %v8535, %v8721
        %v8754 = vmul.f32 %v8535, %v8722
        %v8755 = vmul.f32 %v8535, %v8723
        %v8756 = vmul.f32 %v8535, %v8724
        %v8757 = vmul.f32 %v8535, %v8725
        %v8758 = vmul.f32 %v8535, %v8726
        %v8759 = vmul.f32 %v8535, %v8727
        %v8760 = vmul.f32 %v8535, %v8728
        %v8761 = vmul.f32 %v8729, 1.442695
        %v8762 = vpow.pop %v8761
        %v8763 = vmul.f32 %v8730, 1.442695
        %v8764 = vpow.pop %v8763
        %v8765 = vmul.f32 %v8731, 1.442695
        %v8766 = vpow.pop %v8765
        %v8767 = vmul.f32 %v8732, 1.442695
        %v8768 = vpow.pop %v8767
        %v8769 = vmul.f32 %v8733, 1.442695
        %v8770 = vpow.pop %v8769
        %v8771 = vmul.f32 %v8734, 1.442695
        %v8772 = vpow.pop %v8771
        %v8773 = vmul.f32 %v8735, 1.442695
        %v8774 = vpow.pop %v8773
        %v8775 = vmul.f32 %v8736, 1.442695
        %v8776 = vpow.pop %v8775
        %v8777 = vmul.f32 %v8737, 1.442695
        %v8778 = vpow.pop %v8777
        %v8779 = vmul.f32 %v8738, 1.442695
        %v8780 = vpow.pop %v8779
        %v8781 = vmul.f32 %v8739, 1.442695
        %v8782 = vpow.pop %v8781
        %v8783 = vmul.f32 %v8740, 1.442695
        %v8784 = vpow.pop %v8783
        %v8785 = vmul.f32 %v8741, 1.442695
        %v8786 = vpow.pop %v8785
        %v8787 = vmul.f32 %v8742, 1.442695
        %v8788 = vpow.pop %v8787
        %v8789 = vmul.f32 %v8743, 1.442695
        %v8790 = vpow.pop %v8789
        %v8791 = vmul.f32 %v8744, 1.442695
        %v8792 = vpow.pop %v8791
        %v8793 = vmul.f32 %v8745, 1.442695
        %v8794 = vpow.pop %v8793
        %v8795 = vmul.f32 %v8746, 1.442695
        %v8796 = vpow.pop %v8795
        %v8797 = vmul.f32 %v8747, 1.442695
        %v8798 = vpow.pop %v8797
        %v8799 = vmul.f32 %v8748, 1.442695
        %v8800 = vpow.pop %v8799
        %v8801 = vmul.f32 %v8749, 1.442695
        %v8802 = vpow.pop %v8801
        %v8803 = vmul.f32 %v8750, 1.442695
        %v8804 = vpow.pop %v8803
        %v8805 = vmul.f32 %v8751, 1.442695
        %v8806 = vpow.pop %v8805
        %v8807 = vmul.f32 %v8752, 1.442695
        %v8808 = vpow.pop %v8807
        %v8809 = vmul.f32 %v8753, 1.442695
        %v8810 = vpow.pop %v8809
        %v8811 = vmul.f32 %v8754, 1.442695
        %v8812 = vpow.pop %v8811
        %v8813 = vmul.f32 %v8755, 1.442695
        %v8814 = vpow.pop %v8813
        %v8815 = vmul.f32 %v8756, 1.442695
        %v8816 = vpow.pop %v8815
        %v8817 = vmul.f32 %v8757, 1.442695
        %v8818 = vpow.pop %v8817
        %v8819 = vmul.f32 %v8758, 1.442695
        %v8820 = vpow.pop %v8819
        %v8821 = vmul.f32 %v8759, 1.442695
        %v8822 = vpow.pop %v8821
        %v8823 = vmul.f32 %v8760, 1.442695
        %v8824 = vpow.pop %v8823
        %v8825 = vperm.slane %v8697, 2
        %v8826 = vperm.slane %v8698, 2
        %v8827 = vperm.slane %v8699, 2
        %v8828 = vperm.slane %v8700, 2
        %v8829 = vperm.slane %v8701, 2
        %v8830 = vperm.slane %v8702, 2
        %v8831 = vperm.slane %v8703, 2
        %v8832 = vperm.slane %v8704, 2
        %v8833 = vperm.slane %v8705, 2
        %v8834 = vperm.slane %v8706, 2
        %v8835 = vperm.slane %v8707, 2
        %v8836 = vperm.slane %v8708, 2
        %v8837 = vperm.slane %v8709, 2
        %v8838 = vperm.slane %v8710, 2
        %v8839 = vperm.slane %v8711, 2
        %v8840 = vperm.slane %v8712, 2
        %v8841 = vmul.f32 %v8825, %v8762
        %v8842 = vmul.f32 %v8826, %v8764
        %v8843 = vmul.f32 %v8827, %v8766
        %v8844 = vmul.f32 %v8828, %v8768
        %v8845 = vmul.f32 %v8829, %v8770
        %v8846 = vmul.f32 %v8830, %v8772
        %v8847 = vmul.f32 %v8831, %v8774
        %v8848 = vmul.f32 %v8832, %v8776
        %v8849 = vmul.f32 %v8833, %v8778
        %v8850 = vmul.f32 %v8834, %v8780
        %v8851 = vmul.f32 %v8835, %v8782
        %v8852 = vmul.f32 %v8836, %v8784
        %v8853 = vmul.f32 %v8837, %v8786
        %v8854 = vmul.f32 %v8838, %v8788
        %v8855 = vmul.f32 %v8839, %v8790
        %v8856 = vmul.f32 %v8840, %v8792
        %v8857 = vmul.f32 %v8825, %v8794
        %v8858 = vmul.f32 %v8826, %v8796
        %v8859 = vmul.f32 %v8827, %v8798
        %v8860 = vmul.f32 %v8828, %v8800
        %v8861 = vmul.f32 %v8829, %v8802
        %v8862 = vmul.f32 %v8830, %v8804
        %v8863 = vmul.f32 %v8831, %v8806
        %v8864 = vmul.f32 %v8832, %v8808
        %v8865 = vmul.f32 %v8833, %v8810
        %v8866 = vmul.f32 %v8834, %v8812
        %v8867 = vmul.f32 %v8835, %v8814
        %v8868 = vmul.f32 %v8836, %v8816
        %v8869 = vmul.f32 %v8837, %v8818
        %v8870 = vmul.f32 %v8838, %v8820
        %v8871 = vmul.f32 %v8839, %v8822
        %v8872 = vmul.f32 %v8840, %v8824
        %v8873 = vadd.f32 %v8665, %v8841
        %v8874 = vadd.f32 %v8666, %v8842
        %v8875 = vadd.f32 %v8667, %v8843
        %v8876 = vadd.f32 %v8668, %v8844
        %v8877 = vadd.f32 %v8669, %v8845
        %v8878 = vadd.f32 %v8670, %v8846
        %v8879 = vadd.f32 %v8671, %v8847
        %v8880 = vadd.f32 %v8672, %v8848
        %v8881 = vadd.f32 %v8673, %v8849
        %v8882 = vadd.f32 %v8674, %v8850
        %v8883 = vadd.f32 %v8675, %v8851
        %v8884 = vadd.f32 %v8676, %v8852
        %v8885 = vadd.f32 %v8677, %v8853
        %v8886 = vadd.f32 %v8678, %v8854
        %v8887 = vadd.f32 %v8679, %v8855
        %v8888 = vadd.f32 %v8680, %v8856
        %v8889 = vadd.f32 %v8681, %v8857
        %v8890 = vadd.f32 %v8682, %v8858
        %v8891 = vadd.f32 %v8683, %v8859
        %v8892 = vadd.f32 %v8684, %v8860
        %v8893 = vadd.f32 %v8685, %v8861
        %v8894 = vadd.f32 %v8686, %v8862
        %v8895 = vadd.f32 %v8687, %v8863
        %v8896 = vadd.f32 %v8688, %v8864
        %v8897 = vadd.f32 %v8689, %v8865
        %v8898 = vadd.f32 %v8690, %v8866
        %v8899 = vadd.f32 %v8691, %v8867
        %v8900 = vadd.f32 %v8692, %v8868
        %v8901 = vadd.f32 %v8693, %v8869
        %v8902 = vadd.f32 %v8694, %v8870
        %v8903 = vadd.f32 %v8695, %v8871
        %v8904 = vadd.f32 %v8696, %v8872
        %v8905 = vperm.slane %v8507, 3
        %v8906 = vperm.slane %v8508, 3
        %v8907 = vperm.slane %v8509, 3
        %v8908 = vperm.slane %v8510, 3
        %v8909 = vperm.slane %v8511, 3
        %v8910 = vperm.slane %v8512, 3
        %v8911 = vperm.slane %v8513, 3
        %v8912 = vperm.slane %v8514, 3
        %v8913 = vperm.slane %v8515, 3
        %v8914 = vperm.slane %v8516, 3
        %v8915 = vperm.slane %v8517, 3
        %v8916 = vperm.slane %v8518, 3
        %v8917 = vperm.slane %v8519, 3
        %v8918 = vperm.slane %v8520, 3
        %v8919 = vperm.slane %v8521, 3
        %v8920 = vperm.slane %v8522, 3
        %v8921 = vmul.f32 %v8905, %v8873
        %v8922 = vmul.f32 %v8906, %v8874
        %v8923 = vmul.f32 %v8907, %v8875
        %v8924 = vmul.f32 %v8908, %v8876
        %v8925 = vmul.f32 %v8909, %v8877
        %v8926 = vmul.f32 %v8910, %v8878
        %v8927 = vmul.f32 %v8911, %v8879
        %v8928 = vmul.f32 %v8912, %v8880
        %v8929 = vmul.f32 %v8913, %v8881
        %v8930 = vmul.f32 %v8914, %v8882
        %v8931 = vmul.f32 %v8915, %v8883
        %v8932 = vmul.f32 %v8916, %v8884
        %v8933 = vmul.f32 %v8917, %v8885
        %v8934 = vmul.f32 %v8918, %v8886
        %v8935 = vmul.f32 %v8919, %v8887
        %v8936 = vmul.f32 %v8920, %v8888
        %v8937 = vmul.f32 %v8905, %v8889
        %v8938 = vmul.f32 %v8906, %v8890
        %v8939 = vmul.f32 %v8907, %v8891
        %v8940 = vmul.f32 %v8908, %v8892
        %v8941 = vmul.f32 %v8909, %v8893
        %v8942 = vmul.f32 %v8910, %v8894
        %v8943 = vmul.f32 %v8911, %v8895
        %v8944 = vmul.f32 %v8912, %v8896
        %v8945 = vmul.f32 %v8913, %v8897
        %v8946 = vmul.f32 %v8914, %v8898
        %v8947 = vmul.f32 %v8915, %v8899
        %v8948 = vmul.f32 %v8916, %v8900
        %v8949 = vmul.f32 %v8917, %v8901
        %v8950 = vmul.f32 %v8918, %v8902
        %v8951 = vmul.f32 %v8919, %v8903
        %v8952 = vmul.f32 %v8920, %v8904
        %8953 = vst [vmem:[%s409] sm:$0xff] %v8921
        %8954 = vst [vmem:[%s409 + $0x8] sm:$0xff] %v8922
        %8955 = vst [vmem:[%s409 + $0x10] sm:$0xff] %v8923
        %8956 = vst [vmem:[%s409 + $0x18] sm:$0xff] %v8924
        %8957 = vst [vmem:[%s409 + $0x20] sm:$0xff] %v8925
        %8958 = vst [vmem:[%s409 + $0x28] sm:$0xff] %v8926
        %8959 = vst [vmem:[%s409 + $0x30] sm:$0xff] %v8927
        %8960 = vst [vmem:[%s409 + $0x38] sm:$0xff] %v8928
        %8961 = vst [vmem:[%s409 + $0x40] sm:$0xff] %v8929
        %8962 = vst [vmem:[%s409 + $0x48] sm:$0xff] %v8930
        %8963 = vst [vmem:[%s409 + $0x50] sm:$0xff] %v8931
        %8964 = vst [vmem:[%s409 + $0x58] sm:$0xff] %v8932
        %8965 = vst [vmem:[%s409 + $0x60] sm:$0xff] %v8933
        %8966 = vst [vmem:[%s409 + $0x68] sm:$0xff] %v8934
        %8967 = vst [vmem:[%s409 + $0x70] sm:$0xff] %v8935
        %8968 = vst [vmem:[%s409 + $0x78] sm:$0xff] %v8936
        %8969 = vst [vmem:[%s409 + $0x80] sm:$0xff] %v8937
        %8970 = vst [vmem:[%s409 + $0x88] sm:$0xff] %v8938
        %8971 = vst [vmem:[%s409 + $0x90] sm:$0xff] %v8939
        %8972 = vst [vmem:[%s409 + $0x98] sm:$0xff] %v8940
        %8973 = vst [vmem:[%s409 + $0xa0] sm:$0xff] %v8941
        %8974 = vst [vmem:[%s409 + $0xa8] sm:$0xff] %v8942
        %8975 = vst [vmem:[%s409 + $0xb0] sm:$0xff] %v8943
        %8976 = vst [vmem:[%s409 + $0xb8] sm:$0xff] %v8944
        %8977 = vst [vmem:[%s409 + $0xc0] sm:$0xff] %v8945
        %8978 = vst [vmem:[%s409 + $0xc8] sm:$0xff] %v8946
        %8979 = vst [vmem:[%s409 + $0xd0] sm:$0xff] %v8947
        %8980 = vst [vmem:[%s409 + $0xd8] sm:$0xff] %v8948
        %8981 = vst [vmem:[%s409 + $0xe0] sm:$0xff] %v8949
        %8982 = vst [vmem:[%s409 + $0xe8] sm:$0xff] %v8950
        %8983 = vst [vmem:[%s409 + $0xf0] sm:$0xff] %v8951
        %8984 = vst [vmem:[%s409 + $0xf8] sm:$0xff] %v8952
        %v9001 = vrot.slane %v8412, 7
        %v9002 = vrot.slane %v8413, 6
        %v9003 = vrot.slane %v8414, 5
        %v9004 = vrot.slane %v8415, 4
        %v9005 = vrot.slane %v8416, 3
        %v9006 = vrot.slane %v8417, 2
        %v9007 = vrot.slane %v8418, 1
        %v9008 = vrot.slane %v8420, 7
        %v9009 = vrot.slane %v8421, 6
        %v9010 = vrot.slane %v8422, 5
        %v9011 = vrot.slane %v8423, 4
        %v9012 = vrot.slane %v8424, 3
        %v9013 = vrot.slane %v8425, 2
        %v9014 = vrot.slane %v8426, 1
        %vm9015 = vcmask 1040384
        %v9016 = vsel %vm9015, %v8411, %v9001
        %vm9017 = vcmask 1042434
        %v9018 = vsel %vm9017, %v9002, %v9003
        %vm9019 = vcmask 1041408
        %v9020 = vsel %vm9019, %v9016, %v9018
        %vm9021 = vcmask 1044484
        %v9022 = vsel %vm9021, %v9004, %v9005
        %vm9023 = vcmask 1046534
        %v9024 = vsel %vm9023, %v9006, %v9007
        %vm9025 = vcmask 1045508
        %v9026 = vsel %vm9025, %v9022, %v9024
        %vm9027 = vcmask 1043456
        %v9028 = vsel %vm9027, %v9020, %v9026
        %v9029 = vsel %vm9015, %v8419, %v9008
        %v9030 = vsel %vm9017, %v9009, %v9010
        %v9031 = vsel %vm9019, %v9029, %v9030
        %v9032 = vsel %vm9021, %v9011, %v9012
        %v9033 = vsel %vm9023, %v9013, %v9014
        %v9034 = vsel %vm9025, %v9032, %v9033
        %v9035 = vsel %vm9027, %v9031, %v9034
        %9038 = vst [vmem:[%s423] ss:$4 sm:$0xff] %v9028
        %s9039 = scalar_lea.vmem %s423, 32
        %9040 = vst [vmem:[%s9039] ss:$4 sm:$0xff] %v9035
        %9057 = vst [vmem:[#allocation1] sm:$0xff] %v8443
        %9058 = vst [vmem:[#allocation1 + $0x9] sm:$0xff] %v8444
        %9059 = vst [vmem:[#allocation1 + $0x12] sm:$0xff] %v8445
        %9060 = vst [vmem:[#allocation1 + $0x1b] sm:$0xff] %v8446
        %9061 = vst [vmem:[#allocation1 + $0x24] sm:$0xff] %v8447
        %9062 = vst [vmem:[#allocation1 + $0x2d] sm:$0xff] %v8448
        %9063 = vst [vmem:[#allocation1 + $0x36] sm:$0xff] %v8449
        %9064 = vst [vmem:[#allocation1 + $0x3f] sm:$0xff] %v8450
        %s9065 = scalar_lea.vmem [#allocation1], 1
        %v9066 = vld [vmem:[%s9065] ss:$9 sm:$0xff]
        %9067 = vst [vmem:[#allocation1] sm:$0xff] %v8451
        %9068 = vst [vmem:[#allocation1 + $0x9] sm:$0xff] %v8452
        %9069 = vst [vmem:[#allocation1 + $0x12] sm:$0xff] %v8453
        %9070 = vst [vmem:[#allocation1 + $0x1b] sm:$0xff] %v8454
        %9071 = vst [vmem:[#allocation1 + $0x24] sm:$0xff] %v8455
        %9072 = vst [vmem:[#allocation1 + $0x2d] sm:$0xff] %v8456
        %9073 = vst [vmem:[#allocation1 + $0x36] sm:$0xff] %v8457
        %9074 = vst [vmem:[#allocation1 + $0x3f] sm:$0xff] %v8458
        %v9075 = vld [vmem:[%s9065] ss:$9 sm:$0xff]
        %s9078 = scalar_lea.vmem %s423, 1
        %9079 = vst [vmem:[%s9078] ss:$4 sm:$0xff] %v9066
        %s9080 = scalar_lea.vmem %s423, 33
        %9081 = vst [vmem:[%s9080] ss:$4 sm:$0xff] %v9075
        %9098 = vst [vmem:[#allocation1] sm:$0xff] %v8475
        %9099 = vst [vmem:[#allocation1 + $0x9] sm:$0xff] %v8476
        %9100 = vst [vmem:[#allocation1 + $0x12] sm:$0xff] %v8477
        %9101 = vst [vmem:[#allocation1 + $0x1b] sm:$0xff] %v8478
        %9102 = vst [vmem:[#allocation1 + $0x24] sm:$0xff] %v8479
        %9103 = vst [vmem:[#allocation1 + $0x2d] sm:$0xff] %v8480
        %9104 = vst [vmem:[#allocation1 + $0x36] sm:$0xff] %v8481
        %9105 = vst [vmem:[#allocation1 + $0x3f] sm:$0xff] %v8482
        %s9106 = scalar_lea.vmem [#allocation1], 2
        %v9107 = vld [vmem:[%s9106] ss:$9 sm:$0xff]
        %9108 = vst [vmem:[#allocation1] sm:$0xff] %v8483
        %9109 = vst [vmem:[#allocation1 + $0x9] sm:$0xff] %v8484
        %9110 = vst [vmem:[#allocation1 + $0x12] sm:$0xff] %v8485
        %9111 = vst [vmem:[#allocation1 + $0x1b] sm:$0xff] %v8486
        %9112 = vst [vmem:[#allocation1 + $0x24] sm:$0xff] %v8487
        %9113 = vst [vmem:[#allocation1 + $0x2d] sm:$0xff] %v8488
        %9114 = vst [vmem:[#allocation1 + $0x36] sm:$0xff] %v8489
        %9115 = vst [vmem:[#allocation1 + $0x3f] sm:$0xff] %v8490
        %v9116 = vld [vmem:[%s9106] ss:$9 sm:$0xff]
        %s9119 = scalar_lea.vmem %s423, 2
        %9120 = vst [vmem:[%s9119] ss:$4 sm:$0xff] %v9107
        %s9121 = scalar_lea.vmem %s423, 34
        %9122 = vst [vmem:[%s9121] ss:$4 sm:$0xff] %v9116
        %9139 = vst [vmem:[#allocation1] sm:$0xff] %v8507
        %9140 = vst [vmem:[#allocation1 + $0x9] sm:$0xff] %v8508
        %9141 = vst [vmem:[#allocation1 + $0x12] sm:$0xff] %v8509
        %9142 = vst [vmem:[#allocation1 + $0x1b] sm:$0xff] %v8510
        %9143 = vst [vmem:[#allocation1 + $0x24] sm:$0xff] %v8511
        %9144 = vst [vmem:[#allocation1 + $0x2d] sm:$0xff] %v8512
        %9145 = vst [vmem:[#allocation1 + $0x36] sm:$0xff] %v8513
        %9146 = vst [vmem:[#allocation1 + $0x3f] sm:$0xff] %v8514
        %s9147 = scalar_lea.vmem [#allocation1], 3
        %v9148 = vld [vmem:[%s9147] ss:$9 sm:$0xff]
        %9149 = vst [vmem:[#allocation1] sm:$0xff] %v8515
        %9150 = vst [vmem:[#allocation1 + $0x9] sm:$0xff] %v8516
        %9151 = vst [vmem:[#allocation1 + $0x12] sm:$0xff] %v8517
        %9152 = vst [vmem:[#allocation1 + $0x1b] sm:$0xff] %v8518
        %9153 = vst [vmem:[#allocation1 + $0x24] sm:$0xff] %v8519
        %9154 = vst [vmem:[#allocation1 + $0x2d] sm:$0xff] %v8520
        %9155 = vst [vmem:[#allocation1 + $0x36] sm:$0xff] %v8521
        %9156 = vst [vmem:[#allocation1 + $0x3f] sm:$0xff] %v8522
        %v9157 = vld [vmem:[%s9147] ss:$9 sm:$0xff]
        %s9160 = scalar_lea.vmem %s423, 3
        %9161 = vst [vmem:[%s9160] ss:$4 sm:$0xff] %v9148
        %s9162 = scalar_lea.vmem %s423, 35
        %9163 = vst [vmem:[%s9162] ss:$4 sm:$0xff] %v9157
        %s9164 = sand.u32 %s202, 1
        %s9165 = sand.u32 %s202, 1
        %s9166 = smul.addr %s9165, 256
        %s9167 = scalar_lea.vmem [#allocation3], %s9166
        %s9168 = smul.u32 16, %s21
        %p9169 = scmp.lt.s32.totalorder %s9168, 47
        %s9170 = scalar_select %p9169, %s9168, 47
        %s9171 = smul.addr %s9170, 4
        %s9172 = scalar_lea.vmem %s9, %s9171
        // Predicated region
        $region76: #{net_split_forward.1} parent=70 // pred_check
          %p9173 = pneg %p212
        $region77: #{net_split_forward.1} parent=70 // pred_check_branch
          %9175 = sbr.rel (%p9173) target = $region79
        $region78: #{net_split_forward.1} parent=70 // pred_region
          %s9176 = smul.u32 16, %s21
          %s9177 = smul.addr %s9176, 8
          %s9178 = scalar_lea.vmem %s8, %s9177
          // Predicated region
          $region80: #{net_split_forward.1} parent=78 // pred_check
            _
          $region81: #{net_split_forward.1} parent=78 // pred_check_branch
            %9180 = sbr.rel (0) target = $region83
          $region82: #{net_split_forward.1} parent=78 // pred_region
            // Predicated region
            $region84: #{net_split_forward.1} parent=82 // pred_check
              _
            $region85: #{net_split_forward.1} parent=82 // pred_check_branch
              %9182 = sbr.rel (0) target = $region87
            $region86: #{net_split_forward.1} parent=82 // pred_region
              loop: start=0, step=1, limit=1
              $region88: #{net_split_forward.1} parent=86 // loop_pre_header
                _
              $region89: #{net_split_forward.1} parent=86 // loop_header
                %s9184 = sphi 0, %s9188
                %p9185 = scmp.ge.s32.totalorder %s9184, 1
                %s9189 = sphi %s9167, %s9167
                %s9190 = sphi %s9178, %s9178
              $region90: #{net_split_forward.1} parent=86 // loop_header_branch
                %9187 = sbr.rel (%p9185) target = $region94
              $region91: #{net_split_forward.1} parent=86 // loop_body
                %v9191 = vld [vmem:[%s9189] sm:$0xff]
                %9192 = vst [vmem:[%s9190] sm:$0xff] %v9191
                %v9193 = vld [vmem:[%s9189 + $0x8] sm:$0xff]
                %9194 = vst [vmem:[%s9190 + $0x8] sm:$0xff] %v9193
                %v9195 = vld [vmem:[%s9189 + $0x10] sm:$0xff]
                %9196 = vst [vmem:[%s9190 + $0x10] sm:$0xff] %v9195
                %v9197 = vld [vmem:[%s9189 + $0x18] sm:$0xff]
                %9198 = vst [vmem:[%s9190 + $0x18] sm:$0xff] %v9197
                %v9199 = vld [vmem:[%s9189 + $0x20] sm:$0xff]
                %9200 = vst [vmem:[%s9190 + $0x20] sm:$0xff] %v9199
                %v9201 = vld [vmem:[%s9189 + $0x28] sm:$0xff]
                %9202 = vst [vmem:[%s9190 + $0x28] sm:$0xff] %v9201
                %v9203 = vld [vmem:[%s9189 + $0x30] sm:$0xff]
                %9204 = vst [vmem:[%s9190 + $0x30] sm:$0xff] %v9203
                %v9205 = vld [vmem:[%s9189 + $0x38] sm:$0xff]
                %9206 = vst [vmem:[%s9190 + $0x38] sm:$0xff] %v9205
                %v9207 = vld [vmem:[%s9189 + $0x40] sm:$0xff]
                %9208 = vst [vmem:[%s9190 + $0x40] sm:$0xff] %v9207
                %v9209 = vld [vmem:[%s9189 + $0x48] sm:$0xff]
                %9210 = vst [vmem:[%s9190 + $0x48] sm:$0xff] %v9209
                %v9211 = vld [vmem:[%s9189 + $0x50] sm:$0xff]
                %9212 = vst [vmem:[%s9190 + $0x50] sm:$0xff] %v9211
                %v9213 = vld [vmem:[%s9189 + $0x58] sm:$0xff]
                %9214 = vst [vmem:[%s9190 + $0x58] sm:$0xff] %v9213
                %v9215 = vld [vmem:[%s9189 + $0x60] sm:$0xff]
                %9216 = vst [vmem:[%s9190 + $0x60] sm:$0xff] %v9215
                %v9217 = vld [vmem:[%s9189 + $0x68] sm:$0xff]
                %9218 = vst [vmem:[%s9190 + $0x68] sm:$0xff] %v9217
                %v9219 = vld [vmem:[%s9189 + $0x70] sm:$0xff]
                %9220 = vst [vmem:[%s9190 + $0x70] sm:$0xff] %v9219
                %v9221 = vld [vmem:[%s9189 + $0x78] sm:$0xff]
                %9222 = vst [vmem:[%s9190 + $0x78] sm:$0xff] %v9221
                %v9223 = vld [vmem:[%s9189 + $0x80] sm:$0xff]
                %9224 = vst [vmem:[%s9190 + $0x180] sm:$0xff] %v9223
                %v9225 = vld [vmem:[%s9189 + $0x88] sm:$0xff]
                %9226 = vst [vmem:[%s9190 + $0x188] sm:$0xff] %v9225
                %v9227 = vld [vmem:[%s9189 + $0x90] sm:$0xff]
                %9228 = vst [vmem:[%s9190 + $0x190] sm:$0xff] %v9227
                %v9229 = vld [vmem:[%s9189 + $0x98] sm:$0xff]
                %9230 = vst [vmem:[%s9190 + $0x198] sm:$0xff] %v9229
                %v9231 = vld [vmem:[%s9189 + $0xa0] sm:$0xff]
                %9232 = vst [vmem:[%s9190 + $0x1a0] sm:$0xff] %v9231
                %v9233 = vld [vmem:[%s9189 + $0xa8] sm:$0xff]
                %9234 = vst [vmem:[%s9190 + $0x1a8] sm:$0xff] %v9233
                %v9235 = vld [vmem:[%s9189 + $0xb0] sm:$0xff]
                %9236 = vst [vmem:[%s9190 + $0x1b0] sm:$0xff] %v9235
                %v9237 = vld [vmem:[%s9189 + $0xb8] sm:$0xff]
                %9238 = vst [vmem:[%s9190 + $0x1b8] sm:$0xff] %v9237
                %v9239 = vld [vmem:[%s9189 + $0xc0] sm:$0xff]
                %9240 = vst [vmem:[%s9190 + $0x1c0] sm:$0xff] %v9239
                %v9241 = vld [vmem:[%s9189 + $0xc8] sm:$0xff]
                %9242 = vst [vmem:[%s9190 + $0x1c8] sm:$0xff] %v9241
                %v9243 = vld [vmem:[%s9189 + $0xd0] sm:$0xff]
                %9244 = vst [vmem:[%s9190 + $0x1d0] sm:$0xff] %v9243
                %v9245 = vld [vmem:[%s9189 + $0xd8] sm:$0xff]
                %9246 = vst [vmem:[%s9190 + $0x1d8] sm:$0xff] %v9245
                %v9247 = vld [vmem:[%s9189 + $0xe0] sm:$0xff]
                %9248 = vst [vmem:[%s9190 + $0x1e0] sm:$0xff] %v9247
                %v9249 = vld [vmem:[%s9189 + $0xe8] sm:$0xff]
                %9250 = vst [vmem:[%s9190 + $0x1e8] sm:$0xff] %v9249
                %v9251 = vld [vmem:[%s9189 + $0xf0] sm:$0xff]
                %9252 = vst [vmem:[%s9190 + $0x1f0] sm:$0xff] %v9251
                %v9253 = vld [vmem:[%s9189 + $0xf8] sm:$0xff]
                %9254 = vst [vmem:[%s9190 + $0x1f8] sm:$0xff] %v9253
              $region92: #{net_split_forward.1} parent=86 // loop_footer
                %s9188 = sadd.s32 1, %s9184
              $region93: #{net_split_forward.1} parent=86 // loop_footer_branch
                %9183 = sbr.rel target = $region89
              $region94: #{net_split_forward.1} parent=86 // loop_exit
                _
            $region87: #{net_split_forward.1} parent=82 // pred_fallthru
              _
            // Predicated region
            $region95: #{net_split_forward.1} parent=82 // pred_check
              _
            $region96: #{net_split_forward.1} parent=82 // pred_check_branch
              %9256 = sbr.rel target = $region98
            $region97: #{net_split_forward.1} parent=82 // pred_region
              _
            $region98: #{net_split_forward.1} parent=82 // pred_fallthru
              _
          $region83: #{net_split_forward.1} parent=78 // pred_fallthru
            _
          %9257 = vnop
        $region79: #{net_split_forward.1} parent=70 // pred_fallthru
          _
        // Predicated region
        $region99: #{net_split_forward.1} parent=70 // pred_check
          %p9258 = pneg %p238
        $region100: #{net_split_forward.1} parent=70 // pred_check_branch
          %9260 = sbr.rel (%p9258) target = $region102
        $region101: #{net_split_forward.1} parent=70 // pred_region
          %s9261 = smul.u32 16, %s21
        $region102: #{net_split_forward.1} parent=70 // pred_fallthru
          _
      $region71: #{net_split_forward.1} parent=5 // pred_fallthru
        _
      %p9262 = scmp.le.s32.totalorder 2, %s16
      // Predicated region
      $region103: #{net_split_forward.1} parent=5 // pred_check
        %p9263 = pneg %p9262
      $region104: #{net_split_forward.1} parent=5 // pred_check_branch
        %9265 = sbr.rel (%p9263) target = $region106
      $region105: #{net_split_forward.1} parent=5 // pred_region
        %s9266 = ssub.s32 %s16, 2
        // Predicated region
        $region107: #{net_split_forward.1} parent=105 // pred_check
          %p9267 = pneg %p218
        $region108: #{net_split_forward.1} parent=105 // pred_check_branch
          %9269 = sbr.rel (%p9267) target = $region110
        $region109: #{net_split_forward.1} parent=105 // pred_region
          %s9270 = sand.u32 %s203, 1
          %s9271 = sand.u32 %s203, 1
          %s9272 = smul.addr %s9271, 256
          %s9273 = scalar_lea.vmem [#allocation3], %s9272
        $region110: #{net_split_forward.1} parent=105 // pred_fallthru
          _
        // Predicated region
        $region111: #{net_split_forward.1} parent=105 // pred_check
          %p9274 = pneg %p244
        $region112: #{net_split_forward.1} parent=105 // pred_check_branch
          %9276 = sbr.rel (%p9274) target = $region114
        $region113: #{net_split_forward.1} parent=105 // pred_region
          %s9277 = smul.u32 16, %s22
          %p9278 = scmp.lt.s32.totalorder %s9277, 47
          %s9279 = scalar_select %p9278, %s9277, 47
          %s9280 = smul.addr %s9279, 4
          %s9281 = scalar_lea.vmem %s9, %s9280
        $region114: #{net_split_forward.1} parent=105 // pred_fallthru
          _
      $region106: #{net_split_forward.1} parent=5 // pred_fallthru
        _
    $region6: #{net_split_forward.1} parent=1 // loop_footer
      %s20 = sadd.s32 1, %s16
    $region7: #{net_split_forward.1} parent=1 // loop_footer_branch
      %15 = sbr.rel target = $region3
    $region8: #{net_split_forward.1} parent=1 // loop_exit
      _

</llo_original>
